<compile_context>
chip_gen: v5e
topology: v5e:2x2
jax: 0.10.0
libtpu: 0.0.40
codegen_flags: <defaults>
</compile_context>

<pallas_src>
import math
from functools import partial

import numpy as np
import jax
import jax.numpy as jnp
from jax.experimental import pallas as pl
from jax.experimental.pallas import tpu as pltpu

BN_EPS = 1e-5


# ---------------------------------------------------------------------------
# Kernel 1: BN + 3x3 conv (stride 1, pad 1) + bias + ReLU (+ 2x2/2 max-pool)
# ---------------------------------------------------------------------------
def _conv_kernel(x_ref, scale_ref, shift_ref, w_ref, b_ref, o_ref,
                 xpad_ref, y_ref, y2_ref, *, H, W, Cin, Cout, pool):
    Hp, Wp = H + 2, W + 2

    # Zero only the 1-pixel border of the padded scratch (4 bulk stores); the
    # interior is fully overwritten below.  (Done every step so that it is
    # safe under "parallel" megacore sharding of the batch axis.)
    zr = jnp.zeros((1, Wp, Cin), jnp.bfloat16)
    zc = jnp.zeros((Hp, 1, Cin), jnp.bfloat16)
    xpad_ref[0:1, :, :] = zr
    xpad_ref[Hp - 1:Hp, :, :] = zr
    xpad_ref[:, 0:1, :] = zc
    xpad_ref[:, Wp - 1:Wp, :] = zc

    # BatchNorm affine (f32) + ONE bulk bf16 store of the whole interior.
    xb = x_ref[0] * scale_ref[...] + shift_ref[...]               # (H, W, Cin)
    xpad_ref[1:1 + H, 1:1 + W, :] = xb.astype(jnp.bfloat16)

    # 3x3 conv = 9 shifted MXU matmuls (bf16 inputs, f32 accumulation).
    acc = jnp.zeros((H * W, Cout), jnp.float32)
    for ky in range(3):
        for kx in range(3):
            win = xpad_ref[ky:ky + H, kx:kx + W, :]               # (H, W, Cin) bf16
            acc = acc + jnp.dot(win.reshape(H * W, Cin),
                                w_ref[ky * 3 + kx],
                                preferred_element_type=jnp.float32)

    y = jnp.maximum(acc + b_ref[...], 0.0)                        # bias + ReLU

    if pool:
        # Vectorized 2x2/2 max-pool: bulk store, strided reads of the row /
        # column pairs, single full-plane output store.
        y_ref[...] = y.reshape(H, W, Cout)
        h0 = y_ref[pl.ds(0, H // 2, stride=2), :, :]              # even rows
        h1 = y_ref[pl.ds(1, H // 2, stride=2), :, :]              # odd rows
        y2_ref[...] = jnp.maximum(h0, h1)                         # (H/2, W, Cout)
        w0 = y2_ref[:, pl.ds(0, W // 2, stride=2), :]             # even cols
        w1 = y2_ref[:, pl.ds(1, W // 2, stride=2), :]             # odd cols
        o_ref[0] = jnp.maximum(w0, w1)                            # (H/2, W/2, Cout)
    else:
        o_ref[0] = y.reshape(H, W, Cout)                          # single store


def conv_block(x, scale, shift, w_taps, b, *, pool=False):
    """BN + 3x3 conv (pad 1) + bias + ReLU (+ optional 2x2/2 max-pool).

    x: (N, H, W, Cin) f32.  w_taps: (9, Cin, Cout)."""
    N, H, W, Cin = x.shape
    Cout = w_taps.shape[-1]
    Ho, Wo = (H // 2, W // 2) if pool else (H, W)

    kernel = partial(_conv_kernel, H=H, W=W, Cin=Cin, Cout=Cout, pool=pool)
    grid_spec = pltpu.PrefetchScalarGridSpec(
        num_scalar_prefetch=0,
        grid=(N,),
        in_specs=[
            pl.BlockSpec((1, H, W, Cin), lambda n: (n, 0, 0, 0)),
            pl.BlockSpec((1, Cin), lambda n: (0, 0)),
            pl.BlockSpec((1, Cin), lambda n: (0, 0)),
            pl.BlockSpec((9, Cin, Cout), lambda n: (0, 0, 0)),
            pl.BlockSpec((1, Cout), lambda n: (0, 0)),
        ],
        out_specs=pl.BlockSpec((1, Ho, Wo, Cout), lambda n: (n, 0, 0, 0)),
        scratch_shapes=[
            pltpu.VMEM((H + 2, W + 2, Cin), jnp.bfloat16),   # zero-padded BN input
            pltpu.VMEM((H, W, Cout), jnp.float32),           # pre-pool activations
            pltpu.VMEM((H // 2, W, Cout), jnp.float32),      # row-pooled activations
        ],
    )
    return pl.pallas_call(
        kernel,
        out_shape=jax.ShapeDtypeStruct((N, Ho, Wo, Cout), jnp.float32),
        grid_spec=grid_spec,
        compiler_params=pltpu.CompilerParams(
            dimension_semantics=("parallel",)),     # 2 TCs on v7x; free elsewhere
    )(x, scale.reshape(1, Cin), shift.reshape(1, Cin),
      w_taps.astype(jnp.bfloat16), b.reshape(1, Cout))


# ---------------------------------------------------------------------------
# Kernel 2: BN + bilinear x2 upsample (align_corners=True) + fused conv
#           (ct1 3x3 or ct2 1x1, folded into the interpolation matrices)
#           + bias + ReLU (+ optional channel softmax).
# Channels are fused into the width axis (columns = w*C + c), so the whole op
# is `sum_t  L[t] @ x_bn @ R[t]`, a handful of tiny MXU matmuls per sample.
# ---------------------------------------------------------------------------
def _upconv_kernel(*refs, n_taps, softmax):
    if softmax:
        (x_ref, scale_ref, shift_ref, l_ref, r_ref, b_ref, psum_ref, o_ref) = refs
    else:
        (x_ref, scale_ref, shift_ref, l_ref, r_ref, b_ref, o_ref) = refs
        psum_ref = None

    xb = x_ref[0] * scale_ref[...] + shift_ref[...]               # (H, W*Cin) f32

    acc = None
    for t in range(n_taps):
        tmp = jnp.dot(l_ref[t], xb, preferred_element_type=jnp.float32)
        term = jnp.dot(tmp, r_ref[t], preferred_element_type=jnp.float32)
        acc = term if acc is None else acc + term
    y = jnp.maximum(acc + b_ref[...], 0.0)                        # bias + ReLU

    if softmax:
        # Channel softmax on the interleaved (w*C + c) layout: subtracting the
        # per-row max is constant within each channel pair, so it is a valid
        # stabilizer; the pair-sum denominator comes from one tiny matmul with
        # kron(I_{2W}, ones(C, C)).
        m = jnp.max(y, axis=-1, keepdims=True)
        e = jnp.exp(y - m)
        denom = jnp.dot(e, psum_ref[...], preferred_element_type=jnp.float32)
        y = e / denom

    o_ref[0] = y


def upconv_block(x, scale, shift, L, R, bias, psum=None):
    """x: (N, H, W, C) -> (N, 2H, 2W, Cout).  BN -> x2 bilinear upsample
    (align_corners=True) -> conv (encoded by L/R) -> ReLU (-> softmax)."""
    N, H, W, C = x.shape
    WC = W * C
    T, twoH, _ = L.shape
    out_cols = R.shape[-1]                       # 2W * Cout
    Cout = out_cols // (2 * W)
    softmax = psum is not None

    x_flat = x.reshape(N, H, WC)
    scale_flat = jnp.tile(scale, W).reshape(1, WC)
    shift_flat = jnp.tile(shift, W).reshape(1, WC)
    bias_flat = jnp.tile(bias, 2 * W).reshape(1, out_cols)

    in_specs = [
        pl.BlockSpec((1, H, WC), lambda n: (n, 0, 0)),
        pl.BlockSpec((1, WC), lambda n: (0, 0)),
        pl.BlockSpec((1, WC), lambda n: (0, 0)),
        pl.BlockSpec((T, twoH, H), lambda n: (0, 0, 0)),
        pl.BlockSpec((T, WC, out_cols), lambda n: (0, 0, 0)),
        pl.BlockSpec((1, out_cols), lambda n: (0, 0)),
    ]
    args = [x_flat, scale_flat, shift_flat, L, R, bias_flat]
    if softmax:
        in_specs.append(pl.BlockSpec((out_cols, out_cols), lambda n: (0, 0)))
        args.append(psum)

    out = pl.pallas_call(
        partial(_upconv_kernel, n_taps=T, softmax=softmax),
        out_shape=jax.ShapeDtypeStruct((N, twoH, out_cols), jnp.float32),
        grid_spec=pltpu.PrefetchScalarGridSpec(
            num_scalar_prefetch=0,
            grid=(N,),
            in_specs=in_specs,
            out_specs=pl.BlockSpec((1, twoH, out_cols), lambda n: (n, 0, 0)),
        ),
        compiler_params=pltpu.CompilerParams(
            dimension_semantics=("parallel",)),
    )(*args)
    return out.reshape(N, twoH, 2 * W, Cout)


# ---------------------------------------------------------------------------
# Host-side matrix builders for the fused upsample+conv kernel.
# ---------------------------------------------------------------------------
def _bilinear_matrix(in_size, out_size):
    """Interpolation matrix for torch Upsample(bilinear, align_corners=True)."""
    A = np.zeros((out_size, in_size), np.float32)
    for o in range(out_size):
        src = o * (in_size - 1) / (out_size - 1)
        i0 = min(int(np.floor(src)), in_size - 1)
        i1 = min(i0 + 1, in_size - 1)
        f = np.float32(src - i0)
        A[o, i0] += 1.0 - f
        A[o, i1] += f
    return A


def _shift_matrix(n, ofs):
    """(n, n) matrix S with S[i, i+ofs] = 1 (zero-padded shift)."""
    S = np.zeros((n, n), np.float32)
    for i in range(n):
        j = i + ofs
        if 0 <= j < n:
            S[i, j] = 1.0
    return S


def build_upconv_matrices(H, W, Cin, taps, ks):
    """taps: (ks, ks, Cin, Cout) ordinary-conv taps (already flipped for a
    transpose conv).  Returns L (ks, 2H, H) and R (ks, W*Cin, 2W*Cout) such
    that  conv(upsample(x)) = sum_k L[k] @ x_flat @ R[k]  (channels fused into
    the width axis, columns = w*C + c)."""
    pad = ks // 2
    Ah = _bilinear_matrix(H, 2 * H)                              # (2H, H)
    Aw = _bilinear_matrix(W, 2 * W)                              # (2W, W)
    BT = np.kron(Aw, np.eye(Cin, dtype=np.float32)).T            # (W*Cin, 2W*Cin)
    Ls, Rs = [], []
    for ky in range(ks):
        L = _shift_matrix(2 * H, ky - pad) @ Ah                  # (2H, H), static
        Q = jnp.zeros((2 * W * Cin, 2 * W * taps.shape[-1]), jnp.float32)
        for kx in range(ks):
            Swx = _shift_matrix(2 * W, pad - kx)                 # static
            Q = Q + jnp.kron(jnp.asarray(Swx), taps[ky, kx])
        Rs.append(jnp.asarray(BT) @ Q)
        Ls.append(jnp.asarray(L))
    return jnp.stack(Ls), jnp.stack(Rs)


# ---------------------------------------------------------------------------
# Glue: BN batch stats, weight layout conversion, parameter init, forward.
# ---------------------------------------------------------------------------
def bn_scale_shift(x_nhwc, gamma, beta):
    # Training-mode BatchNorm forward: batch stats over (N, H, W), biased var.
    mean = jnp.mean(x_nhwc, axis=(0, 1, 2))
    var = jnp.var(x_nhwc, axis=(0, 1, 2))
    scale = gamma / jnp.sqrt(var + BN_EPS)
    shift = beta - mean * scale
    return scale, shift
    # TODO(synk): running_mean/running_var momentum updates (training-only side
    # effect, no impact on the forward output) are not modeled; BN statistics
    # could additionally be fused into the producing conv kernels.


def conv_w_to_taps(w):
    """PyTorch Conv2d weight (Cout, Cin, 3, 3) -> (9, Cin, Cout)."""
    return jnp.transpose(w, (2, 3, 1, 0)).reshape(9, w.shape[1], w.shape[0])


def convT_w_to_taps4d(w):
    """PyTorch ConvTranspose2d weight (Cin, Cout, k, k), stride 1 ->
    equivalent ordinary-conv taps (k, k, Cin, Cout) (spatially flipped)."""
    wf = w[:, :, ::-1, ::-1]
    return jnp.transpose(wf, (2, 3, 0, 1))


def init_params(key):
    k = jax.random.split(key, 10)

    def u(kk, shape, fan_in):
        b = 1.0 / math.sqrt(fan_in)
        return jax.random.uniform(kk, shape, jnp.float32, minval=-b, maxval=b)

    return {
        "conv1_w": u(k[0], (34, 54, 3, 3), 54 * 9), "conv1_b": u(k[1], (34,), 54 * 9),
        "conv2_w": u(k[2], (15, 34, 3, 3), 34 * 9), "conv2_b": u(k[3], (15,), 34 * 9),
        "conv3_w": u(k[4], (2, 15, 3, 3), 15 * 9),  "conv3_b": u(k[5], (2,), 15 * 9),
        "ct1_w":   u(k[6], (2, 2, 3, 3), 2 * 9),    "ct1_b":   u(k[7], (2,), 2 * 9),
        "ct2_w":   u(k[8], (2, 2, 1, 1), 2),        "ct2_b":   u(k[9], (2,), 2),
        # BatchNorm affine params (PyTorch defaults: weight=1, bias=0)
        "bn1_g": jnp.ones((54,), jnp.float32), "bn1_b": jnp.zeros((54,), jnp.float32),
        "bn2_g": jnp.ones((34,), jnp.float32), "bn2_b": jnp.zeros((34,), jnp.float32),
        "bn3_g": jnp.ones((15,), jnp.float32), "bn3_b": jnp.zeros((15,), jnp.float32),
        "bn4_g": jnp.ones((2,), jnp.float32),  "bn4_b": jnp.zeros((2,), jnp.float32),
    }


@jax.jit
def test_net_forward(params, x_nchw):
    # NCHW (PyTorch) -> NHWC (kernel layout)
    x = jnp.transpose(x_nchw, (0, 2, 3, 1)).astype(jnp.float32)

    # x = maxpool(relu(conv1(bn1(x))))
    s, t = bn_scale_shift(x, params["bn1_g"], params["bn1_b"])
    x = conv_block(x, s, t, conv_w_to_taps(params["conv1_w"]), params["conv1_b"],
                   pool=True)
    # x = maxpool(relu(conv2(bn2(x))))
    s, t = bn_scale_shift(x, params["bn2_g"], params["bn2_b"])
    x = conv_block(x, s, t, conv_w_to_taps(params["conv2_w"]), params["conv2_b"],
                   pool=True)
    # x = relu(conv3(bn3(x)))
    s, t = bn_scale_shift(x, params["bn3_g"], params["bn3_b"])
    x = conv_block(x, s, t, conv_w_to_taps(params["conv3_w"]), params["conv3_b"],
                   pool=False)

    # x = relu(ct1(up(bn4(x))))  -- ct1 fused into the upsample kernel
    s, t = bn_scale_shift(x, params["bn4_g"], params["bn4_b"])
    _, H, W, C = x.shape
    L1, R1 = build_upconv_matrices(H, W, C, convT_w_to_taps4d(params["ct1_w"]), ks=3)
    x = upconv_block(x, s, t, L1, R1, params["ct1_b"])

    # x = softmax(relu(ct2(up(bn4(x)))), dim=channels) -- fully fused
    s, t = bn_scale_shift(x, params["bn4_g"], params["bn4_b"])
    _, H, W, C = x.shape
    taps2 = convT_w_to_taps4d(params["ct2_w"])
    L2, R2 = build_upconv_matrices(H, W, C, taps2, ks=1)
    Cout2 = taps2.shape[-1]
    psum = jnp.asarray(np.kron(np.eye(2 * W, dtype=np.float32),
                               np.ones((Cout2, Cout2), np.float32)))
    x = upconv_block(x, s, t, L2, R2, params["ct2_b"], psum=psum)

    # NHWC -> NCHW
    return jnp.transpose(x, (0, 3, 1, 2))


if __name__ == "__main__":
    key = jax.random.PRNGKey(0)
    k_x, k_p = jax.random.split(key)
    params = init_params(k_p)
    # PyTorch-style NCHW input: batch=2, 54 channels, 16x16 spatial.
    x = jax.random.normal(k_x, (2, 54, 16, 16), jnp.float32)

    out = test_net_forward(params, x)
    out = jax.block_until_ready(out)

    assert out.shape == (2, 2, 16, 16), out.shape
    assert bool(jnp.all(jnp.isfinite(out)))
    assert bool(jnp.allclose(out.sum(axis=1), 1.0, atol=1e-4))  # channel softmax
    print("KERNEL_OK")
</pallas_src>

<mosaic_0001>
module attributes {stable_mosaic.version = 11 : i64} {
  func.func @_conv_kernel(%arg0: i32, %arg1: memref<1x16x16x54xf32, #tpu.memory_space<vmem>>, %arg2: memref<1x54xf32, #tpu.memory_space<vmem>>, %arg3: memref<1x54xf32, #tpu.memory_space<vmem>>, %arg4: memref<9x54x34xbf16, #tpu.memory_space<vmem>>, %arg5: memref<1x34xf32, #tpu.memory_space<vmem>>, %arg6: memref<1x8x8x34xf32, #tpu.memory_space<vmem>>, %arg7: memref<18x18x54xbf16, #tpu.memory_space<vmem>>, %arg8: memref<16x16x34xf32, #tpu.memory_space<vmem>>, %arg9: memref<8x16x34xf32, #tpu.memory_space<vmem>>) attributes {dimension_semantics = [#tpu.dimension_semantics<parallel>], iteration_bounds = array<i64: 2>, scalar_prefetch = 0 : i64, scratch_operands = 3 : i64, tpu.core_type = #tpu.core_type<tc>, window_params = [{transform_indices = @transform_0, window_bounds = array<i64: 1, 16, 16, 54>}, {pipeline_mode = #tpu.pipeline_mode<synchronous>, transform_indices = @transform_1, window_bounds = array<i64: 1, 54>}, {pipeline_mode = #tpu.pipeline_mode<synchronous>, transform_indices = @transform_2, window_bounds = array<i64: 1, 54>}, {pipeline_mode = #tpu.pipeline_mode<synchronous>, transform_indices = @transform_3, window_bounds = array<i64: 9, 54, 34>}, {pipeline_mode = #tpu.pipeline_mode<synchronous>, transform_indices = @transform_4, window_bounds = array<i64: 1, 34>}, {transform_indices = @transform_5, window_bounds = array<i64: 1, 8, 8, 34>}]} {
    %cst = arith.constant 0.000000e+00 : bf16
    %0 = vector.broadcast %cst : bf16 to vector<1x18x54xbf16>
    %cst_0 = arith.constant 0.000000e+00 : bf16
    %1 = vector.broadcast %cst_0 : bf16 to vector<18x1x54xbf16>
    %c0 = arith.constant 0 : index
    %c0_1 = arith.constant 0 : index
    %c0_2 = arith.constant 0 : index
    %2 = vector.load %arg7[%c0, %c0_1, %c0_2] : memref<18x18x54xbf16, #tpu.memory_space<vmem>>, vector<1x18x54xbf16>
    tpu.vector_store %arg7[%c0, %c0_1, %c0_2], %0 {strides = array<i32>} : memref<18x18x54xbf16, #tpu.memory_space<vmem>>, vector<1x18x54xbf16>,
    %c17 = arith.constant 17 : index
    %c0_3 = arith.constant 0 : index
    %c0_4 = arith.constant 0 : index
    %3 = vector.load %arg7[%c17, %c0_3, %c0_4] : memref<18x18x54xbf16, #tpu.memory_space<vmem>>, vector<1x18x54xbf16>
    tpu.vector_store %arg7[%c17, %c0_3, %c0_4], %0 {strides = array<i32>} : memref<18x18x54xbf16, #tpu.memory_space<vmem>>, vector<1x18x54xbf16>,
    %c0_5 = arith.constant 0 : index
    %c0_6 = arith.constant 0 : index
    %c0_7 = arith.constant 0 : index
    %4 = vector.load %arg7[%c0_5, %c0_6, %c0_7] : memref<18x18x54xbf16, #tpu.memory_space<vmem>>, vector<18x1x54xbf16>
    tpu.vector_store %arg7[%c0_5, %c0_6, %c0_7], %1 {strides = array<i32>} : memref<18x18x54xbf16, #tpu.memory_space<vmem>>, vector<18x1x54xbf16>,
    %c0_8 = arith.constant 0 : index
    %c17_9 = arith.constant 17 : index
    %c0_10 = arith.constant 0 : index
    %5 = vector.load %arg7[%c0_8, %c17_9, %c0_10] : memref<18x18x54xbf16, #tpu.memory_space<vmem>>, vector<18x1x54xbf16>
    tpu.vector_store %arg7[%c0_8, %c17_9, %c0_10], %1 {strides = array<i32>} : memref<18x18x54xbf16, #tpu.memory_space<vmem>>, vector<18x1x54xbf16>,
    %c0_11 = arith.constant 0 : index
    %c0_12 = arith.constant 0 : index
    %c0_13 = arith.constant 0 : index
    %c0_14 = arith.constant 0 : index
    %6 = vector.load %arg1[%c0_11, %c0_12, %c0_13, %c0_14] : memref<1x16x16x54xf32, #tpu.memory_space<vmem>>, vector<1x16x16x54xf32>
    %7 = vector.shape_cast %6 : vector<1x16x16x54xf32> to vector<16x16x54xf32>
    %c0_15 = arith.constant 0 : index
    %c0_16 = arith.constant 0 : index
    %8 = vector.load %arg2[%c0_15, %c0_16] : memref<1x54xf32, #tpu.memory_space<vmem>>, vector<1x54xf32>
    %9 = vector.shape_cast %8 : vector<1x54xf32> to vector<1x1x54xf32>
    %10 = vector.broadcast %9 : vector<1x1x54xf32> to vector<16x16x54xf32>
    %11 = arith.mulf %7, %10 : vector<16x16x54xf32>
    %c0_17 = arith.constant 0 : index
    %c0_18 = arith.constant 0 : index
    %12 = vector.load %arg3[%c0_17, %c0_18] : memref<1x54xf32, #tpu.memory_space<vmem>>, vector<1x54xf32>
    %13 = vector.shape_cast %12 : vector<1x54xf32> to vector<1x1x54xf32>
    %14 = vector.broadcast %13 : vector<1x1x54xf32> to vector<16x16x54xf32>
    %15 = arith.addf %11, %14 : vector<16x16x54xf32>
    %16 = arith.truncf %15 : vector<16x16x54xf32> to vector<16x16x54xbf16>
    %c1 = arith.constant 1 : index
    %c1_19 = arith.constant 1 : index
    %c0_20 = arith.constant 0 : index
    %17 = vector.load %arg7[%c1, %c1_19, %c0_20] : memref<18x18x54xbf16, #tpu.memory_space<vmem>>, vector<16x16x54xbf16>
    tpu.vector_store %arg7[%c1, %c1_19, %c0_20], %16 {strides = array<i32>} : memref<18x18x54xbf16, #tpu.memory_space<vmem>>, vector<16x16x54xbf16>,
    %cst_21 = arith.constant 0.000000e+00 : f32
    %18 = vector.broadcast %cst_21 : f32 to vector<256x34xf32>
    %c0_22 = arith.constant 0 : index
    %c0_23 = arith.constant 0 : index
    %c0_24 = arith.constant 0 : index
    %19 = vector.load %arg7[%c0_22, %c0_23, %c0_24] : memref<18x18x54xbf16, #tpu.memory_space<vmem>>, vector<16x16x54xbf16>
    %20 = vector.shape_cast %19 : vector<16x16x54xbf16> to vector<256x54xbf16>
    %c0_25 = arith.constant 0 : index
    %c0_26 = arith.constant 0 : index
    %c0_27 = arith.constant 0 : index
    %21 = vector.load %arg4[%c0_25, %c0_26, %c0_27] : memref<9x54x34xbf16, #tpu.memory_space<vmem>>, vector<1x54x34xbf16>
    %22 = vector.shape_cast %21 : vector<1x54x34xbf16> to vector<54x34xbf16>
    %cst_28 = arith.constant dense<0.000000e+00> : vector<256x34xf32>
    %23 = tpu.matmul %20, %22, %cst_28 {dimension_numbers = #tpu.dot_dimension_numbers<[1], [0], [0], [1], [0, 0, 1, 1], [], []>} : vector<256x54xbf16>, vector<54x34xbf16>, vector<256x34xf32> -> vector<256x34xf32>
    %24 = arith.addf %18, %23 : vector<256x34xf32>
    %c0_29 = arith.constant 0 : index
    %c1_30 = arith.constant 1 : index
    %c0_31 = arith.constant 0 : index
    %25 = vector.load %arg7[%c0_29, %c1_30, %c0_31] : memref<18x18x54xbf16, #tpu.memory_space<vmem>>, vector<16x16x54xbf16>
    %26 = vector.shape_cast %25 : vector<16x16x54xbf16> to vector<256x54xbf16>
    %c1_32 = arith.constant 1 : index
    %c0_33 = arith.constant 0 : index
    %c0_34 = arith.constant 0 : index
    %27 = vector.load %arg4[%c1_32, %c0_33, %c0_34] : memref<9x54x34xbf16, #tpu.memory_space<vmem>>, vector<1x54x34xbf16>
    %28 = vector.shape_cast %27 : vector<1x54x34xbf16> to vector<54x34xbf16>
    %cst_35 = arith.constant dense<0.000000e+00> : vector<256x34xf32>
    %29 = tpu.matmul %26, %28, %cst_35 {dimension_numbers = #tpu.dot_dimension_numbers<[1], [0], [0], [1], [0, 0, 1, 1], [], []>} : vector<256x54xbf16>, vector<54x34xbf16>, vector<256x34xf32> -> vector<256x34xf32>
    %30 = arith.addf %24, %29 : vector<256x34xf32>
    %c0_36 = arith.constant 0 : index
    %c2 = arith.constant 2 : index
    %c0_37 = arith.constant 0 : index
    %31 = vector.load %arg7[%c0_36, %c2, %c0_37] : memref<18x18x54xbf16, #tpu.memory_space<vmem>>, vector<16x16x54xbf16>
    %32 = vector.shape_cast %31 : vector<16x16x54xbf16> to vector<256x54xbf16>
    %c2_38 = arith.constant 2 : index
    %c0_39 = arith.constant 0 : index
    %c0_40 = arith.constant 0 : index
    %33 = vector.load %arg4[%c2_38, %c0_39, %c0_40] : memref<9x54x34xbf16, #tpu.memory_space<vmem>>, vector<1x54x34xbf16>
    %34 = vector.shape_cast %33 : vector<1x54x34xbf16> to vector<54x34xbf16>
    %cst_41 = arith.constant dense<0.000000e+00> : vector<256x34xf32>
    %35 = tpu.matmul %32, %34, %cst_41 {dimension_numbers = #tpu.dot_dimension_numbers<[1], [0], [0], [1], [0, 0, 1, 1], [], []>} : vector<256x54xbf16>, vector<54x34xbf16>, vector<256x34xf32> -> vector<256x34xf32>
    %36 = arith.addf %30, %35 : vector<256x34xf32>
    %c1_42 = arith.constant 1 : index
    %c0_43 = arith.constant 0 : index
    %c0_44 = arith.constant 0 : index
    %37 = vector.load %arg7[%c1_42, %c0_43, %c0_44] : memref<18x18x54xbf16, #tpu.memory_space<vmem>>, vector<16x16x54xbf16>
    %38 = vector.shape_cast %37 : vector<16x16x54xbf16> to vector<256x54xbf16>
    %c3 = arith.constant 3 : index
    %c0_45 = arith.constant 0 : index
    %c0_46 = arith.constant 0 : index
    %39 = vector.load %arg4[%c3, %c0_45, %c0_46] : memref<9x54x34xbf16, #tpu.memory_space<vmem>>, vector<1x54x34xbf16>
    %40 = vector.shape_cast %39 : vector<1x54x34xbf16> to vector<54x34xbf16>
    %cst_47 = arith.constant dense<0.000000e+00> : vector<256x34xf32>
    %41 = tpu.matmul %38, %40, %cst_47 {dimension_numbers = #tpu.dot_dimension_numbers<[1], [0], [0], [1], [0, 0, 1, 1], [], []>} : vector<256x54xbf16>, vector<54x34xbf16>, vector<256x34xf32> -> vector<256x34xf32>
    %42 = arith.addf %36, %41 : vector<256x34xf32>
    %c1_48 = arith.constant 1 : index
    %c1_49 = arith.constant 1 : index
    %c0_50 = arith.constant 0 : index
    %43 = vector.load %arg7[%c1_48, %c1_49, %c0_50] : memref<18x18x54xbf16, #tpu.memory_space<vmem>>, vector<16x16x54xbf16>
    %44 = vector.shape_cast %43 : vector<16x16x54xbf16> to vector<256x54xbf16>
    %c4 = arith.constant 4 : index
    %c0_51 = arith.constant 0 : index
    %c0_52 = arith.constant 0 : index
    %45 = vector.load %arg4[%c4, %c0_51, %c0_52] : memref<9x54x34xbf16, #tpu.memory_space<vmem>>, vector<1x54x34xbf16>
    %46 = vector.shape_cast %45 : vector<1x54x34xbf16> to vector<54x34xbf16>
    %cst_53 = arith.constant dense<0.000000e+00> : vector<256x34xf32>
    %47 = tpu.matmul %44, %46, %cst_53 {dimension_numbers = #tpu.dot_dimension_numbers<[1], [0], [0], [1], [0, 0, 1, 1], [], []>} : vector<256x54xbf16>, vector<54x34xbf16>, vector<256x34xf32> -> vector<256x34xf32>
    %48 = arith.addf %42, %47 : vector<256x34xf32>
    %c1_54 = arith.constant 1 : index
    %c2_55 = arith.constant 2 : index
    %c0_56 = arith.constant 0 : index
    %49 = vector.load %arg7[%c1_54, %c2_55, %c0_56] : memref<18x18x54xbf16, #tpu.memory_space<vmem>>, vector<16x16x54xbf16>
    %50 = vector.shape_cast %49 : vector<16x16x54xbf16> to vector<256x54xbf16>
    %c5 = arith.constant 5 : index
    %c0_57 = arith.constant 0 : index
    %c0_58 = arith.constant 0 : index
    %51 = vector.load %arg4[%c5, %c0_57, %c0_58] : memref<9x54x34xbf16, #tpu.memory_space<vmem>>, vector<1x54x34xbf16>
    %52 = vector.shape_cast %51 : vector<1x54x34xbf16> to vector<54x34xbf16>
    %cst_59 = arith.constant dense<0.000000e+00> : vector<256x34xf32>
    %53 = tpu.matmul %50, %52, %cst_59 {dimension_numbers = #tpu.dot_dimension_numbers<[1], [0], [0], [1], [0, 0, 1, 1], [], []>} : vector<256x54xbf16>, vector<54x34xbf16>, vector<256x34xf32> -> vector<256x34xf32>
    %54 = arith.addf %48, %53 : vector<256x34xf32>
    %c2_60 = arith.constant 2 : index
    %c0_61 = arith.constant 0 : index
    %c0_62 = arith.constant 0 : index
    %55 = vector.load %arg7[%c2_60, %c0_61, %c0_62] : memref<18x18x54xbf16, #tpu.memory_space<vmem>>, vector<16x16x54xbf16>
    %56 = vector.shape_cast %55 : vector<16x16x54xbf16> to vector<256x54xbf16>
    %c6 = arith.constant 6 : index
    %c0_63 = arith.constant 0 : index
    %c0_64 = arith.constant 0 : index
    %57 = vector.load %arg4[%c6, %c0_63, %c0_64] : memref<9x54x34xbf16, #tpu.memory_space<vmem>>, vector<1x54x34xbf16>
    %58 = vector.shape_cast %57 : vector<1x54x34xbf16> to vector<54x34xbf16>
    %cst_65 = arith.constant dense<0.000000e+00> : vector<256x34xf32>
    %59 = tpu.matmul %56, %58, %cst_65 {dimension_numbers = #tpu.dot_dimension_numbers<[1], [0], [0], [1], [0, 0, 1, 1], [], []>} : vector<256x54xbf16>, vector<54x34xbf16>, vector<256x34xf32> -> vector<256x34xf32>
    %60 = arith.addf %54, %59 : vector<256x34xf32>
    %c2_66 = arith.constant 2 : index
    %c1_67 = arith.constant 1 : index
    %c0_68 = arith.constant 0 : index
    %61 = vector.load %arg7[%c2_66, %c1_67, %c0_68] : memref<18x18x54xbf16, #tpu.memory_space<vmem>>, vector<16x16x54xbf16>
    %62 = vector.shape_cast %61 : vector<16x16x54xbf16> to vector<256x54xbf16>
    %c7 = arith.constant 7 : index
    %c0_69 = arith.constant 0 : index
    %c0_70 = arith.constant 0 : index
    %63 = vector.load %arg4[%c7, %c0_69, %c0_70] : memref<9x54x34xbf16, #tpu.memory_space<vmem>>, vector<1x54x34xbf16>
    %64 = vector.shape_cast %63 : vector<1x54x34xbf16> to vector<54x34xbf16>
    %cst_71 = arith.constant dense<0.000000e+00> : vector<256x34xf32>
    %65 = tpu.matmul %62, %64, %cst_71 {dimension_numbers = #tpu.dot_dimension_numbers<[1], [0], [0], [1], [0, 0, 1, 1], [], []>} : vector<256x54xbf16>, vector<54x34xbf16>, vector<256x34xf32> -> vector<256x34xf32>
    %66 = arith.addf %60, %65 : vector<256x34xf32>
    %c2_72 = arith.constant 2 : index
    %c2_73 = arith.constant 2 : index
    %c0_74 = arith.constant 0 : index
    %67 = vector.load %arg7[%c2_72, %c2_73, %c0_74] : memref<18x18x54xbf16, #tpu.memory_space<vmem>>, vector<16x16x54xbf16>
    %68 = vector.shape_cast %67 : vector<16x16x54xbf16> to vector<256x54xbf16>
    %c8 = arith.constant 8 : index
    %c0_75 = arith.constant 0 : index
    %c0_76 = arith.constant 0 : index
    %69 = vector.load %arg4[%c8, %c0_75, %c0_76] : memref<9x54x34xbf16, #tpu.memory_space<vmem>>, vector<1x54x34xbf16>
    %70 = vector.shape_cast %69 : vector<1x54x34xbf16> to vector<54x34xbf16>
    %cst_77 = arith.constant dense<0.000000e+00> : vector<256x34xf32>
    %71 = tpu.matmul %68, %70, %cst_77 {dimension_numbers = #tpu.dot_dimension_numbers<[1], [0], [0], [1], [0, 0, 1, 1], [], []>} : vector<256x54xbf16>, vector<54x34xbf16>, vector<256x34xf32> -> vector<256x34xf32>
    %72 = arith.addf %66, %71 : vector<256x34xf32>
    %c0_78 = arith.constant 0 : index
    %c0_79 = arith.constant 0 : index
    %73 = vector.load %arg5[%c0_78, %c0_79] : memref<1x34xf32, #tpu.memory_space<vmem>>, vector<1x34xf32>
    %74 = vector.broadcast %73 : vector<1x34xf32> to vector<256x34xf32>
    %75 = arith.addf %72, %74 : vector<256x34xf32>
    %cst_80 = arith.constant 0.000000e+00 : f32
    %76 = vector.broadcast %cst_80 : f32 to vector<256x34xf32>
    %77 = arith.maximumf %75, %76 : vector<256x34xf32>
    %78 = vector.shape_cast %77 : vector<256x34xf32> to vector<16x16x34xf32>
    %c0_81 = arith.constant 0 : index
    %c0_82 = arith.constant 0 : index
    %c0_83 = arith.constant 0 : index
    %79 = vector.load %arg8[%c0_81, %c0_82, %c0_83] : memref<16x16x34xf32, #tpu.memory_space<vmem>>, vector<16x16x34xf32>
    tpu.vector_store %arg8[%c0_81, %c0_82, %c0_83], %78 {strides = array<i32>} : memref<16x16x34xf32, #tpu.memory_space<vmem>>, vector<16x16x34xf32>,
    %c0_84 = arith.constant 0 : index
    %c0_85 = arith.constant 0 : index
    %c0_86 = arith.constant 0 : index
    %80 = tpu.strided_load %arg8[%c0_84, %c0_85, %c0_86] {strides = array<i32: 2, 1, 1>} : memref<16x16x34xf32, #tpu.memory_space<vmem>>, vector<8x16x34xf32>
    %c1_87 = arith.constant 1 : index
    %c0_88 = arith.constant 0 : index
    %c0_89 = arith.constant 0 : index
    %81 = tpu.strided_load %arg8[%c1_87, %c0_88, %c0_89] {strides = array<i32: 2, 1, 1>} : memref<16x16x34xf32, #tpu.memory_space<vmem>>, vector<8x16x34xf32>
    %82 = arith.maximumf %80, %81 : vector<8x16x34xf32>
    %c0_90 = arith.constant 0 : index
    %c0_91 = arith.constant 0 : index
    %c0_92 = arith.constant 0 : index
    %83 = vector.load %arg9[%c0_90, %c0_91, %c0_92] : memref<8x16x34xf32, #tpu.memory_space<vmem>>, vector<8x16x34xf32>
    tpu.vector_store %arg9[%c0_90, %c0_91, %c0_92], %82 {strides = array<i32>} : memref<8x16x34xf32, #tpu.memory_space<vmem>>, vector<8x16x34xf32>,
    %c0_93 = arith.constant 0 : index
    %c0_94 = arith.constant 0 : index
    %c0_95 = arith.constant 0 : index
    %84 = tpu.strided_load %arg9[%c0_93, %c0_94, %c0_95] {strides = array<i32: 1, 2, 1>} : memref<8x16x34xf32, #tpu.memory_space<vmem>>, vector<8x8x34xf32>
    %c0_96 = arith.constant 0 : index
    %c1_97 = arith.constant 1 : index
    %c0_98 = arith.constant 0 : index
    %85 = tpu.strided_load %arg9[%c0_96, %c1_97, %c0_98] {strides = array<i32: 1, 2, 1>} : memref<8x16x34xf32, #tpu.memory_space<vmem>>, vector<8x8x34xf32>
    %86 = arith.maximumf %84, %85 : vector<8x8x34xf32>
    %c0_99 = arith.constant 0 : index
    %c0_100 = arith.constant 0 : index
    %c0_101 = arith.constant 0 : index
    %c0_102 = arith.constant 0 : index
    %87 = vector.load %arg6[%c0_99, %c0_100, %c0_101, %c0_102] : memref<1x8x8x34xf32, #tpu.memory_space<vmem>>, vector<1x8x8x34xf32>
    %88 = vector.shape_cast %87 : vector<1x8x8x34xf32> to vector<8x8x34xf32>
    %89 = vector.shape_cast %86 : vector<8x8x34xf32> to vector<1x8x8x34xf32>
    tpu.vector_store %arg6[%c0_99, %c0_100, %c0_101, %c0_102], %89 {strides = array<i32>} : memref<1x8x8x34xf32, #tpu.memory_space<vmem>>, vector<1x8x8x34xf32>,
    return
  }
  func.func @transform_0(%arg0: i32) -> (i32, i32, i32, i32) {
    %c0_i32 = arith.constant 0 : i32
    %c0_i32_0 = arith.constant 0 : i32
    %c0_i32_1 = arith.constant 0 : i32
    %c0_i32_2 = arith.constant 0 : i32
    return %arg0, %c0_i32, %c0_i32_0, %c0_i32_1 : i32, i32, i32, i32
  }
  func.func @transform_1(%arg0: i32) -> (i32, i32) {
    %c0_i32 = arith.constant 0 : i32
    %c0_i32_0 = arith.constant 0 : i32
    %c0_i32_1 = arith.constant 0 : i32
    return %c0_i32, %c0_i32_0 : i32, i32
  }
  func.func @transform_2(%arg0: i32) -> (i32, i32) {
    %c0_i32 = arith.constant 0 : i32
    %c0_i32_0 = arith.constant 0 : i32
    %c0_i32_1 = arith.constant 0 : i32
    return %c0_i32, %c0_i32_0 : i32, i32
  }
  func.func @transform_3(%arg0: i32) -> (i32, i32, i32) {
    %c0_i32 = arith.constant 0 : i32
    %c0_i32_0 = arith.constant 0 : i32
    %c0_i32_1 = arith.constant 0 : i32
    %c0_i32_2 = arith.constant 0 : i32
    return %c0_i32, %c0_i32_0, %c0_i32_1 : i32, i32, i32
  }
  func.func @transform_4(%arg0: i32) -> (i32, i32) {
    %c0_i32 = arith.constant 0 : i32
    %c0_i32_0 = arith.constant 0 : i32
    %c0_i32_1 = arith.constant 0 : i32
    return %c0_i32, %c0_i32_0 : i32, i32
  }
  func.func @transform_5(%arg0: i32) -> (i32, i32, i32, i32) {
    %c0_i32 = arith.constant 0 : i32
    %c0_i32_0 = arith.constant 0 : i32
    %c0_i32_1 = arith.constant 0 : i32
    %c0_i32_2 = arith.constant 0 : i32
    return %arg0, %c0_i32, %c0_i32_0, %c0_i32_1 : i32, i32, i32, i32
  }
}

module attributes {stable_mosaic.version = 11 : i64} {
  func.func @_conv_kernel(%arg0: i32, %arg1: memref<1x8x8x34xf32, #tpu.memory_space<vmem>>, %arg2: memref<1x34xf32, #tpu.memory_space<vmem>>, %arg3: memref<1x34xf32, #tpu.memory_space<vmem>>, %arg4: memref<9x34x15xbf16, #tpu.memory_space<vmem>>, %arg5: memref<1x15xf32, #tpu.memory_space<vmem>>, %arg6: memref<1x4x4x15xf32, #tpu.memory_space<vmem>>, %arg7: memref<10x10x34xbf16, #tpu.memory_space<vmem>>, %arg8: memref<8x8x15xf32, #tpu.memory_space<vmem>>, %arg9: memref<4x8x15xf32, #tpu.memory_space<vmem>>) attributes {dimension_semantics = [#tpu.dimension_semantics<parallel>], iteration_bounds = array<i64: 2>, scalar_prefetch = 0 : i64, scratch_operands = 3 : i64, tpu.core_type = #tpu.core_type<tc>, window_params = [{transform_indices = @transform_0, window_bounds = array<i64: 1, 8, 8, 34>}, {pipeline_mode = #tpu.pipeline_mode<synchronous>, transform_indices = @transform_1, window_bounds = array<i64: 1, 34>}, {pipeline_mode = #tpu.pipeline_mode<synchronous>, transform_indices = @transform_2, window_bounds = array<i64: 1, 34>}, {pipeline_mode = #tpu.pipeline_mode<synchronous>, transform_indices = @transform_3, window_bounds = array<i64: 9, 34, 15>}, {pipeline_mode = #tpu.pipeline_mode<synchronous>, transform_indices = @transform_4, window_bounds = array<i64: 1, 15>}, {transform_indices = @transform_5, window_bounds = array<i64: 1, 4, 4, 15>}]} {
    %cst = arith.constant 0.000000e+00 : bf16
    %0 = vector.broadcast %cst : bf16 to vector<1x10x34xbf16>
    %cst_0 = arith.constant 0.000000e+00 : bf16
    %1 = vector.broadcast %cst_0 : bf16 to vector<10x1x34xbf16>
    %c0 = arith.constant 0 : index
    %c0_1 = arith.constant 0 : index
    %c0_2 = arith.constant 0 : index
    %2 = vector.load %arg7[%c0, %c0_1, %c0_2] : memref<10x10x34xbf16, #tpu.memory_space<vmem>>, vector<1x10x34xbf16>
    tpu.vector_store %arg7[%c0, %c0_1, %c0_2], %0 {strides = array<i32>} : memref<10x10x34xbf16, #tpu.memory_space<vmem>>, vector<1x10x34xbf16>,
    %c9 = arith.constant 9 : index
    %c0_3 = arith.constant 0 : index
    %c0_4 = arith.constant 0 : index
    %3 = vector.load %arg7[%c9, %c0_3, %c0_4] : memref<10x10x34xbf16, #tpu.memory_space<vmem>>, vector<1x10x34xbf16>
    tpu.vector_store %arg7[%c9, %c0_3, %c0_4], %0 {strides = array<i32>} : memref<10x10x34xbf16, #tpu.memory_space<vmem>>, vector<1x10x34xbf16>,
    %c0_5 = arith.constant 0 : index
    %c0_6 = arith.constant 0 : index
    %c0_7 = arith.constant 0 : index
    %4 = vector.load %arg7[%c0_5, %c0_6, %c0_7] : memref<10x10x34xbf16, #tpu.memory_space<vmem>>, vector<10x1x34xbf16>
    tpu.vector_store %arg7[%c0_5, %c0_6, %c0_7], %1 {strides = array<i32>} : memref<10x10x34xbf16, #tpu.memory_space<vmem>>, vector<10x1x34xbf16>,
    %c0_8 = arith.constant 0 : index
    %c9_9 = arith.constant 9 : index
    %c0_10 = arith.constant 0 : index
    %5 = vector.load %arg7[%c0_8, %c9_9, %c0_10] : memref<10x10x34xbf16, #tpu.memory_space<vmem>>, vector<10x1x34xbf16>
    tpu.vector_store %arg7[%c0_8, %c9_9, %c0_10], %1 {strides = array<i32>} : memref<10x10x34xbf16, #tpu.memory_space<vmem>>, vector<10x1x34xbf16>,
    %c0_11 = arith.constant 0 : index
    %c0_12 = arith.constant 0 : index
    %c0_13 = arith.constant 0 : index
    %c0_14 = arith.constant 0 : index
    %6 = vector.load %arg1[%c0_11, %c0_12, %c0_13, %c0_14] : memref<1x8x8x34xf32, #tpu.memory_space<vmem>>, vector<1x8x8x34xf32>
    %7 = vector.shape_cast %6 : vector<1x8x8x34xf32> to vector<8x8x34xf32>
    %c0_15 = arith.constant 0 : index
    %c0_16 = arith.constant 0 : index
    %8 = vector.load %arg2[%c0_15, %c0_16] : memref<1x34xf32, #tpu.memory_space<vmem>>, vector<1x34xf32>
    %9 = vector.shape_cast %8 : vector<1x34xf32> to vector<1x1x34xf32>
    %10 = vector.broadcast %9 : vector<1x1x34xf32> to vector<8x8x34xf32>
    %11 = arith.mulf %7, %10 : vector<8x8x34xf32>
    %c0_17 = arith.constant 0 : index
    %c0_18 = arith.constant 0 : index
    %12 = vector.load %arg3[%c0_17, %c0_18] : memref<1x34xf32, #tpu.memory_space<vmem>>, vector<1x34xf32>
    %13 = vector.shape_cast %12 : vector<1x34xf32> to vector<1x1x34xf32>
    %14 = vector.broadcast %13 : vector<1x1x34xf32> to vector<8x8x34xf32>
    %15 = arith.addf %11, %14 : vector<8x8x34xf32>
    %16 = arith.truncf %15 : vector<8x8x34xf32> to vector<8x8x34xbf16>
    %c1 = arith.constant 1 : index
    %c1_19 = arith.constant 1 : index
    %c0_20 = arith.constant 0 : index
    %17 = vector.load %arg7[%c1, %c1_19, %c0_20] : memref<10x10x34xbf16, #tpu.memory_space<vmem>>, vector<8x8x34xbf16>
    tpu.vector_store %arg7[%c1, %c1_19, %c0_20], %16 {strides = array<i32>} : memref<10x10x34xbf16, #tpu.memory_space<vmem>>, vector<8x8x34xbf16>,
    %cst_21 = arith.constant 0.000000e+00 : f32
    %18 = vector.broadcast %cst_21 : f32 to vector<64x15xf32>
    %c0_22 = arith.constant 0 : index
    %c0_23 = arith.constant 0 : index
    %c0_24 = arith.constant 0 : index
    %19 = vector.load %arg7[%c0_22, %c0_23, %c0_24] : memref<10x10x34xbf16, #tpu.memory_space<vmem>>, vector<8x8x34xbf16>
    %20 = vector.shape_cast %19 : vector<8x8x34xbf16> to vector<64x34xbf16>
    %c0_25 = arith.constant 0 : index
    %c0_26 = arith.constant 0 : index
    %c0_27 = arith.constant 0 : index
    %21 = vector.load %arg4[%c0_25, %c0_26, %c0_27] : memref<9x34x15xbf16, #tpu.memory_space<vmem>>, vector<1x34x15xbf16>
    %22 = vector.shape_cast %21 : vector<1x34x15xbf16> to vector<34x15xbf16>
    %cst_28 = arith.constant dense<0.000000e+00> : vector<64x15xf32>
    %23 = tpu.matmul %20, %22, %cst_28 {dimension_numbers = #tpu.dot_dimension_numbers<[1], [0], [0], [1], [0, 0, 1, 1], [], []>} : vector<64x34xbf16>, vector<34x15xbf16>, vector<64x15xf32> -> vector<64x15xf32>
    %24 = arith.addf %18, %23 : vector<64x15xf32>
    %c0_29 = arith.constant 0 : index
    %c1_30 = arith.constant 1 : index
    %c0_31 = arith.constant 0 : index
    %25 = vector.load %arg7[%c0_29, %c1_30, %c0_31] : memref<10x10x34xbf16, #tpu.memory_space<vmem>>, vector<8x8x34xbf16>
    %26 = vector.shape_cast %25 : vector<8x8x34xbf16> to vector<64x34xbf16>
    %c1_32 = arith.constant 1 : index
    %c0_33 = arith.constant 0 : index
    %c0_34 = arith.constant 0 : index
    %27 = vector.load %arg4[%c1_32, %c0_33, %c0_34] : memref<9x34x15xbf16, #tpu.memory_space<vmem>>, vector<1x34x15xbf16>
    %28 = vector.shape_cast %27 : vector<1x34x15xbf16> to vector<34x15xbf16>
    %cst_35 = arith.constant dense<0.000000e+00> : vector<64x15xf32>
    %29 = tpu.matmul %26, %28, %cst_35 {dimension_numbers = #tpu.dot_dimension_numbers<[1], [0], [0], [1], [0, 0, 1, 1], [], []>} : vector<64x34xbf16>, vector<34x15xbf16>, vector<64x15xf32> -> vector<64x15xf32>
    %30 = arith.addf %24, %29 : vector<64x15xf32>
    %c0_36 = arith.constant 0 : index
    %c2 = arith.constant 2 : index
    %c0_37 = arith.constant 0 : index
    %31 = vector.load %arg7[%c0_36, %c2, %c0_37] : memref<10x10x34xbf16, #tpu.memory_space<vmem>>, vector<8x8x34xbf16>
    %32 = vector.shape_cast %31 : vector<8x8x34xbf16> to vector<64x34xbf16>
    %c2_38 = arith.constant 2 : index
    %c0_39 = arith.constant 0 : index
    %c0_40 = arith.constant 0 : index
    %33 = vector.load %arg4[%c2_38, %c0_39, %c0_40] : memref<9x34x15xbf16, #tpu.memory_space<vmem>>, vector<1x34x15xbf16>
    %34 = vector.shape_cast %33 : vector<1x34x15xbf16> to vector<34x15xbf16>
    %cst_41 = arith.constant dense<0.000000e+00> : vector<64x15xf32>
    %35 = tpu.matmul %32, %34, %cst_41 {dimension_numbers = #tpu.dot_dimension_numbers<[1], [0], [0], [1], [0, 0, 1, 1], [], []>} : vector<64x34xbf16>, vector<34x15xbf16>, vector<64x15xf32> -> vector<64x15xf32>
    %36 = arith.addf %30, %35 : vector<64x15xf32>
    %c1_42 = arith.constant 1 : index
    %c0_43 = arith.constant 0 : index
    %c0_44 = arith.constant 0 : index
    %37 = vector.load %arg7[%c1_42, %c0_43, %c0_44] : memref<10x10x34xbf16, #tpu.memory_space<vmem>>, vector<8x8x34xbf16>
    %38 = vector.shape_cast %37 : vector<8x8x34xbf16> to vector<64x34xbf16>
    %c3 = arith.constant 3 : index
    %c0_45 = arith.constant 0 : index
    %c0_46 = arith.constant 0 : index
    %39 = vector.load %arg4[%c3, %c0_45, %c0_46] : memref<9x34x15xbf16, #tpu.memory_space<vmem>>, vector<1x34x15xbf16>
    %40 = vector.shape_cast %39 : vector<1x34x15xbf16> to vector<34x15xbf16>
    %cst_47 = arith.constant dense<0.000000e+00> : vector<64x15xf32>
    %41 = tpu.matmul %38, %40, %cst_47 {dimension_numbers = #tpu.dot_dimension_numbers<[1], [0], [0], [1], [0, 0, 1, 1], [], []>} : vector<64x34xbf16>, vector<34x15xbf16>, vector<64x15xf32> -> vector<64x15xf32>
    %42 = arith.addf %36, %41 : vector<64x15xf32>
    %c1_48 = arith.constant 1 : index
    %c1_49 = arith.constant 1 : index
    %c0_50 = arith.constant 0 : index
    %43 = vector.load %arg7[%c1_48, %c1_49, %c0_50] : memref<10x10x34xbf16, #tpu.memory_space<vmem>>, vector<8x8x34xbf16>
    %44 = vector.shape_cast %43 : vector<8x8x34xbf16> to vector<64x34xbf16>
    %c4 = arith.constant 4 : index
    %c0_51 = arith.constant 0 : index
    %c0_52 = arith.constant 0 : index
    %45 = vector.load %arg4[%c4, %c0_51, %c0_52] : memref<9x34x15xbf16, #tpu.memory_space<vmem>>, vector<1x34x15xbf16>
    %46 = vector.shape_cast %45 : vector<1x34x15xbf16> to vector<34x15xbf16>
    %cst_53 = arith.constant dense<0.000000e+00> : vector<64x15xf32>
    %47 = tpu.matmul %44, %46, %cst_53 {dimension_numbers = #tpu.dot_dimension_numbers<[1], [0], [0], [1], [0, 0, 1, 1], [], []>} : vector<64x34xbf16>, vector<34x15xbf16>, vector<64x15xf32> -> vector<64x15xf32>
    %48 = arith.addf %42, %47 : vector<64x15xf32>
    %c1_54 = arith.constant 1 : index
    %c2_55 = arith.constant 2 : index
    %c0_56 = arith.constant 0 : index
    %49 = vector.load %arg7[%c1_54, %c2_55, %c0_56] : memref<10x10x34xbf16, #tpu.memory_space<vmem>>, vector<8x8x34xbf16>
    %50 = vector.shape_cast %49 : vector<8x8x34xbf16> to vector<64x34xbf16>
    %c5 = arith.constant 5 : index
    %c0_57 = arith.constant 0 : index
    %c0_58 = arith.constant 0 : index
    %51 = vector.load %arg4[%c5, %c0_57, %c0_58] : memref<9x34x15xbf16, #tpu.memory_space<vmem>>, vector<1x34x15xbf16>
    %52 = vector.shape_cast %51 : vector<1x34x15xbf16> to vector<34x15xbf16>
    %cst_59 = arith.constant dense<0.000000e+00> : vector<64x15xf32>
    %53 = tpu.matmul %50, %52, %cst_59 {dimension_numbers = #tpu.dot_dimension_numbers<[1], [0], [0], [1], [0, 0, 1, 1], [], []>} : vector<64x34xbf16>, vector<34x15xbf16>, vector<64x15xf32> -> vector<64x15xf32>
    %54 = arith.addf %48, %53 : vector<64x15xf32>
    %c2_60 = arith.constant 2 : index
    %c0_61 = arith.constant 0 : index
    %c0_62 = arith.constant 0 : index
    %55 = vector.load %arg7[%c2_60, %c0_61, %c0_62] : memref<10x10x34xbf16, #tpu.memory_space<vmem>>, vector<8x8x34xbf16>
    %56 = vector.shape_cast %55 : vector<8x8x34xbf16> to vector<64x34xbf16>
    %c6 = arith.constant 6 : index
    %c0_63 = arith.constant 0 : index
    %c0_64 = arith.constant 0 : index
    %57 = vector.load %arg4[%c6, %c0_63, %c0_64] : memref<9x34x15xbf16, #tpu.memory_space<vmem>>, vector<1x34x15xbf16>
    %58 = vector.shape_cast %57 : vector<1x34x15xbf16> to vector<34x15xbf16>
    %cst_65 = arith.constant dense<0.000000e+00> : vector<64x15xf32>
    %59 = tpu.matmul %56, %58, %cst_65 {dimension_numbers = #tpu.dot_dimension_numbers<[1], [0], [0], [1], [0, 0, 1, 1], [], []>} : vector<64x34xbf16>, vector<34x15xbf16>, vector<64x15xf32> -> vector<64x15xf32>
    %60 = arith.addf %54, %59 : vector<64x15xf32>
    %c2_66 = arith.constant 2 : index
    %c1_67 = arith.constant 1 : index
    %c0_68 = arith.constant 0 : index
    %61 = vector.load %arg7[%c2_66, %c1_67, %c0_68] : memref<10x10x34xbf16, #tpu.memory_space<vmem>>, vector<8x8x34xbf16>
    %62 = vector.shape_cast %61 : vector<8x8x34xbf16> to vector<64x34xbf16>
    %c7 = arith.constant 7 : index
    %c0_69 = arith.constant 0 : index
    %c0_70 = arith.constant 0 : index
    %63 = vector.load %arg4[%c7, %c0_69, %c0_70] : memref<9x34x15xbf16, #tpu.memory_space<vmem>>, vector<1x34x15xbf16>
    %64 = vector.shape_cast %63 : vector<1x34x15xbf16> to vector<34x15xbf16>
    %cst_71 = arith.constant dense<0.000000e+00> : vector<64x15xf32>
    %65 = tpu.matmul %62, %64, %cst_71 {dimension_numbers = #tpu.dot_dimension_numbers<[1], [0], [0], [1], [0, 0, 1, 1], [], []>} : vector<64x34xbf16>, vector<34x15xbf16>, vector<64x15xf32> -> vector<64x15xf32>
    %66 = arith.addf %60, %65 : vector<64x15xf32>
    %c2_72 = arith.constant 2 : index
    %c2_73 = arith.constant 2 : index
    %c0_74 = arith.constant 0 : index
    %67 = vector.load %arg7[%c2_72, %c2_73, %c0_74] : memref<10x10x34xbf16, #tpu.memory_space<vmem>>, vector<8x8x34xbf16>
    %68 = vector.shape_cast %67 : vector<8x8x34xbf16> to vector<64x34xbf16>
    %c8 = arith.constant 8 : index
    %c0_75 = arith.constant 0 : index
    %c0_76 = arith.constant 0 : index
    %69 = vector.load %arg4[%c8, %c0_75, %c0_76] : memref<9x34x15xbf16, #tpu.memory_space<vmem>>, vector<1x34x15xbf16>
    %70 = vector.shape_cast %69 : vector<1x34x15xbf16> to vector<34x15xbf16>
    %cst_77 = arith.constant dense<0.000000e+00> : vector<64x15xf32>
    %71 = tpu.matmul %68, %70, %cst_77 {dimension_numbers = #tpu.dot_dimension_numbers<[1], [0], [0], [1], [0, 0, 1, 1], [], []>} : vector<64x34xbf16>, vector<34x15xbf16>, vector<64x15xf32> -> vector<64x15xf32>
    %72 = arith.addf %66, %71 : vector<64x15xf32>
    %c0_78 = arith.constant 0 : index
    %c0_79 = arith.constant 0 : index
    %73 = vector.load %arg5[%c0_78, %c0_79] : memref<1x15xf32, #tpu.memory_space<vmem>>, vector<1x15xf32>
    %74 = vector.broadcast %73 : vector<1x15xf32> to vector<64x15xf32>
    %75 = arith.addf %72, %74 : vector<64x15xf32>
    %cst_80 = arith.constant 0.000000e+00 : f32
    %76 = vector.broadcast %cst_80 : f32 to vector<64x15xf32>
    %77 = arith.maximumf %75, %76 : vector<64x15xf32>
    %78 = vector.shape_cast %77 : vector<64x15xf32> to vector<8x8x15xf32>
    %c0_81 = arith.constant 0 : index
    %c0_82 = arith.constant 0 : index
    %c0_83 = arith.constant 0 : index
    %79 = vector.load %arg8[%c0_81, %c0_82, %c0_83] : memref<8x8x15xf32, #tpu.memory_space<vmem>>, vector<8x8x15xf32>
    tpu.vector_store %arg8[%c0_81, %c0_82, %c0_83], %78 {strides = array<i32>} : memref<8x8x15xf32, #tpu.memory_space<vmem>>, vector<8x8x15xf32>,
    %c0_84 = arith.constant 0 : index
    %c0_85 = arith.constant 0 : index
    %c0_86 = arith.constant 0 : index
    %80 = tpu.strided_load %arg8[%c0_84, %c0_85, %c0_86] {strides = array<i32: 2, 1, 1>} : memref<8x8x15xf32, #tpu.memory_space<vmem>>, vector<4x8x15xf32>
    %c1_87 = arith.constant 1 : index
    %c0_88 = arith.constant 0 : index
    %c0_89 = arith.constant 0 : index
    %81 = tpu.strided_load %arg8[%c1_87, %c0_88, %c0_89] {strides = array<i32: 2, 1, 1>} : memref<8x8x15xf32, #tpu.memory_space<vmem>>, vector<4x8x15xf32>
    %82 = arith.maximumf %80, %81 : vector<4x8x15xf32>
    %c0_90 = arith.constant 0 : index
    %c0_91 = arith.constant 0 : index
    %c0_92 = arith.constant 0 : index
    %83 = vector.load %arg9[%c0_90, %c0_91, %c0_92] : memref<4x8x15xf32, #tpu.memory_space<vmem>>, vector<4x8x15xf32>
    tpu.vector_store %arg9[%c0_90, %c0_91, %c0_92], %82 {strides = array<i32>} : memref<4x8x15xf32, #tpu.memory_space<vmem>>, vector<4x8x15xf32>,
    %c0_93 = arith.constant 0 : index
    %c0_94 = arith.constant 0 : index
    %c0_95 = arith.constant 0 : index
    %84 = tpu.strided_load %arg9[%c0_93, %c0_94, %c0_95] {strides = array<i32: 1, 2, 1>} : memref<4x8x15xf32, #tpu.memory_space<vmem>>, vector<4x4x15xf32>
    %c0_96 = arith.constant 0 : index
    %c1_97 = arith.constant 1 : index
    %c0_98 = arith.constant 0 : index
    %85 = tpu.strided_load %arg9[%c0_96, %c1_97, %c0_98] {strides = array<i32: 1, 2, 1>} : memref<4x8x15xf32, #tpu.memory_space<vmem>>, vector<4x4x15xf32>
    %86 = arith.maximumf %84, %85 : vector<4x4x15xf32>
    %c0_99 = arith.constant 0 : index
    %c0_100 = arith.constant 0 : index
    %c0_101 = arith.constant 0 : index
    %c0_102 = arith.constant 0 : index
    %87 = vector.load %arg6[%c0_99, %c0_100, %c0_101, %c0_102] : memref<1x4x4x15xf32, #tpu.memory_space<vmem>>, vector<1x4x4x15xf32>
    %88 = vector.shape_cast %87 : vector<1x4x4x15xf32> to vector<4x4x15xf32>
    %89 = vector.shape_cast %86 : vector<4x4x15xf32> to vector<1x4x4x15xf32>
    tpu.vector_store %arg6[%c0_99, %c0_100, %c0_101, %c0_102], %89 {strides = array<i32>} : memref<1x4x4x15xf32, #tpu.memory_space<vmem>>, vector<1x4x4x15xf32>,
    return
  }
  func.func @transform_0(%arg0: i32) -> (i32, i32, i32, i32) {
    %c0_i32 = arith.constant 0 : i32
    %c0_i32_0 = arith.constant 0 : i32
    %c0_i32_1 = arith.constant 0 : i32
    %c0_i32_2 = arith.constant 0 : i32
    return %arg0, %c0_i32, %c0_i32_0, %c0_i32_1 : i32, i32, i32, i32
  }
  func.func @transform_1(%arg0: i32) -> (i32, i32) {
    %c0_i32 = arith.constant 0 : i32
    %c0_i32_0 = arith.constant 0 : i32
    %c0_i32_1 = arith.constant 0 : i32
    return %c0_i32, %c0_i32_0 : i32, i32
  }
  func.func @transform_2(%arg0: i32) -> (i32, i32) {
    %c0_i32 = arith.constant 0 : i32
    %c0_i32_0 = arith.constant 0 : i32
    %c0_i32_1 = arith.constant 0 : i32
    return %c0_i32, %c0_i32_0 : i32, i32
  }
  func.func @transform_3(%arg0: i32) -> (i32, i32, i32) {
    %c0_i32 = arith.constant 0 : i32
    %c0_i32_0 = arith.constant 0 : i32
    %c0_i32_1 = arith.constant 0 : i32
    %c0_i32_2 = arith.constant 0 : i32
    return %c0_i32, %c0_i32_0, %c0_i32_1 : i32, i32, i32
  }
  func.func @transform_4(%arg0: i32) -> (i32, i32) {
    %c0_i32 = arith.constant 0 : i32
    %c0_i32_0 = arith.constant 0 : i32
    %c0_i32_1 = arith.constant 0 : i32
    return %c0_i32, %c0_i32_0 : i32, i32
  }
  func.func @transform_5(%arg0: i32) -> (i32, i32, i32, i32) {
    %c0_i32 = arith.constant 0 : i32
    %c0_i32_0 = arith.constant 0 : i32
    %c0_i32_1 = arith.constant 0 : i32
    %c0_i32_2 = arith.constant 0 : i32
    return %arg0, %c0_i32, %c0_i32_0, %c0_i32_1 : i32, i32, i32, i32
  }
}

module attributes {stable_mosaic.version = 11 : i64} {
  func.func @_conv_kernel(%arg0: i32, %arg1: memref<1x4x4x15xf32, #tpu.memory_space<vmem>>, %arg2: memref<1x15xf32, #tpu.memory_space<vmem>>, %arg3: memref<1x15xf32, #tpu.memory_space<vmem>>, %arg4: memref<9x15x2xbf16, #tpu.memory_space<vmem>>, %arg5: memref<1x2xf32, #tpu.memory_space<vmem>>, %arg6: memref<1x4x4x2xf32, #tpu.memory_space<vmem>>, %arg7: memref<6x6x15xbf16, #tpu.memory_space<vmem>>, %arg8: memref<4x4x2xf32, #tpu.memory_space<vmem>>, %arg9: memref<2x4x2xf32, #tpu.memory_space<vmem>>) attributes {dimension_semantics = [#tpu.dimension_semantics<parallel>], iteration_bounds = array<i64: 2>, scalar_prefetch = 0 : i64, scratch_operands = 3 : i64, tpu.core_type = #tpu.core_type<tc>, window_params = [{transform_indices = @transform_0, window_bounds = array<i64: 1, 4, 4, 15>}, {pipeline_mode = #tpu.pipeline_mode<synchronous>, transform_indices = @transform_1, window_bounds = array<i64: 1, 15>}, {pipeline_mode = #tpu.pipeline_mode<synchronous>, transform_indices = @transform_2, window_bounds = array<i64: 1, 15>}, {pipeline_mode = #tpu.pipeline_mode<synchronous>, transform_indices = @transform_3, window_bounds = array<i64: 9, 15, 2>}, {pipeline_mode = #tpu.pipeline_mode<synchronous>, transform_indices = @transform_4, window_bounds = array<i64: 1, 2>}, {transform_indices = @transform_5, window_bounds = array<i64: 1, 4, 4, 2>}]} {
    %cst = arith.constant 0.000000e+00 : bf16
    %0 = vector.broadcast %cst : bf16 to vector<1x6x15xbf16>
    %cst_0 = arith.constant 0.000000e+00 : bf16
    %1 = vector.broadcast %cst_0 : bf16 to vector<6x1x15xbf16>
    %c0 = arith.constant 0 : index
    %c0_1 = arith.constant 0 : index
    %c0_2 = arith.constant 0 : index
    %2 = vector.load %arg7[%c0, %c0_1, %c0_2] : memref<6x6x15xbf16, #tpu.memory_space<vmem>>, vector<1x6x15xbf16>
    tpu.vector_store %arg7[%c0, %c0_1, %c0_2], %0 {strides = array<i32>} : memref<6x6x15xbf16, #tpu.memory_space<vmem>>, vector<1x6x15xbf16>,
    %c5 = arith.constant 5 : index
    %c0_3 = arith.constant 0 : index
    %c0_4 = arith.constant 0 : index
    %3 = vector.load %arg7[%c5, %c0_3, %c0_4] : memref<6x6x15xbf16, #tpu.memory_space<vmem>>, vector<1x6x15xbf16>
    tpu.vector_store %arg7[%c5, %c0_3, %c0_4], %0 {strides = array<i32>} : memref<6x6x15xbf16, #tpu.memory_space<vmem>>, vector<1x6x15xbf16>,
    %c0_5 = arith.constant 0 : index
    %c0_6 = arith.constant 0 : index
    %c0_7 = arith.constant 0 : index
    %4 = vector.load %arg7[%c0_5, %c0_6, %c0_7] : memref<6x6x15xbf16, #tpu.memory_space<vmem>>, vector<6x1x15xbf16>
    tpu.vector_store %arg7[%c0_5, %c0_6, %c0_7], %1 {strides = array<i32>} : memref<6x6x15xbf16, #tpu.memory_space<vmem>>, vector<6x1x15xbf16>,
    %c0_8 = arith.constant 0 : index
    %c5_9 = arith.constant 5 : index
    %c0_10 = arith.constant 0 : index
    %5 = vector.load %arg7[%c0_8, %c5_9, %c0_10] : memref<6x6x15xbf16, #tpu.memory_space<vmem>>, vector<6x1x15xbf16>
    tpu.vector_store %arg7[%c0_8, %c5_9, %c0_10], %1 {strides = array<i32>} : memref<6x6x15xbf16, #tpu.memory_space<vmem>>, vector<6x1x15xbf16>,
    %c0_11 = arith.constant 0 : index
    %c0_12 = arith.constant 0 : index
    %c0_13 = arith.constant 0 : index
    %c0_14 = arith.constant 0 : index
    %6 = vector.load %arg1[%c0_11, %c0_12, %c0_13, %c0_14] : memref<1x4x4x15xf32, #tpu.memory_space<vmem>>, vector<1x4x4x15xf32>
    %7 = vector.shape_cast %6 : vector<1x4x4x15xf32> to vector<4x4x15xf32>
    %c0_15 = arith.constant 0 : index
    %c0_16 = arith.constant 0 : index
    %8 = vector.load %arg2[%c0_15, %c0_16] : memref<1x15xf32, #tpu.memory_space<vmem>>, vector<1x15xf32>
    %9 = vector.shape_cast %8 : vector<1x15xf32> to vector<1x1x15xf32>
    %10 = vector.broadcast %9 : vector<1x1x15xf32> to vector<4x4x15xf32>
    %11 = arith.mulf %7, %10 : vector<4x4x15xf32>
    %c0_17 = arith.constant 0 : index
    %c0_18 = arith.constant 0 : index
    %12 = vector.load %arg3[%c0_17, %c0_18] : memref<1x15xf32, #tpu.memory_space<vmem>>, vector<1x15xf32>
    %13 = vector.shape_cast %12 : vector<1x15xf32> to vector<1x1x15xf32>
    %14 = vector.broadcast %13 : vector<1x1x15xf32> to vector<4x4x15xf32>
    %15 = arith.addf %11, %14 : vector<4x4x15xf32>
    %16 = arith.truncf %15 : vector<4x4x15xf32> to vector<4x4x15xbf16>
    %c1 = arith.constant 1 : index
    %c1_19 = arith.constant 1 : index
    %c0_20 = arith.constant 0 : index
    %17 = vector.load %arg7[%c1, %c1_19, %c0_20] : memref<6x6x15xbf16, #tpu.memory_space<vmem>>, vector<4x4x15xbf16>
    tpu.vector_store %arg7[%c1, %c1_19, %c0_20], %16 {strides = array<i32>} : memref<6x6x15xbf16, #tpu.memory_space<vmem>>, vector<4x4x15xbf16>,
    %cst_21 = arith.constant 0.000000e+00 : f32
    %18 = vector.broadcast %cst_21 : f32 to vector<16x2xf32>
    %c0_22 = arith.constant 0 : index
    %c0_23 = arith.constant 0 : index
    %c0_24 = arith.constant 0 : index
    %19 = vector.load %arg7[%c0_22, %c0_23, %c0_24] : memref<6x6x15xbf16, #tpu.memory_space<vmem>>, vector<4x4x15xbf16>
    %20 = vector.shape_cast %19 : vector<4x4x15xbf16> to vector<16x15xbf16>
    %c0_25 = arith.constant 0 : index
    %c0_26 = arith.constant 0 : index
    %c0_27 = arith.constant 0 : index
    %21 = vector.load %arg4[%c0_25, %c0_26, %c0_27] : memref<9x15x2xbf16, #tpu.memory_space<vmem>>, vector<1x15x2xbf16>
    %22 = vector.shape_cast %21 : vector<1x15x2xbf16> to vector<15x2xbf16>
    %cst_28 = arith.constant dense<0.000000e+00> : vector<16x2xf32>
    %23 = tpu.matmul %20, %22, %cst_28 {dimension_numbers = #tpu.dot_dimension_numbers<[1], [0], [0], [1], [0, 0, 1, 1], [], []>} : vector<16x15xbf16>, vector<15x2xbf16>, vector<16x2xf32> -> vector<16x2xf32>
    %24 = arith.addf %18, %23 : vector<16x2xf32>
    %c0_29 = arith.constant 0 : index
    %c1_30 = arith.constant 1 : index
    %c0_31 = arith.constant 0 : index
    %25 = vector.load %arg7[%c0_29, %c1_30, %c0_31] : memref<6x6x15xbf16, #tpu.memory_space<vmem>>, vector<4x4x15xbf16>
    %26 = vector.shape_cast %25 : vector<4x4x15xbf16> to vector<16x15xbf16>
    %c1_32 = arith.constant 1 : index
    %c0_33 = arith.constant 0 : index
    %c0_34 = arith.constant 0 : index
    %27 = vector.load %arg4[%c1_32, %c0_33, %c0_34] : memref<9x15x2xbf16, #tpu.memory_space<vmem>>, vector<1x15x2xbf16>
    %28 = vector.shape_cast %27 : vector<1x15x2xbf16> to vector<15x2xbf16>
    %cst_35 = arith.constant dense<0.000000e+00> : vector<16x2xf32>
    %29 = tpu.matmul %26, %28, %cst_35 {dimension_numbers = #tpu.dot_dimension_numbers<[1], [0], [0], [1], [0, 0, 1, 1], [], []>} : vector<16x15xbf16>, vector<15x2xbf16>, vector<16x2xf32> -> vector<16x2xf32>
    %30 = arith.addf %24, %29 : vector<16x2xf32>
    %c0_36 = arith.constant 0 : index
    %c2 = arith.constant 2 : index
    %c0_37 = arith.constant 0 : index
    %31 = vector.load %arg7[%c0_36, %c2, %c0_37] : memref<6x6x15xbf16, #tpu.memory_space<vmem>>, vector<4x4x15xbf16>
    %32 = vector.shape_cast %31 : vector<4x4x15xbf16> to vector<16x15xbf16>
    %c2_38 = arith.constant 2 : index
    %c0_39 = arith.constant 0 : index
    %c0_40 = arith.constant 0 : index
    %33 = vector.load %arg4[%c2_38, %c0_39, %c0_40] : memref<9x15x2xbf16, #tpu.memory_space<vmem>>, vector<1x15x2xbf16>
    %34 = vector.shape_cast %33 : vector<1x15x2xbf16> to vector<15x2xbf16>
    %cst_41 = arith.constant dense<0.000000e+00> : vector<16x2xf32>
    %35 = tpu.matmul %32, %34, %cst_41 {dimension_numbers = #tpu.dot_dimension_numbers<[1], [0], [0], [1], [0, 0, 1, 1], [], []>} : vector<16x15xbf16>, vector<15x2xbf16>, vector<16x2xf32> -> vector<16x2xf32>
    %36 = arith.addf %30, %35 : vector<16x2xf32>
    %c1_42 = arith.constant 1 : index
    %c0_43 = arith.constant 0 : index
    %c0_44 = arith.constant 0 : index
    %37 = vector.load %arg7[%c1_42, %c0_43, %c0_44] : memref<6x6x15xbf16, #tpu.memory_space<vmem>>, vector<4x4x15xbf16>
    %38 = vector.shape_cast %37 : vector<4x4x15xbf16> to vector<16x15xbf16>
    %c3 = arith.constant 3 : index
    %c0_45 = arith.constant 0 : index
    %c0_46 = arith.constant 0 : index
    %39 = vector.load %arg4[%c3, %c0_45, %c0_46] : memref<9x15x2xbf16, #tpu.memory_space<vmem>>, vector<1x15x2xbf16>
    %40 = vector.shape_cast %39 : vector<1x15x2xbf16> to vector<15x2xbf16>
    %cst_47 = arith.constant dense<0.000000e+00> : vector<16x2xf32>
    %41 = tpu.matmul %38, %40, %cst_47 {dimension_numbers = #tpu.dot_dimension_numbers<[1], [0], [0], [1], [0, 0, 1, 1], [], []>} : vector<16x15xbf16>, vector<15x2xbf16>, vector<16x2xf32> -> vector<16x2xf32>
    %42 = arith.addf %36, %41 : vector<16x2xf32>
    %c1_48 = arith.constant 1 : index
    %c1_49 = arith.constant 1 : index
    %c0_50 = arith.constant 0 : index
    %43 = vector.load %arg7[%c1_48, %c1_49, %c0_50] : memref<6x6x15xbf16, #tpu.memory_space<vmem>>, vector<4x4x15xbf16>
    %44 = vector.shape_cast %43 : vector<4x4x15xbf16> to vector<16x15xbf16>
    %c4 = arith.constant 4 : index
    %c0_51 = arith.constant 0 : index
    %c0_52 = arith.constant 0 : index
    %45 = vector.load %arg4[%c4, %c0_51, %c0_52] : memref<9x15x2xbf16, #tpu.memory_space<vmem>>, vector<1x15x2xbf16>
    %46 = vector.shape_cast %45 : vector<1x15x2xbf16> to vector<15x2xbf16>
    %cst_53 = arith.constant dense<0.000000e+00> : vector<16x2xf32>
    %47 = tpu.matmul %44, %46, %cst_53 {dimension_numbers = #tpu.dot_dimension_numbers<[1], [0], [0], [1], [0, 0, 1, 1], [], []>} : vector<16x15xbf16>, vector<15x2xbf16>, vector<16x2xf32> -> vector<16x2xf32>
    %48 = arith.addf %42, %47 : vector<16x2xf32>
    %c1_54 = arith.constant 1 : index
    %c2_55 = arith.constant 2 : index
    %c0_56 = arith.constant 0 : index
    %49 = vector.load %arg7[%c1_54, %c2_55, %c0_56] : memref<6x6x15xbf16, #tpu.memory_space<vmem>>, vector<4x4x15xbf16>
    %50 = vector.shape_cast %49 : vector<4x4x15xbf16> to vector<16x15xbf16>
    %c5_57 = arith.constant 5 : index
    %c0_58 = arith.constant 0 : index
    %c0_59 = arith.constant 0 : index
    %51 = vector.load %arg4[%c5_57, %c0_58, %c0_59] : memref<9x15x2xbf16, #tpu.memory_space<vmem>>, vector<1x15x2xbf16>
    %52 = vector.shape_cast %51 : vector<1x15x2xbf16> to vector<15x2xbf16>
    %cst_60 = arith.constant dense<0.000000e+00> : vector<16x2xf32>
    %53 = tpu.matmul %50, %52, %cst_60 {dimension_numbers = #tpu.dot_dimension_numbers<[1], [0], [0], [1], [0, 0, 1, 1], [], []>} : vector<16x15xbf16>, vector<15x2xbf16>, vector<16x2xf32> -> vector<16x2xf32>
    %54 = arith.addf %48, %53 : vector<16x2xf32>
    %c2_61 = arith.constant 2 : index
    %c0_62 = arith.constant 0 : index
    %c0_63 = arith.constant 0 : index
    %55 = vector.load %arg7[%c2_61, %c0_62, %c0_63] : memref<6x6x15xbf16, #tpu.memory_space<vmem>>, vector<4x4x15xbf16>
    %56 = vector.shape_cast %55 : vector<4x4x15xbf16> to vector<16x15xbf16>
    %c6 = arith.constant 6 : index
    %c0_64 = arith.constant 0 : index
    %c0_65 = arith.constant 0 : index
    %57 = vector.load %arg4[%c6, %c0_64, %c0_65] : memref<9x15x2xbf16, #tpu.memory_space<vmem>>, vector<1x15x2xbf16>
    %58 = vector.shape_cast %57 : vector<1x15x2xbf16> to vector<15x2xbf16>
    %cst_66 = arith.constant dense<0.000000e+00> : vector<16x2xf32>
    %59 = tpu.matmul %56, %58, %cst_66 {dimension_numbers = #tpu.dot_dimension_numbers<[1], [0], [0], [1], [0, 0, 1, 1], [], []>} : vector<16x15xbf16>, vector<15x2xbf16>, vector<16x2xf32> -> vector<16x2xf32>
    %60 = arith.addf %54, %59 : vector<16x2xf32>
    %c2_67 = arith.constant 2 : index
    %c1_68 = arith.constant 1 : index
    %c0_69 = arith.constant 0 : index
    %61 = vector.load %arg7[%c2_67, %c1_68, %c0_69] : memref<6x6x15xbf16, #tpu.memory_space<vmem>>, vector<4x4x15xbf16>
    %62 = vector.shape_cast %61 : vector<4x4x15xbf16> to vector<16x15xbf16>
    %c7 = arith.constant 7 : index
    %c0_70 = arith.constant 0 : index
    %c0_71 = arith.constant 0 : index
    %63 = vector.load %arg4[%c7, %c0_70, %c0_71] : memref<9x15x2xbf16, #tpu.memory_space<vmem>>, vector<1x15x2xbf16>
    %64 = vector.shape_cast %63 : vector<1x15x2xbf16> to vector<15x2xbf16>
    %cst_72 = arith.constant dense<0.000000e+00> : vector<16x2xf32>
    %65 = tpu.matmul %62, %64, %cst_72 {dimension_numbers = #tpu.dot_dimension_numbers<[1], [0], [0], [1], [0, 0, 1, 1], [], []>} : vector<16x15xbf16>, vector<15x2xbf16>, vector<16x2xf32> -> vector<16x2xf32>
    %66 = arith.addf %60, %65 : vector<16x2xf32>
    %c2_73 = arith.constant 2 : index
    %c2_74 = arith.constant 2 : index
    %c0_75 = arith.constant 0 : index
    %67 = vector.load %arg7[%c2_73, %c2_74, %c0_75] : memref<6x6x15xbf16, #tpu.memory_space<vmem>>, vector<4x4x15xbf16>
    %68 = vector.shape_cast %67 : vector<4x4x15xbf16> to vector<16x15xbf16>
    %c8 = arith.constant 8 : index
    %c0_76 = arith.constant 0 : index
    %c0_77 = arith.constant 0 : index
    %69 = vector.load %arg4[%c8, %c0_76, %c0_77] : memref<9x15x2xbf16, #tpu.memory_space<vmem>>, vector<1x15x2xbf16>
    %70 = vector.shape_cast %69 : vector<1x15x2xbf16> to vector<15x2xbf16>
    %cst_78 = arith.constant dense<0.000000e+00> : vector<16x2xf32>
    %71 = tpu.matmul %68, %70, %cst_78 {dimension_numbers = #tpu.dot_dimension_numbers<[1], [0], [0], [1], [0, 0, 1, 1], [], []>} : vector<16x15xbf16>, vector<15x2xbf16>, vector<16x2xf32> -> vector<16x2xf32>
    %72 = arith.addf %66, %71 : vector<16x2xf32>
    %c0_79 = arith.constant 0 : index
    %c0_80 = arith.constant 0 : index
    %73 = vector.load %arg5[%c0_79, %c0_80] : memref<1x2xf32, #tpu.memory_space<vmem>>, vector<1x2xf32>
    %74 = vector.broadcast %73 : vector<1x2xf32> to vector<16x2xf32>
    %75 = arith.addf %72, %74 : vector<16x2xf32>
    %cst_81 = arith.constant 0.000000e+00 : f32
    %76 = vector.broadcast %cst_81 : f32 to vector<16x2xf32>
    %77 = arith.maximumf %75, %76 : vector<16x2xf32>
    %78 = vector.shape_cast %77 : vector<16x2xf32> to vector<4x4x2xf32>
    %c0_82 = arith.constant 0 : index
    %c0_83 = arith.constant 0 : index
    %c0_84 = arith.constant 0 : index
    %c0_85 = arith.constant 0 : index
    %79 = vector.load %arg6[%c0_82, %c0_83, %c0_84, %c0_85] : memref<1x4x4x2xf32, #tpu.memory_space<vmem>>, vector<1x4x4x2xf32>
    %80 = vector.shape_cast %79 : vector<1x4x4x2xf32> to vector<4x4x2xf32>
    %81 = vector.shape_cast %78 : vector<4x4x2xf32> to vector<1x4x4x2xf32>
    tpu.vector_store %arg6[%c0_82, %c0_83, %c0_84, %c0_85], %81 {strides = array<i32>} : memref<1x4x4x2xf32, #tpu.memory_space<vmem>>, vector<1x4x4x2xf32>,
    return
  }
  func.func @transform_0(%arg0: i32) -> (i32, i32, i32, i32) {
    %c0_i32 = arith.constant 0 : i32
    %c0_i32_0 = arith.constant 0 : i32
    %c0_i32_1 = arith.constant 0 : i32
    %c0_i32_2 = arith.constant 0 : i32
    return %arg0, %c0_i32, %c0_i32_0, %c0_i32_1 : i32, i32, i32, i32
  }
  func.func @transform_1(%arg0: i32) -> (i32, i32) {
    %c0_i32 = arith.constant 0 : i32
    %c0_i32_0 = arith.constant 0 : i32
    %c0_i32_1 = arith.constant 0 : i32
    return %c0_i32, %c0_i32_0 : i32, i32
  }
  func.func @transform_2(%arg0: i32) -> (i32, i32) {
    %c0_i32 = arith.constant 0 : i32
    %c0_i32_0 = arith.constant 0 : i32
    %c0_i32_1 = arith.constant 0 : i32
    return %c0_i32, %c0_i32_0 : i32, i32
  }
  func.func @transform_3(%arg0: i32) -> (i32, i32, i32) {
    %c0_i32 = arith.constant 0 : i32
    %c0_i32_0 = arith.constant 0 : i32
    %c0_i32_1 = arith.constant 0 : i32
    %c0_i32_2 = arith.constant 0 : i32
    return %c0_i32, %c0_i32_0, %c0_i32_1 : i32, i32, i32
  }
  func.func @transform_4(%arg0: i32) -> (i32, i32) {
    %c0_i32 = arith.constant 0 : i32
    %c0_i32_0 = arith.constant 0 : i32
    %c0_i32_1 = arith.constant 0 : i32
    return %c0_i32, %c0_i32_0 : i32, i32
  }
  func.func @transform_5(%arg0: i32) -> (i32, i32, i32, i32) {
    %c0_i32 = arith.constant 0 : i32
    %c0_i32_0 = arith.constant 0 : i32
    %c0_i32_1 = arith.constant 0 : i32
    %c0_i32_2 = arith.constant 0 : i32
    return %arg0, %c0_i32, %c0_i32_0, %c0_i32_1 : i32, i32, i32, i32
  }
}

module attributes {stable_mosaic.version = 11 : i64} {
  func.func @_upconv_kernel(%arg0: i32, %arg1: memref<1x4x8xf32, #tpu.memory_space<vmem>>, %arg2: memref<1x8xf32, #tpu.memory_space<vmem>>, %arg3: memref<1x8xf32, #tpu.memory_space<vmem>>, %arg4: memref<3x8x4xf32, #tpu.memory_space<vmem>>, %arg5: memref<3x8x16xf32, #tpu.memory_space<vmem>>, %arg6: memref<1x16xf32, #tpu.memory_space<vmem>>, %arg7: memref<1x8x16xf32, #tpu.memory_space<vmem>>) attributes {dimension_semantics = [#tpu.dimension_semantics<parallel>], iteration_bounds = array<i64: 2>, scalar_prefetch = 0 : i64, scratch_operands = 0 : i64, tpu.core_type = #tpu.core_type<tc>, window_params = [{transform_indices = @transform_0, window_bounds = array<i64: 1, 4, 8>}, {pipeline_mode = #tpu.pipeline_mode<synchronous>, transform_indices = @transform_1, window_bounds = array<i64: 1, 8>}, {pipeline_mode = #tpu.pipeline_mode<synchronous>, transform_indices = @transform_2, window_bounds = array<i64: 1, 8>}, {pipeline_mode = #tpu.pipeline_mode<synchronous>, transform_indices = @transform_3, window_bounds = array<i64: 3, 8, 4>}, {pipeline_mode = #tpu.pipeline_mode<synchronous>, transform_indices = @transform_4, window_bounds = array<i64: 3, 8, 16>}, {pipeline_mode = #tpu.pipeline_mode<synchronous>, transform_indices = @transform_5, window_bounds = array<i64: 1, 16>}, {transform_indices = @transform_6, window_bounds = array<i64: 1, 8, 16>}]} {
    %c0 = arith.constant 0 : index
    %c0_0 = arith.constant 0 : index
    %c0_1 = arith.constant 0 : index
    %0 = vector.load %arg1[%c0, %c0_0, %c0_1] : memref<1x4x8xf32, #tpu.memory_space<vmem>>, vector<1x4x8xf32>
    %1 = vector.shape_cast %0 : vector<1x4x8xf32> to vector<4x8xf32>
    %c0_2 = arith.constant 0 : index
    %c0_3 = arith.constant 0 : index
    %2 = vector.load %arg2[%c0_2, %c0_3] : memref<1x8xf32, #tpu.memory_space<vmem>>, vector<1x8xf32>
    %3 = vector.broadcast %2 : vector<1x8xf32> to vector<4x8xf32>
    %4 = arith.mulf %1, %3 : vector<4x8xf32>
    %c0_4 = arith.constant 0 : index
    %c0_5 = arith.constant 0 : index
    %5 = vector.load %arg3[%c0_4, %c0_5] : memref<1x8xf32, #tpu.memory_space<vmem>>, vector<1x8xf32>
    %6 = vector.broadcast %5 : vector<1x8xf32> to vector<4x8xf32>
    %7 = arith.addf %4, %6 : vector<4x8xf32>
    %c0_6 = arith.constant 0 : index
    %c0_7 = arith.constant 0 : index
    %c0_8 = arith.constant 0 : index
    %8 = vector.load %arg4[%c0_6, %c0_7, %c0_8] : memref<3x8x4xf32, #tpu.memory_space<vmem>>, vector<1x8x4xf32>
    %9 = vector.shape_cast %8 : vector<1x8x4xf32> to vector<8x4xf32>
    %cst = arith.constant dense<0.000000e+00> : vector<8x8xf32>
    %10 = tpu.matmul %9, %7, %cst {dimension_numbers = #tpu.dot_dimension_numbers<[1], [0], [0], [1], [0, 0, 1, 1], [], []>} : vector<8x4xf32>, vector<4x8xf32>, vector<8x8xf32> -> vector<8x8xf32>
    %c0_9 = arith.constant 0 : index
    %c0_10 = arith.constant 0 : index
    %c0_11 = arith.constant 0 : index
    %11 = vector.load %arg5[%c0_9, %c0_10, %c0_11] : memref<3x8x16xf32, #tpu.memory_space<vmem>>, vector<1x8x16xf32>
    %12 = vector.shape_cast %11 : vector<1x8x16xf32> to vector<8x16xf32>
    %cst_12 = arith.constant dense<0.000000e+00> : vector<8x16xf32>
    %13 = tpu.matmul %10, %12, %cst_12 {dimension_numbers = #tpu.dot_dimension_numbers<[1], [0], [0], [1], [0, 0, 1, 1], [], []>} : vector<8x8xf32>, vector<8x16xf32>, vector<8x16xf32> -> vector<8x16xf32>
    %c1 = arith.constant 1 : index
    %c0_13 = arith.constant 0 : index
    %c0_14 = arith.constant 0 : index
    %14 = vector.load %arg4[%c1, %c0_13, %c0_14] : memref<3x8x4xf32, #tpu.memory_space<vmem>>, vector<1x8x4xf32>
    %15 = vector.shape_cast %14 : vector<1x8x4xf32> to vector<8x4xf32>
    %cst_15 = arith.constant dense<0.000000e+00> : vector<8x8xf32>
    %16 = tpu.matmul %15, %7, %cst_15 {dimension_numbers = #tpu.dot_dimension_numbers<[1], [0], [0], [1], [0, 0, 1, 1], [], []>} : vector<8x4xf32>, vector<4x8xf32>, vector<8x8xf32> -> vector<8x8xf32>
    %c1_16 = arith.constant 1 : index
    %c0_17 = arith.constant 0 : index
    %c0_18 = arith.constant 0 : index
    %17 = vector.load %arg5[%c1_16, %c0_17, %c0_18] : memref<3x8x16xf32, #tpu.memory_space<vmem>>, vector<1x8x16xf32>
    %18 = vector.shape_cast %17 : vector<1x8x16xf32> to vector<8x16xf32>
    %cst_19 = arith.constant dense<0.000000e+00> : vector<8x16xf32>
    %19 = tpu.matmul %16, %18, %cst_19 {dimension_numbers = #tpu.dot_dimension_numbers<[1], [0], [0], [1], [0, 0, 1, 1], [], []>} : vector<8x8xf32>, vector<8x16xf32>, vector<8x16xf32> -> vector<8x16xf32>
    %20 = arith.addf %13, %19 : vector<8x16xf32>
    %c2 = arith.constant 2 : index
    %c0_20 = arith.constant 0 : index
    %c0_21 = arith.constant 0 : index
    %21 = vector.load %arg4[%c2, %c0_20, %c0_21] : memref<3x8x4xf32, #tpu.memory_space<vmem>>, vector<1x8x4xf32>
    %22 = vector.shape_cast %21 : vector<1x8x4xf32> to vector<8x4xf32>
    %cst_22 = arith.constant dense<0.000000e+00> : vector<8x8xf32>
    %23 = tpu.matmul %22, %7, %cst_22 {dimension_numbers = #tpu.dot_dimension_numbers<[1], [0], [0], [1], [0, 0, 1, 1], [], []>} : vector<8x4xf32>, vector<4x8xf32>, vector<8x8xf32> -> vector<8x8xf32>
    %c2_23 = arith.constant 2 : index
    %c0_24 = arith.constant 0 : index
    %c0_25 = arith.constant 0 : index
    %24 = vector.load %arg5[%c2_23, %c0_24, %c0_25] : memref<3x8x16xf32, #tpu.memory_space<vmem>>, vector<1x8x16xf32>
    %25 = vector.shape_cast %24 : vector<1x8x16xf32> to vector<8x16xf32>
    %cst_26 = arith.constant dense<0.000000e+00> : vector<8x16xf32>
    %26 = tpu.matmul %23, %25, %cst_26 {dimension_numbers = #tpu.dot_dimension_numbers<[1], [0], [0], [1], [0, 0, 1, 1], [], []>} : vector<8x8xf32>, vector<8x16xf32>, vector<8x16xf32> -> vector<8x16xf32>
    %27 = arith.addf %20, %26 : vector<8x16xf32>
    %c0_27 = arith.constant 0 : index
    %c0_28 = arith.constant 0 : index
    %28 = vector.load %arg6[%c0_27, %c0_28] : memref<1x16xf32, #tpu.memory_space<vmem>>, vector<1x16xf32>
    %29 = vector.broadcast %28 : vector<1x16xf32> to vector<8x16xf32>
    %30 = arith.addf %27, %29 : vector<8x16xf32>
    %cst_29 = arith.constant 0.000000e+00 : f32
    %31 = vector.broadcast %cst_29 : f32 to vector<8x16xf32>
    %32 = arith.maximumf %30, %31 : vector<8x16xf32>
    %c0_30 = arith.constant 0 : index
    %c0_31 = arith.constant 0 : index
    %c0_32 = arith.constant 0 : index
    %33 = vector.load %arg7[%c0_30, %c0_31, %c0_32] : memref<1x8x16xf32, #tpu.memory_space<vmem>>, vector<1x8x16xf32>
    %34 = vector.shape_cast %33 : vector<1x8x16xf32> to vector<8x16xf32>
    %35 = vector.shape_cast %32 : vector<8x16xf32> to vector<1x8x16xf32>
    tpu.vector_store %arg7[%c0_30, %c0_31, %c0_32], %35 {strides = array<i32>} : memref<1x8x16xf32, #tpu.memory_space<vmem>>, vector<1x8x16xf32>,
    return
  }
  func.func @transform_0(%arg0: i32) -> (i32, i32, i32) {
    %c0_i32 = arith.constant 0 : i32
    %c0_i32_0 = arith.constant 0 : i32
    %c0_i32_1 = arith.constant 0 : i32
    return %arg0, %c0_i32, %c0_i32_0 : i32, i32, i32
  }
  func.func @transform_1(%arg0: i32) -> (i32, i32) {
    %c0_i32 = arith.constant 0 : i32
    %c0_i32_0 = arith.constant 0 : i32
    %c0_i32_1 = arith.constant 0 : i32
    return %c0_i32, %c0_i32_0 : i32, i32
  }
  func.func @transform_2(%arg0: i32) -> (i32, i32) {
    %c0_i32 = arith.constant 0 : i32
    %c0_i32_0 = arith.constant 0 : i32
    %c0_i32_1 = arith.constant 0 : i32
    return %c0_i32, %c0_i32_0 : i32, i32
  }
  func.func @transform_3(%arg0: i32) -> (i32, i32, i32) {
    %c0_i32 = arith.constant 0 : i32
    %c0_i32_0 = arith.constant 0 : i32
    %c0_i32_1 = arith.constant 0 : i32
    %c0_i32_2 = arith.constant 0 : i32
    return %c0_i32, %c0_i32_0, %c0_i32_1 : i32, i32, i32
  }
  func.func @transform_4(%arg0: i32) -> (i32, i32, i32) {
    %c0_i32 = arith.constant 0 : i32
    %c0_i32_0 = arith.constant 0 : i32
    %c0_i32_1 = arith.constant 0 : i32
    %c0_i32_2 = arith.constant 0 : i32
    return %c0_i32, %c0_i32_0, %c0_i32_1 : i32, i32, i32
  }
  func.func @transform_5(%arg0: i32) -> (i32, i32) {
    %c0_i32 = arith.constant 0 : i32
    %c0_i32_0 = arith.constant 0 : i32
    %c0_i32_1 = arith.constant 0 : i32
    return %c0_i32, %c0_i32_0 : i32, i32
  }
  func.func @transform_6(%arg0: i32) -> (i32, i32, i32) {
    %c0_i32 = arith.constant 0 : i32
    %c0_i32_0 = arith.constant 0 : i32
    %c0_i32_1 = arith.constant 0 : i32
    return %arg0, %c0_i32, %c0_i32_0 : i32, i32, i32
  }
}

module attributes {stable_mosaic.version = 11 : i64} {
  func.func @_upconv_kernel(%arg0: i32, %arg1: memref<1x8x16xf32, #tpu.memory_space<vmem>>, %arg2: memref<1x16xf32, #tpu.memory_space<vmem>>, %arg3: memref<1x16xf32, #tpu.memory_space<vmem>>, %arg4: memref<1x16x8xf32, #tpu.memory_space<vmem>>, %arg5: memref<1x16x32xf32, #tpu.memory_space<vmem>>, %arg6: memref<1x32xf32, #tpu.memory_space<vmem>>, %arg7: memref<32x32xf32, #tpu.memory_space<vmem>>, %arg8: memref<1x16x32xf32, #tpu.memory_space<vmem>>) attributes {dimension_semantics = [#tpu.dimension_semantics<parallel>], iteration_bounds = array<i64: 2>, scalar_prefetch = 0 : i64, scratch_operands = 0 : i64, tpu.core_type = #tpu.core_type<tc>, window_params = [{transform_indices = @transform_0, window_bounds = array<i64: 1, 8, 16>}, {pipeline_mode = #tpu.pipeline_mode<synchronous>, transform_indices = @transform_1, window_bounds = array<i64: 1, 16>}, {pipeline_mode = #tpu.pipeline_mode<synchronous>, transform_indices = @transform_2, window_bounds = array<i64: 1, 16>}, {pipeline_mode = #tpu.pipeline_mode<synchronous>, transform_indices = @transform_3, window_bounds = array<i64: 1, 16, 8>}, {pipeline_mode = #tpu.pipeline_mode<synchronous>, transform_indices = @transform_4, window_bounds = array<i64: 1, 16, 32>}, {pipeline_mode = #tpu.pipeline_mode<synchronous>, transform_indices = @transform_5, window_bounds = array<i64: 1, 32>}, {pipeline_mode = #tpu.pipeline_mode<synchronous>, transform_indices = @transform_6, window_bounds = array<i64: 32, 32>}, {transform_indices = @transform_7, window_bounds = array<i64: 1, 16, 32>}]} {
    %c0 = arith.constant 0 : index
    %c0_0 = arith.constant 0 : index
    %c0_1 = arith.constant 0 : index
    %0 = vector.load %arg1[%c0, %c0_0, %c0_1] : memref<1x8x16xf32, #tpu.memory_space<vmem>>, vector<1x8x16xf32>
    %1 = vector.shape_cast %0 : vector<1x8x16xf32> to vector<8x16xf32>
    %c0_2 = arith.constant 0 : index
    %c0_3 = arith.constant 0 : index
    %2 = vector.load %arg2[%c0_2, %c0_3] : memref<1x16xf32, #tpu.memory_space<vmem>>, vector<1x16xf32>
    %3 = vector.broadcast %2 : vector<1x16xf32> to vector<8x16xf32>
    %4 = arith.mulf %1, %3 : vector<8x16xf32>
    %c0_4 = arith.constant 0 : index
    %c0_5 = arith.constant 0 : index
    %5 = vector.load %arg3[%c0_4, %c0_5] : memref<1x16xf32, #tpu.memory_space<vmem>>, vector<1x16xf32>
    %6 = vector.broadcast %5 : vector<1x16xf32> to vector<8x16xf32>
    %7 = arith.addf %4, %6 : vector<8x16xf32>
    %c0_6 = arith.constant 0 : index
    %c0_7 = arith.constant 0 : index
    %c0_8 = arith.constant 0 : index
    %8 = vector.load %arg4[%c0_6, %c0_7, %c0_8] : memref<1x16x8xf32, #tpu.memory_space<vmem>>, vector<1x16x8xf32>
    %9 = vector.shape_cast %8 : vector<1x16x8xf32> to vector<16x8xf32>
    %cst = arith.constant dense<0.000000e+00> : vector<16x16xf32>
    %10 = tpu.matmul %9, %7, %cst {dimension_numbers = #tpu.dot_dimension_numbers<[1], [0], [0], [1], [0, 0, 1, 1], [], []>} : vector<16x8xf32>, vector<8x16xf32>, vector<16x16xf32> -> vector<16x16xf32>
    %c0_9 = arith.constant 0 : index
    %c0_10 = arith.constant 0 : index
    %c0_11 = arith.constant 0 : index
    %11 = vector.load %arg5[%c0_9, %c0_10, %c0_11] : memref<1x16x32xf32, #tpu.memory_space<vmem>>, vector<1x16x32xf32>
    %12 = vector.shape_cast %11 : vector<1x16x32xf32> to vector<16x32xf32>
    %cst_12 = arith.constant dense<0.000000e+00> : vector<16x32xf32>
    %13 = tpu.matmul %10, %12, %cst_12 {dimension_numbers = #tpu.dot_dimension_numbers<[1], [0], [0], [1], [0, 0, 1, 1], [], []>} : vector<16x16xf32>, vector<16x32xf32>, vector<16x32xf32> -> vector<16x32xf32>
    %c0_13 = arith.constant 0 : index
    %c0_14 = arith.constant 0 : index
    %14 = vector.load %arg6[%c0_13, %c0_14] : memref<1x32xf32, #tpu.memory_space<vmem>>, vector<1x32xf32>
    %15 = vector.broadcast %14 : vector<1x32xf32> to vector<16x32xf32>
    %16 = arith.addf %13, %15 : vector<16x32xf32>
    %cst_15 = arith.constant 0.000000e+00 : f32
    %17 = vector.broadcast %cst_15 : f32 to vector<16x32xf32>
    %18 = arith.maximumf %16, %17 : vector<16x32xf32>
    %cst_16 = arith.constant dense<0xFF800000> : vector<16xf32>
    %19 = vector.multi_reduction <maximumf>, %18, %cst_16 [1] : vector<16x32xf32> to vector<16xf32>
    %20 = vector.shape_cast %19 : vector<16xf32> to vector<16x1xf32>
    %21 = vector.broadcast %20 : vector<16x1xf32> to vector<16x32xf32>
    %22 = arith.subf %18, %21 : vector<16x32xf32>
    %23 = math.exp %22 : vector<16x32xf32>
    %c0_17 = arith.constant 0 : index
    %c0_18 = arith.constant 0 : index
    %24 = vector.load %arg7[%c0_17, %c0_18] : memref<32x32xf32, #tpu.memory_space<vmem>>, vector<32x32xf32>
    %cst_19 = arith.constant dense<0.000000e+00> : vector<16x32xf32>
    %25 = tpu.matmul %23, %24, %cst_19 {dimension_numbers = #tpu.dot_dimension_numbers<[1], [0], [0], [1], [0, 0, 1, 1], [], []>} : vector<16x32xf32>, vector<32x32xf32>, vector<16x32xf32> -> vector<16x32xf32>
    %26 = arith.divf %23, %25 : vector<16x32xf32>
    %c0_20 = arith.constant 0 : index
    %c0_21 = arith.constant 0 : index
    %c0_22 = arith.constant 0 : index
    %27 = vector.load %arg8[%c0_20, %c0_21, %c0_22] : memref<1x16x32xf32, #tpu.memory_space<vmem>>, vector<1x16x32xf32>
    %28 = vector.shape_cast %27 : vector<1x16x32xf32> to vector<16x32xf32>
    %29 = vector.shape_cast %26 : vector<16x32xf32> to vector<1x16x32xf32>
    tpu.vector_store %arg8[%c0_20, %c0_21, %c0_22], %29 {strides = array<i32>} : memref<1x16x32xf32, #tpu.memory_space<vmem>>, vector<1x16x32xf32>,
    return
  }
  func.func @transform_0(%arg0: i32) -> (i32, i32, i32) {
    %c0_i32 = arith.constant 0 : i32
    %c0_i32_0 = arith.constant 0 : i32
    %c0_i32_1 = arith.constant 0 : i32
    return %arg0, %c0_i32, %c0_i32_0 : i32, i32, i32
  }
  func.func @transform_1(%arg0: i32) -> (i32, i32) {
    %c0_i32 = arith.constant 0 : i32
    %c0_i32_0 = arith.constant 0 : i32
    %c0_i32_1 = arith.constant 0 : i32
    return %c0_i32, %c0_i32_0 : i32, i32
  }
  func.func @transform_2(%arg0: i32) -> (i32, i32) {
    %c0_i32 = arith.constant 0 : i32
    %c0_i32_0 = arith.constant 0 : i32
    %c0_i32_1 = arith.constant 0 : i32
    return %c0_i32, %c0_i32_0 : i32, i32
  }
  func.func @transform_3(%arg0: i32) -> (i32, i32, i32) {
    %c0_i32 = arith.constant 0 : i32
    %c0_i32_0 = arith.constant 0 : i32
    %c0_i32_1 = arith.constant 0 : i32
    %c0_i32_2 = arith.constant 0 : i32
    return %c0_i32, %c0_i32_0, %c0_i32_1 : i32, i32, i32
  }
  func.func @transform_4(%arg0: i32) -> (i32, i32, i32) {
    %c0_i32 = arith.constant 0 : i32
    %c0_i32_0 = arith.constant 0 : i32
    %c0_i32_1 = arith.constant 0 : i32
    %c0_i32_2 = arith.constant 0 : i32
    return %c0_i32, %c0_i32_0, %c0_i32_1 : i32, i32, i32
  }
  func.func @transform_5(%arg0: i32) -> (i32, i32) {
    %c0_i32 = arith.constant 0 : i32
    %c0_i32_0 = arith.constant 0 : i32
    %c0_i32_1 = arith.constant 0 : i32
    return %c0_i32, %c0_i32_0 : i32, i32
  }
  func.func @transform_6(%arg0: i32) -> (i32, i32) {
    %c0_i32 = arith.constant 0 : i32
    %c0_i32_0 = arith.constant 0 : i32
    %c0_i32_1 = arith.constant 0 : i32
    return %c0_i32, %c0_i32_0 : i32, i32
  }
  func.func @transform_7(%arg0: i32) -> (i32, i32, i32) {
    %c0_i32 = arith.constant 0 : i32
    %c0_i32_0 = arith.constant 0 : i32
    %c0_i32_1 = arith.constant 0 : i32
    return %arg0, %c0_i32, %c0_i32_0 : i32, i32, i32
  }
}

</mosaic_0001>

<llo_original>
// kernel: tile.33
$region0: #{tile.33}
  #allocation0 [shape = 's32[1]{0}', space=sflag, size = 0x4, scoped, tag = 'scoped memory for tile.33']
  %s0 = inlined_call_operand.vmem [shape: f32[2], index: 0, kind: input, shape index: {}]
  %s1 = inlined_call_operand.vmem [shape: f32[4,2], index: 1, kind: output, shape index: {}]
  // Predicated region
  $region2: #{tile.33} parent=0 // pred_check
    _
  $region3: #{tile.33} parent=0 // pred_check_branch
    %3 = sbr.rel (0) target = $region5
  $region4: #{tile.33} parent=0 // pred_region
    _
  $region5: #{tile.33} parent=0 // pred_fallthru
    _
  %v4 = vld [vmem:[%s0] ss:$0 sm:$0xff]
  %5 = vst [vmem:[%s1] sm:$0xf] %v4

// kernel: tile.34
$region0: #{tile.34}
  %s0 = inlined_call_operand.vmem [shape: f32[4,2], index: 0, kind: input, shape index: {}]
  %s1 = inlined_call_operand.vmem [shape: f32[1,8], index: 1, kind: output, shape index: {}]
  $region1: #{tile.34} parent=0
    #allocation0 [shape = 'u8[4096]{0}', space=vmem, size = 0x1000, scoped, tag = 'scoped mem for output reshape']
    #allocation1 [shape = 'u8[4096]{0}', space=vmem, size = 0x1000, scoped, tag = 'scoped mem for input reshape']
    %s3 = ssub.s32 16, 1
    %v4 = vld [vmem:[%s0] sm:%s3]
    %5 = vst [vmem:[#allocation1] sm:%s3] %v4
    %v6 = vld [vmem:[#allocation1] sm:$0x1]
    %vm7 = vcmask 15360
    %8 = vst.msk [vmem:[#allocation0] sm:$0x1] %vm7, %v6
    %s9 = scalar_lea.vmem [#allocation1], 3
    %v10 = vld [vmem:[%s9] sm:$0x1]
    %11 = vrot.lane.b32.xlu0 %v10, 6
    %v12 = vpop.permute.xlu0 %11
    %vm13 = vcmask 64560
    %14 = vst.msk [vmem:[#allocation0] sm:$0x1] %vm13, %v12
    %s15 = scalar_lea.vmem [#allocation1], 2
    %v16 = vld [vmem:[%s15] sm:$0x1]
    %17 = vrot.lane.b32.xlu0 %v16, 4
    %v18 = vpop.permute.xlu0 %17
    %vm19 = vcmask 48160
    %20 = vst.msk [vmem:[#allocation0] sm:$0x1] %vm19, %v18
    %s21 = scalar_lea.vmem [#allocation1], 1
    %v22 = vld [vmem:[%s21] sm:$0x1]
    %23 = vrot.lane.b32.xlu0 %v22, 2
    %v24 = vpop.permute.xlu0 %23
    %vm25 = vcmask 31760
    %26 = vst.msk [vmem:[#allocation0] sm:$0x1] %vm25, %v24
    %s28 = ssub.s32 2, 1
    %v29 = vld [vmem:[#allocation0] sm:%s28]
    %s31 = ssub.s32 2, 1
    %32 = vst [vmem:[%s1] sm:%s31] %v29

// kernel: test_net_forward.6
$region0: #{test_net_forward.6}
  #allocation0 [shape = 'u32[]', space=smem, size = 0x4, offset = 0x4, fixed_abs, tag = 'smem constant byte address 0x4 - core index']
  #allocation1 [shape = 'u32[72,128]{1,0:T(1,128)}', space=vmem, size = 0x9000, scoped, tag = 'internal scratch']
  #allocation2 [shape = 'bf16[10,10,34]{2,1,0:T(8,128)(2,1)}', space=vmem, size = 0xa000, scoped, tag = 'scratch operand']
  #allocation3 [shape = 'f32[8,8,15]{2,1,0:T(8,128)}', space=vmem, size = 0x8000, scoped, tag = 'scratch operand']
  #allocation4 [shape = 'f32[4,8,15]{2,1,0:T(8,128)}', space=vmem, size = 0x4000, scoped, tag = 'scratch operand']
  %s0 = inlined_call_operand.vmem [shape: f32[2,8,8,34], index: 0, kind: input, shape index: {}]
  %s1 = inlined_call_operand.vmem [shape: f32[1,34], index: 1, kind: input, shape index: {}]
  %s2 = inlined_call_operand.vmem [shape: f32[1,34], index: 2, kind: input, shape index: {}]
  %s3 = inlined_call_operand.vmem [shape: bf16[9,34,15], index: 3, kind: input, shape index: {}]
  %s4 = inlined_call_operand.vmem [shape: f32[1,15], index: 4, kind: input, shape index: {}]
  %s5 = inlined_call_operand.vmem [shape: f32[2,4,4,15], index: 5, kind: output, shape index: {}]
  %s6 = sld [smem:[#allocation0]]
  $region53: #{test_net_forward.6} parent=0
    _
  %s8 = ssub.s32 1, %s6
  %s9 = scalar_select 0, %s8, %s6
  loop: start=0, step=1, limit=4
  $region2: #{test_net_forward.6} parent=0 // loop_pre_header
    _
  $region3: #{test_net_forward.6} parent=0 // loop_header
    %s11 = sphi 0, %s15
    %p12 = scmp.ge.s32.totalorder %s11, 4
    %s21 = sphi 0, %s23
    %s24 = sphi 0, %s21
    %s25 = sphi 0, %s24
    %s41 = sphi 0, %s25
    %s45 = sphi 0, %s45
    %s47 = sphi 0, %s45
    %s48 = sphi 0, %s47
    %s62 = sphi 0, %s48
    %s66 = sphi 0, %s66
    %s68 = sphi 0, %s66
    %s69 = sphi 0, %s68
    %s83 = sphi 0, %s69
    %s87 = sphi 0, %s87
    %s89 = sphi 0, %s87
    %s90 = sphi 0, %s89
    %s104 = sphi 0, %s90
    %s108 = sphi 0, %s108
    %s110 = sphi 0, %s108
    %s111 = sphi 0, %s110
    %s125 = sphi 0, %s111
    %s131 = sphi 0, %s133
    %s134 = sphi 0, %s131
    %s135 = sphi 0, %s134
    %s151 = sphi 0, %s135
  $region4: #{test_net_forward.6} parent=0 // loop_header_branch
    %14 = sbr.rel (%p12) target = $region8
  $region5: #{test_net_forward.6} parent=0 // loop_body
    %s16 = ssub.s32 %s11, 1
    %s17 = ssub.s32 %s11, 2
    %s18 = sadd.s32 %s11, 1
    %s19 = ssub.s32 %s11, %s18
    %p20 = scmp.eq.s32.totalorder %s19, 0
    %s22 = sadd.s32 %s21, 1
    %s23 = scalar_select %p20, %s21, %s22
    %p26 = pneg %p20
    %p27 = scmp.eq.s32.totalorder %s11, 1
    %p28 = por %p26, %p27
    %p29 = scmp.ne.s32.totalorder %s21, %s24
    %p30 = scmp.eq.s32.totalorder %s11, 0
    %p31 = por %p29, %p30
    %p32 = scmp.ne.s32.totalorder %s21, %s24
    %p33 = scmp.eq.s32.totalorder %s16, 1
    %p34 = por %p32, %p33
    %p35 = scmp.ne.s32.totalorder %s24, %s25
    %p36 = scmp.eq.s32.totalorder %s16, 0
    %p37 = por %p35, %p36
    %p38 = scmp.ne.s32.totalorder %s24, %s25
    %p39 = scmp.eq.s32.totalorder %s17, 1
    %p40 = por %p38, %p39
    %p42 = scmp.ne.s32.totalorder %s25, %s41
    %p43 = scmp.eq.s32.totalorder %s17, 0
    %p44 = por %p42, %p43
    %s46 = sadd.s32 %s45, 1
    %p49 = scmp.eq.s32.totalorder %s11, 1
    %p50 = scmp.ne.s32.totalorder %s45, %s47
    %p51 = scmp.eq.s32.totalorder %s11, 0
    %p52 = por %p50, %p51
    %p53 = scmp.ne.s32.totalorder %s45, %s47
    %p54 = scmp.eq.s32.totalorder %s16, 1
    %p55 = por %p53, %p54
    %p56 = scmp.ne.s32.totalorder %s47, %s48
    %p57 = scmp.eq.s32.totalorder %s16, 0
    %p58 = por %p56, %p57
    %p59 = scmp.ne.s32.totalorder %s47, %s48
    %p60 = scmp.eq.s32.totalorder %s17, 1
    %p61 = por %p59, %p60
    %p63 = scmp.ne.s32.totalorder %s48, %s62
    %p64 = scmp.eq.s32.totalorder %s17, 0
    %p65 = por %p63, %p64
    %s67 = sadd.s32 %s66, 1
    %p70 = scmp.eq.s32.totalorder %s11, 1
    %p71 = scmp.ne.s32.totalorder %s66, %s68
    %p72 = scmp.eq.s32.totalorder %s11, 0
    %p73 = por %p71, %p72
    %p74 = scmp.ne.s32.totalorder %s66, %s68
    %p75 = scmp.eq.s32.totalorder %s16, 1
    %p76 = por %p74, %p75
    %p77 = scmp.ne.s32.totalorder %s68, %s69
    %p78 = scmp.eq.s32.totalorder %s16, 0
    %p79 = por %p77, %p78
    %p80 = scmp.ne.s32.totalorder %s68, %s69
    %p81 = scmp.eq.s32.totalorder %s17, 1
    %p82 = por %p80, %p81
    %p84 = scmp.ne.s32.totalorder %s69, %s83
    %p85 = scmp.eq.s32.totalorder %s17, 0
    %p86 = por %p84, %p85
    %s88 = sadd.s32 %s87, 1
    %p91 = scmp.eq.s32.totalorder %s11, 1
    %p92 = scmp.ne.s32.totalorder %s87, %s89
    %p93 = scmp.eq.s32.totalorder %s11, 0
    %p94 = por %p92, %p93
    %p95 = scmp.ne.s32.totalorder %s87, %s89
    %p96 = scmp.eq.s32.totalorder %s16, 1
    %p97 = por %p95, %p96
    %p98 = scmp.ne.s32.totalorder %s89, %s90
    %p99 = scmp.eq.s32.totalorder %s16, 0
    %p100 = por %p98, %p99
    %p101 = scmp.ne.s32.totalorder %s89, %s90
    %p102 = scmp.eq.s32.totalorder %s17, 1
    %p103 = por %p101, %p102
    %p105 = scmp.ne.s32.totalorder %s90, %s104
    %p106 = scmp.eq.s32.totalorder %s17, 0
    %p107 = por %p105, %p106
    %s109 = sadd.s32 %s108, 1
    %p112 = scmp.eq.s32.totalorder %s11, 1
    %p113 = scmp.ne.s32.totalorder %s108, %s110
    %p114 = scmp.eq.s32.totalorder %s11, 0
    %p115 = por %p113, %p114
    %p116 = scmp.ne.s32.totalorder %s108, %s110
    %p117 = scmp.eq.s32.totalorder %s16, 1
    %p118 = por %p116, %p117
    %p119 = scmp.ne.s32.totalorder %s110, %s111
    %p120 = scmp.eq.s32.totalorder %s16, 0
    %p121 = por %p119, %p120
    %p122 = scmp.ne.s32.totalorder %s110, %s111
    %p123 = scmp.eq.s32.totalorder %s17, 1
    %p124 = por %p122, %p123
    %p126 = scmp.ne.s32.totalorder %s111, %s125
    %p127 = scmp.eq.s32.totalorder %s17, 0
    %p128 = por %p126, %p127
    %s129 = ssub.s32 %s11, %s18
    %p130 = scmp.eq.s32.totalorder %s129, 0
    %s132 = sadd.s32 %s131, 1
    %s133 = scalar_select %p130, %s131, %s132
    %p136 = pneg %p130
    %p137 = scmp.eq.s32.totalorder %s11, 1
    %p138 = por %p136, %p137
    %p139 = scmp.ne.s32.totalorder %s131, %s134
    %p140 = scmp.eq.s32.totalorder %s11, 0
    %p141 = por %p139, %p140
    %p142 = scmp.ne.s32.totalorder %s131, %s134
    %p143 = scmp.eq.s32.totalorder %s16, 1
    %p144 = por %p142, %p143
    %p145 = scmp.ne.s32.totalorder %s134, %s135
    %p146 = scmp.eq.s32.totalorder %s16, 0
    %p147 = por %p145, %p146
    %p148 = scmp.ne.s32.totalorder %s134, %s135
    %p149 = scmp.eq.s32.totalorder %s17, 1
    %p150 = por %p148, %p149
    %p152 = scmp.ne.s32.totalorder %s135, %s151
    %p153 = scmp.eq.s32.totalorder %s17, 0
    %p154 = por %p152, %p153
    %p155 = scmp.le.s32.totalorder 1, %s11
    %p156 = scmp.lt.s32.totalorder %s11, 3
    %p157 = pnand %p155, %p156
    %p158 = pneg %p157
    // Predicated region
    $region9: #{test_net_forward.6} parent=5 // pred_check
      _
    $region10: #{test_net_forward.6} parent=5 // pred_check_branch
      %160 = sbr.rel (%p157) target = $region12
    $region11: #{test_net_forward.6} parent=5 // pred_region
      %s161 = ssub.s32 %s11, 1
      // Predicated region
      $region13: #{test_net_forward.6} parent=11 // pred_check
        %p162 = pneg %p58
      $region14: #{test_net_forward.6} parent=11 // pred_check_branch
        %164 = sbr.rel (%p162) target = $region16
      $region15: #{test_net_forward.6} parent=11 // pred_region
        _
      $region16: #{test_net_forward.6} parent=11 // pred_fallthru
        _
      // Predicated region
      $region17: #{test_net_forward.6} parent=11 // pred_check
        %p165 = pneg %p79
      $region18: #{test_net_forward.6} parent=11 // pred_check_branch
        %167 = sbr.rel (%p165) target = $region20
      $region19: #{test_net_forward.6} parent=11 // pred_region
        _
      $region20: #{test_net_forward.6} parent=11 // pred_fallthru
        _
      // Predicated region
      $region21: #{test_net_forward.6} parent=11 // pred_check
        %p168 = pneg %p100
      $region22: #{test_net_forward.6} parent=11 // pred_check_branch
        %170 = sbr.rel (%p168) target = $region24
      $region23: #{test_net_forward.6} parent=11 // pred_region
        _
      $region24: #{test_net_forward.6} parent=11 // pred_fallthru
        _
      // Predicated region
      $region25: #{test_net_forward.6} parent=11 // pred_check
        %p171 = pneg %p121
      $region26: #{test_net_forward.6} parent=11 // pred_check_branch
        %173 = sbr.rel (%p171) target = $region28
      $region27: #{test_net_forward.6} parent=11 // pred_region
        _
      $region28: #{test_net_forward.6} parent=11 // pred_fallthru
        _
    $region12: #{test_net_forward.6} parent=5 // pred_fallthru
      _
    %p174 = scmp.lt.s32.totalorder %s11, 2
    // Predicated region
    $region29: #{test_net_forward.6} parent=5 // pred_check
      %p175 = pneg %p174
    $region30: #{test_net_forward.6} parent=5 // pred_check_branch
      %177 = sbr.rel (%p175) target = $region32
    $region31: #{test_net_forward.6} parent=5 // pred_region
      // Predicated region
      $region33: #{test_net_forward.6} parent=31 // pred_check
        %p178 = pneg %p31
      $region34: #{test_net_forward.6} parent=31 // pred_check_branch
        %180 = sbr.rel (%p178) target = $region36
      $region35: #{test_net_forward.6} parent=31 // pred_region
        %p181 = scmp.lt.s32.totalorder %s11, 1
        %s182 = scalar_select %p181, %s11, 1
        %s183 = smul.addr %s182, 8
        %s184 = smul.addr %s183, 8
        %s185 = scalar_lea.vmem %s0, %s184
      $region36: #{test_net_forward.6} parent=31 // pred_fallthru
        _
    $region32: #{test_net_forward.6} parent=5 // pred_fallthru
      _
    %p186 = scmp.le.s32.totalorder 1, %s11
    %p187 = scmp.lt.s32.totalorder %s11, 3
    %p188 = pnand %p186, %p187
    %p189 = pneg %p188
    // Predicated region
    $region37: #{test_net_forward.6} parent=5 // pred_check
      _
    $region38: #{test_net_forward.6} parent=5 // pred_check_branch
      %191 = sbr.rel (%p188) target = $region40
    $region39: #{test_net_forward.6} parent=5 // pred_region
      %s192 = ssub.s32 %s11, 1
      %p193 = scmp.lt.s32.totalorder %s16, 1
      %s194 = scalar_select %p193, %s16, 1
      %s195 = smul.addr %s194, 8
      %s196 = smul.addr %s195, 8
      %s197 = scalar_lea.vmem %s0, %s196
      %p198 = pneg %p37
      %p199 = pneg %p34
      %p200 = pneg %p58
      %p201 = pneg %p55
      %p202 = pneg %p79
      %p203 = pneg %p76
      %p204 = pneg %p100
      %p205 = pneg %p97
      %p206 = pneg %p121
      %p207 = pneg %p118
      %p208 = pneg %p147
      %p209 = pneg %p144
      %p210 = scmp.lt.s32.totalorder %s16, 1
      %s211 = scalar_select %p210, %s16, 1
      %s212 = smul.addr %s211, 4
      %s213 = smul.addr %s212, 4
      %s214 = scalar_lea.vmem %s5, %s213
      %p215 = scmp.lt.s32.totalorder %s16, 1
      %s216 = scalar_select %p215, %s16, 1
      %s217 = smul.addr %s216, 8
      %s218 = smul.addr %s217, 8
      %s219 = scalar_lea.vmem %s0, %s218
      %p220 = scmp.lt.s32.totalorder %s16, 1
      %s221 = scalar_select %p220, %s16, 1
      %s222 = smul.addr %s221, 4
      %s223 = smul.addr %s222, 4
      %s224 = scalar_lea.vmem %s5, %s223
      %vm226 = vcmask 273408
      %227 = vst.msk [vmem:[#allocation2] sm:$0xf] %vm226, 0
      %vm228 = vcmask 270336
      %229 = vst.msk [vmem:[#allocation2 + $0x4] sm:$0x1] %vm228, 0
      %s230 = scalar_lea.vmem [#allocation2], 72
      %231 = vst.msk [vmem:[%s230] sm:$0xf] %vm226, 0
      %232 = vst.msk [vmem:[%s230 + $0x4] sm:$0x1] %vm228, 0
      %vm233 = vcmask 270336
      %vm234 = vsmask.f32 256
      %vm235 = vmand %vm233, %vm234
      %v236 = vld [vmem:[#allocation2] sm:$0x1]
      %v237 = vsel %vm235, 0, %v236
      %238 = vst [vmem:[#allocation2] sm:$0x1] %v237
      %v239 = vld [vmem:[#allocation2 + $0x8] sm:$0x1]
      %v240 = vsel %vm235, 0, %v239
      %241 = vst [vmem:[#allocation2 + $0x8] sm:$0x1] %v240
      %v242 = vld [vmem:[#allocation2 + $0x10] sm:$0x1]
      %v243 = vsel %vm235, 0, %v242
      %244 = vst [vmem:[#allocation2 + $0x10] sm:$0x1] %v243
      %v245 = vld [vmem:[#allocation2 + $0x18] sm:$0x1]
      %v246 = vsel %vm235, 0, %v245
      %247 = vst [vmem:[#allocation2 + $0x18] sm:$0x1] %v246
      %v248 = vld [vmem:[#allocation2 + $0x20] sm:$0x1]
      %v249 = vsel %vm235, 0, %v248
      %250 = vst [vmem:[#allocation2 + $0x20] sm:$0x1] %v249
      %v251 = vld [vmem:[#allocation2 + $0x28] sm:$0x1]
      %v252 = vsel %vm235, 0, %v251
      %253 = vst [vmem:[#allocation2 + $0x28] sm:$0x1] %v252
      %v254 = vld [vmem:[#allocation2 + $0x30] sm:$0x1]
      %v255 = vsel %vm235, 0, %v254
      %256 = vst [vmem:[#allocation2 + $0x30] sm:$0x1] %v255
      %v257 = vld [vmem:[#allocation2 + $0x38] sm:$0x1]
      %v258 = vsel %vm235, 0, %v257
      %259 = vst [vmem:[#allocation2 + $0x38] sm:$0x1] %v258
      %v260 = vld [vmem:[#allocation2 + $0x40] sm:$0x1]
      %v261 = vsel %vm235, 0, %v260
      %262 = vst [vmem:[#allocation2 + $0x40] sm:$0x1] %v261
      %v263 = vld [vmem:[#allocation2 + $0x48] sm:$0x1]
      %v264 = vsel %vm235, 0, %v263
      %265 = vst [vmem:[#allocation2 + $0x48] sm:$0x1] %v264
      %vm266 = vsmask.f32 7938
      %vm267 = vmand %vm233, %vm266
      %v268 = vld [vmem:[#allocation2 + $0x4] sm:$0x1]
      %v269 = vsel %vm267, 0, %v268
      %270 = vst [vmem:[#allocation2 + $0x4] sm:$0x1] %v269
      %v271 = vld [vmem:[#allocation2 + $0xc] sm:$0x1]
      %v272 = vsel %vm267, 0, %v271
      %273 = vst [vmem:[#allocation2 + $0xc] sm:$0x1] %v272
      %v274 = vld [vmem:[#allocation2 + $0x14] sm:$0x1]
      %v275 = vsel %vm267, 0, %v274
      %276 = vst [vmem:[#allocation2 + $0x14] sm:$0x1] %v275
      %v277 = vld [vmem:[#allocation2 + $0x1c] sm:$0x1]
      %v278 = vsel %vm267, 0, %v277
      %279 = vst [vmem:[#allocation2 + $0x1c] sm:$0x1] %v278
      %v280 = vld [vmem:[#allocation2 + $0x24] sm:$0x1]
      %v281 = vsel %vm267, 0, %v280
      %282 = vst [vmem:[#allocation2 + $0x24] sm:$0x1] %v281
      %v283 = vld [vmem:[#allocation2 + $0x2c] sm:$0x1]
      %v284 = vsel %vm267, 0, %v283
      %285 = vst [vmem:[#allocation2 + $0x2c] sm:$0x1] %v284
      %v286 = vld [vmem:[#allocation2 + $0x34] sm:$0x1]
      %v287 = vsel %vm267, 0, %v286
      %288 = vst [vmem:[#allocation2 + $0x34] sm:$0x1] %v287
      %v289 = vld [vmem:[#allocation2 + $0x3c] sm:$0x1]
      %v290 = vsel %vm267, 0, %v289
      %291 = vst [vmem:[#allocation2 + $0x3c] sm:$0x1] %v290
      %v292 = vld [vmem:[#allocation2 + $0x44] sm:$0x1]
      %v293 = vsel %vm267, 0, %v292
      %294 = vst [vmem:[#allocation2 + $0x44] sm:$0x1] %v293
      %v295 = vld [vmem:[#allocation2 + $0x4c] sm:$0x1]
      %v296 = vsel %vm267, 0, %v295
      %297 = vst [vmem:[#allocation2 + $0x4c] sm:$0x1] %v296
      %v298 = vld [vmem:[%s219] sm:$0xff]
      %v299 = vld [vmem:[%s219 + $0x8] sm:$0xff]
      %v300 = vld [vmem:[%s219 + $0x10] sm:$0xff]
      %v301 = vld [vmem:[%s219 + $0x18] sm:$0xff]
      %v302 = vld [vmem:[%s219 + $0x20] sm:$0xff]
      %v303 = vld [vmem:[%s219 + $0x28] sm:$0xff]
      %v304 = vld [vmem:[%s219 + $0x30] sm:$0xff]
      %v305 = vld [vmem:[%s219 + $0x38] sm:$0xff]
      %v306 = vld [vmem:[%s1] sm:$0x1]
      %v308 = vperm.slane %v306, 0
      %v310 = vmul.f32 %v298, %v308
      %v311 = vmul.f32 %v299, %v308
      %v312 = vmul.f32 %v300, %v308
      %v313 = vmul.f32 %v301, %v308
      %v314 = vmul.f32 %v302, %v308
      %v315 = vmul.f32 %v303, %v308
      %v316 = vmul.f32 %v304, %v308
      %v317 = vmul.f32 %v305, %v308
      %v318 = vld [vmem:[%s2] sm:$0x1]
      %v320 = vperm.slane %v318, 0
      %v322 = vadd.f32 %v310, %v320
      %v323 = vadd.f32 %v311, %v320
      %v324 = vadd.f32 %v312, %v320
      %v325 = vadd.f32 %v313, %v320
      %v326 = vadd.f32 %v314, %v320
      %v327 = vadd.f32 %v315, %v320
      %v328 = vadd.f32 %v316, %v320
      %v329 = vadd.f32 %v317, %v320
      %v330 = vpack.c.bf16 %v322, %v322
      %v331 = vpack.c.bf16 %v323, %v323
      %v332 = vpack.c.bf16 %v324, %v324
      %v333 = vpack.c.bf16 %v325, %v325
      %v334 = vpack.c.bf16 %v326, %v326
      %v335 = vpack.c.bf16 %v327, %v327
      %v336 = vpack.c.bf16 %v328, %v328
      %v337 = vpack.c.bf16 %v329, %v329
      %v339 = vshrl.u32 %v330, 16
      %v341 = vrot.slane %v339, 7
      %v342 = vshll.u32 %v330, 16
      %v344 = vor.u32 %v341, %v342
      %v345 = vrot.slane %v341, 4
      %v347 = vshrl.u32 %v331, 16
      %v349 = vrot.slane %v347, 7
      %v350 = vshll.u32 %v331, 16
      %v352 = vor.u32 %v349, %v350
      %v353 = vrot.slane %v349, 4
      %v355 = vshrl.u32 %v332, 16
      %v357 = vrot.slane %v355, 7
      %v358 = vshll.u32 %v332, 16
      %v360 = vor.u32 %v357, %v358
      %v361 = vrot.slane %v357, 4
      %v363 = vshrl.u32 %v333, 16
      %v365 = vrot.slane %v363, 7
      %v366 = vshll.u32 %v333, 16
      %v368 = vor.u32 %v365, %v366
      %v369 = vrot.slane %v365, 4
      %v371 = vshrl.u32 %v334, 16
      %v373 = vrot.slane %v371, 7
      %v374 = vshll.u32 %v334, 16
      %v376 = vor.u32 %v373, %v374
      %v377 = vrot.slane %v373, 4
      %v379 = vshrl.u32 %v335, 16
      %v381 = vrot.slane %v379, 7
      %v382 = vshll.u32 %v335, 16
      %v384 = vor.u32 %v381, %v382
      %v385 = vrot.slane %v381, 4
      %v387 = vshrl.u32 %v336, 16
      %v389 = vrot.slane %v387, 7
      %v390 = vshll.u32 %v336, 16
      %v392 = vor.u32 %v389, %v390
      %v393 = vrot.slane %v389, 4
      %v395 = vshrl.u32 %v337, 16
      %v397 = vrot.slane %v395, 7
      %v398 = vshll.u32 %v337, 16
      %v400 = vor.u32 %v397, %v398
      %v401 = vrot.slane %v397, 4
      %s418 = scalar_lea.vmem [#allocation2], 8
      %vm419 = vcmask 273408
      %vm420 = vmand %vm419, %vm266
      %v421 = vld [vmem:[%s418] sm:$0xf]
      %v422 = vsel %vm420, %v344, %v421
      %423 = vst [vmem:[%s418] sm:$0xf] %v422
      %v424 = vld [vmem:[%s418 + $0x4] sm:$0x1]
      %v425 = vsel %vm235, %v345, %v424
      %426 = vst [vmem:[%s418 + $0x4] sm:$0x1] %v425
      %v427 = vld [vmem:[%s418 + $0x8] sm:$0xf]
      %v428 = vsel %vm420, %v352, %v427
      %429 = vst [vmem:[%s418 + $0x8] sm:$0xf] %v428
      %v430 = vld [vmem:[%s418 + $0xc] sm:$0x1]
      %v431 = vsel %vm235, %v353, %v430
      %432 = vst [vmem:[%s418 + $0xc] sm:$0x1] %v431
      %v433 = vld [vmem:[%s418 + $0x10] sm:$0xf]
      %v434 = vsel %vm420, %v360, %v433
      %435 = vst [vmem:[%s418 + $0x10] sm:$0xf] %v434
      %v436 = vld [vmem:[%s418 + $0x14] sm:$0x1]
      %v437 = vsel %vm235, %v361, %v436
      %438 = vst [vmem:[%s418 + $0x14] sm:$0x1] %v437
      %v439 = vld [vmem:[%s418 + $0x18] sm:$0xf]
      %v440 = vsel %vm420, %v368, %v439
      %441 = vst [vmem:[%s418 + $0x18] sm:$0xf] %v440
      %v442 = vld [vmem:[%s418 + $0x1c] sm:$0x1]
      %v443 = vsel %vm235, %v369, %v442
      %444 = vst [vmem:[%s418 + $0x1c] sm:$0x1] %v443
      %v445 = vld [vmem:[%s418 + $0x20] sm:$0xf]
      %v446 = vsel %vm420, %v376, %v445
      %447 = vst [vmem:[%s418 + $0x20] sm:$0xf] %v446
      %v448 = vld [vmem:[%s418 + $0x24] sm:$0x1]
      %v449 = vsel %vm235, %v377, %v448
      %450 = vst [vmem:[%s418 + $0x24] sm:$0x1] %v449
      %v451 = vld [vmem:[%s418 + $0x28] sm:$0xf]
      %v452 = vsel %vm420, %v384, %v451
      %453 = vst [vmem:[%s418 + $0x28] sm:$0xf] %v452
      %v454 = vld [vmem:[%s418 + $0x2c] sm:$0x1]
      %v455 = vsel %vm235, %v385, %v454
      %456 = vst [vmem:[%s418 + $0x2c] sm:$0x1] %v455
      %v457 = vld [vmem:[%s418 + $0x30] sm:$0xf]
      %v458 = vsel %vm420, %v392, %v457
      %459 = vst [vmem:[%s418 + $0x30] sm:$0xf] %v458
      %v460 = vld [vmem:[%s418 + $0x34] sm:$0x1]
      %v461 = vsel %vm235, %v393, %v460
      %462 = vst [vmem:[%s418 + $0x34] sm:$0x1] %v461
      %v463 = vld [vmem:[%s418 + $0x38] sm:$0xf]
      %v464 = vsel %vm420, %v400, %v463
      %465 = vst [vmem:[%s418 + $0x38] sm:$0xf] %v464
      %v466 = vld [vmem:[%s418 + $0x3c] sm:$0x1]
      %v467 = vsel %vm235, %v401, %v466
      %468 = vst [vmem:[%s418 + $0x3c] sm:$0x1] %v467
      %v469 = vld [vmem:[#allocation2] sm:$0xf]
      %v470 = vld [vmem:[#allocation2 + $0x8] sm:$0xf]
      %v471 = vld [vmem:[#allocation2 + $0x10] sm:$0xf]
      %v472 = vld [vmem:[#allocation2 + $0x18] sm:$0xf]
      %v473 = vld [vmem:[#allocation2 + $0x20] sm:$0xf]
      %v474 = vld [vmem:[#allocation2 + $0x28] sm:$0xf]
      %v475 = vld [vmem:[#allocation2 + $0x30] sm:$0xf]
      %v476 = vld [vmem:[#allocation2 + $0x38] sm:$0xf]
      %v477 = vld [vmem:[%s3] sm:$0xf]
      %v478 = vld [vmem:[%s3 + $0x4] sm:$0xf]
      %v479 = vld [vmem:[%s3 + $0x8] sm:$0xf]
      %v480 = vld [vmem:[%s3 + $0xc] sm:$0xf]
      %v481 = vld [vmem:[%s3 + $0x10] sm:$0x1]
      %v482 = vld [vmem:[#allocation2 + $0x4] sm:$0x1]
      %v483 = vld [vmem:[#allocation2 + $0xc] sm:$0x1]
      %v484 = vld [vmem:[#allocation2 + $0x14] sm:$0x1]
      %v485 = vld [vmem:[#allocation2 + $0x1c] sm:$0x1]
      %v486 = vld [vmem:[#allocation2 + $0x24] sm:$0x1]
      %v487 = vld [vmem:[#allocation2 + $0x2c] sm:$0x1]
      %v488 = vld [vmem:[#allocation2 + $0x34] sm:$0x1]
      %v489 = vld [vmem:[#allocation2 + $0x3c] sm:$0x1]
      %vm490 = vsmask.f32 3328
      %vm491 = vsmask.f32 7440
      %vm492 = vmor %vm490, %vm491
      %v494 = vshrl.u32 %v469, 16
      %v496 = vrot.slane %v494, 4
      %v497 = vshll.u32 %v469, 16
      %v499 = vrot.slane %v497, 5
      %v500 = vor.u32 %v496, %v499
      %v501 = vrot.slane %v500, 4
      %v503 = vshll.u32 %v482, 16
      %v505 = vrot.slane %v503, 5
      %v506 = vsel %vm492, %v501, %v505
      %v508 = vshrl.u32 %v470, 16
      %v510 = vrot.slane %v508, 4
      %v511 = vshll.u32 %v470, 16
      %v513 = vrot.slane %v511, 5
      %v514 = vor.u32 %v510, %v513
      %v515 = vrot.slane %v514, 4
      %v517 = vshll.u32 %v483, 16
      %v519 = vrot.slane %v517, 5
      %v520 = vsel %vm492, %v515, %v519
      %v522 = vshrl.u32 %v471, 16
      %v524 = vrot.slane %v522, 4
      %v525 = vshll.u32 %v471, 16
      %v527 = vrot.slane %v525, 5
      %v528 = vor.u32 %v524, %v527
      %v529 = vrot.slane %v528, 4
      %v531 = vshll.u32 %v484, 16
      %v533 = vrot.slane %v531, 5
      %v534 = vsel %vm492, %v529, %v533
      %v536 = vshrl.u32 %v472, 16
      %v538 = vrot.slane %v536, 4
      %v539 = vshll.u32 %v472, 16
      %v541 = vrot.slane %v539, 5
      %v542 = vor.u32 %v538, %v541
      %v543 = vrot.slane %v542, 4
      %v545 = vshll.u32 %v485, 16
      %v547 = vrot.slane %v545, 5
      %v548 = vsel %vm492, %v543, %v547
      %v550 = vshrl.u32 %v473, 16
      %v552 = vrot.slane %v550, 4
      %v553 = vshll.u32 %v473, 16
      %v555 = vrot.slane %v553, 5
      %v556 = vor.u32 %v552, %v555
      %v557 = vrot.slane %v556, 4
      %v559 = vshll.u32 %v486, 16
      %v561 = vrot.slane %v559, 5
      %v562 = vsel %vm492, %v557, %v561
      %v564 = vshrl.u32 %v474, 16
      %v566 = vrot.slane %v564, 4
      %v567 = vshll.u32 %v474, 16
      %v569 = vrot.slane %v567, 5
      %v570 = vor.u32 %v566, %v569
      %v571 = vrot.slane %v570, 4
      %v573 = vshll.u32 %v487, 16
      %v575 = vrot.slane %v573, 5
      %v576 = vsel %vm492, %v571, %v575
      %v578 = vshrl.u32 %v475, 16
      %v580 = vrot.slane %v578, 4
      %v581 = vshll.u32 %v475, 16
      %v583 = vrot.slane %v581, 5
      %v584 = vor.u32 %v580, %v583
      %v585 = vrot.slane %v584, 4
      %v587 = vshll.u32 %v488, 16
      %v589 = vrot.slane %v587, 5
      %v590 = vsel %vm492, %v585, %v589
      %v592 = vshrl.u32 %v476, 16
      %v594 = vrot.slane %v592, 4
      %v595 = vshll.u32 %v476, 16
      %v597 = vrot.slane %v595, 5
      %v598 = vor.u32 %v594, %v597
      %v599 = vrot.slane %v598, 4
      %v601 = vshll.u32 %v489, 16
      %v603 = vrot.slane %v601, 5
      %v604 = vsel %vm492, %v599, %v603
      %s605 = scalar_lea.vmem %s3, 20
      %v606 = vld [vmem:[%s605] sm:$0xf]
      %v607 = vld [vmem:[%s605 + $0x4] sm:$0xf]
      %v608 = vld [vmem:[%s605 + $0x8] sm:$0xf]
      %v609 = vld [vmem:[%s605 + $0xc] sm:$0xf]
      %v610 = vld [vmem:[%s605 + $0x10] sm:$0x1]
      %v611 = vunpack.c.l.b16 %v506
      %v612 = vunpack.c.l.b16 %v520
      %v613 = vunpack.c.l.b16 %v534
      %v614 = vunpack.c.l.b16 %v548
      %v615 = vunpack.c.l.b16 %v562
      %v616 = vunpack.c.l.b16 %v576
      %v617 = vunpack.c.l.b16 %v590
      %v618 = vunpack.c.l.b16 %v604
      %v619 = vpack.c.b16 %v612, %v611
      %v620 = vpack.c.b16 %v614, %v613
      %v621 = vpack.c.b16 %v616, %v615
      %v622 = vpack.c.b16 %v618, %v617
      %v628 = vunpack.c.l.b16 %v606
      %v629 = vunpack.c.l.b16 %v607
      %v630 = vunpack.c.l.b16 %v608
      %v631 = vunpack.c.l.b16 %v609
      %v632 = vunpack.c.l.b16 %v610
      %v633 = vpack.c.b16 %v629, %v628
      %v634 = vpack.c.b16 %v631, %v630
      %v635 = vpack.c.b16 %v632, %v632
      %vm638 = vcmask 277504
      %v640 = vsel %vm638, %v619, 0
      %v643 = vsel %vm638, %v620, 0
      %v646 = vsel %vm638, %v621, 0
      %v649 = vsel %vm638, %v622, 0
      %vm651 = vcmask 1040384
      %v653 = vsel %vm651, %v635, 0
      %655 = vmatpush.bf16.msra.mxu0 0
      %656 = vmatpush.bf16.msra.mxu0 0
      %657 = vmatpush.bf16.msra.mxu0 0
      %658 = vmatpush.bf16.msra.mxu0 0
      %659 = vmatpush.bf16.msra.mxu0 0
      %660 = vmatpush.bf16.msra.mxu0 %v653
      %661 = vmatpush.bf16.msra.mxu0 %v634
      %662 = vmatpush.bf16.msra.mxu0 %v633
      %663 = vmatmul.bf16.gmra.mxu0 %v640
      %v664 = vpop.f32.mrf.mxu0
      %v665 = vadd.f32 0.0, %v664
      %v666 = vpop.f32.mrf.mxu0
      %v667 = vadd.f32 0.0, %v666
      %668 = vmatmul.bf16.gmra.mxu0 %v643
      %v669 = vpop.f32.mrf.mxu0
      %v670 = vadd.f32 0.0, %v669
      %v671 = vpop.f32.mrf.mxu0
      %v672 = vadd.f32 0.0, %v671
      %673 = vmatmul.bf16.gmra.mxu0 %v646
      %v674 = vpop.f32.mrf.mxu0
      %v675 = vadd.f32 0.0, %v674
      %v676 = vpop.f32.mrf.mxu0
      %v677 = vadd.f32 0.0, %v676
      %678 = vmatmul.bf16.gmra.mxu0 %v649
      %v679 = vpop.f32.mrf.mxu0
      %v680 = vadd.f32 0.0, %v679
      %v681 = vpop.f32.mrf.mxu0
      %v682 = vadd.f32 0.0, %v681
      %683 = vdwg.mxu0
      %v692 = vunpack.c.l.b16 %v469
      %v693 = vunpack.c.l.b16 %v470
      %v694 = vunpack.c.l.b16 %v471
      %v695 = vunpack.c.l.b16 %v472
      %v696 = vunpack.c.l.b16 %v473
      %v697 = vunpack.c.l.b16 %v474
      %v698 = vunpack.c.l.b16 %v475
      %v699 = vunpack.c.l.b16 %v476
      %v700 = vpack.c.b16 %v693, %v692
      %v701 = vpack.c.b16 %v695, %v694
      %v702 = vpack.c.b16 %v697, %v696
      %v703 = vpack.c.b16 %v699, %v698
      %v709 = vunpack.c.l.b16 %v477
      %v710 = vunpack.c.l.b16 %v478
      %v711 = vunpack.c.l.b16 %v479
      %v712 = vunpack.c.l.b16 %v480
      %v713 = vunpack.c.l.b16 %v481
      %v714 = vpack.c.b16 %v710, %v709
      %v715 = vpack.c.b16 %v712, %v711
      %v716 = vpack.c.b16 %v713, %v713
      %v720 = vsel %vm638, %v700, 0
      %v723 = vsel %vm638, %v701, 0
      %v726 = vsel %vm638, %v702, 0
      %v729 = vsel %vm638, %v703, 0
      %v732 = vsel %vm651, %v716, 0
      %734 = vmatpush.bf16.msra.mxu0 0
      %735 = vmatpush.bf16.msra.mxu0 0
      %736 = vmatpush.bf16.msra.mxu0 0
      %737 = vmatpush.bf16.msra.mxu0 0
      %738 = vmatpush.bf16.msra.mxu0 0
      %739 = vmatpush.bf16.msra.mxu0 %v732
      %740 = vmatpush.bf16.msra.mxu0 %v715
      %741 = vmatpush.bf16.msra.mxu0 %v714
      %742 = vmatmul.bf16.gmra.mxu0 %v720
      %v743 = vpop.f32.mrf.mxu0
      %v744 = vadd.f32 %v665, %v743
      %v745 = vpop.f32.mrf.mxu0
      %v746 = vadd.f32 %v667, %v745
      %747 = vmatmul.bf16.gmra.mxu0 %v723
      %v748 = vpop.f32.mrf.mxu0
      %v749 = vadd.f32 %v670, %v748
      %v750 = vpop.f32.mrf.mxu0
      %v751 = vadd.f32 %v672, %v750
      %752 = vmatmul.bf16.gmra.mxu0 %v726
      %v753 = vpop.f32.mrf.mxu0
      %v754 = vadd.f32 %v675, %v753
      %v755 = vpop.f32.mrf.mxu0
      %v756 = vadd.f32 %v677, %v755
      %757 = vmatmul.bf16.gmra.mxu0 %v729
      %v758 = vpop.f32.mrf.mxu0
      %v759 = vadd.f32 %v680, %v758
      %v760 = vpop.f32.mrf.mxu0
      %v761 = vadd.f32 %v682, %v760
      %762 = vdwg.mxu0
      %v763 = vld [vmem:[#allocation2] sm:$0xe]
      %v764 = vld [vmem:[#allocation2 + $0x8] sm:$0xe]
      %v765 = vld [vmem:[#allocation2 + $0x10] sm:$0xe]
      %v766 = vld [vmem:[#allocation2 + $0x18] sm:$0xe]
      %v767 = vld [vmem:[#allocation2 + $0x20] sm:$0xe]
      %v768 = vld [vmem:[#allocation2 + $0x28] sm:$0xe]
      %v769 = vld [vmem:[#allocation2 + $0x30] sm:$0xe]
      %v770 = vld [vmem:[#allocation2 + $0x38] sm:$0xe]
      %vm787 = vcmask 1042432
      %vm788 = vcmask 1046532
      %vm789 = vmor %vm787, %vm788
      %v790 = vrot.slane %v763, 5
      %v791 = vrot.slane %v790, 4
      %v792 = vrot.slane %v482, 5
      %v793 = vsel %vm789, %v791, %v792
      %v794 = vrot.slane %v764, 5
      %v795 = vrot.slane %v794, 4
      %v796 = vrot.slane %v483, 5
      %v797 = vsel %vm789, %v795, %v796
      %v798 = vrot.slane %v765, 5
      %v799 = vrot.slane %v798, 4
      %v800 = vrot.slane %v484, 5
      %v801 = vsel %vm789, %v799, %v800
      %v802 = vrot.slane %v766, 5
      %v803 = vrot.slane %v802, 4
      %v804 = vrot.slane %v485, 5
      %v805 = vsel %vm789, %v803, %v804
      %v806 = vrot.slane %v767, 5
      %v807 = vrot.slane %v806, 4
      %v808 = vrot.slane %v486, 5
      %v809 = vsel %vm789, %v807, %v808
      %v810 = vrot.slane %v768, 5
      %v811 = vrot.slane %v810, 4
      %v812 = vrot.slane %v487, 5
      %v813 = vsel %vm789, %v811, %v812
      %v814 = vrot.slane %v769, 5
      %v815 = vrot.slane %v814, 4
      %v816 = vrot.slane %v488, 5
      %v817 = vsel %vm789, %v815, %v816
      %v818 = vrot.slane %v770, 5
      %v819 = vrot.slane %v818, 4
      %v820 = vrot.slane %v489, 5
      %v821 = vsel %vm789, %v819, %v820
      %s822 = scalar_lea.vmem %s3, 40
      %v823 = vld [vmem:[%s822] sm:$0xf]
      %v824 = vld [vmem:[%s822 + $0x4] sm:$0xf]
      %v825 = vld [vmem:[%s822 + $0x8] sm:$0xf]
      %v826 = vld [vmem:[%s822 + $0xc] sm:$0xf]
      %v827 = vld [vmem:[%s822 + $0x10] sm:$0x1]
      %v828 = vunpack.c.l.b16 %v793
      %v829 = vunpack.c.l.b16 %v797
      %v830 = vunpack.c.l.b16 %v801
      %v831 = vunpack.c.l.b16 %v805
      %v832 = vunpack.c.l.b16 %v809
      %v833 = vunpack.c.l.b16 %v813
      %v834 = vunpack.c.l.b16 %v817
      %v835 = vunpack.c.l.b16 %v821
      %v836 = vpack.c.b16 %v829, %v828
      %v837 = vpack.c.b16 %v831, %v830
      %v838 = vpack.c.b16 %v833, %v832
      %v839 = vpack.c.b16 %v835, %v834
      %v845 = vunpack.c.l.b16 %v823
      %v846 = vunpack.c.l.b16 %v824
      %v847 = vunpack.c.l.b16 %v825
      %v848 = vunpack.c.l.b16 %v826
      %v849 = vunpack.c.l.b16 %v827
      %v850 = vpack.c.b16 %v846, %v845
      %v851 = vpack.c.b16 %v848, %v847
      %v852 = vpack.c.b16 %v849, %v849
      %v856 = vsel %vm638, %v836, 0
      %v859 = vsel %vm638, %v837, 0
      %v862 = vsel %vm638, %v838, 0
      %v865 = vsel %vm638, %v839, 0
      %v868 = vsel %vm651, %v852, 0
      %870 = vmatpush.bf16.msra.mxu0 0
      %871 = vmatpush.bf16.msra.mxu0 0
      %872 = vmatpush.bf16.msra.mxu0 0
      %873 = vmatpush.bf16.msra.mxu0 0
      %874 = vmatpush.bf16.msra.mxu0 0
      %875 = vmatpush.bf16.msra.mxu0 %v868
      %876 = vmatpush.bf16.msra.mxu0 %v851
      %877 = vmatpush.bf16.msra.mxu0 %v850
      %878 = vmatmul.bf16.gmra.mxu0 %v856
      %v879 = vpop.f32.mrf.mxu0
      %v880 = vadd.f32 0.0, %v879
      %v881 = vpop.f32.mrf.mxu0
      %v882 = vadd.f32 0.0, %v881
      %883 = vmatmul.bf16.gmra.mxu0 %v859
      %v884 = vpop.f32.mrf.mxu0
      %v885 = vadd.f32 0.0, %v884
      %v886 = vpop.f32.mrf.mxu0
      %v887 = vadd.f32 0.0, %v886
      %888 = vmatmul.bf16.gmra.mxu0 %v862
      %v889 = vpop.f32.mrf.mxu0
      %v890 = vadd.f32 0.0, %v889
      %v891 = vpop.f32.mrf.mxu0
      %v892 = vadd.f32 0.0, %v891
      %893 = vmatmul.bf16.gmra.mxu0 %v865
      %v894 = vpop.f32.mrf.mxu0
      %v895 = vadd.f32 0.0, %v894
      %v896 = vpop.f32.mrf.mxu0
      %v897 = vadd.f32 0.0, %v896
      %898 = vdwg.mxu0
      %v899 = vadd.f32 %v744, %v880
      %v900 = vadd.f32 %v746, %v882
      %v901 = vadd.f32 %v749, %v885
      %v902 = vadd.f32 %v751, %v887
      %v903 = vadd.f32 %v754, %v890
      %v904 = vadd.f32 %v756, %v892
      %v905 = vadd.f32 %v759, %v895
      %v906 = vadd.f32 %v761, %v897
      %v907 = vld [vmem:[%s418] sm:$0xf]
      %v908 = vld [vmem:[%s418 + $0x8] sm:$0xf]
      %v909 = vld [vmem:[%s418 + $0x10] sm:$0xf]
      %v910 = vld [vmem:[%s418 + $0x18] sm:$0xf]
      %v911 = vld [vmem:[%s418 + $0x20] sm:$0xf]
      %v912 = vld [vmem:[%s418 + $0x28] sm:$0xf]
      %v913 = vld [vmem:[%s418 + $0x30] sm:$0xf]
      %v914 = vld [vmem:[%s418 + $0x38] sm:$0xf]
      %s915 = scalar_lea.vmem %s3, 60
      %v916 = vld [vmem:[%s915] sm:$0xf]
      %v917 = vld [vmem:[%s915 + $0x4] sm:$0xf]
      %v918 = vld [vmem:[%s915 + $0x8] sm:$0xf]
      %v919 = vld [vmem:[%s915 + $0xc] sm:$0xf]
      %v920 = vld [vmem:[%s915 + $0x10] sm:$0x1]
      %v929 = vunpack.c.l.b16 %v907
      %v930 = vunpack.c.l.b16 %v908
      %v931 = vunpack.c.l.b16 %v909
      %v932 = vunpack.c.l.b16 %v910
      %v933 = vunpack.c.l.b16 %v911
      %v934 = vunpack.c.l.b16 %v912
      %v935 = vunpack.c.l.b16 %v913
      %v936 = vunpack.c.l.b16 %v914
      %v937 = vpack.c.b16 %v930, %v929
      %v938 = vpack.c.b16 %v932, %v931
      %v939 = vpack.c.b16 %v934, %v933
      %v940 = vpack.c.b16 %v936, %v935
      %v946 = vunpack.c.l.b16 %v916
      %v947 = vunpack.c.l.b16 %v917
      %v948 = vunpack.c.l.b16 %v918
      %v949 = vunpack.c.l.b16 %v919
      %v950 = vunpack.c.l.b16 %v920
      %v951 = vpack.c.b16 %v947, %v946
      %v952 = vpack.c.b16 %v949, %v948
      %v953 = vpack.c.b16 %v950, %v950
      %v957 = vsel %vm638, %v937, 0
      %v960 = vsel %vm638, %v938, 0
      %v963 = vsel %vm638, %v939, 0
      %v966 = vsel %vm638, %v940, 0
      %v969 = vsel %vm651, %v953, 0
      %971 = vmatpush.bf16.msra.mxu0 0
      %972 = vmatpush.bf16.msra.mxu0 0
      %973 = vmatpush.bf16.msra.mxu0 0
      %974 = vmatpush.bf16.msra.mxu0 0
      %975 = vmatpush.bf16.msra.mxu0 0
      %976 = vmatpush.bf16.msra.mxu0 %v969
      %977 = vmatpush.bf16.msra.mxu0 %v952
      %978 = vmatpush.bf16.msra.mxu0 %v951
      %979 = vmatmul.bf16.gmra.mxu0 %v957
      %v980 = vpop.f32.mrf.mxu0
      %v981 = vadd.f32 0.0, %v980
      %v982 = vpop.f32.mrf.mxu0
      %v983 = vadd.f32 0.0, %v982
      %984 = vmatmul.bf16.gmra.mxu0 %v960
      %v985 = vpop.f32.mrf.mxu0
      %v986 = vadd.f32 0.0, %v985
      %v987 = vpop.f32.mrf.mxu0
      %v988 = vadd.f32 0.0, %v987
      %989 = vmatmul.bf16.gmra.mxu0 %v963
      %v990 = vpop.f32.mrf.mxu0
      %v991 = vadd.f32 0.0, %v990
      %v992 = vpop.f32.mrf.mxu0
      %v993 = vadd.f32 0.0, %v992
      %994 = vmatmul.bf16.gmra.mxu0 %v966
      %v995 = vpop.f32.mrf.mxu0
      %v996 = vadd.f32 0.0, %v995
      %v997 = vpop.f32.mrf.mxu0
      %v998 = vadd.f32 0.0, %v997
      %999 = vdwg.mxu0
      %v1000 = vadd.f32 %v899, %v981
      %v1001 = vadd.f32 %v900, %v983
      %v1002 = vadd.f32 %v901, %v986
      %v1003 = vadd.f32 %v902, %v988
      %v1004 = vadd.f32 %v903, %v991
      %v1005 = vadd.f32 %v904, %v993
      %v1006 = vadd.f32 %v905, %v996
      %v1007 = vadd.f32 %v906, %v998
      %v1008 = vld [vmem:[%s418] sm:$0xf]
      %v1009 = vld [vmem:[%s418 + $0x4] sm:$0x1]
      %v1010 = vld [vmem:[%s418 + $0x8] sm:$0xf]
      %v1011 = vld [vmem:[%s418 + $0xc] sm:$0x1]
      %v1012 = vld [vmem:[%s418 + $0x10] sm:$0xf]
      %v1013 = vld [vmem:[%s418 + $0x14] sm:$0x1]
      %v1014 = vld [vmem:[%s418 + $0x18] sm:$0xf]
      %v1015 = vld [vmem:[%s418 + $0x1c] sm:$0x1]
      %v1016 = vld [vmem:[%s418 + $0x20] sm:$0xf]
      %v1017 = vld [vmem:[%s418 + $0x24] sm:$0x1]
      %v1018 = vld [vmem:[%s418 + $0x28] sm:$0xf]
      %v1019 = vld [vmem:[%s418 + $0x2c] sm:$0x1]
      %v1020 = vld [vmem:[%s418 + $0x30] sm:$0xf]
      %v1021 = vld [vmem:[%s418 + $0x34] sm:$0x1]
      %v1022 = vld [vmem:[%s418 + $0x38] sm:$0xf]
      %v1023 = vld [vmem:[%s418 + $0x3c] sm:$0x1]
      %v1025 = vshrl.u32 %v1008, 16
      %v1027 = vrot.slane %v1025, 4
      %v1028 = vshll.u32 %v1008, 16
      %v1030 = vrot.slane %v1028, 5
      %v1031 = vor.u32 %v1027, %v1030
      %v1032 = vrot.slane %v1031, 4
      %v1034 = vshll.u32 %v1009, 16
      %v1036 = vrot.slane %v1034, 5
      %v1037 = vsel %vm492, %v1032, %v1036
      %v1039 = vshrl.u32 %v1010, 16
      %v1041 = vrot.slane %v1039, 4
      %v1042 = vshll.u32 %v1010, 16
      %v1044 = vrot.slane %v1042, 5
      %v1045 = vor.u32 %v1041, %v1044
      %v1046 = vrot.slane %v1045, 4
      %v1048 = vshll.u32 %v1011, 16
      %v1050 = vrot.slane %v1048, 5
      %v1051 = vsel %vm492, %v1046, %v1050
      %v1053 = vshrl.u32 %v1012, 16
      %v1055 = vrot.slane %v1053, 4
      %v1056 = vshll.u32 %v1012, 16
      %v1058 = vrot.slane %v1056, 5
      %v1059 = vor.u32 %v1055, %v1058
      %v1060 = vrot.slane %v1059, 4
      %v1062 = vshll.u32 %v1013, 16
      %v1064 = vrot.slane %v1062, 5
      %v1065 = vsel %vm492, %v1060, %v1064
      %v1067 = vshrl.u32 %v1014, 16
      %v1069 = vrot.slane %v1067, 4
      %v1070 = vshll.u32 %v1014, 16
      %v1072 = vrot.slane %v1070, 5
      %v1073 = vor.u32 %v1069, %v1072
      %v1074 = vrot.slane %v1073, 4
      %v1076 = vshll.u32 %v1015, 16
      %v1078 = vrot.slane %v1076, 5
      %v1079 = vsel %vm492, %v1074, %v1078
      %v1081 = vshrl.u32 %v1016, 16
      %v1083 = vrot.slane %v1081, 4
      %v1084 = vshll.u32 %v1016, 16
      %v1086 = vrot.slane %v1084, 5
      %v1087 = vor.u32 %v1083, %v1086
      %v1088 = vrot.slane %v1087, 4
      %v1090 = vshll.u32 %v1017, 16
      %v1092 = vrot.slane %v1090, 5
      %v1093 = vsel %vm492, %v1088, %v1092
      %v1095 = vshrl.u32 %v1018, 16
      %v1097 = vrot.slane %v1095, 4
      %v1098 = vshll.u32 %v1018, 16
      %v1100 = vrot.slane %v1098, 5
      %v1101 = vor.u32 %v1097, %v1100
      %v1102 = vrot.slane %v1101, 4
      %v1104 = vshll.u32 %v1019, 16
      %v1106 = vrot.slane %v1104, 5
      %v1107 = vsel %vm492, %v1102, %v1106
      %v1109 = vshrl.u32 %v1020, 16
      %v1111 = vrot.slane %v1109, 4
      %v1112 = vshll.u32 %v1020, 16
      %v1114 = vrot.slane %v1112, 5
      %v1115 = vor.u32 %v1111, %v1114
      %v1116 = vrot.slane %v1115, 4
      %v1118 = vshll.u32 %v1021, 16
      %v1120 = vrot.slane %v1118, 5
      %v1121 = vsel %vm492, %v1116, %v1120
      %v1123 = vshrl.u32 %v1022, 16
      %v1125 = vrot.slane %v1123, 4
      %v1126 = vshll.u32 %v1022, 16
      %v1128 = vrot.slane %v1126, 5
      %v1129 = vor.u32 %v1125, %v1128
      %v1130 = vrot.slane %v1129, 4
      %v1132 = vshll.u32 %v1023, 16
      %v1134 = vrot.slane %v1132, 5
      %v1135 = vsel %vm492, %v1130, %v1134
      %s1136 = scalar_lea.vmem %s3, 80
      %v1137 = vld [vmem:[%s1136] sm:$0xf]
      %v1138 = vld [vmem:[%s1136 + $0x4] sm:$0xf]
      %v1139 = vld [vmem:[%s1136 + $0x8] sm:$0xf]
      %v1140 = vld [vmem:[%s1136 + $0xc] sm:$0xf]
      %v1141 = vld [vmem:[%s1136 + $0x10] sm:$0x1]
      %v1142 = vunpack.c.l.b16 %v1037
      %v1143 = vunpack.c.l.b16 %v1051
      %v1144 = vunpack.c.l.b16 %v1065
      %v1145 = vunpack.c.l.b16 %v1079
      %v1146 = vunpack.c.l.b16 %v1093
      %v1147 = vunpack.c.l.b16 %v1107
      %v1148 = vunpack.c.l.b16 %v1121
      %v1149 = vunpack.c.l.b16 %v1135
      %v1150 = vpack.c.b16 %v1143, %v1142
      %v1151 = vpack.c.b16 %v1145, %v1144
      %v1152 = vpack.c.b16 %v1147, %v1146
      %v1153 = vpack.c.b16 %v1149, %v1148
      %v1159 = vunpack.c.l.b16 %v1137
      %v1160 = vunpack.c.l.b16 %v1138
      %v1161 = vunpack.c.l.b16 %v1139
      %v1162 = vunpack.c.l.b16 %v1140
      %v1163 = vunpack.c.l.b16 %v1141
      %v1164 = vpack.c.b16 %v1160, %v1159
      %v1165 = vpack.c.b16 %v1162, %v1161
      %v1166 = vpack.c.b16 %v1163, %v1163
      %v1170 = vsel %vm638, %v1150, 0
      %v1173 = vsel %vm638, %v1151, 0
      %v1176 = vsel %vm638, %v1152, 0
      %v1179 = vsel %vm638, %v1153, 0
      %v1182 = vsel %vm651, %v1166, 0
      %1184 = vmatpush.bf16.msra.mxu0 0
      %1185 = vmatpush.bf16.msra.mxu0 0
      %1186 = vmatpush.bf16.msra.mxu0 0
      %1187 = vmatpush.bf16.msra.mxu0 0
      %1188 = vmatpush.bf16.msra.mxu0 0
      %1189 = vmatpush.bf16.msra.mxu0 %v1182
      %1190 = vmatpush.bf16.msra.mxu0 %v1165
      %1191 = vmatpush.bf16.msra.mxu0 %v1164
      %1192 = vmatmul.bf16.gmra.mxu0 %v1170
      %v1193 = vpop.f32.mrf.mxu0
      %v1194 = vadd.f32 0.0, %v1193
      %v1195 = vpop.f32.mrf.mxu0
      %v1196 = vadd.f32 0.0, %v1195
      %1197 = vmatmul.bf16.gmra.mxu0 %v1173
      %v1198 = vpop.f32.mrf.mxu0
      %v1199 = vadd.f32 0.0, %v1198
      %v1200 = vpop.f32.mrf.mxu0
      %v1201 = vadd.f32 0.0, %v1200
      %1202 = vmatmul.bf16.gmra.mxu0 %v1176
      %v1203 = vpop.f32.mrf.mxu0
      %v1204 = vadd.f32 0.0, %v1203
      %v1205 = vpop.f32.mrf.mxu0
      %v1206 = vadd.f32 0.0, %v1205
      %1207 = vmatmul.bf16.gmra.mxu0 %v1179
      %v1208 = vpop.f32.mrf.mxu0
      %v1209 = vadd.f32 0.0, %v1208
      %v1210 = vpop.f32.mrf.mxu0
      %v1211 = vadd.f32 0.0, %v1210
      %1212 = vdwg.mxu0
      %v1213 = vadd.f32 %v1000, %v1194
      %v1214 = vadd.f32 %v1001, %v1196
      %v1215 = vadd.f32 %v1002, %v1199
      %v1216 = vadd.f32 %v1003, %v1201
      %v1217 = vadd.f32 %v1004, %v1204
      %v1218 = vadd.f32 %v1005, %v1206
      %v1219 = vadd.f32 %v1006, %v1209
      %v1220 = vadd.f32 %v1007, %v1211
      %v1221 = vld [vmem:[%s418] sm:$0xe]
      %v1222 = vld [vmem:[%s418 + $0x8] sm:$0xe]
      %v1223 = vld [vmem:[%s418 + $0x10] sm:$0xe]
      %v1224 = vld [vmem:[%s418 + $0x18] sm:$0xe]
      %v1225 = vld [vmem:[%s418 + $0x20] sm:$0xe]
      %v1226 = vld [vmem:[%s418 + $0x28] sm:$0xe]
      %v1227 = vld [vmem:[%s418 + $0x30] sm:$0xe]
      %v1228 = vld [vmem:[%s418 + $0x38] sm:$0xe]
      %v1245 = vrot.slane %v1221, 5
      %v1246 = vrot.slane %v1245, 4
      %v1247 = vrot.slane %v1009, 5
      %v1248 = vsel %vm789, %v1246, %v1247
      %v1249 = vrot.slane %v1222, 5
      %v1250 = vrot.slane %v1249, 4
      %v1251 = vrot.slane %v1011, 5
      %v1252 = vsel %vm789, %v1250, %v1251
      %v1253 = vrot.slane %v1223, 5
      %v1254 = vrot.slane %v1253, 4
      %v1255 = vrot.slane %v1013, 5
      %v1256 = vsel %vm789, %v1254, %v1255
      %v1257 = vrot.slane %v1224, 5
      %v1258 = vrot.slane %v1257, 4
      %v1259 = vrot.slane %v1015, 5
      %v1260 = vsel %vm789, %v1258, %v1259
      %v1261 = vrot.slane %v1225, 5
      %v1262 = vrot.slane %v1261, 4
      %v1263 = vrot.slane %v1017, 5
      %v1264 = vsel %vm789, %v1262, %v1263
      %v1265 = vrot.slane %v1226, 5
      %v1266 = vrot.slane %v1265, 4
      %v1267 = vrot.slane %v1019, 5
      %v1268 = vsel %vm789, %v1266, %v1267
      %v1269 = vrot.slane %v1227, 5
      %v1270 = vrot.slane %v1269, 4
      %v1271 = vrot.slane %v1021, 5
      %v1272 = vsel %vm789, %v1270, %v1271
      %v1273 = vrot.slane %v1228, 5
      %v1274 = vrot.slane %v1273, 4
      %v1275 = vrot.slane %v1023, 5
      %v1276 = vsel %vm789, %v1274, %v1275
      %s1277 = scalar_lea.vmem %s3, 100
      %v1278 = vld [vmem:[%s1277] sm:$0xf]
      %v1279 = vld [vmem:[%s1277 + $0x4] sm:$0xf]
      %v1280 = vld [vmem:[%s1277 + $0x8] sm:$0xf]
      %v1281 = vld [vmem:[%s1277 + $0xc] sm:$0xf]
      %v1282 = vld [vmem:[%s1277 + $0x10] sm:$0x1]
      %v1283 = vunpack.c.l.b16 %v1248
      %v1284 = vunpack.c.l.b16 %v1252
      %v1285 = vunpack.c.l.b16 %v1256
      %v1286 = vunpack.c.l.b16 %v1260
      %v1287 = vunpack.c.l.b16 %v1264
      %v1288 = vunpack.c.l.b16 %v1268
      %v1289 = vunpack.c.l.b16 %v1272
      %v1290 = vunpack.c.l.b16 %v1276
      %v1291 = vpack.c.b16 %v1284, %v1283
      %v1292 = vpack.c.b16 %v1286, %v1285
      %v1293 = vpack.c.b16 %v1288, %v1287
      %v1294 = vpack.c.b16 %v1290, %v1289
      %v1300 = vunpack.c.l.b16 %v1278
      %v1301 = vunpack.c.l.b16 %v1279
      %v1302 = vunpack.c.l.b16 %v1280
      %v1303 = vunpack.c.l.b16 %v1281
      %v1304 = vunpack.c.l.b16 %v1282
      %v1305 = vpack.c.b16 %v1301, %v1300
      %v1306 = vpack.c.b16 %v1303, %v1302
      %v1307 = vpack.c.b16 %v1304, %v1304
      %v1311 = vsel %vm638, %v1291, 0
      %v1314 = vsel %vm638, %v1292, 0
      %v1317 = vsel %vm638, %v1293, 0
      %v1320 = vsel %vm638, %v1294, 0
      %v1323 = vsel %vm651, %v1307, 0
      %1325 = vmatpush.bf16.msra.mxu0 0
      %1326 = vmatpush.bf16.msra.mxu0 0
      %1327 = vmatpush.bf16.msra.mxu0 0
      %1328 = vmatpush.bf16.msra.mxu0 0
      %1329 = vmatpush.bf16.msra.mxu0 0
      %1330 = vmatpush.bf16.msra.mxu0 %v1323
      %1331 = vmatpush.bf16.msra.mxu0 %v1306
      %1332 = vmatpush.bf16.msra.mxu0 %v1305
      %1333 = vmatmul.bf16.gmra.mxu0 %v1311
      %v1334 = vpop.f32.mrf.mxu0
      %v1335 = vadd.f32 0.0, %v1334
      %v1336 = vpop.f32.mrf.mxu0
      %v1337 = vadd.f32 0.0, %v1336
      %1338 = vmatmul.bf16.gmra.mxu0 %v1314
      %v1339 = vpop.f32.mrf.mxu0
      %v1340 = vadd.f32 0.0, %v1339
      %v1341 = vpop.f32.mrf.mxu0
      %v1342 = vadd.f32 0.0, %v1341
      %1343 = vmatmul.bf16.gmra.mxu0 %v1317
      %v1344 = vpop.f32.mrf.mxu0
      %v1345 = vadd.f32 0.0, %v1344
      %v1346 = vpop.f32.mrf.mxu0
      %v1347 = vadd.f32 0.0, %v1346
      %1348 = vmatmul.bf16.gmra.mxu0 %v1320
      %v1349 = vpop.f32.mrf.mxu0
      %v1350 = vadd.f32 0.0, %v1349
      %v1351 = vpop.f32.mrf.mxu0
      %v1352 = vadd.f32 0.0, %v1351
      %1353 = vdwg.mxu0
      %v1354 = vadd.f32 %v1213, %v1335
      %v1355 = vadd.f32 %v1214, %v1337
      %v1356 = vadd.f32 %v1215, %v1340
      %v1357 = vadd.f32 %v1216, %v1342
      %v1358 = vadd.f32 %v1217, %v1345
      %v1359 = vadd.f32 %v1218, %v1347
      %v1360 = vadd.f32 %v1219, %v1350
      %v1361 = vadd.f32 %v1220, %v1352
      %s1362 = scalar_lea.vmem [#allocation2], 16
      %v1363 = vld [vmem:[%s1362] sm:$0xf]
      %v1364 = vld [vmem:[%s1362 + $0x8] sm:$0xf]
      %v1365 = vld [vmem:[%s1362 + $0x10] sm:$0xf]
      %v1366 = vld [vmem:[%s1362 + $0x18] sm:$0xf]
      %v1367 = vld [vmem:[%s1362 + $0x20] sm:$0xf]
      %v1368 = vld [vmem:[%s1362 + $0x28] sm:$0xf]
      %v1369 = vld [vmem:[%s1362 + $0x30] sm:$0xf]
      %v1370 = vld [vmem:[%s1362 + $0x38] sm:$0xf]
      %s1371 = scalar_lea.vmem %s3, 120
      %v1372 = vld [vmem:[%s1371] sm:$0xf]
      %v1373 = vld [vmem:[%s1371 + $0x4] sm:$0xf]
      %v1374 = vld [vmem:[%s1371 + $0x8] sm:$0xf]
      %v1375 = vld [vmem:[%s1371 + $0xc] sm:$0xf]
      %v1376 = vld [vmem:[%s1371 + $0x10] sm:$0x1]
      %v1385 = vunpack.c.l.b16 %v1363
      %v1386 = vunpack.c.l.b16 %v1364
      %v1387 = vunpack.c.l.b16 %v1365
      %v1388 = vunpack.c.l.b16 %v1366
      %v1389 = vunpack.c.l.b16 %v1367
      %v1390 = vunpack.c.l.b16 %v1368
      %v1391 = vunpack.c.l.b16 %v1369
      %v1392 = vunpack.c.l.b16 %v1370
      %v1393 = vpack.c.b16 %v1386, %v1385
      %v1394 = vpack.c.b16 %v1388, %v1387
      %v1395 = vpack.c.b16 %v1390, %v1389
      %v1396 = vpack.c.b16 %v1392, %v1391
      %v1402 = vunpack.c.l.b16 %v1372
      %v1403 = vunpack.c.l.b16 %v1373
      %v1404 = vunpack.c.l.b16 %v1374
      %v1405 = vunpack.c.l.b16 %v1375
      %v1406 = vunpack.c.l.b16 %v1376
      %v1407 = vpack.c.b16 %v1403, %v1402
      %v1408 = vpack.c.b16 %v1405, %v1404
      %v1409 = vpack.c.b16 %v1406, %v1406
      %v1413 = vsel %vm638, %v1393, 0
      %v1416 = vsel %vm638, %v1394, 0
      %v1419 = vsel %vm638, %v1395, 0
      %v1422 = vsel %vm638, %v1396, 0
      %v1425 = vsel %vm651, %v1409, 0
      %1427 = vmatpush.bf16.msra.mxu0 0
      %1428 = vmatpush.bf16.msra.mxu0 0
      %1429 = vmatpush.bf16.msra.mxu0 0
      %1430 = vmatpush.bf16.msra.mxu0 0
      %1431 = vmatpush.bf16.msra.mxu0 0
      %1432 = vmatpush.bf16.msra.mxu0 %v1425
      %1433 = vmatpush.bf16.msra.mxu0 %v1408
      %1434 = vmatpush.bf16.msra.mxu0 %v1407
      %1435 = vmatmul.bf16.gmra.mxu0 %v1413
      %v1436 = vpop.f32.mrf.mxu0
      %v1437 = vadd.f32 0.0, %v1436
      %v1438 = vpop.f32.mrf.mxu0
      %v1439 = vadd.f32 0.0, %v1438
      %1440 = vmatmul.bf16.gmra.mxu0 %v1416
      %v1441 = vpop.f32.mrf.mxu0
      %v1442 = vadd.f32 0.0, %v1441
      %v1443 = vpop.f32.mrf.mxu0
      %v1444 = vadd.f32 0.0, %v1443
      %1445 = vmatmul.bf16.gmra.mxu0 %v1419
      %v1446 = vpop.f32.mrf.mxu0
      %v1447 = vadd.f32 0.0, %v1446
      %v1448 = vpop.f32.mrf.mxu0
      %v1449 = vadd.f32 0.0, %v1448
      %1450 = vmatmul.bf16.gmra.mxu0 %v1422
      %v1451 = vpop.f32.mrf.mxu0
      %v1452 = vadd.f32 0.0, %v1451
      %v1453 = vpop.f32.mrf.mxu0
      %v1454 = vadd.f32 0.0, %v1453
      %1455 = vdwg.mxu0
      %v1456 = vadd.f32 %v1354, %v1437
      %v1457 = vadd.f32 %v1355, %v1439
      %v1458 = vadd.f32 %v1356, %v1442
      %v1459 = vadd.f32 %v1357, %v1444
      %v1460 = vadd.f32 %v1358, %v1447
      %v1461 = vadd.f32 %v1359, %v1449
      %v1462 = vadd.f32 %v1360, %v1452
      %v1463 = vadd.f32 %v1361, %v1454
      %v1464 = vld [vmem:[%s1362] sm:$0xf]
      %v1465 = vld [vmem:[%s1362 + $0x4] sm:$0x1]
      %v1466 = vld [vmem:[%s1362 + $0x8] sm:$0xf]
      %v1467 = vld [vmem:[%s1362 + $0xc] sm:$0x1]
      %v1468 = vld [vmem:[%s1362 + $0x10] sm:$0xf]
      %v1469 = vld [vmem:[%s1362 + $0x14] sm:$0x1]
      %v1470 = vld [vmem:[%s1362 + $0x18] sm:$0xf]
      %v1471 = vld [vmem:[%s1362 + $0x1c] sm:$0x1]
      %v1472 = vld [vmem:[%s1362 + $0x20] sm:$0xf]
      %v1473 = vld [vmem:[%s1362 + $0x24] sm:$0x1]
      %v1474 = vld [vmem:[%s1362 + $0x28] sm:$0xf]
      %v1475 = vld [vmem:[%s1362 + $0x2c] sm:$0x1]
      %v1476 = vld [vmem:[%s1362 + $0x30] sm:$0xf]
      %v1477 = vld [vmem:[%s1362 + $0x34] sm:$0x1]
      %v1478 = vld [vmem:[%s1362 + $0x38] sm:$0xf]
      %v1479 = vld [vmem:[%s1362 + $0x3c] sm:$0x1]
      %v1481 = vshrl.u32 %v1464, 16
      %v1483 = vrot.slane %v1481, 4
      %v1484 = vshll.u32 %v1464, 16
      %v1486 = vrot.slane %v1484, 5
      %v1487 = vor.u32 %v1483, %v1486
      %v1488 = vrot.slane %v1487, 4
      %v1490 = vshll.u32 %v1465, 16
      %v1492 = vrot.slane %v1490, 5
      %v1493 = vsel %vm492, %v1488, %v1492
      %v1495 = vshrl.u32 %v1466, 16
      %v1497 = vrot.slane %v1495, 4
      %v1498 = vshll.u32 %v1466, 16
      %v1500 = vrot.slane %v1498, 5
      %v1501 = vor.u32 %v1497, %v1500
      %v1502 = vrot.slane %v1501, 4
      %v1504 = vshll.u32 %v1467, 16
      %v1506 = vrot.slane %v1504, 5
      %v1507 = vsel %vm492, %v1502, %v1506
      %v1509 = vshrl.u32 %v1468, 16
      %v1511 = vrot.slane %v1509, 4
      %v1512 = vshll.u32 %v1468, 16
      %v1514 = vrot.slane %v1512, 5
      %v1515 = vor.u32 %v1511, %v1514
      %v1516 = vrot.slane %v1515, 4
      %v1518 = vshll.u32 %v1469, 16
      %v1520 = vrot.slane %v1518, 5
      %v1521 = vsel %vm492, %v1516, %v1520
      %v1523 = vshrl.u32 %v1470, 16
      %v1525 = vrot.slane %v1523, 4
      %v1526 = vshll.u32 %v1470, 16
      %v1528 = vrot.slane %v1526, 5
      %v1529 = vor.u32 %v1525, %v1528
      %v1530 = vrot.slane %v1529, 4
      %v1532 = vshll.u32 %v1471, 16
      %v1534 = vrot.slane %v1532, 5
      %v1535 = vsel %vm492, %v1530, %v1534
      %v1537 = vshrl.u32 %v1472, 16
      %v1539 = vrot.slane %v1537, 4
      %v1540 = vshll.u32 %v1472, 16
      %v1542 = vrot.slane %v1540, 5
      %v1543 = vor.u32 %v1539, %v1542
      %v1544 = vrot.slane %v1543, 4
      %v1546 = vshll.u32 %v1473, 16
      %v1548 = vrot.slane %v1546, 5
      %v1549 = vsel %vm492, %v1544, %v1548
      %v1551 = vshrl.u32 %v1474, 16
      %v1553 = vrot.slane %v1551, 4
      %v1554 = vshll.u32 %v1474, 16
      %v1556 = vrot.slane %v1554, 5
      %v1557 = vor.u32 %v1553, %v1556
      %v1558 = vrot.slane %v1557, 4
      %v1560 = vshll.u32 %v1475, 16
      %v1562 = vrot.slane %v1560, 5
      %v1563 = vsel %vm492, %v1558, %v1562
      %v1565 = vshrl.u32 %v1476, 16
      %v1567 = vrot.slane %v1565, 4
      %v1568 = vshll.u32 %v1476, 16
      %v1570 = vrot.slane %v1568, 5
      %v1571 = vor.u32 %v1567, %v1570
      %v1572 = vrot.slane %v1571, 4
      %v1574 = vshll.u32 %v1477, 16
      %v1576 = vrot.slane %v1574, 5
      %v1577 = vsel %vm492, %v1572, %v1576
      %v1579 = vshrl.u32 %v1478, 16
      %v1581 = vrot.slane %v1579, 4
      %v1582 = vshll.u32 %v1478, 16
      %v1584 = vrot.slane %v1582, 5
      %v1585 = vor.u32 %v1581, %v1584
      %v1586 = vrot.slane %v1585, 4
      %v1588 = vshll.u32 %v1479, 16
      %v1590 = vrot.slane %v1588, 5
      %v1591 = vsel %vm492, %v1586, %v1590
      %s1592 = scalar_lea.vmem %s3, 140
      %v1593 = vld [vmem:[%s1592] sm:$0xf]
      %v1594 = vld [vmem:[%s1592 + $0x4] sm:$0xf]
      %v1595 = vld [vmem:[%s1592 + $0x8] sm:$0xf]
      %v1596 = vld [vmem:[%s1592 + $0xc] sm:$0xf]
      %v1597 = vld [vmem:[%s1592 + $0x10] sm:$0x1]
      %v1598 = vunpack.c.l.b16 %v1493
      %v1599 = vunpack.c.l.b16 %v1507
      %v1600 = vunpack.c.l.b16 %v1521
      %v1601 = vunpack.c.l.b16 %v1535
      %v1602 = vunpack.c.l.b16 %v1549
      %v1603 = vunpack.c.l.b16 %v1563
      %v1604 = vunpack.c.l.b16 %v1577
      %v1605 = vunpack.c.l.b16 %v1591
      %v1606 = vpack.c.b16 %v1599, %v1598
      %v1607 = vpack.c.b16 %v1601, %v1600
      %v1608 = vpack.c.b16 %v1603, %v1602
      %v1609 = vpack.c.b16 %v1605, %v1604
      %v1615 = vunpack.c.l.b16 %v1593
      %v1616 = vunpack.c.l.b16 %v1594
      %v1617 = vunpack.c.l.b16 %v1595
      %v1618 = vunpack.c.l.b16 %v1596
      %v1619 = vunpack.c.l.b16 %v1597
      %v1620 = vpack.c.b16 %v1616, %v1615
      %v1621 = vpack.c.b16 %v1618, %v1617
      %v1622 = vpack.c.b16 %v1619, %v1619
      %v1626 = vsel %vm638, %v1606, 0
      %v1629 = vsel %vm638, %v1607, 0
      %v1632 = vsel %vm638, %v1608, 0
      %v1635 = vsel %vm638, %v1609, 0
      %v1638 = vsel %vm651, %v1622, 0
      %1640 = vmatpush.bf16.msra.mxu0 0
      %1641 = vmatpush.bf16.msra.mxu0 0
      %1642 = vmatpush.bf16.msra.mxu0 0
      %1643 = vmatpush.bf16.msra.mxu0 0
      %1644 = vmatpush.bf16.msra.mxu0 0
      %1645 = vmatpush.bf16.msra.mxu0 %v1638
      %1646 = vmatpush.bf16.msra.mxu0 %v1621
      %1647 = vmatpush.bf16.msra.mxu0 %v1620
      %1648 = vmatmul.bf16.gmra.mxu0 %v1626
      %v1649 = vpop.f32.mrf.mxu0
      %v1650 = vadd.f32 0.0, %v1649
      %v1651 = vpop.f32.mrf.mxu0
      %v1652 = vadd.f32 0.0, %v1651
      %1653 = vmatmul.bf16.gmra.mxu0 %v1629
      %v1654 = vpop.f32.mrf.mxu0
      %v1655 = vadd.f32 0.0, %v1654
      %v1656 = vpop.f32.mrf.mxu0
      %v1657 = vadd.f32 0.0, %v1656
      %1658 = vmatmul.bf16.gmra.mxu0 %v1632
      %v1659 = vpop.f32.mrf.mxu0
      %v1660 = vadd.f32 0.0, %v1659
      %v1661 = vpop.f32.mrf.mxu0
      %v1662 = vadd.f32 0.0, %v1661
      %1663 = vmatmul.bf16.gmra.mxu0 %v1635
      %v1664 = vpop.f32.mrf.mxu0
      %v1665 = vadd.f32 0.0, %v1664
      %v1666 = vpop.f32.mrf.mxu0
      %v1667 = vadd.f32 0.0, %v1666
      %1668 = vdwg.mxu0
      %v1669 = vadd.f32 %v1456, %v1650
      %v1670 = vadd.f32 %v1457, %v1652
      %v1671 = vadd.f32 %v1458, %v1655
      %v1672 = vadd.f32 %v1459, %v1657
      %v1673 = vadd.f32 %v1460, %v1660
      %v1674 = vadd.f32 %v1461, %v1662
      %v1675 = vadd.f32 %v1462, %v1665
      %v1676 = vadd.f32 %v1463, %v1667
      %v1677 = vld [vmem:[%s1362] sm:$0xe]
      %v1678 = vld [vmem:[%s1362 + $0x8] sm:$0xe]
      %v1679 = vld [vmem:[%s1362 + $0x10] sm:$0xe]
      %v1680 = vld [vmem:[%s1362 + $0x18] sm:$0xe]
      %v1681 = vld [vmem:[%s1362 + $0x20] sm:$0xe]
      %v1682 = vld [vmem:[%s1362 + $0x28] sm:$0xe]
      %v1683 = vld [vmem:[%s1362 + $0x30] sm:$0xe]
      %v1684 = vld [vmem:[%s1362 + $0x38] sm:$0xe]
      %v1701 = vrot.slane %v1677, 5
      %v1702 = vrot.slane %v1701, 4
      %v1703 = vrot.slane %v1465, 5
      %v1704 = vsel %vm789, %v1702, %v1703
      %v1705 = vrot.slane %v1678, 5
      %v1706 = vrot.slane %v1705, 4
      %v1707 = vrot.slane %v1467, 5
      %v1708 = vsel %vm789, %v1706, %v1707
      %v1709 = vrot.slane %v1679, 5
      %v1710 = vrot.slane %v1709, 4
      %v1711 = vrot.slane %v1469, 5
      %v1712 = vsel %vm789, %v1710, %v1711
      %v1713 = vrot.slane %v1680, 5
      %v1714 = vrot.slane %v1713, 4
      %v1715 = vrot.slane %v1471, 5
      %v1716 = vsel %vm789, %v1714, %v1715
      %v1717 = vrot.slane %v1681, 5
      %v1718 = vrot.slane %v1717, 4
      %v1719 = vrot.slane %v1473, 5
      %v1720 = vsel %vm789, %v1718, %v1719
      %v1721 = vrot.slane %v1682, 5
      %v1722 = vrot.slane %v1721, 4
      %v1723 = vrot.slane %v1475, 5
      %v1724 = vsel %vm789, %v1722, %v1723
      %v1725 = vrot.slane %v1683, 5
      %v1726 = vrot.slane %v1725, 4
      %v1727 = vrot.slane %v1477, 5
      %v1728 = vsel %vm789, %v1726, %v1727
      %v1729 = vrot.slane %v1684, 5
      %v1730 = vrot.slane %v1729, 4
      %v1731 = vrot.slane %v1479, 5
      %v1732 = vsel %vm789, %v1730, %v1731
      %s1733 = scalar_lea.vmem %s3, 160
      %v1734 = vld [vmem:[%s1733] sm:$0xf]
      %v1735 = vld [vmem:[%s1733 + $0x4] sm:$0xf]
      %v1736 = vld [vmem:[%s1733 + $0x8] sm:$0xf]
      %v1737 = vld [vmem:[%s1733 + $0xc] sm:$0xf]
      %v1738 = vld [vmem:[%s1733 + $0x10] sm:$0x1]
      %v1739 = vunpack.c.l.b16 %v1704
      %v1740 = vunpack.c.l.b16 %v1708
      %v1741 = vunpack.c.l.b16 %v1712
      %v1742 = vunpack.c.l.b16 %v1716
      %v1743 = vunpack.c.l.b16 %v1720
      %v1744 = vunpack.c.l.b16 %v1724
      %v1745 = vunpack.c.l.b16 %v1728
      %v1746 = vunpack.c.l.b16 %v1732
      %v1747 = vpack.c.b16 %v1740, %v1739
      %v1748 = vpack.c.b16 %v1742, %v1741
      %v1749 = vpack.c.b16 %v1744, %v1743
      %v1750 = vpack.c.b16 %v1746, %v1745
      %v1756 = vunpack.c.l.b16 %v1734
      %v1757 = vunpack.c.l.b16 %v1735
      %v1758 = vunpack.c.l.b16 %v1736
      %v1759 = vunpack.c.l.b16 %v1737
      %v1760 = vunpack.c.l.b16 %v1738
      %v1761 = vpack.c.b16 %v1757, %v1756
      %v1762 = vpack.c.b16 %v1759, %v1758
      %v1763 = vpack.c.b16 %v1760, %v1760
      %v1767 = vsel %vm638, %v1747, 0
      %v1770 = vsel %vm638, %v1748, 0
      %v1773 = vsel %vm638, %v1749, 0
      %v1776 = vsel %vm638, %v1750, 0
      %v1779 = vsel %vm651, %v1763, 0
      %1781 = vmatpush.bf16.msra.mxu0 0
      %1782 = vmatpush.bf16.msra.mxu0 0
      %1783 = vmatpush.bf16.msra.mxu0 0
      %1784 = vmatpush.bf16.msra.mxu0 0
      %1785 = vmatpush.bf16.msra.mxu0 0
      %1786 = vmatpush.bf16.msra.mxu0 %v1779
      %1787 = vmatpush.bf16.msra.mxu0 %v1762
      %1788 = vmatpush.bf16.msra.mxu0 %v1761
      %1789 = vmatmul.bf16.gmra.mxu0 %v1767
      %v1790 = vpop.f32.mrf.mxu0
      %v1791 = vadd.f32 0.0, %v1790
      %v1792 = vpop.f32.mrf.mxu0
      %v1793 = vadd.f32 0.0, %v1792
      %1794 = vmatmul.bf16.gmra.mxu0 %v1770
      %v1795 = vpop.f32.mrf.mxu0
      %v1796 = vadd.f32 0.0, %v1795
      %v1797 = vpop.f32.mrf.mxu0
      %v1798 = vadd.f32 0.0, %v1797
      %1799 = vmatmul.bf16.gmra.mxu0 %v1773
      %v1800 = vpop.f32.mrf.mxu0
      %v1801 = vadd.f32 0.0, %v1800
      %v1802 = vpop.f32.mrf.mxu0
      %v1803 = vadd.f32 0.0, %v1802
      %1804 = vmatmul.bf16.gmra.mxu0 %v1776
      %v1805 = vpop.f32.mrf.mxu0
      %v1806 = vadd.f32 0.0, %v1805
      %v1807 = vpop.f32.mrf.mxu0
      %v1808 = vadd.f32 0.0, %v1807
      %1809 = vdwg.mxu0
      %v1810 = vadd.f32 %v1669, %v1791
      %v1811 = vadd.f32 %v1670, %v1793
      %v1812 = vadd.f32 %v1671, %v1796
      %v1813 = vadd.f32 %v1672, %v1798
      %v1814 = vadd.f32 %v1673, %v1801
      %v1815 = vadd.f32 %v1674, %v1803
      %v1816 = vadd.f32 %v1675, %v1806
      %v1817 = vadd.f32 %v1676, %v1808
      %v1818 = vld [vmem:[%s4] sm:$0x1]
      %v1820 = vperm.slane %v1818, 0
      %v1822 = vadd.f32 %v1810, %v1820
      %v1823 = vadd.f32 %v1811, %v1820
      %v1824 = vadd.f32 %v1812, %v1820
      %v1825 = vadd.f32 %v1813, %v1820
      %v1826 = vadd.f32 %v1814, %v1820
      %v1827 = vadd.f32 %v1815, %v1820
      %v1828 = vadd.f32 %v1816, %v1820
      %v1829 = vadd.f32 %v1817, %v1820
      %v1830 = vmax.f32 %v1822, 0.0
      %v1831 = vmax.f32 %v1823, 0.0
      %v1832 = vmax.f32 %v1824, 0.0
      %v1833 = vmax.f32 %v1825, 0.0
      %v1834 = vmax.f32 %v1826, 0.0
      %v1835 = vmax.f32 %v1827, 0.0
      %v1836 = vmax.f32 %v1828, 0.0
      %v1837 = vmax.f32 %v1829, 0.0
      %vm1838 = vcmask 121856
      %1839 = vst.msk [vmem:[#allocation3] sm:$0xff] %vm1838, %v1830
      %1840 = vst.msk [vmem:[#allocation3 + $0x8] sm:$0xff] %vm1838, %v1831
      %1841 = vst.msk [vmem:[#allocation3 + $0x10] sm:$0xff] %vm1838, %v1832
      %1842 = vst.msk [vmem:[#allocation3 + $0x18] sm:$0xff] %vm1838, %v1833
      %1843 = vst.msk [vmem:[#allocation3 + $0x20] sm:$0xff] %vm1838, %v1834
      %1844 = vst.msk [vmem:[#allocation3 + $0x28] sm:$0xff] %vm1838, %v1835
      %1845 = vst.msk [vmem:[#allocation3 + $0x30] sm:$0xff] %vm1838, %v1836
      %1846 = vst.msk [vmem:[#allocation3 + $0x38] sm:$0xff] %vm1838, %v1837
      %v1847 = vld [vmem:[#allocation3] sm:$0xff]
      %v1848 = vld [vmem:[#allocation3 + $0x10] sm:$0xff]
      %v1849 = vld [vmem:[#allocation3 + $0x20] sm:$0xff]
      %v1850 = vld [vmem:[#allocation3 + $0x30] sm:$0xff]
      %s1851 = scalar_lea.vmem [#allocation3], 8
      %v1852 = vld [vmem:[%s1851] sm:$0xff]
      %v1853 = vld [vmem:[%s1851 + $0x10] sm:$0xff]
      %v1854 = vld [vmem:[%s1851 + $0x20] sm:$0xff]
      %v1855 = vld [vmem:[%s1851 + $0x30] sm:$0xff]
      %v1856 = vmax.f32 %v1847, %v1852
      %v1857 = vmax.f32 %v1848, %v1853
      %v1858 = vmax.f32 %v1849, %v1854
      %v1859 = vmax.f32 %v1850, %v1855
      %1860 = vst.msk [vmem:[#allocation4] sm:$0xff] %vm1838, %v1856
      %1861 = vst.msk [vmem:[#allocation4 + $0x8] sm:$0xff] %vm1838, %v1857
      %1862 = vst.msk [vmem:[#allocation4 + $0x10] sm:$0xff] %vm1838, %v1858
      %1863 = vst.msk [vmem:[#allocation4 + $0x18] sm:$0xff] %vm1838, %v1859
      %v1864 = vld [vmem:[#allocation4] ss:$2 sm:$0xf]
      %s1865 = scalar_lea.vmem [#allocation4], 8
      %v1866 = vld [vmem:[%s1865] ss:$2 sm:$0xf]
      %s1867 = scalar_lea.vmem [#allocation4], 16
      %v1868 = vld [vmem:[%s1867] ss:$2 sm:$0xf]
      %s1869 = scalar_lea.vmem [#allocation4], 24
      %v1870 = vld [vmem:[%s1869] ss:$2 sm:$0xf]
      %s1871 = scalar_lea.vmem [#allocation4], 1
      %v1872 = vld [vmem:[%s1871] ss:$2 sm:$0xf]
      %s1873 = scalar_lea.vmem [#allocation4], 9
      %v1874 = vld [vmem:[%s1873] ss:$2 sm:$0xf]
      %s1875 = scalar_lea.vmem [#allocation4], 17
      %v1876 = vld [vmem:[%s1875] ss:$2 sm:$0xf]
      %s1877 = scalar_lea.vmem [#allocation4], 25
      %v1878 = vld [vmem:[%s1877] ss:$2 sm:$0xf]
      %v1879 = vmax.f32 %v1864, %v1872
      %v1880 = vmax.f32 %v1866, %v1874
      %v1881 = vmax.f32 %v1868, %v1876
      %v1882 = vmax.f32 %v1870, %v1878
      %vm1883 = vcmask 117760
      %1884 = vst.msk [vmem:[%s224] sm:$0xf] %vm1883, %v1879
      %1885 = vst.msk [vmem:[%s224 + $0x4] sm:$0xf] %vm1883, %v1880
      %1886 = vst.msk [vmem:[%s224 + $0x8] sm:$0xf] %vm1883, %v1881
      %1887 = vst.msk [vmem:[%s224 + $0xc] sm:$0xf] %vm1883, %v1882
      %p1888 = scmp.lt.s32.totalorder %s16, 1
      %s1889 = scalar_select %p1888, %s16, 1
      %s1890 = smul.addr %s1889, 4
      %s1891 = smul.addr %s1890, 4
      %s1892 = scalar_lea.vmem %s5, %s1891
      // Predicated region
      $region41: #{test_net_forward.6} parent=39 // pred_check
        %p1893 = pneg %p144
      $region42: #{test_net_forward.6} parent=39 // pred_check_branch
        %1895 = sbr.rel (%p1893) target = $region44
      $region43: #{test_net_forward.6} parent=39 // pred_region
        _
      $region44: #{test_net_forward.6} parent=39 // pred_fallthru
        _
    $region40: #{test_net_forward.6} parent=5 // pred_fallthru
      _
    %p1896 = scmp.le.s32.totalorder 2, %s11
    // Predicated region
    $region45: #{test_net_forward.6} parent=5 // pred_check
      %p1897 = pneg %p1896
    $region46: #{test_net_forward.6} parent=5 // pred_check_branch
      %1899 = sbr.rel (%p1897) target = $region48
    $region47: #{test_net_forward.6} parent=5 // pred_region
      %s1900 = ssub.s32 %s11, 2
      // Predicated region
      $region49: #{test_net_forward.6} parent=47 // pred_check
        %p1901 = pneg %p150
      $region50: #{test_net_forward.6} parent=47 // pred_check_branch
        %1903 = sbr.rel (%p1901) target = $region52
      $region51: #{test_net_forward.6} parent=47 // pred_region
        %p1904 = scmp.lt.s32.totalorder %s17, 1
        %s1905 = scalar_select %p1904, %s17, 1
        %s1906 = smul.addr %s1905, 4
        %s1907 = smul.addr %s1906, 4
        %s1908 = scalar_lea.vmem %s5, %s1907
      $region52: #{test_net_forward.6} parent=47 // pred_fallthru
        _
    $region48: #{test_net_forward.6} parent=5 // pred_fallthru
      _
  $region6: #{test_net_forward.6} parent=0 // loop_footer
    %s15 = sadd.s32 1, %s11
  $region7: #{test_net_forward.6} parent=0 // loop_footer_branch
    %10 = sbr.rel target = $region3
  $region8: #{test_net_forward.6} parent=0 // loop_exit
    _

// kernel: test_net_forward.7
$region0: #{test_net_forward.7}
  #allocation0 [shape = 'u32[]', space=smem, size = 0x4, offset = 0x4, fixed_abs, tag = 'smem constant byte address 0x4 - core index']
  #allocation1 [shape = 'u32[72,128]{1,0:T(1,128)}', space=vmem, size = 0x9000, scoped, tag = 'internal scratch']
  #allocation2 [shape = 'bf16[6,6,15]{2,1,0:T(8,128)(2,1)}', space=vmem, size = 0x3000, scoped, tag = 'scratch operand']
  #allocation3 [shape = 'f32[4,4,2]{2,1,0:T(4,128)}', space=vmem, size = 0x2000, scoped, tag = 'scratch operand']
  #allocation4 [shape = 'f32[2,4,2]{2,1,0:T(4,128)}', space=vmem, size = 0x1000, scoped, tag = 'scratch operand']
  %s0 = inlined_call_operand.vmem [shape: f32[2,4,4,15], index: 0, kind: input, shape index: {}]
  %s1 = inlined_call_operand.vmem [shape: f32[1,15], index: 1, kind: input, shape index: {}]
  %s2 = inlined_call_operand.vmem [shape: f32[1,15], index: 2, kind: input, shape index: {}]
  %s3 = inlined_call_operand.vmem [shape: bf16[9,15,2], index: 3, kind: input, shape index: {}]
  %s4 = inlined_call_operand.vmem [shape: f32[1,2], index: 4, kind: input, shape index: {}]
  %s5 = inlined_call_operand.vmem [shape: f32[2,4,4,2], index: 5, kind: output, shape index: {}]
  %s6 = sld [smem:[#allocation0]]
  $region53: #{test_net_forward.7} parent=0
    _
  %s8 = ssub.s32 1, %s6
  %s9 = scalar_select 0, %s8, %s6
  loop: start=0, step=1, limit=4
  $region2: #{test_net_forward.7} parent=0 // loop_pre_header
    _
  $region3: #{test_net_forward.7} parent=0 // loop_header
    %s11 = sphi 0, %s15
    %p12 = scmp.ge.s32.totalorder %s11, 4
    %s21 = sphi 0, %s23
    %s24 = sphi 0, %s21
    %s25 = sphi 0, %s24
    %s41 = sphi 0, %s25
    %s45 = sphi 0, %s45
    %s47 = sphi 0, %s45
    %s48 = sphi 0, %s47
    %s62 = sphi 0, %s48
    %s66 = sphi 0, %s66
    %s68 = sphi 0, %s66
    %s69 = sphi 0, %s68
    %s83 = sphi 0, %s69
    %s87 = sphi 0, %s87
    %s89 = sphi 0, %s87
    %s90 = sphi 0, %s89
    %s104 = sphi 0, %s90
    %s108 = sphi 0, %s108
    %s110 = sphi 0, %s108
    %s111 = sphi 0, %s110
    %s125 = sphi 0, %s111
    %s131 = sphi 0, %s133
    %s134 = sphi 0, %s131
    %s135 = sphi 0, %s134
    %s151 = sphi 0, %s135
  $region4: #{test_net_forward.7} parent=0 // loop_header_branch
    %14 = sbr.rel (%p12) target = $region8
  $region5: #{test_net_forward.7} parent=0 // loop_body
    %s16 = ssub.s32 %s11, 1
    %s17 = ssub.s32 %s11, 2
    %s18 = sadd.s32 %s11, 1
    %s19 = ssub.s32 %s11, %s18
    %p20 = scmp.eq.s32.totalorder %s19, 0
    %s22 = sadd.s32 %s21, 1
    %s23 = scalar_select %p20, %s21, %s22
    %p26 = pneg %p20
    %p27 = scmp.eq.s32.totalorder %s11, 1
    %p28 = por %p26, %p27
    %p29 = scmp.ne.s32.totalorder %s21, %s24
    %p30 = scmp.eq.s32.totalorder %s11, 0
    %p31 = por %p29, %p30
    %p32 = scmp.ne.s32.totalorder %s21, %s24
    %p33 = scmp.eq.s32.totalorder %s16, 1
    %p34 = por %p32, %p33
    %p35 = scmp.ne.s32.totalorder %s24, %s25
    %p36 = scmp.eq.s32.totalorder %s16, 0
    %p37 = por %p35, %p36
    %p38 = scmp.ne.s32.totalorder %s24, %s25
    %p39 = scmp.eq.s32.totalorder %s17, 1
    %p40 = por %p38, %p39
    %p42 = scmp.ne.s32.totalorder %s25, %s41
    %p43 = scmp.eq.s32.totalorder %s17, 0
    %p44 = por %p42, %p43
    %s46 = sadd.s32 %s45, 1
    %p49 = scmp.eq.s32.totalorder %s11, 1
    %p50 = scmp.ne.s32.totalorder %s45, %s47
    %p51 = scmp.eq.s32.totalorder %s11, 0
    %p52 = por %p50, %p51
    %p53 = scmp.ne.s32.totalorder %s45, %s47
    %p54 = scmp.eq.s32.totalorder %s16, 1
    %p55 = por %p53, %p54
    %p56 = scmp.ne.s32.totalorder %s47, %s48
    %p57 = scmp.eq.s32.totalorder %s16, 0
    %p58 = por %p56, %p57
    %p59 = scmp.ne.s32.totalorder %s47, %s48
    %p60 = scmp.eq.s32.totalorder %s17, 1
    %p61 = por %p59, %p60
    %p63 = scmp.ne.s32.totalorder %s48, %s62
    %p64 = scmp.eq.s32.totalorder %s17, 0
    %p65 = por %p63, %p64
    %s67 = sadd.s32 %s66, 1
    %p70 = scmp.eq.s32.totalorder %s11, 1
    %p71 = scmp.ne.s32.totalorder %s66, %s68
    %p72 = scmp.eq.s32.totalorder %s11, 0
    %p73 = por %p71, %p72
    %p74 = scmp.ne.s32.totalorder %s66, %s68
    %p75 = scmp.eq.s32.totalorder %s16, 1
    %p76 = por %p74, %p75
    %p77 = scmp.ne.s32.totalorder %s68, %s69
    %p78 = scmp.eq.s32.totalorder %s16, 0
    %p79 = por %p77, %p78
    %p80 = scmp.ne.s32.totalorder %s68, %s69
    %p81 = scmp.eq.s32.totalorder %s17, 1
    %p82 = por %p80, %p81
    %p84 = scmp.ne.s32.totalorder %s69, %s83
    %p85 = scmp.eq.s32.totalorder %s17, 0
    %p86 = por %p84, %p85
    %s88 = sadd.s32 %s87, 1
    %p91 = scmp.eq.s32.totalorder %s11, 1
    %p92 = scmp.ne.s32.totalorder %s87, %s89
    %p93 = scmp.eq.s32.totalorder %s11, 0
    %p94 = por %p92, %p93
    %p95 = scmp.ne.s32.totalorder %s87, %s89
    %p96 = scmp.eq.s32.totalorder %s16, 1
    %p97 = por %p95, %p96
    %p98 = scmp.ne.s32.totalorder %s89, %s90
    %p99 = scmp.eq.s32.totalorder %s16, 0
    %p100 = por %p98, %p99
    %p101 = scmp.ne.s32.totalorder %s89, %s90
    %p102 = scmp.eq.s32.totalorder %s17, 1
    %p103 = por %p101, %p102
    %p105 = scmp.ne.s32.totalorder %s90, %s104
    %p106 = scmp.eq.s32.totalorder %s17, 0
    %p107 = por %p105, %p106
    %s109 = sadd.s32 %s108, 1
    %p112 = scmp.eq.s32.totalorder %s11, 1
    %p113 = scmp.ne.s32.totalorder %s108, %s110
    %p114 = scmp.eq.s32.totalorder %s11, 0
    %p115 = por %p113, %p114
    %p116 = scmp.ne.s32.totalorder %s108, %s110
    %p117 = scmp.eq.s32.totalorder %s16, 1
    %p118 = por %p116, %p117
    %p119 = scmp.ne.s32.totalorder %s110, %s111
    %p120 = scmp.eq.s32.totalorder %s16, 0
    %p121 = por %p119, %p120
    %p122 = scmp.ne.s32.totalorder %s110, %s111
    %p123 = scmp.eq.s32.totalorder %s17, 1
    %p124 = por %p122, %p123
    %p126 = scmp.ne.s32.totalorder %s111, %s125
    %p127 = scmp.eq.s32.totalorder %s17, 0
    %p128 = por %p126, %p127
    %s129 = ssub.s32 %s11, %s18
    %p130 = scmp.eq.s32.totalorder %s129, 0
    %s132 = sadd.s32 %s131, 1
    %s133 = scalar_select %p130, %s131, %s132
    %p136 = pneg %p130
    %p137 = scmp.eq.s32.totalorder %s11, 1
    %p138 = por %p136, %p137
    %p139 = scmp.ne.s32.totalorder %s131, %s134
    %p140 = scmp.eq.s32.totalorder %s11, 0
    %p141 = por %p139, %p140
    %p142 = scmp.ne.s32.totalorder %s131, %s134
    %p143 = scmp.eq.s32.totalorder %s16, 1
    %p144 = por %p142, %p143
    %p145 = scmp.ne.s32.totalorder %s134, %s135
    %p146 = scmp.eq.s32.totalorder %s16, 0
    %p147 = por %p145, %p146
    %p148 = scmp.ne.s32.totalorder %s134, %s135
    %p149 = scmp.eq.s32.totalorder %s17, 1
    %p150 = por %p148, %p149
    %p152 = scmp.ne.s32.totalorder %s135, %s151
    %p153 = scmp.eq.s32.totalorder %s17, 0
    %p154 = por %p152, %p153
    %p155 = scmp.le.s32.totalorder 1, %s11
    %p156 = scmp.lt.s32.totalorder %s11, 3
    %p157 = pnand %p155, %p156
    %p158 = pneg %p157
    // Predicated region
    $region9: #{test_net_forward.7} parent=5 // pred_check
      _
    $region10: #{test_net_forward.7} parent=5 // pred_check_branch
      %160 = sbr.rel (%p157) target = $region12
    $region11: #{test_net_forward.7} parent=5 // pred_region
      %s161 = ssub.s32 %s11, 1
      // Predicated region
      $region13: #{test_net_forward.7} parent=11 // pred_check
        %p162 = pneg %p58
      $region14: #{test_net_forward.7} parent=11 // pred_check_branch
        %164 = sbr.rel (%p162) target = $region16
      $region15: #{test_net_forward.7} parent=11 // pred_region
        _
      $region16: #{test_net_forward.7} parent=11 // pred_fallthru
        _
      // Predicated region
      $region17: #{test_net_forward.7} parent=11 // pred_check
        %p165 = pneg %p79
      $region18: #{test_net_forward.7} parent=11 // pred_check_branch
        %167 = sbr.rel (%p165) target = $region20
      $region19: #{test_net_forward.7} parent=11 // pred_region
        _
      $region20: #{test_net_forward.7} parent=11 // pred_fallthru
        _
      // Predicated region
      $region21: #{test_net_forward.7} parent=11 // pred_check
        %p168 = pneg %p100
      $region22: #{test_net_forward.7} parent=11 // pred_check_branch
        %170 = sbr.rel (%p168) target = $region24
      $region23: #{test_net_forward.7} parent=11 // pred_region
        _
      $region24: #{test_net_forward.7} parent=11 // pred_fallthru
        _
      // Predicated region
      $region25: #{test_net_forward.7} parent=11 // pred_check
        %p171 = pneg %p121
      $region26: #{test_net_forward.7} parent=11 // pred_check_branch
        %173 = sbr.rel (%p171) target = $region28
      $region27: #{test_net_forward.7} parent=11 // pred_region
        _
      $region28: #{test_net_forward.7} parent=11 // pred_fallthru
        _
    $region12: #{test_net_forward.7} parent=5 // pred_fallthru
      _
    %p174 = scmp.lt.s32.totalorder %s11, 2
    // Predicated region
    $region29: #{test_net_forward.7} parent=5 // pred_check
      %p175 = pneg %p174
    $region30: #{test_net_forward.7} parent=5 // pred_check_branch
      %177 = sbr.rel (%p175) target = $region32
    $region31: #{test_net_forward.7} parent=5 // pred_region
      // Predicated region
      $region33: #{test_net_forward.7} parent=31 // pred_check
        %p178 = pneg %p31
      $region34: #{test_net_forward.7} parent=31 // pred_check_branch
        %180 = sbr.rel (%p178) target = $region36
      $region35: #{test_net_forward.7} parent=31 // pred_region
        %p181 = scmp.lt.s32.totalorder %s11, 1
        %s182 = scalar_select %p181, %s11, 1
        %s183 = smul.addr %s182, 4
        %s184 = smul.addr %s183, 4
        %s185 = scalar_lea.vmem %s0, %s184
      $region36: #{test_net_forward.7} parent=31 // pred_fallthru
        _
    $region32: #{test_net_forward.7} parent=5 // pred_fallthru
      _
    %p186 = scmp.le.s32.totalorder 1, %s11
    %p187 = scmp.lt.s32.totalorder %s11, 3
    %p188 = pnand %p186, %p187
    %p189 = pneg %p188
    // Predicated region
    $region37: #{test_net_forward.7} parent=5 // pred_check
      _
    $region38: #{test_net_forward.7} parent=5 // pred_check_branch
      %191 = sbr.rel (%p188) target = $region40
    $region39: #{test_net_forward.7} parent=5 // pred_region
      %s192 = ssub.s32 %s11, 1
      %p193 = scmp.lt.s32.totalorder %s16, 1
      %s194 = scalar_select %p193, %s16, 1
      %s195 = smul.addr %s194, 4
      %s196 = smul.addr %s195, 4
      %s197 = scalar_lea.vmem %s0, %s196
      %p198 = pneg %p37
      %p199 = pneg %p34
      %p200 = pneg %p58
      %p201 = pneg %p55
      %p202 = pneg %p79
      %p203 = pneg %p76
      %p204 = pneg %p100
      %p205 = pneg %p97
      %p206 = pneg %p121
      %p207 = pneg %p118
      %p208 = pneg %p147
      %p209 = pneg %p144
      %p210 = scmp.lt.s32.totalorder %s16, 1
      %s211 = scalar_select %p210, %s16, 1
      %s212 = smul.addr %s211, 4
      %s213 = smul.addr %s212, 4
      %s214 = scalar_lea.vmem %s5, %s213
      %p215 = scmp.lt.s32.totalorder %s16, 1
      %s216 = scalar_select %p215, %s16, 1
      %s217 = smul.addr %s216, 4
      %s218 = smul.addr %s217, 4
      %s219 = scalar_lea.vmem %s0, %s218
      %p220 = scmp.lt.s32.totalorder %s16, 1
      %s221 = scalar_select %p220, %s16, 1
      %s222 = smul.addr %s221, 4
      %s223 = smul.addr %s222, 4
      %s224 = scalar_lea.vmem %s5, %s223
      %vm226 = vcmask 116736
      %227 = vst.msk [vmem:[#allocation2] sm:$0x7] %vm226, 0
      %s228 = scalar_lea.vmem [#allocation2], 20
      %229 = vst.msk [vmem:[%s228] sm:$0x7] %vm226, 0
      %vm230 = vcmask 114688
      %vm231 = vsmask.f32 256
      %vm232 = vmand %vm230, %vm231
      %v233 = vld [vmem:[#allocation2] sm:$0x1]
      %v234 = vsel %vm232, 0, %v233
      %235 = vst [vmem:[#allocation2] sm:$0x1] %v234
      %v236 = vld [vmem:[#allocation2 + $0x4] sm:$0x1]
      %v237 = vsel %vm232, 0, %v236
      %238 = vst [vmem:[#allocation2 + $0x4] sm:$0x1] %v237
      %v239 = vld [vmem:[#allocation2 + $0x8] sm:$0x1]
      %v240 = vsel %vm232, 0, %v239
      %241 = vst [vmem:[#allocation2 + $0x8] sm:$0x1] %v240
      %v242 = vld [vmem:[#allocation2 + $0xc] sm:$0x1]
      %v243 = vsel %vm232, 0, %v242
      %244 = vst [vmem:[#allocation2 + $0xc] sm:$0x1] %v243
      %v245 = vld [vmem:[#allocation2 + $0x10] sm:$0x1]
      %v246 = vsel %vm232, 0, %v245
      %247 = vst [vmem:[#allocation2 + $0x10] sm:$0x1] %v246
      %v248 = vld [vmem:[#allocation2 + $0x14] sm:$0x1]
      %v249 = vsel %vm232, 0, %v248
      %250 = vst [vmem:[#allocation2 + $0x14] sm:$0x1] %v249
      %vm251 = vcmask 116738
      %vm252 = vsmask.f32 7946
      %vm253 = vmand %vm251, %vm252
      %v254 = vld [vmem:[#allocation2] sm:$0x4]
      %v255 = vsel %vm253, 0, %v254
      %256 = vst [vmem:[#allocation2] sm:$0x4] %v255
      %v257 = vld [vmem:[#allocation2 + $0x4] sm:$0x4]
      %v258 = vsel %vm253, 0, %v257
      %259 = vst [vmem:[#allocation2 + $0x4] sm:$0x4] %v258
      %v260 = vld [vmem:[#allocation2 + $0x8] sm:$0x4]
      %v261 = vsel %vm253, 0, %v260
      %262 = vst [vmem:[#allocation2 + $0x8] sm:$0x4] %v261
      %v263 = vld [vmem:[#allocation2 + $0xc] sm:$0x4]
      %v264 = vsel %vm253, 0, %v263
      %265 = vst [vmem:[#allocation2 + $0xc] sm:$0x4] %v264
      %v266 = vld [vmem:[#allocation2 + $0x10] sm:$0x4]
      %v267 = vsel %vm253, 0, %v266
      %268 = vst [vmem:[#allocation2 + $0x10] sm:$0x4] %v267
      %v269 = vld [vmem:[#allocation2 + $0x14] sm:$0x4]
      %v270 = vsel %vm253, 0, %v269
      %271 = vst [vmem:[#allocation2 + $0x14] sm:$0x4] %v270
      %v272 = vld [vmem:[%s219] sm:$0xf]
      %v273 = vld [vmem:[%s219 + $0x4] sm:$0xf]
      %v274 = vld [vmem:[%s219 + $0x8] sm:$0xf]
      %v275 = vld [vmem:[%s219 + $0xc] sm:$0xf]
      %v276 = vld [vmem:[%s1] sm:$0x1]
      %v278 = vperm.slane %v276, 0
      %v280 = vmul.f32 %v272, %v278
      %v281 = vmul.f32 %v273, %v278
      %v282 = vmul.f32 %v274, %v278
      %v283 = vmul.f32 %v275, %v278
      %v284 = vld [vmem:[%s2] sm:$0x1]
      %v286 = vperm.slane %v284, 0
      %v288 = vadd.f32 %v280, %v286
      %v289 = vadd.f32 %v281, %v286
      %v290 = vadd.f32 %v282, %v286
      %v291 = vadd.f32 %v283, %v286
      %v292 = vpack.c.bf16 %v288, %v288
      %v293 = vpack.c.bf16 %v289, %v289
      %v294 = vpack.c.bf16 %v290, %v290
      %v295 = vpack.c.bf16 %v291, %v291
      %v297 = vshrl.u32 %v292, 16
      %v299 = vrot.slane %v297, 7
      %v300 = vshll.u32 %v292, 16
      %v302 = vor.u32 %v299, %v300
      %v304 = vshrl.u32 %v293, 16
      %v306 = vrot.slane %v304, 7
      %v307 = vshll.u32 %v293, 16
      %v309 = vor.u32 %v306, %v307
      %v311 = vshrl.u32 %v294, 16
      %v313 = vrot.slane %v311, 7
      %v314 = vshll.u32 %v294, 16
      %v316 = vor.u32 %v313, %v314
      %v318 = vshrl.u32 %v295, 16
      %v320 = vrot.slane %v318, 7
      %v321 = vshll.u32 %v295, 16
      %v323 = vor.u32 %v320, %v321
      %s328 = scalar_lea.vmem [#allocation2], 4
      %vm329 = vcmask 116736
      %vm330 = vsmask.f32 2306
      %vm331 = vmand %vm329, %vm330
      %v332 = vld [vmem:[%s328] sm:$0x7]
      %v333 = vsel %vm331, %v302, %v332
      %334 = vst [vmem:[%s328] sm:$0x7] %v333
      %v335 = vld [vmem:[%s328 + $0x4] sm:$0x7]
      %v336 = vsel %vm331, %v309, %v335
      %337 = vst [vmem:[%s328 + $0x4] sm:$0x7] %v336
      %v338 = vld [vmem:[%s328 + $0x8] sm:$0x7]
      %v339 = vsel %vm331, %v316, %v338
      %340 = vst [vmem:[%s328 + $0x8] sm:$0x7] %v339
      %v341 = vld [vmem:[%s328 + $0xc] sm:$0x7]
      %v342 = vsel %vm331, %v323, %v341
      %343 = vst [vmem:[%s328 + $0xc] sm:$0x7] %v342
      %v344 = vld [vmem:[#allocation2] sm:$0x3]
      %v345 = vld [vmem:[#allocation2 + $0x4] sm:$0x3]
      %v346 = vld [vmem:[#allocation2 + $0x8] sm:$0x3]
      %v347 = vld [vmem:[#allocation2 + $0xc] sm:$0x3]
      %v348 = vld [vmem:[%s3] sm:$0xf]
      %v349 = vld [vmem:[%s3 + $0x4] sm:$0xf]
      %v350 = vld [vmem:[#allocation2] sm:$0x7]
      %v351 = vld [vmem:[#allocation2 + $0x4] sm:$0x7]
      %v352 = vld [vmem:[#allocation2 + $0x8] sm:$0x7]
      %v353 = vld [vmem:[#allocation2 + $0xc] sm:$0x7]
      %v358 = vrot.slane %v350, 2
      %v359 = vrot.slane %v351, 2
      %v360 = vrot.slane %v352, 2
      %v361 = vrot.slane %v353, 2
      %vm362 = vcmask 1041408
      %v365 = vsel %vm362, %v350, %v358
      %vm366 = vcmask 1043458
      %v367 = vsel %vm366, %v350, %v358
      %v369 = vrot.slane %v367, 2
      %v372 = vsel %vm362, %v351, %v359
      %v373 = vsel %vm366, %v351, %v359
      %v375 = vrot.slane %v373, 2
      %v378 = vsel %vm362, %v352, %v360
      %v379 = vsel %vm366, %v352, %v360
      %v381 = vrot.slane %v379, 2
      %v384 = vsel %vm362, %v353, %v361
      %v385 = vsel %vm366, %v353, %v361
      %v387 = vrot.slane %v385, 2
      %vm388 = vsmask.f32 1280
      %vm389 = vsmask.f32 3336
      %vm390 = vmor %vm388, %vm389
      %vm391 = vsmask.f32 5392
      %vm392 = vmor %vm390, %vm391
      %vm393 = vsmask.f32 7448
      %vm394 = vmor %vm392, %vm393
      %v395 = vshrl.u32 %v365, 16
      %v397 = vrot.slane %v395, 6
      %v398 = vshll.u32 %v365, 16
      %v400 = vrot.slane %v398, 7
      %v401 = vor.u32 %v397, %v400
      %v402 = vrot.slane %v401, 2
      %v404 = vshll.u32 %v369, 16
      %v406 = vrot.slane %v404, 7
      %v407 = vsel %vm394, %v402, %v406
      %v408 = vshrl.u32 %v372, 16
      %v410 = vrot.slane %v408, 6
      %v411 = vshll.u32 %v372, 16
      %v413 = vrot.slane %v411, 7
      %v414 = vor.u32 %v410, %v413
      %v415 = vrot.slane %v414, 2
      %v417 = vshll.u32 %v375, 16
      %v419 = vrot.slane %v417, 7
      %v420 = vsel %vm394, %v415, %v419
      %v421 = vshrl.u32 %v378, 16
      %v423 = vrot.slane %v421, 6
      %v424 = vshll.u32 %v378, 16
      %v426 = vrot.slane %v424, 7
      %v427 = vor.u32 %v423, %v426
      %v428 = vrot.slane %v427, 2
      %v430 = vshll.u32 %v381, 16
      %v432 = vrot.slane %v430, 7
      %v433 = vsel %vm394, %v428, %v432
      %v434 = vshrl.u32 %v384, 16
      %v436 = vrot.slane %v434, 6
      %v437 = vshll.u32 %v384, 16
      %v439 = vrot.slane %v437, 7
      %v440 = vor.u32 %v436, %v439
      %v441 = vrot.slane %v440, 2
      %v443 = vshll.u32 %v387, 16
      %v445 = vrot.slane %v443, 7
      %v446 = vsel %vm394, %v441, %v445
      %s447 = scalar_lea.vmem %s3, 8
      %v448 = vld [vmem:[%s447] sm:$0xf]
      %v449 = vld [vmem:[%s447 + $0x4] sm:$0xf]
      %451 = vst [vmem:[#allocation1] ss:$4 sm:$0xff] %v407
      %s453 = scalar_lea.vmem [#allocation1], 1
      %454 = vst [vmem:[%s453] ss:$4 sm:$0xff] %v420
      %s456 = scalar_lea.vmem [#allocation1], 2
      %457 = vst [vmem:[%s456] ss:$4 sm:$0xff] %v433
      %s459 = scalar_lea.vmem [#allocation1], 3
      %460 = vst [vmem:[%s459] ss:$4 sm:$0xff] %v446
      %v461 = vld.sshfl [vmem:[#allocation1] sm:$0xff pattern:$0x73625140]
      %v464 = vunpack.c.l.b16 %v448
      %v465 = vunpack.c.l.b16 %v449
      %v466 = vpack.c.b16 %v465, %v464
      %vm467 = vcmask 121856
      %v468 = vsel %vm467, %v461, 0
      %vm470 = vcmask 1046528
      %vm471 = vcmask 1047552
      %v472 = vsel %vm470, 4294967295, 65535
      %v473 = vsel %vm471, %v472, 0
      %v475 = vand.u32 %v466, %v473
      %477 = vmatpush.bf16.msra.mxu0 0
      %478 = vmatpush.bf16.msra.mxu0 0
      %479 = vmatpush.bf16.msra.mxu0 0
      %480 = vmatpush.bf16.msra.mxu0 0
      %481 = vmatpush.bf16.msra.mxu0 0
      %482 = vmatpush.bf16.msra.mxu0 0
      %483 = vmatpush.bf16.msra.mxu0 0
      %484 = vmatpush.bf16.msra.mxu0 %v475
      %485 = vmatmul.bf16.gmra.mxu0 %v468
      %v486 = vpop.f32.mrf.mxu0
      %v487 = vadd.f32 0.0, %v486
      %v488 = vpop.f32.mrf.mxu0
      %v489 = vadd.f32 0.0, %v488
      %490 = vdwg.mxu0
      %492 = vst [vmem:[#allocation1] ss:$4 sm:$0xff] %v344
      %s494 = scalar_lea.vmem [#allocation1], 1
      %495 = vst [vmem:[%s494] ss:$4 sm:$0xff] %v345
      %s497 = scalar_lea.vmem [#allocation1], 2
      %498 = vst [vmem:[%s497] ss:$4 sm:$0xff] %v346
      %s500 = scalar_lea.vmem [#allocation1], 3
      %501 = vst [vmem:[%s500] ss:$4 sm:$0xff] %v347
      %v502 = vld.sshfl [vmem:[#allocation1] sm:$0xff pattern:$0x73625140]
      %v505 = vunpack.c.l.b16 %v348
      %v506 = vunpack.c.l.b16 %v349
      %v507 = vpack.c.b16 %v506, %v505
      %v508 = vsel %vm467, %v502, 0
      %v511 = vand.u32 %v507, %v473
      %513 = vmatpush.bf16.msra.mxu0 0
      %514 = vmatpush.bf16.msra.mxu0 0
      %515 = vmatpush.bf16.msra.mxu0 0
      %516 = vmatpush.bf16.msra.mxu0 0
      %517 = vmatpush.bf16.msra.mxu0 0
      %518 = vmatpush.bf16.msra.mxu0 0
      %519 = vmatpush.bf16.msra.mxu0 0
      %520 = vmatpush.bf16.msra.mxu0 %v511
      %521 = vmatmul.bf16.gmra.mxu0 %v508
      %v522 = vpop.f32.mrf.mxu0
      %v523 = vadd.f32 %v487, %v522
      %v524 = vpop.f32.mrf.mxu0
      %v525 = vadd.f32 %v489, %v524
      %526 = vdwg.mxu0
      %v527 = vld [vmem:[#allocation2] sm:$0x6]
      %v528 = vld [vmem:[#allocation2 + $0x4] sm:$0x6]
      %v529 = vld [vmem:[#allocation2 + $0x8] sm:$0x6]
      %v530 = vld [vmem:[#allocation2 + $0xc] sm:$0x6]
      %v535 = vrot.slane %v527, 2
      %v536 = vrot.slane %v528, 2
      %v537 = vrot.slane %v529, 2
      %v538 = vrot.slane %v530, 2
      %v541 = vsel %vm362, %v527, %v535
      %v543 = vsel %vm366, %v527, %v535
      %v545 = vrot.slane %v543, 2
      %v548 = vsel %vm362, %v528, %v536
      %v550 = vsel %vm366, %v528, %v536
      %v552 = vrot.slane %v550, 2
      %v555 = vsel %vm362, %v529, %v537
      %v557 = vsel %vm366, %v529, %v537
      %v559 = vrot.slane %v557, 2
      %v562 = vsel %vm362, %v530, %v538
      %v564 = vsel %vm366, %v530, %v538
      %v566 = vrot.slane %v564, 2
      %vm567 = vcmask 1040384
      %vm568 = vcmask 1042434
      %vm569 = vmor %vm567, %vm568
      %vm570 = vcmask 1044484
      %vm571 = vmor %vm569, %vm570
      %vm572 = vcmask 1046534
      %vm573 = vmor %vm571, %vm572
      %v574 = vrot.slane %v541, 7
      %v575 = vrot.slane %v574, 2
      %v576 = vrot.slane %v545, 7
      %v577 = vsel %vm573, %v575, %v576
      %v578 = vrot.slane %v548, 7
      %v579 = vrot.slane %v578, 2
      %v580 = vrot.slane %v552, 7
      %v581 = vsel %vm573, %v579, %v580
      %v582 = vrot.slane %v555, 7
      %v583 = vrot.slane %v582, 2
      %v584 = vrot.slane %v559, 7
      %v585 = vsel %vm573, %v583, %v584
      %v586 = vrot.slane %v562, 7
      %v587 = vrot.slane %v586, 2
      %v588 = vrot.slane %v566, 7
      %v589 = vsel %vm573, %v587, %v588
      %s590 = scalar_lea.vmem %s3, 16
      %v591 = vld [vmem:[%s590] sm:$0xf]
      %v592 = vld [vmem:[%s590 + $0x4] sm:$0xf]
      %594 = vst [vmem:[#allocation1] ss:$4 sm:$0xff] %v577
      %s596 = scalar_lea.vmem [#allocation1], 1
      %597 = vst [vmem:[%s596] ss:$4 sm:$0xff] %v581
      %s599 = scalar_lea.vmem [#allocation1], 2
      %600 = vst [vmem:[%s599] ss:$4 sm:$0xff] %v585
      %s602 = scalar_lea.vmem [#allocation1], 3
      %603 = vst [vmem:[%s602] ss:$4 sm:$0xff] %v589
      %v604 = vld.sshfl [vmem:[#allocation1] sm:$0xff pattern:$0x73625140]
      %v607 = vunpack.c.l.b16 %v591
      %v608 = vunpack.c.l.b16 %v592
      %v609 = vpack.c.b16 %v608, %v607
      %v610 = vsel %vm467, %v604, 0
      %v613 = vand.u32 %v609, %v473
      %615 = vmatpush.bf16.msra.mxu0 0
      %616 = vmatpush.bf16.msra.mxu0 0
      %617 = vmatpush.bf16.msra.mxu0 0
      %618 = vmatpush.bf16.msra.mxu0 0
      %619 = vmatpush.bf16.msra.mxu0 0
      %620 = vmatpush.bf16.msra.mxu0 0
      %621 = vmatpush.bf16.msra.mxu0 0
      %622 = vmatpush.bf16.msra.mxu0 %v613
      %623 = vmatmul.bf16.gmra.mxu0 %v610
      %v624 = vpop.f32.mrf.mxu0
      %v625 = vadd.f32 0.0, %v624
      %v626 = vpop.f32.mrf.mxu0
      %v627 = vadd.f32 0.0, %v626
      %628 = vdwg.mxu0
      %v629 = vadd.f32 %v523, %v625
      %v630 = vadd.f32 %v525, %v627
      %v631 = vld [vmem:[%s328] sm:$0x3]
      %v632 = vld [vmem:[%s328 + $0x4] sm:$0x3]
      %v633 = vld [vmem:[%s328 + $0x8] sm:$0x3]
      %v634 = vld [vmem:[%s328 + $0xc] sm:$0x3]
      %s635 = scalar_lea.vmem %s3, 24
      %v636 = vld [vmem:[%s635] sm:$0xf]
      %v637 = vld [vmem:[%s635 + $0x4] sm:$0xf]
      %639 = vst [vmem:[#allocation1] ss:$4 sm:$0xff] %v631
      %s641 = scalar_lea.vmem [#allocation1], 1
      %642 = vst [vmem:[%s641] ss:$4 sm:$0xff] %v632
      %s644 = scalar_lea.vmem [#allocation1], 2
      %645 = vst [vmem:[%s644] ss:$4 sm:$0xff] %v633
      %s647 = scalar_lea.vmem [#allocation1], 3
      %648 = vst [vmem:[%s647] ss:$4 sm:$0xff] %v634
      %v649 = vld.sshfl [vmem:[#allocation1] sm:$0xff pattern:$0x73625140]
      %v652 = vunpack.c.l.b16 %v636
      %v653 = vunpack.c.l.b16 %v637
      %v654 = vpack.c.b16 %v653, %v652
      %v655 = vsel %vm467, %v649, 0
      %v658 = vand.u32 %v654, %v473
      %660 = vmatpush.bf16.msra.mxu0 0
      %661 = vmatpush.bf16.msra.mxu0 0
      %662 = vmatpush.bf16.msra.mxu0 0
      %663 = vmatpush.bf16.msra.mxu0 0
      %664 = vmatpush.bf16.msra.mxu0 0
      %665 = vmatpush.bf16.msra.mxu0 0
      %666 = vmatpush.bf16.msra.mxu0 0
      %667 = vmatpush.bf16.msra.mxu0 %v658
      %668 = vmatmul.bf16.gmra.mxu0 %v655
      %v669 = vpop.f32.mrf.mxu0
      %v670 = vadd.f32 0.0, %v669
      %v671 = vpop.f32.mrf.mxu0
      %v672 = vadd.f32 0.0, %v671
      %673 = vdwg.mxu0
      %v674 = vadd.f32 %v629, %v670
      %v675 = vadd.f32 %v630, %v672
      %v676 = vld [vmem:[%s328] sm:$0x7]
      %v677 = vld [vmem:[%s328 + $0x4] sm:$0x7]
      %v678 = vld [vmem:[%s328 + $0x8] sm:$0x7]
      %v679 = vld [vmem:[%s328 + $0xc] sm:$0x7]
      %v684 = vrot.slane %v676, 2
      %v685 = vrot.slane %v677, 2
      %v686 = vrot.slane %v678, 2
      %v687 = vrot.slane %v679, 2
      %v690 = vsel %vm362, %v676, %v684
      %v691 = vsel %vm366, %v676, %v684
      %v693 = vrot.slane %v691, 2
      %v696 = vsel %vm362, %v677, %v685
      %v697 = vsel %vm366, %v677, %v685
      %v699 = vrot.slane %v697, 2
      %v702 = vsel %vm362, %v678, %v686
      %v703 = vsel %vm366, %v678, %v686
      %v705 = vrot.slane %v703, 2
      %v708 = vsel %vm362, %v679, %v687
      %v709 = vsel %vm366, %v679, %v687
      %v711 = vrot.slane %v709, 2
      %v712 = vshrl.u32 %v690, 16
      %v714 = vrot.slane %v712, 6
      %v715 = vshll.u32 %v690, 16
      %v717 = vrot.slane %v715, 7
      %v718 = vor.u32 %v714, %v717
      %v719 = vrot.slane %v718, 2
      %v721 = vshll.u32 %v693, 16
      %v723 = vrot.slane %v721, 7
      %v724 = vsel %vm394, %v719, %v723
      %v725 = vshrl.u32 %v696, 16
      %v727 = vrot.slane %v725, 6
      %v728 = vshll.u32 %v696, 16
      %v730 = vrot.slane %v728, 7
      %v731 = vor.u32 %v727, %v730
      %v732 = vrot.slane %v731, 2
      %v734 = vshll.u32 %v699, 16
      %v736 = vrot.slane %v734, 7
      %v737 = vsel %vm394, %v732, %v736
      %v738 = vshrl.u32 %v702, 16
      %v740 = vrot.slane %v738, 6
      %v741 = vshll.u32 %v702, 16
      %v743 = vrot.slane %v741, 7
      %v744 = vor.u32 %v740, %v743
      %v745 = vrot.slane %v744, 2
      %v747 = vshll.u32 %v705, 16
      %v749 = vrot.slane %v747, 7
      %v750 = vsel %vm394, %v745, %v749
      %v751 = vshrl.u32 %v708, 16
      %v753 = vrot.slane %v751, 6
      %v754 = vshll.u32 %v708, 16
      %v756 = vrot.slane %v754, 7
      %v757 = vor.u32 %v753, %v756
      %v758 = vrot.slane %v757, 2
      %v760 = vshll.u32 %v711, 16
      %v762 = vrot.slane %v760, 7
      %v763 = vsel %vm394, %v758, %v762
      %s764 = scalar_lea.vmem %s3, 32
      %v765 = vld [vmem:[%s764] sm:$0xf]
      %v766 = vld [vmem:[%s764 + $0x4] sm:$0xf]
      %768 = vst [vmem:[#allocation1] ss:$4 sm:$0xff] %v724
      %s770 = scalar_lea.vmem [#allocation1], 1
      %771 = vst [vmem:[%s770] ss:$4 sm:$0xff] %v737
      %s773 = scalar_lea.vmem [#allocation1], 2
      %774 = vst [vmem:[%s773] ss:$4 sm:$0xff] %v750
      %s776 = scalar_lea.vmem [#allocation1], 3
      %777 = vst [vmem:[%s776] ss:$4 sm:$0xff] %v763
      %v778 = vld.sshfl [vmem:[#allocation1] sm:$0xff pattern:$0x73625140]
      %v781 = vunpack.c.l.b16 %v765
      %v782 = vunpack.c.l.b16 %v766
      %v783 = vpack.c.b16 %v782, %v781
      %v784 = vsel %vm467, %v778, 0
      %v787 = vand.u32 %v783, %v473
      %789 = vmatpush.bf16.msra.mxu0 0
      %790 = vmatpush.bf16.msra.mxu0 0
      %791 = vmatpush.bf16.msra.mxu0 0
      %792 = vmatpush.bf16.msra.mxu0 0
      %793 = vmatpush.bf16.msra.mxu0 0
      %794 = vmatpush.bf16.msra.mxu0 0
      %795 = vmatpush.bf16.msra.mxu0 0
      %796 = vmatpush.bf16.msra.mxu0 %v787
      %797 = vmatmul.bf16.gmra.mxu0 %v784
      %v798 = vpop.f32.mrf.mxu0
      %v799 = vadd.f32 0.0, %v798
      %v800 = vpop.f32.mrf.mxu0
      %v801 = vadd.f32 0.0, %v800
      %802 = vdwg.mxu0
      %v803 = vadd.f32 %v674, %v799
      %v804 = vadd.f32 %v675, %v801
      %v805 = vld [vmem:[%s328] sm:$0x6]
      %v806 = vld [vmem:[%s328 + $0x4] sm:$0x6]
      %v807 = vld [vmem:[%s328 + $0x8] sm:$0x6]
      %v808 = vld [vmem:[%s328 + $0xc] sm:$0x6]
      %v813 = vrot.slane %v805, 2
      %v814 = vrot.slane %v806, 2
      %v815 = vrot.slane %v807, 2
      %v816 = vrot.slane %v808, 2
      %v819 = vsel %vm362, %v805, %v813
      %v821 = vsel %vm366, %v805, %v813
      %v823 = vrot.slane %v821, 2
      %v826 = vsel %vm362, %v806, %v814
      %v828 = vsel %vm366, %v806, %v814
      %v830 = vrot.slane %v828, 2
      %v833 = vsel %vm362, %v807, %v815
      %v835 = vsel %vm366, %v807, %v815
      %v837 = vrot.slane %v835, 2
      %v840 = vsel %vm362, %v808, %v816
      %v842 = vsel %vm366, %v808, %v816
      %v844 = vrot.slane %v842, 2
      %v845 = vrot.slane %v819, 7
      %v846 = vrot.slane %v845, 2
      %v847 = vrot.slane %v823, 7
      %v848 = vsel %vm573, %v846, %v847
      %v849 = vrot.slane %v826, 7
      %v850 = vrot.slane %v849, 2
      %v851 = vrot.slane %v830, 7
      %v852 = vsel %vm573, %v850, %v851
      %v853 = vrot.slane %v833, 7
      %v854 = vrot.slane %v853, 2
      %v855 = vrot.slane %v837, 7
      %v856 = vsel %vm573, %v854, %v855
      %v857 = vrot.slane %v840, 7
      %v858 = vrot.slane %v857, 2
      %v859 = vrot.slane %v844, 7
      %v860 = vsel %vm573, %v858, %v859
      %s861 = scalar_lea.vmem %s3, 40
      %v862 = vld [vmem:[%s861] sm:$0xf]
      %v863 = vld [vmem:[%s861 + $0x4] sm:$0xf]
      %865 = vst [vmem:[#allocation1] ss:$4 sm:$0xff] %v848
      %s867 = scalar_lea.vmem [#allocation1], 1
      %868 = vst [vmem:[%s867] ss:$4 sm:$0xff] %v852
      %s870 = scalar_lea.vmem [#allocation1], 2
      %871 = vst [vmem:[%s870] ss:$4 sm:$0xff] %v856
      %s873 = scalar_lea.vmem [#allocation1], 3
      %874 = vst [vmem:[%s873] ss:$4 sm:$0xff] %v860
      %v875 = vld.sshfl [vmem:[#allocation1] sm:$0xff pattern:$0x73625140]
      %v878 = vunpack.c.l.b16 %v862
      %v879 = vunpack.c.l.b16 %v863
      %v880 = vpack.c.b16 %v879, %v878
      %v881 = vsel %vm467, %v875, 0
      %v884 = vand.u32 %v880, %v473
      %886 = vmatpush.bf16.msra.mxu0 0
      %887 = vmatpush.bf16.msra.mxu0 0
      %888 = vmatpush.bf16.msra.mxu0 0
      %889 = vmatpush.bf16.msra.mxu0 0
      %890 = vmatpush.bf16.msra.mxu0 0
      %891 = vmatpush.bf16.msra.mxu0 0
      %892 = vmatpush.bf16.msra.mxu0 0
      %893 = vmatpush.bf16.msra.mxu0 %v884
      %894 = vmatmul.bf16.gmra.mxu0 %v881
      %v895 = vpop.f32.mrf.mxu0
      %v896 = vadd.f32 0.0, %v895
      %v897 = vpop.f32.mrf.mxu0
      %v898 = vadd.f32 0.0, %v897
      %899 = vdwg.mxu0
      %v900 = vadd.f32 %v803, %v896
      %v901 = vadd.f32 %v804, %v898
      %s902 = scalar_lea.vmem [#allocation2], 8
      %v903 = vld [vmem:[%s902] sm:$0x3]
      %v904 = vld [vmem:[%s902 + $0x4] sm:$0x3]
      %v905 = vld [vmem:[%s902 + $0x8] sm:$0x3]
      %v906 = vld [vmem:[%s902 + $0xc] sm:$0x3]
      %s907 = scalar_lea.vmem %s3, 48
      %v908 = vld [vmem:[%s907] sm:$0xf]
      %v909 = vld [vmem:[%s907 + $0x4] sm:$0xf]
      %911 = vst [vmem:[#allocation1] ss:$4 sm:$0xff] %v903
      %s913 = scalar_lea.vmem [#allocation1], 1
      %914 = vst [vmem:[%s913] ss:$4 sm:$0xff] %v904
      %s916 = scalar_lea.vmem [#allocation1], 2
      %917 = vst [vmem:[%s916] ss:$4 sm:$0xff] %v905
      %s919 = scalar_lea.vmem [#allocation1], 3
      %920 = vst [vmem:[%s919] ss:$4 sm:$0xff] %v906
      %v921 = vld.sshfl [vmem:[#allocation1] sm:$0xff pattern:$0x73625140]
      %v924 = vunpack.c.l.b16 %v908
      %v925 = vunpack.c.l.b16 %v909
      %v926 = vpack.c.b16 %v925, %v924
      %v927 = vsel %vm467, %v921, 0
      %v930 = vand.u32 %v926, %v473
      %932 = vmatpush.bf16.msra.mxu0 0
      %933 = vmatpush.bf16.msra.mxu0 0
      %934 = vmatpush.bf16.msra.mxu0 0
      %935 = vmatpush.bf16.msra.mxu0 0
      %936 = vmatpush.bf16.msra.mxu0 0
      %937 = vmatpush.bf16.msra.mxu0 0
      %938 = vmatpush.bf16.msra.mxu0 0
      %939 = vmatpush.bf16.msra.mxu0 %v930
      %940 = vmatmul.bf16.gmra.mxu0 %v927
      %v941 = vpop.f32.mrf.mxu0
      %v942 = vadd.f32 0.0, %v941
      %v943 = vpop.f32.mrf.mxu0
      %v944 = vadd.f32 0.0, %v943
      %945 = vdwg.mxu0
      %v946 = vadd.f32 %v900, %v942
      %v947 = vadd.f32 %v901, %v944
      %v948 = vld [vmem:[%s902] sm:$0x7]
      %v949 = vld [vmem:[%s902 + $0x4] sm:$0x7]
      %v950 = vld [vmem:[%s902 + $0x8] sm:$0x7]
      %v951 = vld [vmem:[%s902 + $0xc] sm:$0x7]
      %v956 = vrot.slane %v948, 2
      %v957 = vrot.slane %v949, 2
      %v958 = vrot.slane %v950, 2
      %v959 = vrot.slane %v951, 2
      %v962 = vsel %vm362, %v948, %v956
      %v963 = vsel %vm366, %v948, %v956
      %v965 = vrot.slane %v963, 2
      %v968 = vsel %vm362, %v949, %v957
      %v969 = vsel %vm366, %v949, %v957
      %v971 = vrot.slane %v969, 2
      %v974 = vsel %vm362, %v950, %v958
      %v975 = vsel %vm366, %v950, %v958
      %v977 = vrot.slane %v975, 2
      %v980 = vsel %vm362, %v951, %v959
      %v981 = vsel %vm366, %v951, %v959
      %v983 = vrot.slane %v981, 2
      %v984 = vshrl.u32 %v962, 16
      %v986 = vrot.slane %v984, 6
      %v987 = vshll.u32 %v962, 16
      %v989 = vrot.slane %v987, 7
      %v990 = vor.u32 %v986, %v989
      %v991 = vrot.slane %v990, 2
      %v993 = vshll.u32 %v965, 16
      %v995 = vrot.slane %v993, 7
      %v996 = vsel %vm394, %v991, %v995
      %v997 = vshrl.u32 %v968, 16
      %v999 = vrot.slane %v997, 6
      %v1000 = vshll.u32 %v968, 16
      %v1002 = vrot.slane %v1000, 7
      %v1003 = vor.u32 %v999, %v1002
      %v1004 = vrot.slane %v1003, 2
      %v1006 = vshll.u32 %v971, 16
      %v1008 = vrot.slane %v1006, 7
      %v1009 = vsel %vm394, %v1004, %v1008
      %v1010 = vshrl.u32 %v974, 16
      %v1012 = vrot.slane %v1010, 6
      %v1013 = vshll.u32 %v974, 16
      %v1015 = vrot.slane %v1013, 7
      %v1016 = vor.u32 %v1012, %v1015
      %v1017 = vrot.slane %v1016, 2
      %v1019 = vshll.u32 %v977, 16
      %v1021 = vrot.slane %v1019, 7
      %v1022 = vsel %vm394, %v1017, %v1021
      %v1023 = vshrl.u32 %v980, 16
      %v1025 = vrot.slane %v1023, 6
      %v1026 = vshll.u32 %v980, 16
      %v1028 = vrot.slane %v1026, 7
      %v1029 = vor.u32 %v1025, %v1028
      %v1030 = vrot.slane %v1029, 2
      %v1032 = vshll.u32 %v983, 16
      %v1034 = vrot.slane %v1032, 7
      %v1035 = vsel %vm394, %v1030, %v1034
      %s1036 = scalar_lea.vmem %s3, 56
      %v1037 = vld [vmem:[%s1036] sm:$0xf]
      %v1038 = vld [vmem:[%s1036 + $0x4] sm:$0xf]
      %1040 = vst [vmem:[#allocation1] ss:$4 sm:$0xff] %v996
      %s1042 = scalar_lea.vmem [#allocation1], 1
      %1043 = vst [vmem:[%s1042] ss:$4 sm:$0xff] %v1009
      %s1045 = scalar_lea.vmem [#allocation1], 2
      %1046 = vst [vmem:[%s1045] ss:$4 sm:$0xff] %v1022
      %s1048 = scalar_lea.vmem [#allocation1], 3
      %1049 = vst [vmem:[%s1048] ss:$4 sm:$0xff] %v1035
      %v1050 = vld.sshfl [vmem:[#allocation1] sm:$0xff pattern:$0x73625140]
      %v1053 = vunpack.c.l.b16 %v1037
      %v1054 = vunpack.c.l.b16 %v1038
      %v1055 = vpack.c.b16 %v1054, %v1053
      %v1056 = vsel %vm467, %v1050, 0
      %v1059 = vand.u32 %v1055, %v473
      %1061 = vmatpush.bf16.msra.mxu0 0
      %1062 = vmatpush.bf16.msra.mxu0 0
      %1063 = vmatpush.bf16.msra.mxu0 0
      %1064 = vmatpush.bf16.msra.mxu0 0
      %1065 = vmatpush.bf16.msra.mxu0 0
      %1066 = vmatpush.bf16.msra.mxu0 0
      %1067 = vmatpush.bf16.msra.mxu0 0
      %1068 = vmatpush.bf16.msra.mxu0 %v1059
      %1069 = vmatmul.bf16.gmra.mxu0 %v1056
      %v1070 = vpop.f32.mrf.mxu0
      %v1071 = vadd.f32 0.0, %v1070
      %v1072 = vpop.f32.mrf.mxu0
      %v1073 = vadd.f32 0.0, %v1072
      %1074 = vdwg.mxu0
      %v1075 = vadd.f32 %v946, %v1071
      %v1076 = vadd.f32 %v947, %v1073
      %v1077 = vld [vmem:[%s902] sm:$0x6]
      %v1078 = vld [vmem:[%s902 + $0x4] sm:$0x6]
      %v1079 = vld [vmem:[%s902 + $0x8] sm:$0x6]
      %v1080 = vld [vmem:[%s902 + $0xc] sm:$0x6]
      %v1085 = vrot.slane %v1077, 2
      %v1086 = vrot.slane %v1078, 2
      %v1087 = vrot.slane %v1079, 2
      %v1088 = vrot.slane %v1080, 2
      %v1091 = vsel %vm362, %v1077, %v1085
      %v1093 = vsel %vm366, %v1077, %v1085
      %v1095 = vrot.slane %v1093, 2
      %v1098 = vsel %vm362, %v1078, %v1086
      %v1100 = vsel %vm366, %v1078, %v1086
      %v1102 = vrot.slane %v1100, 2
      %v1105 = vsel %vm362, %v1079, %v1087
      %v1107 = vsel %vm366, %v1079, %v1087
      %v1109 = vrot.slane %v1107, 2
      %v1112 = vsel %vm362, %v1080, %v1088
      %v1114 = vsel %vm366, %v1080, %v1088
      %v1116 = vrot.slane %v1114, 2
      %v1117 = vrot.slane %v1091, 7
      %v1118 = vrot.slane %v1117, 2
      %v1119 = vrot.slane %v1095, 7
      %v1120 = vsel %vm573, %v1118, %v1119
      %v1121 = vrot.slane %v1098, 7
      %v1122 = vrot.slane %v1121, 2
      %v1123 = vrot.slane %v1102, 7
      %v1124 = vsel %vm573, %v1122, %v1123
      %v1125 = vrot.slane %v1105, 7
      %v1126 = vrot.slane %v1125, 2
      %v1127 = vrot.slane %v1109, 7
      %v1128 = vsel %vm573, %v1126, %v1127
      %v1129 = vrot.slane %v1112, 7
      %v1130 = vrot.slane %v1129, 2
      %v1131 = vrot.slane %v1116, 7
      %v1132 = vsel %vm573, %v1130, %v1131
      %s1133 = scalar_lea.vmem %s3, 64
      %v1134 = vld [vmem:[%s1133] sm:$0xf]
      %v1135 = vld [vmem:[%s1133 + $0x4] sm:$0xf]
      %1137 = vst [vmem:[#allocation1] ss:$4 sm:$0xff] %v1120
      %s1139 = scalar_lea.vmem [#allocation1], 1
      %1140 = vst [vmem:[%s1139] ss:$4 sm:$0xff] %v1124
      %s1142 = scalar_lea.vmem [#allocation1], 2
      %1143 = vst [vmem:[%s1142] ss:$4 sm:$0xff] %v1128
      %s1145 = scalar_lea.vmem [#allocation1], 3
      %1146 = vst [vmem:[%s1145] ss:$4 sm:$0xff] %v1132
      %v1147 = vld.sshfl [vmem:[#allocation1] sm:$0xff pattern:$0x73625140]
      %v1150 = vunpack.c.l.b16 %v1134
      %v1151 = vunpack.c.l.b16 %v1135
      %v1152 = vpack.c.b16 %v1151, %v1150
      %v1153 = vsel %vm467, %v1147, 0
      %v1156 = vand.u32 %v1152, %v473
      %1158 = vmatpush.bf16.msra.mxu0 0
      %1159 = vmatpush.bf16.msra.mxu0 0
      %1160 = vmatpush.bf16.msra.mxu0 0
      %1161 = vmatpush.bf16.msra.mxu0 0
      %1162 = vmatpush.bf16.msra.mxu0 0
      %1163 = vmatpush.bf16.msra.mxu0 0
      %1164 = vmatpush.bf16.msra.mxu0 0
      %1165 = vmatpush.bf16.msra.mxu0 %v1156
      %1166 = vmatmul.bf16.gmra.mxu0 %v1153
      %v1167 = vpop.f32.mrf.mxu0
      %v1168 = vadd.f32 0.0, %v1167
      %v1169 = vpop.f32.mrf.mxu0
      %v1170 = vadd.f32 0.0, %v1169
      %1171 = vdwg.mxu0
      %v1172 = vadd.f32 %v1075, %v1168
      %v1173 = vadd.f32 %v1076, %v1170
      %v1174 = vld [vmem:[%s4] sm:$0x1]
      %v1176 = vperm.slane %v1174, 0
      %v1178 = vadd.f32 %v1172, %v1176
      %v1179 = vadd.f32 %v1173, %v1176
      %v1180 = vmax.f32 %v1178, 0.0
      %v1181 = vmax.f32 %v1179, 0.0
      %v1184 = vrot.slane %v1180, 4
      %v1185 = vrot.slane %v1181, 4
      %vm1188 = vcmask 11264
      %1189 = vst.msk [vmem:[%s224] sm:$0xf] %vm1188, %v1180
      %1190 = vst.msk [vmem:[%s224 + $0x4] sm:$0xf] %vm1188, %v1184
      %1191 = vst.msk [vmem:[%s224 + $0x8] sm:$0xf] %vm1188, %v1181
      %1192 = vst.msk [vmem:[%s224 + $0xc] sm:$0xf] %vm1188, %v1185
      %p1193 = scmp.lt.s32.totalorder %s16, 1
      %s1194 = scalar_select %p1193, %s16, 1
      %s1195 = smul.addr %s1194, 4
      %s1196 = smul.addr %s1195, 4
      %s1197 = scalar_lea.vmem %s5, %s1196
      // Predicated region
      $region41: #{test_net_forward.7} parent=39 // pred_check
        %p1198 = pneg %p144
      $region42: #{test_net_forward.7} parent=39 // pred_check_branch
        %1200 = sbr.rel (%p1198) target = $region44
      $region43: #{test_net_forward.7} parent=39 // pred_region
        _
      $region44: #{test_net_forward.7} parent=39 // pred_fallthru
        _
    $region40: #{test_net_forward.7} parent=5 // pred_fallthru
      _
    %p1201 = scmp.le.s32.totalorder 2, %s11
    // Predicated region
    $region45: #{test_net_forward.7} parent=5 // pred_check
      %p1202 = pneg %p1201
    $region46: #{test_net_forward.7} parent=5 // pred_check_branch
      %1204 = sbr.rel (%p1202) target = $region48
    $region47: #{test_net_forward.7} parent=5 // pred_region
      %s1205 = ssub.s32 %s11, 2
      // Predicated region
      $region49: #{test_net_forward.7} parent=47 // pred_check
        %p1206 = pneg %p150
      $region50: #{test_net_forward.7} parent=47 // pred_check_branch
        %1208 = sbr.rel (%p1206) target = $region52
      $region51: #{test_net_forward.7} parent=47 // pred_region
        %p1209 = scmp.lt.s32.totalorder %s17, 1
        %s1210 = scalar_select %p1209, %s17, 1
        %s1211 = smul.addr %s1210, 4
        %s1212 = smul.addr %s1211, 4
        %s1213 = scalar_lea.vmem %s5, %s1212
      $region52: #{test_net_forward.7} parent=47 // pred_fallthru
        _
    $region48: #{test_net_forward.7} parent=5 // pred_fallthru
      _
  $region6: #{test_net_forward.7} parent=0 // loop_footer
    %s15 = sadd.s32 1, %s11
  $region7: #{test_net_forward.7} parent=0 // loop_footer_branch
    %10 = sbr.rel target = $region3
  $region8: #{test_net_forward.7} parent=0 // loop_exit
    _

// kernel: tile.43
$region0: #{tile.43}
  #allocation0 [shape = 's32[1]{0}', space=sflag, size = 0x4, scoped, tag = 'scoped memory for tile.43']
  %s0 = inlined_call_operand.vmem [shape: f32[2], index: 0, kind: input, shape index: {}]
  %s1 = inlined_call_operand.vmem [shape: f32[8,2], index: 1, kind: output, shape index: {}]
  // Predicated region
  $region2: #{tile.43} parent=0 // pred_check
    _
  $region3: #{tile.43} parent=0 // pred_check_branch
    %3 = sbr.rel (0) target = $region5
  $region4: #{tile.43} parent=0 // pred_region
    _
  $region5: #{tile.43} parent=0 // pred_fallthru
    _
  %v4 = vld [vmem:[%s0] ss:$0 sm:$0xff]
  %5 = vst [vmem:[%s1] sm:$0xff] %v4

// kernel: tile.44
$region0: #{tile.44}
  %s0 = inlined_call_operand.vmem [shape: f32[8,2], index: 0, kind: input, shape index: {}]
  %s1 = inlined_call_operand.vmem [shape: f32[1,16], index: 1, kind: output, shape index: {}]
  $region1: #{tile.44} parent=0
    #allocation0 [shape = 'u8[4096]{0}', space=vmem, size = 0x1000, scoped, tag = 'scoped mem for output reshape']
    %v2 = vld [vmem:[%s0] sm:$0x1]
    %vm3 = vcmask 15360
    %4 = vst.msk [vmem:[#allocation0] sm:$0x1] %vm3, %v2
    %s5 = scalar_lea.vmem %s0, 7
    %v6 = vld [vmem:[%s5] sm:$0x1]
    %7 = vrot.lane.b32.xlu0 %v6, 14
    %v8 = vpop.permute.xlu0 %7
    %vm9 = vcmask 130160
    %10 = vst.msk [vmem:[#allocation0] sm:$0x1] %vm9, %v8
    %s11 = scalar_lea.vmem %s0, 6
    %v12 = vld [vmem:[%s11] sm:$0x1]
    %13 = vrot.lane.b32.xlu0 %v12, 12
    %v14 = vpop.permute.xlu0 %13
    %vm15 = vcmask 113760
    %16 = vst.msk [vmem:[#allocation0] sm:$0x1] %vm15, %v14
    %s17 = scalar_lea.vmem %s0, 5
    %v18 = vld [vmem:[%s17] sm:$0x1]
    %19 = vrot.lane.b32.xlu0 %v18, 10
    %v20 = vpop.permute.xlu0 %19
    %vm21 = vcmask 97360
    %22 = vst.msk [vmem:[#allocation0] sm:$0x1] %vm21, %v20
    %s23 = scalar_lea.vmem %s0, 4
    %v24 = vld [vmem:[%s23] sm:$0x1]
    %25 = vrot.lane.b32.xlu0 %v24, 8
    %v26 = vpop.permute.xlu0 %25
    %vm27 = vcmask 80960
    %28 = vst.msk [vmem:[#allocation0] sm:$0x1] %vm27, %v26
    %s29 = scalar_lea.vmem %s0, 3
    %v30 = vld [vmem:[%s29] sm:$0x1]
    %31 = vrot.lane.b32.xlu0 %v30, 6
    %v32 = vpop.permute.xlu0 %31
    %vm33 = vcmask 64560
    %34 = vst.msk [vmem:[#allocation0] sm:$0x1] %vm33, %v32
    %s35 = scalar_lea.vmem %s0, 2
    %v36 = vld [vmem:[%s35] sm:$0x1]
    %37 = vrot.lane.b32.xlu0 %v36, 4
    %v38 = vpop.permute.xlu0 %37
    %vm39 = vcmask 48160
    %40 = vst.msk [vmem:[#allocation0] sm:$0x1] %vm39, %v38
    %s41 = scalar_lea.vmem %s0, 1
    %v42 = vld [vmem:[%s41] sm:$0x1]
    %43 = vrot.lane.b32.xlu0 %v42, 2
    %v44 = vpop.permute.xlu0 %43
    %vm45 = vcmask 31760
    %46 = vst.msk [vmem:[#allocation0] sm:$0x1] %vm45, %v44
    %s48 = ssub.s32 2, 1
    %v49 = vld [vmem:[#allocation0] sm:%s48]
    %s51 = ssub.s32 2, 1
    %52 = vst [vmem:[%s1] sm:%s51] %v49

// kernel: tile.58
$region0: #{tile.58}
  #allocation0 [shape = 's32[1]{0}', space=sflag, size = 0x4, scoped, tag = 'scoped memory for tile.58']
  %s0 = inlined_call_operand.vmem [shape: f32[2], index: 0, kind: input, shape index: {}]
  %s1 = inlined_call_operand.vmem [shape: f32[16,2], index: 1, kind: output, shape index: {}]
  // Predicated region
  $region2: #{tile.58} parent=0 // pred_check
    _
  $region3: #{tile.58} parent=0 // pred_check_branch
    %3 = sbr.rel (0) target = $region5
  $region4: #{tile.58} parent=0 // pred_region
    _
  $region5: #{tile.58} parent=0 // pred_fallthru
    _
  %v4 = vld [vmem:[%s0] ss:$0 sm:$0xff]
  %5 = vst [vmem:[%s1] sm:$0xff] %v4
  %s6 = scalar_lea.vmem %s1, 8
  %7 = vst [vmem:[%s6] sm:$0xff] %v4

// kernel: tile.59
$region0: #{tile.59}
  %s0 = inlined_call_operand.vmem [shape: f32[16,2], index: 0, kind: input, shape index: {}]
  %s1 = inlined_call_operand.vmem [shape: f32[1,32], index: 1, kind: output, shape index: {}]
  $region1: #{tile.59} parent=0
    #allocation0 [shape = 'u8[4096]{0}', space=vmem, size = 0x1000, scoped, tag = 'scoped mem for output reshape']
    %v2 = vld [vmem:[%s0] sm:$0x1]
    %vm3 = vcmask 15360
    %4 = vst.msk [vmem:[#allocation0] sm:$0x1] %vm3, %v2
    %s5 = scalar_lea.vmem %s0, 15
    %v6 = vld [vmem:[%s5] sm:$0x1]
    %7 = vrot.lane.b32.xlu0 %v6, 30
    %v8 = vpop.permute.xlu0 %7
    %vm9 = vcmask 261360
    %10 = vst.msk [vmem:[#allocation0] sm:$0x1] %vm9, %v8
    %s11 = scalar_lea.vmem %s0, 14
    %v12 = vld [vmem:[%s11] sm:$0x1]
    %13 = vrot.lane.b32.xlu0 %v12, 28
    %v14 = vpop.permute.xlu0 %13
    %vm15 = vcmask 244960
    %16 = vst.msk [vmem:[#allocation0] sm:$0x1] %vm15, %v14
    %s17 = scalar_lea.vmem %s0, 13
    %v18 = vld [vmem:[%s17] sm:$0x1]
    %19 = vrot.lane.b32.xlu0 %v18, 26
    %v20 = vpop.permute.xlu0 %19
    %vm21 = vcmask 228560
    %22 = vst.msk [vmem:[#allocation0] sm:$0x1] %vm21, %v20
    %s23 = scalar_lea.vmem %s0, 12
    %v24 = vld [vmem:[%s23] sm:$0x1]
    %25 = vrot.lane.b32.xlu0 %v24, 24
    %v26 = vpop.permute.xlu0 %25
    %vm27 = vcmask 212160
    %28 = vst.msk [vmem:[#allocation0] sm:$0x1] %vm27, %v26
    %s29 = scalar_lea.vmem %s0, 11
    %v30 = vld [vmem:[%s29] sm:$0x1]
    %31 = vrot.lane.b32.xlu0 %v30, 22
    %v32 = vpop.permute.xlu0 %31
    %vm33 = vcmask 195760
    %34 = vst.msk [vmem:[#allocation0] sm:$0x1] %vm33, %v32
    %s35 = scalar_lea.vmem %s0, 10
    %v36 = vld [vmem:[%s35] sm:$0x1]
    %37 = vrot.lane.b32.xlu0 %v36, 20
    %v38 = vpop.permute.xlu0 %37
    %vm39 = vcmask 179360
    %40 = vst.msk [vmem:[#allocation0] sm:$0x1] %vm39, %v38
    %s41 = scalar_lea.vmem %s0, 9
    %v42 = vld [vmem:[%s41] sm:$0x1]
    %43 = vrot.lane.b32.xlu0 %v42, 18
    %v44 = vpop.permute.xlu0 %43
    %vm45 = vcmask 162960
    %46 = vst.msk [vmem:[#allocation0] sm:$0x1] %vm45, %v44
    %s47 = scalar_lea.vmem %s0, 8
    %v48 = vld [vmem:[%s47] sm:$0x1]
    %49 = vrot.lane.b32.xlu0 %v48, 16
    %v50 = vpop.permute.xlu0 %49
    %vm51 = vcmask 146560
    %52 = vst.msk [vmem:[#allocation0] sm:$0x1] %vm51, %v50
    %s53 = scalar_lea.vmem %s0, 7
    %v54 = vld [vmem:[%s53] sm:$0x1]
    %55 = vrot.lane.b32.xlu0 %v54, 14
    %v56 = vpop.permute.xlu0 %55
    %vm57 = vcmask 130160
    %58 = vst.msk [vmem:[#allocation0] sm:$0x1] %vm57, %v56
    %s59 = scalar_lea.vmem %s0, 6
    %v60 = vld [vmem:[%s59] sm:$0x1]
    %61 = vrot.lane.b32.xlu0 %v60, 12
    %v62 = vpop.permute.xlu0 %61
    %vm63 = vcmask 113760
    %64 = vst.msk [vmem:[#allocation0] sm:$0x1] %vm63, %v62
    %s65 = scalar_lea.vmem %s0, 5
    %v66 = vld [vmem:[%s65] sm:$0x1]
    %67 = vrot.lane.b32.xlu0 %v66, 10
    %v68 = vpop.permute.xlu0 %67
    %vm69 = vcmask 97360
    %70 = vst.msk [vmem:[#allocation0] sm:$0x1] %vm69, %v68
    %s71 = scalar_lea.vmem %s0, 4
    %v72 = vld [vmem:[%s71] sm:$0x1]
    %73 = vrot.lane.b32.xlu0 %v72, 8
    %v74 = vpop.permute.xlu0 %73
    %vm75 = vcmask 80960
    %76 = vst.msk [vmem:[#allocation0] sm:$0x1] %vm75, %v74
    %s77 = scalar_lea.vmem %s0, 3
    %v78 = vld [vmem:[%s77] sm:$0x1]
    %79 = vrot.lane.b32.xlu0 %v78, 6
    %v80 = vpop.permute.xlu0 %79
    %vm81 = vcmask 64560
    %82 = vst.msk [vmem:[#allocation0] sm:$0x1] %vm81, %v80
    %s83 = scalar_lea.vmem %s0, 2
    %v84 = vld [vmem:[%s83] sm:$0x1]
    %85 = vrot.lane.b32.xlu0 %v84, 4
    %v86 = vpop.permute.xlu0 %85
    %vm87 = vcmask 48160
    %88 = vst.msk [vmem:[#allocation0] sm:$0x1] %vm87, %v86
    %s89 = scalar_lea.vmem %s0, 1
    %v90 = vld [vmem:[%s89] sm:$0x1]
    %91 = vrot.lane.b32.xlu0 %v90, 2
    %v92 = vpop.permute.xlu0 %91
    %vm93 = vcmask 31760
    %94 = vst.msk [vmem:[#allocation0] sm:$0x1] %vm93, %v92
    %s96 = ssub.s32 2, 1
    %v97 = vld [vmem:[#allocation0] sm:%s96]
    %s99 = ssub.s32 2, 1
    %100 = vst [vmem:[%s1] sm:%s99] %v97

// kernel: test_net_forward.8
$region0: #{test_net_forward.8}
  #allocation0 [shape = 'u32[]', space=smem, size = 0x4, offset = 0x4, fixed_abs, tag = 'smem constant byte address 0x4 - core index']
  #allocation1 [shape = 'u32[72,128]{1,0:T(1,128)}', space=vmem, size = 0x9000, scoped, tag = 'internal scratch']
  %s0 = inlined_call_operand.vmem [shape: f32[2,4,8], index: 0, kind: input, shape index: {}]
  %s1 = inlined_call_operand.vmem [shape: f32[1,8], index: 1, kind: input, shape index: {}]
  %s2 = inlined_call_operand.vmem [shape: f32[1,8], index: 2, kind: input, shape index: {}]
  %s3 = inlined_call_operand.vmem [shape: f32[3,8,4], index: 3, kind: input, shape index: {}]
  %s4 = inlined_call_operand.vmem [shape: f32[3,8,16], index: 4, kind: input, shape index: {}]
  %s5 = inlined_call_operand.vmem [shape: f32[1,16], index: 5, kind: input, shape index: {}]
  %s6 = inlined_call_operand.vmem [shape: f32[2,8,16], index: 6, kind: output, shape index: {}]
  %s7 = sld [smem:[#allocation0]]
  $region57: #{test_net_forward.8} parent=0
    _
  %s9 = ssub.s32 1, %s7
  %s10 = scalar_select 0, %s9, %s7
  loop: start=0, step=1, limit=4
  $region2: #{test_net_forward.8} parent=0 // loop_pre_header
    _
  $region3: #{test_net_forward.8} parent=0 // loop_header
    %s12 = sphi 0, %s16
    %p13 = scmp.ge.s32.totalorder %s12, 4
    %s22 = sphi 0, %s24
    %s25 = sphi 0, %s22
    %s26 = sphi 0, %s25
    %s42 = sphi 0, %s26
    %s46 = sphi 0, %s46
    %s48 = sphi 0, %s46
    %s49 = sphi 0, %s48
    %s63 = sphi 0, %s49
    %s67 = sphi 0, %s67
    %s69 = sphi 0, %s67
    %s70 = sphi 0, %s69
    %s84 = sphi 0, %s70
    %s88 = sphi 0, %s88
    %s90 = sphi 0, %s88
    %s91 = sphi 0, %s90
    %s105 = sphi 0, %s91
    %s109 = sphi 0, %s109
    %s111 = sphi 0, %s109
    %s112 = sphi 0, %s111
    %s126 = sphi 0, %s112
    %s130 = sphi 0, %s130
    %s132 = sphi 0, %s130
    %s133 = sphi 0, %s132
    %s147 = sphi 0, %s133
    %s153 = sphi 0, %s155
    %s156 = sphi 0, %s153
    %s157 = sphi 0, %s156
    %s173 = sphi 0, %s157
  $region4: #{test_net_forward.8} parent=0 // loop_header_branch
    %15 = sbr.rel (%p13) target = $region8
  $region5: #{test_net_forward.8} parent=0 // loop_body
    %s17 = ssub.s32 %s12, 1
    %s18 = ssub.s32 %s12, 2
    %s19 = sadd.s32 %s12, 1
    %s20 = ssub.s32 %s12, %s19
    %p21 = scmp.eq.s32.totalorder %s20, 0
    %s23 = sadd.s32 %s22, 1
    %s24 = scalar_select %p21, %s22, %s23
    %p27 = pneg %p21
    %p28 = scmp.eq.s32.totalorder %s12, 1
    %p29 = por %p27, %p28
    %p30 = scmp.ne.s32.totalorder %s22, %s25
    %p31 = scmp.eq.s32.totalorder %s12, 0
    %p32 = por %p30, %p31
    %p33 = scmp.ne.s32.totalorder %s22, %s25
    %p34 = scmp.eq.s32.totalorder %s17, 1
    %p35 = por %p33, %p34
    %p36 = scmp.ne.s32.totalorder %s25, %s26
    %p37 = scmp.eq.s32.totalorder %s17, 0
    %p38 = por %p36, %p37
    %p39 = scmp.ne.s32.totalorder %s25, %s26
    %p40 = scmp.eq.s32.totalorder %s18, 1
    %p41 = por %p39, %p40
    %p43 = scmp.ne.s32.totalorder %s26, %s42
    %p44 = scmp.eq.s32.totalorder %s18, 0
    %p45 = por %p43, %p44
    %s47 = sadd.s32 %s46, 1
    %p50 = scmp.eq.s32.totalorder %s12, 1
    %p51 = scmp.ne.s32.totalorder %s46, %s48
    %p52 = scmp.eq.s32.totalorder %s12, 0
    %p53 = por %p51, %p52
    %p54 = scmp.ne.s32.totalorder %s46, %s48
    %p55 = scmp.eq.s32.totalorder %s17, 1
    %p56 = por %p54, %p55
    %p57 = scmp.ne.s32.totalorder %s48, %s49
    %p58 = scmp.eq.s32.totalorder %s17, 0
    %p59 = por %p57, %p58
    %p60 = scmp.ne.s32.totalorder %s48, %s49
    %p61 = scmp.eq.s32.totalorder %s18, 1
    %p62 = por %p60, %p61
    %p64 = scmp.ne.s32.totalorder %s49, %s63
    %p65 = scmp.eq.s32.totalorder %s18, 0
    %p66 = por %p64, %p65
    %s68 = sadd.s32 %s67, 1
    %p71 = scmp.eq.s32.totalorder %s12, 1
    %p72 = scmp.ne.s32.totalorder %s67, %s69
    %p73 = scmp.eq.s32.totalorder %s12, 0
    %p74 = por %p72, %p73
    %p75 = scmp.ne.s32.totalorder %s67, %s69
    %p76 = scmp.eq.s32.totalorder %s17, 1
    %p77 = por %p75, %p76
    %p78 = scmp.ne.s32.totalorder %s69, %s70
    %p79 = scmp.eq.s32.totalorder %s17, 0
    %p80 = por %p78, %p79
    %p81 = scmp.ne.s32.totalorder %s69, %s70
    %p82 = scmp.eq.s32.totalorder %s18, 1
    %p83 = por %p81, %p82
    %p85 = scmp.ne.s32.totalorder %s70, %s84
    %p86 = scmp.eq.s32.totalorder %s18, 0
    %p87 = por %p85, %p86
    %s89 = sadd.s32 %s88, 1
    %p92 = scmp.eq.s32.totalorder %s12, 1
    %p93 = scmp.ne.s32.totalorder %s88, %s90
    %p94 = scmp.eq.s32.totalorder %s12, 0
    %p95 = por %p93, %p94
    %p96 = scmp.ne.s32.totalorder %s88, %s90
    %p97 = scmp.eq.s32.totalorder %s17, 1
    %p98 = por %p96, %p97
    %p99 = scmp.ne.s32.totalorder %s90, %s91
    %p100 = scmp.eq.s32.totalorder %s17, 0
    %p101 = por %p99, %p100
    %p102 = scmp.ne.s32.totalorder %s90, %s91
    %p103 = scmp.eq.s32.totalorder %s18, 1
    %p104 = por %p102, %p103
    %p106 = scmp.ne.s32.totalorder %s91, %s105
    %p107 = scmp.eq.s32.totalorder %s18, 0
    %p108 = por %p106, %p107
    %s110 = sadd.s32 %s109, 1
    %p113 = scmp.eq.s32.totalorder %s12, 1
    %p114 = scmp.ne.s32.totalorder %s109, %s111
    %p115 = scmp.eq.s32.totalorder %s12, 0
    %p116 = por %p114, %p115
    %p117 = scmp.ne.s32.totalorder %s109, %s111
    %p118 = scmp.eq.s32.totalorder %s17, 1
    %p119 = por %p117, %p118
    %p120 = scmp.ne.s32.totalorder %s111, %s112
    %p121 = scmp.eq.s32.totalorder %s17, 0
    %p122 = por %p120, %p121
    %p123 = scmp.ne.s32.totalorder %s111, %s112
    %p124 = scmp.eq.s32.totalorder %s18, 1
    %p125 = por %p123, %p124
    %p127 = scmp.ne.s32.totalorder %s112, %s126
    %p128 = scmp.eq.s32.totalorder %s18, 0
    %p129 = por %p127, %p128
    %s131 = sadd.s32 %s130, 1
    %p134 = scmp.eq.s32.totalorder %s12, 1
    %p135 = scmp.ne.s32.totalorder %s130, %s132
    %p136 = scmp.eq.s32.totalorder %s12, 0
    %p137 = por %p135, %p136
    %p138 = scmp.ne.s32.totalorder %s130, %s132
    %p139 = scmp.eq.s32.totalorder %s17, 1
    %p140 = por %p138, %p139
    %p141 = scmp.ne.s32.totalorder %s132, %s133
    %p142 = scmp.eq.s32.totalorder %s17, 0
    %p143 = por %p141, %p142
    %p144 = scmp.ne.s32.totalorder %s132, %s133
    %p145 = scmp.eq.s32.totalorder %s18, 1
    %p146 = por %p144, %p145
    %p148 = scmp.ne.s32.totalorder %s133, %s147
    %p149 = scmp.eq.s32.totalorder %s18, 0
    %p150 = por %p148, %p149
    %s151 = ssub.s32 %s12, %s19
    %p152 = scmp.eq.s32.totalorder %s151, 0
    %s154 = sadd.s32 %s153, 1
    %s155 = scalar_select %p152, %s153, %s154
    %p158 = pneg %p152
    %p159 = scmp.eq.s32.totalorder %s12, 1
    %p160 = por %p158, %p159
    %p161 = scmp.ne.s32.totalorder %s153, %s156
    %p162 = scmp.eq.s32.totalorder %s12, 0
    %p163 = por %p161, %p162
    %p164 = scmp.ne.s32.totalorder %s153, %s156
    %p165 = scmp.eq.s32.totalorder %s17, 1
    %p166 = por %p164, %p165
    %p167 = scmp.ne.s32.totalorder %s156, %s157
    %p168 = scmp.eq.s32.totalorder %s17, 0
    %p169 = por %p167, %p168
    %p170 = scmp.ne.s32.totalorder %s156, %s157
    %p171 = scmp.eq.s32.totalorder %s18, 1
    %p172 = por %p170, %p171
    %p174 = scmp.ne.s32.totalorder %s157, %s173
    %p175 = scmp.eq.s32.totalorder %s18, 0
    %p176 = por %p174, %p175
    %p177 = scmp.le.s32.totalorder 1, %s12
    %p178 = scmp.lt.s32.totalorder %s12, 3
    %p179 = pnand %p177, %p178
    %p180 = pneg %p179
    // Predicated region
    $region9: #{test_net_forward.8} parent=5 // pred_check
      _
    $region10: #{test_net_forward.8} parent=5 // pred_check_branch
      %182 = sbr.rel (%p179) target = $region12
    $region11: #{test_net_forward.8} parent=5 // pred_region
      %s183 = ssub.s32 %s12, 1
      // Predicated region
      $region13: #{test_net_forward.8} parent=11 // pred_check
        %p184 = pneg %p59
      $region14: #{test_net_forward.8} parent=11 // pred_check_branch
        %186 = sbr.rel (%p184) target = $region16
      $region15: #{test_net_forward.8} parent=11 // pred_region
        _
      $region16: #{test_net_forward.8} parent=11 // pred_fallthru
        _
      // Predicated region
      $region17: #{test_net_forward.8} parent=11 // pred_check
        %p187 = pneg %p80
      $region18: #{test_net_forward.8} parent=11 // pred_check_branch
        %189 = sbr.rel (%p187) target = $region20
      $region19: #{test_net_forward.8} parent=11 // pred_region
        _
      $region20: #{test_net_forward.8} parent=11 // pred_fallthru
        _
      // Predicated region
      $region21: #{test_net_forward.8} parent=11 // pred_check
        %p190 = pneg %p101
      $region22: #{test_net_forward.8} parent=11 // pred_check_branch
        %192 = sbr.rel (%p190) target = $region24
      $region23: #{test_net_forward.8} parent=11 // pred_region
        _
      $region24: #{test_net_forward.8} parent=11 // pred_fallthru
        _
      // Predicated region
      $region25: #{test_net_forward.8} parent=11 // pred_check
        %p193 = pneg %p122
      $region26: #{test_net_forward.8} parent=11 // pred_check_branch
        %195 = sbr.rel (%p193) target = $region28
      $region27: #{test_net_forward.8} parent=11 // pred_region
        _
      $region28: #{test_net_forward.8} parent=11 // pred_fallthru
        _
      // Predicated region
      $region29: #{test_net_forward.8} parent=11 // pred_check
        %p196 = pneg %p143
      $region30: #{test_net_forward.8} parent=11 // pred_check_branch
        %198 = sbr.rel (%p196) target = $region32
      $region31: #{test_net_forward.8} parent=11 // pred_region
        _
      $region32: #{test_net_forward.8} parent=11 // pred_fallthru
        _
    $region12: #{test_net_forward.8} parent=5 // pred_fallthru
      _
    %p199 = scmp.lt.s32.totalorder %s12, 2
    // Predicated region
    $region33: #{test_net_forward.8} parent=5 // pred_check
      %p200 = pneg %p199
    $region34: #{test_net_forward.8} parent=5 // pred_check_branch
      %202 = sbr.rel (%p200) target = $region36
    $region35: #{test_net_forward.8} parent=5 // pred_region
      // Predicated region
      $region37: #{test_net_forward.8} parent=35 // pred_check
        %p203 = pneg %p32
      $region38: #{test_net_forward.8} parent=35 // pred_check_branch
        %205 = sbr.rel (%p203) target = $region40
      $region39: #{test_net_forward.8} parent=35 // pred_region
        %p206 = scmp.lt.s32.totalorder %s12, 1
        %s207 = scalar_select %p206, %s12, 1
        %s208 = smul.addr %s207, 4
        %s209 = scalar_lea.vmem %s0, %s208
      $region40: #{test_net_forward.8} parent=35 // pred_fallthru
        _
    $region36: #{test_net_forward.8} parent=5 // pred_fallthru
      _
    %p210 = scmp.le.s32.totalorder 1, %s12
    %p211 = scmp.lt.s32.totalorder %s12, 3
    %p212 = pnand %p210, %p211
    %p213 = pneg %p212
    // Predicated region
    $region41: #{test_net_forward.8} parent=5 // pred_check
      _
    $region42: #{test_net_forward.8} parent=5 // pred_check_branch
      %215 = sbr.rel (%p212) target = $region44
    $region43: #{test_net_forward.8} parent=5 // pred_region
      %s216 = ssub.s32 %s12, 1
      %p217 = scmp.lt.s32.totalorder %s17, 1
      %s218 = scalar_select %p217, %s17, 1
      %s219 = smul.addr %s218, 4
      %s220 = scalar_lea.vmem %s0, %s219
      %p221 = pneg %p38
      %p222 = pneg %p35
      %p223 = pneg %p59
      %p224 = pneg %p56
      %p225 = pneg %p80
      %p226 = pneg %p77
      %p227 = pneg %p101
      %p228 = pneg %p98
      %p229 = pneg %p122
      %p230 = pneg %p119
      %p231 = pneg %p143
      %p232 = pneg %p140
      %p233 = pneg %p169
      %p234 = pneg %p166
      %p235 = scmp.lt.s32.totalorder %s17, 1
      %s236 = scalar_select %p235, %s17, 1
      %s237 = smul.addr %s236, 8
      %s238 = scalar_lea.vmem %s6, %s237
      %p239 = scmp.lt.s32.totalorder %s17, 1
      %s240 = scalar_select %p239, %s17, 1
      %s241 = smul.addr %s240, 4
      %s242 = scalar_lea.vmem %s0, %s241
      %p243 = scmp.lt.s32.totalorder %s17, 1
      %s244 = scalar_select %p243, %s17, 1
      %s245 = smul.addr %s244, 8
      %s246 = scalar_lea.vmem %s6, %s245
      %v247 = vld [vmem:[%s242] sm:$0xf]
      %v248 = vld [vmem:[%s1] sm:$0x1]
      %v250 = vperm.slane %v248, 0
      %v252 = vmul.f32 %v247, %v250
      %v253 = vld [vmem:[%s2] sm:$0x1]
      %v255 = vperm.slane %v253, 0
      %v257 = vadd.f32 %v252, %v255
      %v258 = vld [vmem:[%s3] sm:$0xff]
      %vm259 = vcmask 31744
      %v261 = vsel %vm259, %v258, 0
      %vm263 = vcmask 1043456
      %v265 = vsel %vm263, %v257, 0
      %267 = vmatpush.msra.mxu0 0.0
      %268 = vmatpush.msra.mxu0 0.0
      %269 = vmatpush.msra.mxu0 0.0
      %270 = vmatpush.msra.mxu0 0.0
      %271 = vmatpush.msra.mxu0 0.0
      %272 = vmatpush.msra.mxu0 0.0
      %273 = vmatpush.msra.mxu0 0.0
      %274 = vmatpush.msra.mxu0 0.0
      %275 = vmatpush.msra.mxu0 0.0
      %276 = vmatpush.msra.mxu0 0.0
      %277 = vmatpush.msra.mxu0 0.0
      %278 = vmatpush.msra.mxu0 0.0
      %279 = vmatpush.msra.mxu0 0.0
      %280 = vmatpush.msra.mxu0 0.0
      %281 = vmatpush.msra.mxu0 0.0
      %282 = vmatpush.msra.mxu0 %v265
      %283 = vmatmul.f32.gmra.mxu0 %v261
      %v284 = vpop.f32.mrf.mxu0
      %v285 = vadd.f32 0.0, %v284
      %286 = vdwg.mxu0
      %v287 = vld [vmem:[%s4] sm:$0xff]
      %s288 = scalar_lea.vmem %s3, 8
      %v289 = vld [vmem:[%s288] sm:$0xff]
      %v291 = vsel %vm259, %v289, 0
      %293 = vmatpush.msra.mxu0 0.0
      %294 = vmatpush.msra.mxu0 0.0
      %295 = vmatpush.msra.mxu0 0.0
      %296 = vmatpush.msra.mxu0 0.0
      %297 = vmatpush.msra.mxu0 0.0
      %298 = vmatpush.msra.mxu0 0.0
      %299 = vmatpush.msra.mxu0 0.0
      %300 = vmatpush.msra.mxu0 0.0
      %301 = vmatpush.msra.mxu0 0.0
      %302 = vmatpush.msra.mxu0 0.0
      %303 = vmatpush.msra.mxu0 0.0
      %304 = vmatpush.msra.mxu0 0.0
      %305 = vmatpush.msra.mxu0 0.0
      %306 = vmatpush.msra.mxu0 0.0
      %307 = vmatpush.msra.mxu0 0.0
      %308 = vmatpush.msra.mxu0 %v265
      %309 = vmatmul.f32.gmra.mxu0 %v291
      %v310 = vpop.f32.mrf.mxu0
      %v311 = vadd.f32 0.0, %v310
      %312 = vdwg.mxu0
      %s313 = scalar_lea.vmem %s4, 8
      %v314 = vld [vmem:[%s313] sm:$0xff]
      %vm315 = vcmask 64512
      %v317 = vsel %vm315, %v311, 0
      %319 = vmatpush.msra.mxu0 0.0
      %320 = vmatpush.msra.mxu0 0.0
      %321 = vmatpush.msra.mxu0 0.0
      %322 = vmatpush.msra.mxu0 0.0
      %323 = vmatpush.msra.mxu0 0.0
      %324 = vmatpush.msra.mxu0 0.0
      %325 = vmatpush.msra.mxu0 0.0
      %326 = vmatpush.msra.mxu0 0.0
      %327 = vmatpush.msra.mxu0 0.0
      %328 = vmatpush.msra.mxu0 0.0
      %329 = vmatpush.msra.mxu0 0.0
      %330 = vmatpush.msra.mxu0 0.0
      %331 = vmatpush.msra.mxu0 0.0
      %332 = vmatpush.msra.mxu0 0.0
      %333 = vmatpush.msra.mxu0 0.0
      %334 = vmatpush.msra.mxu0 %v314
      %335 = vmatmul.f32.gmra.mxu0 %v317
      %v336 = vpop.f32.mrf.mxu0
      %v337 = vadd.f32 0.0, %v336
      %338 = vdwg.mxu0
      %v340 = vsel %vm315, %v285, 0
      %342 = vmatpush.msra.mxu0 0.0
      %343 = vmatpush.msra.mxu0 0.0
      %344 = vmatpush.msra.mxu0 0.0
      %345 = vmatpush.msra.mxu0 0.0
      %346 = vmatpush.msra.mxu0 0.0
      %347 = vmatpush.msra.mxu0 0.0
      %348 = vmatpush.msra.mxu0 0.0
      %349 = vmatpush.msra.mxu0 0.0
      %350 = vmatpush.msra.mxu0 0.0
      %351 = vmatpush.msra.mxu0 0.0
      %352 = vmatpush.msra.mxu0 0.0
      %353 = vmatpush.msra.mxu0 0.0
      %354 = vmatpush.msra.mxu0 0.0
      %355 = vmatpush.msra.mxu0 0.0
      %356 = vmatpush.msra.mxu0 0.0
      %357 = vmatpush.msra.mxu0 %v287
      %358 = vmatmul.f32.gmra.mxu0 %v340
      %v359 = vpop.f32.mrf.mxu0
      %v360 = vadd.f32 %v337, %v359
      %361 = vdwg.mxu0
      %s362 = scalar_lea.vmem %s3, 16
      %v363 = vld [vmem:[%s362] sm:$0xff]
      %v365 = vsel %vm259, %v363, 0
      %367 = vmatpush.msra.mxu0 0.0
      %368 = vmatpush.msra.mxu0 0.0
      %369 = vmatpush.msra.mxu0 0.0
      %370 = vmatpush.msra.mxu0 0.0
      %371 = vmatpush.msra.mxu0 0.0
      %372 = vmatpush.msra.mxu0 0.0
      %373 = vmatpush.msra.mxu0 0.0
      %374 = vmatpush.msra.mxu0 0.0
      %375 = vmatpush.msra.mxu0 0.0
      %376 = vmatpush.msra.mxu0 0.0
      %377 = vmatpush.msra.mxu0 0.0
      %378 = vmatpush.msra.mxu0 0.0
      %379 = vmatpush.msra.mxu0 0.0
      %380 = vmatpush.msra.mxu0 0.0
      %381 = vmatpush.msra.mxu0 0.0
      %382 = vmatpush.msra.mxu0 %v265
      %383 = vmatmul.f32.gmra.mxu0 %v365
      %v384 = vpop.f32.mrf.mxu0
      %v385 = vadd.f32 0.0, %v384
      %386 = vdwg.mxu0
      %s387 = scalar_lea.vmem %s4, 16
      %v388 = vld [vmem:[%s387] sm:$0xff]
      %v390 = vsel %vm315, %v385, 0
      %392 = vmatpush.msra.mxu0 0.0
      %393 = vmatpush.msra.mxu0 0.0
      %394 = vmatpush.msra.mxu0 0.0
      %395 = vmatpush.msra.mxu0 0.0
      %396 = vmatpush.msra.mxu0 0.0
      %397 = vmatpush.msra.mxu0 0.0
      %398 = vmatpush.msra.mxu0 0.0
      %399 = vmatpush.msra.mxu0 0.0
      %400 = vmatpush.msra.mxu0 0.0
      %401 = vmatpush.msra.mxu0 0.0
      %402 = vmatpush.msra.mxu0 0.0
      %403 = vmatpush.msra.mxu0 0.0
      %404 = vmatpush.msra.mxu0 0.0
      %405 = vmatpush.msra.mxu0 0.0
      %406 = vmatpush.msra.mxu0 0.0
      %407 = vmatpush.msra.mxu0 %v388
      %408 = vmatmul.f32.gmra.mxu0 %v390
      %v409 = vpop.f32.mrf.mxu0
      %v410 = vadd.f32 0.0, %v409
      %411 = vdwg.mxu0
      %v412 = vadd.f32 %v360, %v410
      %v413 = vld [vmem:[%s5] sm:$0x1]
      %v415 = vperm.slane %v413, 0
      %v417 = vadd.f32 %v412, %v415
      %v418 = vmax.f32 %v417, 0.0
      %vm419 = vcmask 130048
      %420 = vst.msk [vmem:[%s246] sm:$0xff] %vm419, %v418
      %p421 = scmp.lt.s32.totalorder %s17, 1
      %s422 = scalar_select %p421, %s17, 1
      %s423 = smul.addr %s422, 8
      %s424 = scalar_lea.vmem %s6, %s423
      // Predicated region
      $region45: #{test_net_forward.8} parent=43 // pred_check
        %p425 = pneg %p166
      $region46: #{test_net_forward.8} parent=43 // pred_check_branch
        %427 = sbr.rel (%p425) target = $region48
      $region47: #{test_net_forward.8} parent=43 // pred_region
        _
      $region48: #{test_net_forward.8} parent=43 // pred_fallthru
        _
    $region44: #{test_net_forward.8} parent=5 // pred_fallthru
      _
    %p428 = scmp.le.s32.totalorder 2, %s12
    // Predicated region
    $region49: #{test_net_forward.8} parent=5 // pred_check
      %p429 = pneg %p428
    $region50: #{test_net_forward.8} parent=5 // pred_check_branch
      %431 = sbr.rel (%p429) target = $region52
    $region51: #{test_net_forward.8} parent=5 // pred_region
      %s432 = ssub.s32 %s12, 2
      // Predicated region
      $region53: #{test_net_forward.8} parent=51 // pred_check
        %p433 = pneg %p172
      $region54: #{test_net_forward.8} parent=51 // pred_check_branch
        %435 = sbr.rel (%p433) target = $region56
      $region55: #{test_net_forward.8} parent=51 // pred_region
        %p436 = scmp.lt.s32.totalorder %s18, 1
        %s437 = scalar_select %p436, %s18, 1
        %s438 = smul.addr %s437, 8
        %s439 = scalar_lea.vmem %s6, %s438
      $region56: #{test_net_forward.8} parent=51 // pred_fallthru
        _
    $region52: #{test_net_forward.8} parent=5 // pred_fallthru
      _
  $region6: #{test_net_forward.8} parent=0 // loop_footer
    %s16 = sadd.s32 1, %s12
  $region7: #{test_net_forward.8} parent=0 // loop_footer_branch
    %11 = sbr.rel target = $region3
  $region8: #{test_net_forward.8} parent=0 // loop_exit
    _

// kernel: test_net_forward.9
$region0: #{test_net_forward.9}
  #allocation0 [shape = 'u32[]', space=smem, size = 0x4, offset = 0x4, fixed_abs, tag = 'smem constant byte address 0x4 - core index']
  #allocation1 [shape = 'u32[72,128]{1,0:T(1,128)}', space=vmem, size = 0x9000, scoped, tag = 'internal scratch']
  %s0 = inlined_call_operand.vmem [shape: f32[2,8,16], index: 0, kind: input, shape index: {}]
  %s1 = inlined_call_operand.vmem [shape: f32[1,16], index: 1, kind: input, shape index: {}]
  %s2 = inlined_call_operand.vmem [shape: f32[1,16], index: 2, kind: input, shape index: {}]
  %s3 = inlined_call_operand.vmem [shape: f32[1,16,8], index: 3, kind: input, shape index: {}]
  %s4 = inlined_call_operand.vmem [shape: f32[1,16,32], index: 4, kind: input, shape index: {}]
  %s5 = inlined_call_operand.vmem [shape: f32[1,32], index: 5, kind: input, shape index: {}]
  %s6 = inlined_call_operand.vmem [shape: f32[32,32], index: 6, kind: input, shape index: {}]
  %s7 = inlined_call_operand.vmem [shape: f32[2,16,32], index: 7, kind: output, shape index: {}]
  %s8 = sld [smem:[#allocation0]]
  $region61: #{test_net_forward.9} parent=0
    _
  %s10 = ssub.s32 1, %s8
  %s11 = scalar_select 0, %s10, %s8
  loop: start=0, step=1, limit=4
  $region2: #{test_net_forward.9} parent=0 // loop_pre_header
    _
  $region3: #{test_net_forward.9} parent=0 // loop_header
    %s13 = sphi 0, %s17
    %p14 = scmp.ge.s32.totalorder %s13, 4
    %s23 = sphi 0, %s25
    %s26 = sphi 0, %s23
    %s27 = sphi 0, %s26
    %s43 = sphi 0, %s27
    %s47 = sphi 0, %s47
    %s49 = sphi 0, %s47
    %s50 = sphi 0, %s49
    %s64 = sphi 0, %s50
    %s68 = sphi 0, %s68
    %s70 = sphi 0, %s68
    %s71 = sphi 0, %s70
    %s85 = sphi 0, %s71
    %s89 = sphi 0, %s89
    %s91 = sphi 0, %s89
    %s92 = sphi 0, %s91
    %s106 = sphi 0, %s92
    %s110 = sphi 0, %s110
    %s112 = sphi 0, %s110
    %s113 = sphi 0, %s112
    %s127 = sphi 0, %s113
    %s131 = sphi 0, %s131
    %s133 = sphi 0, %s131
    %s134 = sphi 0, %s133
    %s148 = sphi 0, %s134
    %s152 = sphi 0, %s152
    %s154 = sphi 0, %s152
    %s155 = sphi 0, %s154
    %s169 = sphi 0, %s155
    %s175 = sphi 0, %s177
    %s178 = sphi 0, %s175
    %s179 = sphi 0, %s178
    %s195 = sphi 0, %s179
  $region4: #{test_net_forward.9} parent=0 // loop_header_branch
    %16 = sbr.rel (%p14) target = $region8
  $region5: #{test_net_forward.9} parent=0 // loop_body
    %s18 = ssub.s32 %s13, 1
    %s19 = ssub.s32 %s13, 2
    %s20 = sadd.s32 %s13, 1
    %s21 = ssub.s32 %s13, %s20
    %p22 = scmp.eq.s32.totalorder %s21, 0
    %s24 = sadd.s32 %s23, 1
    %s25 = scalar_select %p22, %s23, %s24
    %p28 = pneg %p22
    %p29 = scmp.eq.s32.totalorder %s13, 1
    %p30 = por %p28, %p29
    %p31 = scmp.ne.s32.totalorder %s23, %s26
    %p32 = scmp.eq.s32.totalorder %s13, 0
    %p33 = por %p31, %p32
    %p34 = scmp.ne.s32.totalorder %s23, %s26
    %p35 = scmp.eq.s32.totalorder %s18, 1
    %p36 = por %p34, %p35
    %p37 = scmp.ne.s32.totalorder %s26, %s27
    %p38 = scmp.eq.s32.totalorder %s18, 0
    %p39 = por %p37, %p38
    %p40 = scmp.ne.s32.totalorder %s26, %s27
    %p41 = scmp.eq.s32.totalorder %s19, 1
    %p42 = por %p40, %p41
    %p44 = scmp.ne.s32.totalorder %s27, %s43
    %p45 = scmp.eq.s32.totalorder %s19, 0
    %p46 = por %p44, %p45
    %s48 = sadd.s32 %s47, 1
    %p51 = scmp.eq.s32.totalorder %s13, 1
    %p52 = scmp.ne.s32.totalorder %s47, %s49
    %p53 = scmp.eq.s32.totalorder %s13, 0
    %p54 = por %p52, %p53
    %p55 = scmp.ne.s32.totalorder %s47, %s49
    %p56 = scmp.eq.s32.totalorder %s18, 1
    %p57 = por %p55, %p56
    %p58 = scmp.ne.s32.totalorder %s49, %s50
    %p59 = scmp.eq.s32.totalorder %s18, 0
    %p60 = por %p58, %p59
    %p61 = scmp.ne.s32.totalorder %s49, %s50
    %p62 = scmp.eq.s32.totalorder %s19, 1
    %p63 = por %p61, %p62
    %p65 = scmp.ne.s32.totalorder %s50, %s64
    %p66 = scmp.eq.s32.totalorder %s19, 0
    %p67 = por %p65, %p66
    %s69 = sadd.s32 %s68, 1
    %p72 = scmp.eq.s32.totalorder %s13, 1
    %p73 = scmp.ne.s32.totalorder %s68, %s70
    %p74 = scmp.eq.s32.totalorder %s13, 0
    %p75 = por %p73, %p74
    %p76 = scmp.ne.s32.totalorder %s68, %s70
    %p77 = scmp.eq.s32.totalorder %s18, 1
    %p78 = por %p76, %p77
    %p79 = scmp.ne.s32.totalorder %s70, %s71
    %p80 = scmp.eq.s32.totalorder %s18, 0
    %p81 = por %p79, %p80
    %p82 = scmp.ne.s32.totalorder %s70, %s71
    %p83 = scmp.eq.s32.totalorder %s19, 1
    %p84 = por %p82, %p83
    %p86 = scmp.ne.s32.totalorder %s71, %s85
    %p87 = scmp.eq.s32.totalorder %s19, 0
    %p88 = por %p86, %p87
    %s90 = sadd.s32 %s89, 1
    %p93 = scmp.eq.s32.totalorder %s13, 1
    %p94 = scmp.ne.s32.totalorder %s89, %s91
    %p95 = scmp.eq.s32.totalorder %s13, 0
    %p96 = por %p94, %p95
    %p97 = scmp.ne.s32.totalorder %s89, %s91
    %p98 = scmp.eq.s32.totalorder %s18, 1
    %p99 = por %p97, %p98
    %p100 = scmp.ne.s32.totalorder %s91, %s92
    %p101 = scmp.eq.s32.totalorder %s18, 0
    %p102 = por %p100, %p101
    %p103 = scmp.ne.s32.totalorder %s91, %s92
    %p104 = scmp.eq.s32.totalorder %s19, 1
    %p105 = por %p103, %p104
    %p107 = scmp.ne.s32.totalorder %s92, %s106
    %p108 = scmp.eq.s32.totalorder %s19, 0
    %p109 = por %p107, %p108
    %s111 = sadd.s32 %s110, 1
    %p114 = scmp.eq.s32.totalorder %s13, 1
    %p115 = scmp.ne.s32.totalorder %s110, %s112
    %p116 = scmp.eq.s32.totalorder %s13, 0
    %p117 = por %p115, %p116
    %p118 = scmp.ne.s32.totalorder %s110, %s112
    %p119 = scmp.eq.s32.totalorder %s18, 1
    %p120 = por %p118, %p119
    %p121 = scmp.ne.s32.totalorder %s112, %s113
    %p122 = scmp.eq.s32.totalorder %s18, 0
    %p123 = por %p121, %p122
    %p124 = scmp.ne.s32.totalorder %s112, %s113
    %p125 = scmp.eq.s32.totalorder %s19, 1
    %p126 = por %p124, %p125
    %p128 = scmp.ne.s32.totalorder %s113, %s127
    %p129 = scmp.eq.s32.totalorder %s19, 0
    %p130 = por %p128, %p129
    %s132 = sadd.s32 %s131, 1
    %p135 = scmp.eq.s32.totalorder %s13, 1
    %p136 = scmp.ne.s32.totalorder %s131, %s133
    %p137 = scmp.eq.s32.totalorder %s13, 0
    %p138 = por %p136, %p137
    %p139 = scmp.ne.s32.totalorder %s131, %s133
    %p140 = scmp.eq.s32.totalorder %s18, 1
    %p141 = por %p139, %p140
    %p142 = scmp.ne.s32.totalorder %s133, %s134
    %p143 = scmp.eq.s32.totalorder %s18, 0
    %p144 = por %p142, %p143
    %p145 = scmp.ne.s32.totalorder %s133, %s134
    %p146 = scmp.eq.s32.totalorder %s19, 1
    %p147 = por %p145, %p146
    %p149 = scmp.ne.s32.totalorder %s134, %s148
    %p150 = scmp.eq.s32.totalorder %s19, 0
    %p151 = por %p149, %p150
    %s153 = sadd.s32 %s152, 1
    %p156 = scmp.eq.s32.totalorder %s13, 1
    %p157 = scmp.ne.s32.totalorder %s152, %s154
    %p158 = scmp.eq.s32.totalorder %s13, 0
    %p159 = por %p157, %p158
    %p160 = scmp.ne.s32.totalorder %s152, %s154
    %p161 = scmp.eq.s32.totalorder %s18, 1
    %p162 = por %p160, %p161
    %p163 = scmp.ne.s32.totalorder %s154, %s155
    %p164 = scmp.eq.s32.totalorder %s18, 0
    %p165 = por %p163, %p164
    %p166 = scmp.ne.s32.totalorder %s154, %s155
    %p167 = scmp.eq.s32.totalorder %s19, 1
    %p168 = por %p166, %p167
    %p170 = scmp.ne.s32.totalorder %s155, %s169
    %p171 = scmp.eq.s32.totalorder %s19, 0
    %p172 = por %p170, %p171
    %s173 = ssub.s32 %s13, %s20
    %p174 = scmp.eq.s32.totalorder %s173, 0
    %s176 = sadd.s32 %s175, 1
    %s177 = scalar_select %p174, %s175, %s176
    %p180 = pneg %p174
    %p181 = scmp.eq.s32.totalorder %s13, 1
    %p182 = por %p180, %p181
    %p183 = scmp.ne.s32.totalorder %s175, %s178
    %p184 = scmp.eq.s32.totalorder %s13, 0
    %p185 = por %p183, %p184
    %p186 = scmp.ne.s32.totalorder %s175, %s178
    %p187 = scmp.eq.s32.totalorder %s18, 1
    %p188 = por %p186, %p187
    %p189 = scmp.ne.s32.totalorder %s178, %s179
    %p190 = scmp.eq.s32.totalorder %s18, 0
    %p191 = por %p189, %p190
    %p192 = scmp.ne.s32.totalorder %s178, %s179
    %p193 = scmp.eq.s32.totalorder %s19, 1
    %p194 = por %p192, %p193
    %p196 = scmp.ne.s32.totalorder %s179, %s195
    %p197 = scmp.eq.s32.totalorder %s19, 0
    %p198 = por %p196, %p197
    %p199 = scmp.le.s32.totalorder 1, %s13
    %p200 = scmp.lt.s32.totalorder %s13, 3
    %p201 = pnand %p199, %p200
    %p202 = pneg %p201
    // Predicated region
    $region9: #{test_net_forward.9} parent=5 // pred_check
      _
    $region10: #{test_net_forward.9} parent=5 // pred_check_branch
      %204 = sbr.rel (%p201) target = $region12
    $region11: #{test_net_forward.9} parent=5 // pred_region
      %s205 = ssub.s32 %s13, 1
      // Predicated region
      $region13: #{test_net_forward.9} parent=11 // pred_check
        %p206 = pneg %p60
      $region14: #{test_net_forward.9} parent=11 // pred_check_branch
        %208 = sbr.rel (%p206) target = $region16
      $region15: #{test_net_forward.9} parent=11 // pred_region
        _
      $region16: #{test_net_forward.9} parent=11 // pred_fallthru
        _
      // Predicated region
      $region17: #{test_net_forward.9} parent=11 // pred_check
        %p209 = pneg %p81
      $region18: #{test_net_forward.9} parent=11 // pred_check_branch
        %211 = sbr.rel (%p209) target = $region20
      $region19: #{test_net_forward.9} parent=11 // pred_region
        _
      $region20: #{test_net_forward.9} parent=11 // pred_fallthru
        _
      // Predicated region
      $region21: #{test_net_forward.9} parent=11 // pred_check
        %p212 = pneg %p102
      $region22: #{test_net_forward.9} parent=11 // pred_check_branch
        %214 = sbr.rel (%p212) target = $region24
      $region23: #{test_net_forward.9} parent=11 // pred_region
        _
      $region24: #{test_net_forward.9} parent=11 // pred_fallthru
        _
      // Predicated region
      $region25: #{test_net_forward.9} parent=11 // pred_check
        %p215 = pneg %p123
      $region26: #{test_net_forward.9} parent=11 // pred_check_branch
        %217 = sbr.rel (%p215) target = $region28
      $region27: #{test_net_forward.9} parent=11 // pred_region
        _
      $region28: #{test_net_forward.9} parent=11 // pred_fallthru
        _
      // Predicated region
      $region29: #{test_net_forward.9} parent=11 // pred_check
        %p218 = pneg %p144
      $region30: #{test_net_forward.9} parent=11 // pred_check_branch
        %220 = sbr.rel (%p218) target = $region32
      $region31: #{test_net_forward.9} parent=11 // pred_region
        _
      $region32: #{test_net_forward.9} parent=11 // pred_fallthru
        _
      // Predicated region
      $region33: #{test_net_forward.9} parent=11 // pred_check
        %p221 = pneg %p165
      $region34: #{test_net_forward.9} parent=11 // pred_check_branch
        %223 = sbr.rel (%p221) target = $region36
      $region35: #{test_net_forward.9} parent=11 // pred_region
        _
      $region36: #{test_net_forward.9} parent=11 // pred_fallthru
        _
    $region12: #{test_net_forward.9} parent=5 // pred_fallthru
      _
    %p224 = scmp.lt.s32.totalorder %s13, 2
    // Predicated region
    $region37: #{test_net_forward.9} parent=5 // pred_check
      %p225 = pneg %p224
    $region38: #{test_net_forward.9} parent=5 // pred_check_branch
      %227 = sbr.rel (%p225) target = $region40
    $region39: #{test_net_forward.9} parent=5 // pred_region
      // Predicated region
      $region41: #{test_net_forward.9} parent=39 // pred_check
        %p228 = pneg %p33
      $region42: #{test_net_forward.9} parent=39 // pred_check_branch
        %230 = sbr.rel (%p228) target = $region44
      $region43: #{test_net_forward.9} parent=39 // pred_region
        %p231 = scmp.lt.s32.totalorder %s13, 1
        %s232 = scalar_select %p231, %s13, 1
        %s233 = smul.addr %s232, 8
        %s234 = scalar_lea.vmem %s0, %s233
      $region44: #{test_net_forward.9} parent=39 // pred_fallthru
        _
    $region40: #{test_net_forward.9} parent=5 // pred_fallthru
      _
    %p235 = scmp.le.s32.totalorder 1, %s13
    %p236 = scmp.lt.s32.totalorder %s13, 3
    %p237 = pnand %p235, %p236
    %p238 = pneg %p237
    // Predicated region
    $region45: #{test_net_forward.9} parent=5 // pred_check
      _
    $region46: #{test_net_forward.9} parent=5 // pred_check_branch
      %240 = sbr.rel (%p237) target = $region48
    $region47: #{test_net_forward.9} parent=5 // pred_region
      %s241 = ssub.s32 %s13, 1
      %p242 = scmp.lt.s32.totalorder %s18, 1
      %s243 = scalar_select %p242, %s18, 1
      %s244 = smul.addr %s243, 8
      %s245 = scalar_lea.vmem %s0, %s244
      %p246 = pneg %p39
      %p247 = pneg %p36
      %p248 = pneg %p60
      %p249 = pneg %p57
      %p250 = pneg %p81
      %p251 = pneg %p78
      %p252 = pneg %p102
      %p253 = pneg %p99
      %p254 = pneg %p123
      %p255 = pneg %p120
      %p256 = pneg %p144
      %p257 = pneg %p141
      %p258 = pneg %p165
      %p259 = pneg %p162
      %p260 = pneg %p191
      %p261 = pneg %p188
      %p262 = scmp.lt.s32.totalorder %s18, 1
      %s263 = scalar_select %p262, %s18, 1
      %s264 = smul.addr %s263, 2
      %s265 = smul.addr %s264, 8
      %s266 = scalar_lea.vmem %s7, %s265
      %p267 = scmp.lt.s32.totalorder %s18, 1
      %s268 = scalar_select %p267, %s18, 1
      %s269 = smul.addr %s268, 8
      %s270 = scalar_lea.vmem %s0, %s269
      %p271 = scmp.lt.s32.totalorder %s18, 1
      %s272 = scalar_select %p271, %s18, 1
      %s273 = smul.addr %s272, 2
      %s274 = smul.addr %s273, 8
      %s275 = scalar_lea.vmem %s7, %s274
      %v276 = vld [vmem:[%s270] sm:$0xff]
      %v277 = vld [vmem:[%s1] sm:$0x1]
      %v279 = vperm.slane %v277, 0
      %v281 = vmul.f32 %v276, %v279
      %v282 = vld [vmem:[%s2] sm:$0x1]
      %v284 = vperm.slane %v282, 0
      %v286 = vadd.f32 %v281, %v284
      %v287 = vld [vmem:[%s3] sm:$0xff]
      %v288 = vld [vmem:[%s3 + $0x8] sm:$0xff]
      %vm289 = vcmask 64512
      %v291 = vsel %vm289, %v287, 0
      %v294 = vsel %vm289, %v288, 0
      %296 = vmatpush.msra.mxu0 0.0
      %297 = vmatpush.msra.mxu0 0.0
      %298 = vmatpush.msra.mxu0 0.0
      %299 = vmatpush.msra.mxu0 0.0
      %300 = vmatpush.msra.mxu0 0.0
      %301 = vmatpush.msra.mxu0 0.0
      %302 = vmatpush.msra.mxu0 0.0
      %303 = vmatpush.msra.mxu0 0.0
      %304 = vmatpush.msra.mxu0 0.0
      %305 = vmatpush.msra.mxu0 0.0
      %306 = vmatpush.msra.mxu0 0.0
      %307 = vmatpush.msra.mxu0 0.0
      %308 = vmatpush.msra.mxu0 0.0
      %309 = vmatpush.msra.mxu0 0.0
      %310 = vmatpush.msra.mxu0 0.0
      %311 = vmatpush.msra.mxu0 %v286
      %312 = vmatmul.f32.gmra.mxu0 %v291
      %v313 = vpop.f32.mrf.mxu0
      %v314 = vadd.f32 0.0, %v313
      %315 = vmatmul.f32.gmra.mxu0 %v294
      %v316 = vpop.f32.mrf.mxu0
      %v317 = vadd.f32 0.0, %v316
      %318 = vdwg.mxu0
      %v319 = vld [vmem:[%s4] sm:$0xff]
      %v320 = vld [vmem:[%s4 + $0x8] sm:$0xff]
      %v321 = vld [vmem:[%s5] sm:$0x1]
      %v323 = vperm.slane %v321, 0
      %vm325 = vcmask 130048
      %v327 = vsel %vm325, %v314, 0
      %v330 = vsel %vm325, %v317, 0
      %332 = vmatpush.msra.mxu0 0.0
      %333 = vmatpush.msra.mxu0 0.0
      %334 = vmatpush.msra.mxu0 0.0
      %335 = vmatpush.msra.mxu0 0.0
      %336 = vmatpush.msra.mxu0 0.0
      %337 = vmatpush.msra.mxu0 0.0
      %338 = vmatpush.msra.mxu0 0.0
      %339 = vmatpush.msra.mxu0 0.0
      %340 = vmatpush.msra.mxu0 0.0
      %341 = vmatpush.msra.mxu0 0.0
      %342 = vmatpush.msra.mxu0 0.0
      %343 = vmatpush.msra.mxu0 0.0
      %344 = vmatpush.msra.mxu0 0.0
      %345 = vmatpush.msra.mxu0 0.0
      %346 = vmatpush.msra.mxu0 %v320
      %347 = vmatpush.msra.mxu0 %v319
      %348 = vmatmul.f32.gmra.mxu0 %v327
      %v349 = vpop.f32.mrf.mxu0
      %v350 = vadd.f32 %v323, %v349
      %351 = vmatmul.f32.gmra.mxu0 %v330
      %v352 = vpop.f32.mrf.mxu0
      %v353 = vadd.f32 %v323, %v352
      %354 = vdwg.mxu0
      %v355 = vmax.f32 %v350, 0.0
      %v356 = vmax.f32 %v353, 0.0
      %vm357 = vcmask 261120
      %v358 = vsel %vm357, %v355, -inf
      %359 = vmax.xlane.f32.xlu0 %v358
      %v360 = vpop.xlane.xlu0 %359
      %v361 = vsel %vm357, %v356, -inf
      %362 = vmax.xlane.f32.xlu0 %v361
      %v363 = vpop.xlane.xlu0 %362
      %v364 = vsub.f32 %v355, %v360
      %v365 = vsub.f32 %v356, %v363
      %v366 = vmul.f32 %v364, 1.442695
      %v367 = vpow.pop %v366
      %v368 = vmul.f32 %v365, 1.442695
      %v369 = vpow.pop %v368
      %v370 = vld [vmem:[%s6] sm:$0xff]
      %v371 = vld [vmem:[%s6 + $0x8] sm:$0xff]
      %v372 = vld [vmem:[%s6 + $0x10] sm:$0xff]
      %v373 = vld [vmem:[%s6 + $0x18] sm:$0xff]
      %v375 = vsel %vm357, %v367, 0
      %v378 = vsel %vm357, %v369, 0
      %380 = vmatpush.msra.mxu0 0.0
      %381 = vmatpush.msra.mxu0 0.0
      %382 = vmatpush.msra.mxu0 0.0
      %383 = vmatpush.msra.mxu0 0.0
      %384 = vmatpush.msra.mxu0 0.0
      %385 = vmatpush.msra.mxu0 0.0
      %386 = vmatpush.msra.mxu0 0.0
      %387 = vmatpush.msra.mxu0 0.0
      %388 = vmatpush.msra.mxu0 0.0
      %389 = vmatpush.msra.mxu0 0.0
      %390 = vmatpush.msra.mxu0 0.0
      %391 = vmatpush.msra.mxu0 0.0
      %392 = vmatpush.msra.mxu0 %v373
      %393 = vmatpush.msra.mxu0 %v372
      %394 = vmatpush.msra.mxu0 %v371
      %395 = vmatpush.msra.mxu0 %v370
      %396 = vmatmul.f32.gmra.mxu0 %v375
      %v397 = vpop.f32.mrf.mxu0
      %v398 = vadd.f32 0.0, %v397
      %399 = vmatmul.f32.gmra.mxu0 %v378
      %v400 = vpop.f32.mrf.mxu0
      %v401 = vadd.f32 0.0, %v400
      %402 = vdwg.mxu0
      %v403 = vrcp.pop %v398
      %v404 = vmul.f32 %v398, %v403
      %v405 = vsub.f32 1.0, %v404
      %v406 = vmul.f32 %v403, %v405
      %v407 = vadd.f32 %v403, %v406
      %vm408 = vweird.f32 %v398
      %vm409 = vweird.f32 %v403
      %vm410 = vmor %vm408, %vm409
      %v411 = vsel %vm410, %v403, %v407
      %v412 = vand.u32 2147483647, %v398
      %vm413 = vcmp.eq.f32.partialorder %v412, 8.507059e+37
      %v414 = vand.u32 %v398, 2147483648
      %v415 = vor.u32 1.1754944e-38, %v414
      %v416 = vsel %vm413, %v415, %v411
      %v417 = vmul.f32 %v367, %v416
      %v418 = vrcp.pop %v401
      %v419 = vmul.f32 %v401, %v418
      %v420 = vsub.f32 1.0, %v419
      %v421 = vmul.f32 %v418, %v420
      %v422 = vadd.f32 %v418, %v421
      %vm423 = vweird.f32 %v401
      %vm424 = vweird.f32 %v418
      %vm425 = vmor %vm423, %vm424
      %v426 = vsel %vm425, %v418, %v422
      %v427 = vand.u32 2147483647, %v401
      %vm428 = vcmp.eq.f32.partialorder %v427, 8.507059e+37
      %v429 = vand.u32 %v401, 2147483648
      %v430 = vor.u32 1.1754944e-38, %v429
      %v431 = vsel %vm428, %v430, %v426
      %v432 = vmul.f32 %v369, %v431
      %433 = vst.msk [vmem:[%s275] sm:$0xff] %vm357, %v417
      %434 = vst.msk [vmem:[%s275 + $0x8] sm:$0xff] %vm357, %v432
      %p435 = scmp.lt.s32.totalorder %s18, 1
      %s436 = scalar_select %p435, %s18, 1
      %s437 = smul.addr %s436, 2
      %s438 = smul.addr %s437, 8
      %s439 = scalar_lea.vmem %s7, %s438
      // Predicated region
      $region49: #{test_net_forward.9} parent=47 // pred_check
        %p440 = pneg %p188
      $region50: #{test_net_forward.9} parent=47 // pred_check_branch
        %442 = sbr.rel (%p440) target = $region52
      $region51: #{test_net_forward.9} parent=47 // pred_region
        _
      $region52: #{test_net_forward.9} parent=47 // pred_fallthru
        _
    $region48: #{test_net_forward.9} parent=5 // pred_fallthru
      _
    %p443 = scmp.le.s32.totalorder 2, %s13
    // Predicated region
    $region53: #{test_net_forward.9} parent=5 // pred_check
      %p444 = pneg %p443
    $region54: #{test_net_forward.9} parent=5 // pred_check_branch
      %446 = sbr.rel (%p444) target = $region56
    $region55: #{test_net_forward.9} parent=5 // pred_region
      %s447 = ssub.s32 %s13, 2
      // Predicated region
      $region57: #{test_net_forward.9} parent=55 // pred_check
        %p448 = pneg %p194
      $region58: #{test_net_forward.9} parent=55 // pred_check_branch
        %450 = sbr.rel (%p448) target = $region60
      $region59: #{test_net_forward.9} parent=55 // pred_region
        %p451 = scmp.lt.s32.totalorder %s19, 1
        %s452 = scalar_select %p451, %s19, 1
        %s453 = smul.addr %s452, 2
        %s454 = smul.addr %s453, 8
        %s455 = scalar_lea.vmem %s7, %s454
      $region60: #{test_net_forward.9} parent=55 // pred_fallthru
        _
    $region56: #{test_net_forward.9} parent=5 // pred_fallthru
      _
  $region6: #{test_net_forward.9} parent=0 // loop_footer
    %s17 = sadd.s32 1, %s13
  $region7: #{test_net_forward.9} parent=0 // loop_footer_branch
    %12 = sbr.rel target = $region3
  $region8: #{test_net_forward.9} parent=0 // loop_exit
    _

// kernel: test_net_forward.5
$region0: #{test_net_forward.5}
  #allocation0 [shape = 'u32[]', space=smem, size = 0x4, offset = 0x4, fixed_abs, tag = 'smem constant byte address 0x4 - core index']
  #allocation1 [shape = 'u32[72,128]{1,0:T(1,128)}', space=vmem, size = 0x9000, scoped, tag = 'internal scratch']
  #allocation2 [shape = 'bf16[18,18,54]{2,1,0:T(8,128)(2,1)}', space=vmem, size = 0x1b000, scoped, tag = 'scratch operand']
  #allocation3 [shape = 'f32[16,16,34]{2,1,0:T(8,128)}', space=vmem, size = 0x20000, scoped, tag = 'scratch operand']
  #allocation4 [shape = 'f32[8,16,34]{2,1,0:T(8,128)}', space=vmem, size = 0x10000, scoped, tag = 'scratch operand']
  %s0 = inlined_call_operand.vmem [shape: f32[2,16,16,54], index: 0, kind: input, shape index: {}]
  %s1 = inlined_call_operand.vmem [shape: f32[1,54], index: 1, kind: input, shape index: {}]
  %s2 = inlined_call_operand.vmem [shape: f32[1,54], index: 2, kind: input, shape index: {}]
  %s3 = inlined_call_operand.vmem [shape: bf16[9,54,34], index: 3, kind: input, shape index: {}]
  %s4 = inlined_call_operand.vmem [shape: f32[1,34], index: 4, kind: input, shape index: {}]
  %s5 = inlined_call_operand.vmem [shape: f32[2,8,8,34], index: 5, kind: output, shape index: {}]
  %s6 = sld [smem:[#allocation0]]
  $region53: #{test_net_forward.5} parent=0
    _
  %s8 = ssub.s32 1, %s6
  %s9 = scalar_select 0, %s8, %s6
  loop: start=0, step=1, limit=4
  $region2: #{test_net_forward.5} parent=0 // loop_pre_header
    _
  $region3: #{test_net_forward.5} parent=0 // loop_header
    %s11 = sphi 0, %s15
    %p12 = scmp.ge.s32.totalorder %s11, 4
    %s21 = sphi 0, %s23
    %s24 = sphi 0, %s21
    %s25 = sphi 0, %s24
    %s41 = sphi 0, %s25
    %s45 = sphi 0, %s45
    %s47 = sphi 0, %s45
    %s48 = sphi 0, %s47
    %s62 = sphi 0, %s48
    %s66 = sphi 0, %s66
    %s68 = sphi 0, %s66
    %s69 = sphi 0, %s68
    %s83 = sphi 0, %s69
    %s87 = sphi 0, %s87
    %s89 = sphi 0, %s87
    %s90 = sphi 0, %s89
    %s104 = sphi 0, %s90
    %s108 = sphi 0, %s108
    %s110 = sphi 0, %s108
    %s111 = sphi 0, %s110
    %s125 = sphi 0, %s111
    %s131 = sphi 0, %s133
    %s134 = sphi 0, %s131
    %s135 = sphi 0, %s134
    %s151 = sphi 0, %s135
  $region4: #{test_net_forward.5} parent=0 // loop_header_branch
    %14 = sbr.rel (%p12) target = $region8
  $region5: #{test_net_forward.5} parent=0 // loop_body
    %s16 = ssub.s32 %s11, 1
    %s17 = ssub.s32 %s11, 2
    %s18 = sadd.s32 %s11, 1
    %s19 = ssub.s32 %s11, %s18
    %p20 = scmp.eq.s32.totalorder %s19, 0
    %s22 = sadd.s32 %s21, 1
    %s23 = scalar_select %p20, %s21, %s22
    %p26 = pneg %p20
    %p27 = scmp.eq.s32.totalorder %s11, 1
    %p28 = por %p26, %p27
    %p29 = scmp.ne.s32.totalorder %s21, %s24
    %p30 = scmp.eq.s32.totalorder %s11, 0
    %p31 = por %p29, %p30
    %p32 = scmp.ne.s32.totalorder %s21, %s24
    %p33 = scmp.eq.s32.totalorder %s16, 1
    %p34 = por %p32, %p33
    %p35 = scmp.ne.s32.totalorder %s24, %s25
    %p36 = scmp.eq.s32.totalorder %s16, 0
    %p37 = por %p35, %p36
    %p38 = scmp.ne.s32.totalorder %s24, %s25
    %p39 = scmp.eq.s32.totalorder %s17, 1
    %p40 = por %p38, %p39
    %p42 = scmp.ne.s32.totalorder %s25, %s41
    %p43 = scmp.eq.s32.totalorder %s17, 0
    %p44 = por %p42, %p43
    %s46 = sadd.s32 %s45, 1
    %p49 = scmp.eq.s32.totalorder %s11, 1
    %p50 = scmp.ne.s32.totalorder %s45, %s47
    %p51 = scmp.eq.s32.totalorder %s11, 0
    %p52 = por %p50, %p51
    %p53 = scmp.ne.s32.totalorder %s45, %s47
    %p54 = scmp.eq.s32.totalorder %s16, 1
    %p55 = por %p53, %p54
    %p56 = scmp.ne.s32.totalorder %s47, %s48
    %p57 = scmp.eq.s32.totalorder %s16, 0
    %p58 = por %p56, %p57
    %p59 = scmp.ne.s32.totalorder %s47, %s48
    %p60 = scmp.eq.s32.totalorder %s17, 1
    %p61 = por %p59, %p60
    %p63 = scmp.ne.s32.totalorder %s48, %s62
    %p64 = scmp.eq.s32.totalorder %s17, 0
    %p65 = por %p63, %p64
    %s67 = sadd.s32 %s66, 1
    %p70 = scmp.eq.s32.totalorder %s11, 1
    %p71 = scmp.ne.s32.totalorder %s66, %s68
    %p72 = scmp.eq.s32.totalorder %s11, 0
    %p73 = por %p71, %p72
    %p74 = scmp.ne.s32.totalorder %s66, %s68
    %p75 = scmp.eq.s32.totalorder %s16, 1
    %p76 = por %p74, %p75
    %p77 = scmp.ne.s32.totalorder %s68, %s69
    %p78 = scmp.eq.s32.totalorder %s16, 0
    %p79 = por %p77, %p78
    %p80 = scmp.ne.s32.totalorder %s68, %s69
    %p81 = scmp.eq.s32.totalorder %s17, 1
    %p82 = por %p80, %p81
    %p84 = scmp.ne.s32.totalorder %s69, %s83
    %p85 = scmp.eq.s32.totalorder %s17, 0
    %p86 = por %p84, %p85
    %s88 = sadd.s32 %s87, 1
    %p91 = scmp.eq.s32.totalorder %s11, 1
    %p92 = scmp.ne.s32.totalorder %s87, %s89
    %p93 = scmp.eq.s32.totalorder %s11, 0
    %p94 = por %p92, %p93
    %p95 = scmp.ne.s32.totalorder %s87, %s89
    %p96 = scmp.eq.s32.totalorder %s16, 1
    %p97 = por %p95, %p96
    %p98 = scmp.ne.s32.totalorder %s89, %s90
    %p99 = scmp.eq.s32.totalorder %s16, 0
    %p100 = por %p98, %p99
    %p101 = scmp.ne.s32.totalorder %s89, %s90
    %p102 = scmp.eq.s32.totalorder %s17, 1
    %p103 = por %p101, %p102
    %p105 = scmp.ne.s32.totalorder %s90, %s104
    %p106 = scmp.eq.s32.totalorder %s17, 0
    %p107 = por %p105, %p106
    %s109 = sadd.s32 %s108, 1
    %p112 = scmp.eq.s32.totalorder %s11, 1
    %p113 = scmp.ne.s32.totalorder %s108, %s110
    %p114 = scmp.eq.s32.totalorder %s11, 0
    %p115 = por %p113, %p114
    %p116 = scmp.ne.s32.totalorder %s108, %s110
    %p117 = scmp.eq.s32.totalorder %s16, 1
    %p118 = por %p116, %p117
    %p119 = scmp.ne.s32.totalorder %s110, %s111
    %p120 = scmp.eq.s32.totalorder %s16, 0
    %p121 = por %p119, %p120
    %p122 = scmp.ne.s32.totalorder %s110, %s111
    %p123 = scmp.eq.s32.totalorder %s17, 1
    %p124 = por %p122, %p123
    %p126 = scmp.ne.s32.totalorder %s111, %s125
    %p127 = scmp.eq.s32.totalorder %s17, 0
    %p128 = por %p126, %p127
    %s129 = ssub.s32 %s11, %s18
    %p130 = scmp.eq.s32.totalorder %s129, 0
    %s132 = sadd.s32 %s131, 1
    %s133 = scalar_select %p130, %s131, %s132
    %p136 = pneg %p130
    %p137 = scmp.eq.s32.totalorder %s11, 1
    %p138 = por %p136, %p137
    %p139 = scmp.ne.s32.totalorder %s131, %s134
    %p140 = scmp.eq.s32.totalorder %s11, 0
    %p141 = por %p139, %p140
    %p142 = scmp.ne.s32.totalorder %s131, %s134
    %p143 = scmp.eq.s32.totalorder %s16, 1
    %p144 = por %p142, %p143
    %p145 = scmp.ne.s32.totalorder %s134, %s135
    %p146 = scmp.eq.s32.totalorder %s16, 0
    %p147 = por %p145, %p146
    %p148 = scmp.ne.s32.totalorder %s134, %s135
    %p149 = scmp.eq.s32.totalorder %s17, 1
    %p150 = por %p148, %p149
    %p152 = scmp.ne.s32.totalorder %s135, %s151
    %p153 = scmp.eq.s32.totalorder %s17, 0
    %p154 = por %p152, %p153
    %p155 = scmp.le.s32.totalorder 1, %s11
    %p156 = scmp.lt.s32.totalorder %s11, 3
    %p157 = pnand %p155, %p156
    %p158 = pneg %p157
    // Predicated region
    $region9: #{test_net_forward.5} parent=5 // pred_check
      _
    $region10: #{test_net_forward.5} parent=5 // pred_check_branch
      %160 = sbr.rel (%p157) target = $region12
    $region11: #{test_net_forward.5} parent=5 // pred_region
      %s161 = ssub.s32 %s11, 1
      // Predicated region
      $region13: #{test_net_forward.5} parent=11 // pred_check
        %p162 = pneg %p58
      $region14: #{test_net_forward.5} parent=11 // pred_check_branch
        %164 = sbr.rel (%p162) target = $region16
      $region15: #{test_net_forward.5} parent=11 // pred_region
        _
      $region16: #{test_net_forward.5} parent=11 // pred_fallthru
        _
      // Predicated region
      $region17: #{test_net_forward.5} parent=11 // pred_check
        %p165 = pneg %p79
      $region18: #{test_net_forward.5} parent=11 // pred_check_branch
        %167 = sbr.rel (%p165) target = $region20
      $region19: #{test_net_forward.5} parent=11 // pred_region
        _
      $region20: #{test_net_forward.5} parent=11 // pred_fallthru
        _
      // Predicated region
      $region21: #{test_net_forward.5} parent=11 // pred_check
        %p168 = pneg %p100
      $region22: #{test_net_forward.5} parent=11 // pred_check_branch
        %170 = sbr.rel (%p168) target = $region24
      $region23: #{test_net_forward.5} parent=11 // pred_region
        _
      $region24: #{test_net_forward.5} parent=11 // pred_fallthru
        _
      // Predicated region
      $region25: #{test_net_forward.5} parent=11 // pred_check
        %p171 = pneg %p121
      $region26: #{test_net_forward.5} parent=11 // pred_check_branch
        %173 = sbr.rel (%p171) target = $region28
      $region27: #{test_net_forward.5} parent=11 // pred_region
        _
      $region28: #{test_net_forward.5} parent=11 // pred_fallthru
        _
    $region12: #{test_net_forward.5} parent=5 // pred_fallthru
      _
    %p174 = scmp.lt.s32.totalorder %s11, 2
    // Predicated region
    $region29: #{test_net_forward.5} parent=5 // pred_check
      %p175 = pneg %p174
    $region30: #{test_net_forward.5} parent=5 // pred_check_branch
      %177 = sbr.rel (%p175) target = $region32
    $region31: #{test_net_forward.5} parent=5 // pred_region
      // Predicated region
      $region33: #{test_net_forward.5} parent=31 // pred_check
        %p178 = pneg %p31
      $region34: #{test_net_forward.5} parent=31 // pred_check_branch
        %180 = sbr.rel (%p178) target = $region36
      $region35: #{test_net_forward.5} parent=31 // pred_region
        %p181 = scmp.lt.s32.totalorder %s11, 1
        %s182 = scalar_select %p181, %s11, 1
        %s183 = smul.addr %s182, 32
        %s184 = smul.addr %s183, 8
        %s185 = scalar_lea.vmem %s0, %s184
      $region36: #{test_net_forward.5} parent=31 // pred_fallthru
        _
    $region32: #{test_net_forward.5} parent=5 // pred_fallthru
      _
    %p186 = scmp.le.s32.totalorder 1, %s11
    %p187 = scmp.lt.s32.totalorder %s11, 3
    %p188 = pnand %p186, %p187
    %p189 = pneg %p188
    // Predicated region
    $region37: #{test_net_forward.5} parent=5 // pred_check
      _
    $region38: #{test_net_forward.5} parent=5 // pred_check_branch
      %191 = sbr.rel (%p188) target = $region40
    $region39: #{test_net_forward.5} parent=5 // pred_region
      %s192 = ssub.s32 %s11, 1
      %p193 = scmp.lt.s32.totalorder %s16, 1
      %s194 = scalar_select %p193, %s16, 1
      %s195 = smul.addr %s194, 32
      %s196 = smul.addr %s195, 8
      %s197 = scalar_lea.vmem %s0, %s196
      %p198 = pneg %p37
      %p199 = pneg %p34
      %p200 = pneg %p58
      %p201 = pneg %p55
      %p202 = pneg %p79
      %p203 = pneg %p76
      %p204 = pneg %p100
      %p205 = pneg %p97
      %p206 = pneg %p121
      %p207 = pneg %p118
      %p208 = pneg %p147
      %p209 = pneg %p144
      %p210 = scmp.lt.s32.totalorder %s16, 1
      %s211 = scalar_select %p210, %s16, 1
      %s212 = smul.addr %s211, 8
      %s213 = smul.addr %s212, 8
      %s214 = scalar_lea.vmem %s5, %s213
      %p215 = scmp.lt.s32.totalorder %s16, 1
      %s216 = scalar_select %p215, %s16, 1
      %s217 = smul.addr %s216, 32
      %s218 = smul.addr %s217, 8
      %s219 = scalar_lea.vmem %s0, %s218
      %p220 = scmp.lt.s32.totalorder %s16, 1
      %s221 = scalar_select %p220, %s16, 1
      %s222 = smul.addr %s221, 8
      %s223 = smul.addr %s222, 8
      %s224 = scalar_lea.vmem %s5, %s223
      %vm226 = vcmask 437248
      %227 = vst.msk [vmem:[#allocation2] sm:$0xf] %vm226, 0
      %228 = vst.msk [vmem:[#allocation2 + $0x4] sm:$0xf] %vm226, 0
      %vm229 = vcmask 434176
      %230 = vst.msk [vmem:[#allocation2 + $0x8] sm:$0x1] %vm229, 0
      %s231 = scalar_lea.vmem [#allocation2], 204
      %232 = vst.msk [vmem:[%s231] sm:$0xf] %vm226, 0
      %233 = vst.msk [vmem:[%s231 + $0x4] sm:$0xf] %vm226, 0
      %234 = vst.msk [vmem:[%s231 + $0x8] sm:$0x1] %vm229, 0
      %vm235 = vcmask 434176
      %vm236 = vsmask.f32 256
      %vm237 = vmand %vm235, %vm236
      %v238 = vld [vmem:[#allocation2] sm:$0x1]
      %v239 = vsel %vm237, 0, %v238
      %240 = vst [vmem:[#allocation2] sm:$0x1] %v239
      %v241 = vld [vmem:[#allocation2 + $0xc] sm:$0x1]
      %v242 = vsel %vm237, 0, %v241
      %243 = vst [vmem:[#allocation2 + $0xc] sm:$0x1] %v242
      %v244 = vld [vmem:[#allocation2 + $0x18] sm:$0x1]
      %v245 = vsel %vm237, 0, %v244
      %246 = vst [vmem:[#allocation2 + $0x18] sm:$0x1] %v245
      %v247 = vld [vmem:[#allocation2 + $0x24] sm:$0x1]
      %v248 = vsel %vm237, 0, %v247
      %249 = vst [vmem:[#allocation2 + $0x24] sm:$0x1] %v248
      %v250 = vld [vmem:[#allocation2 + $0x30] sm:$0x1]
      %v251 = vsel %vm237, 0, %v250
      %252 = vst [vmem:[#allocation2 + $0x30] sm:$0x1] %v251
      %v253 = vld [vmem:[#allocation2 + $0x3c] sm:$0x1]
      %v254 = vsel %vm237, 0, %v253
      %255 = vst [vmem:[#allocation2 + $0x3c] sm:$0x1] %v254
      %v256 = vld [vmem:[#allocation2 + $0x48] sm:$0x1]
      %v257 = vsel %vm237, 0, %v256
      %258 = vst [vmem:[#allocation2 + $0x48] sm:$0x1] %v257
      %v259 = vld [vmem:[#allocation2 + $0x54] sm:$0x1]
      %v260 = vsel %vm237, 0, %v259
      %261 = vst [vmem:[#allocation2 + $0x54] sm:$0x1] %v260
      %v262 = vld [vmem:[#allocation2 + $0x60] sm:$0x1]
      %v263 = vsel %vm237, 0, %v262
      %264 = vst [vmem:[#allocation2 + $0x60] sm:$0x1] %v263
      %v265 = vld [vmem:[#allocation2 + $0x6c] sm:$0x1]
      %v266 = vsel %vm237, 0, %v265
      %267 = vst [vmem:[#allocation2 + $0x6c] sm:$0x1] %v266
      %v268 = vld [vmem:[#allocation2 + $0x78] sm:$0x1]
      %v269 = vsel %vm237, 0, %v268
      %270 = vst [vmem:[#allocation2 + $0x78] sm:$0x1] %v269
      %v271 = vld [vmem:[#allocation2 + $0x84] sm:$0x1]
      %v272 = vsel %vm237, 0, %v271
      %273 = vst [vmem:[#allocation2 + $0x84] sm:$0x1] %v272
      %v274 = vld [vmem:[#allocation2 + $0x90] sm:$0x1]
      %v275 = vsel %vm237, 0, %v274
      %276 = vst [vmem:[#allocation2 + $0x90] sm:$0x1] %v275
      %v277 = vld [vmem:[#allocation2 + $0x9c] sm:$0x1]
      %v278 = vsel %vm237, 0, %v277
      %279 = vst [vmem:[#allocation2 + $0x9c] sm:$0x1] %v278
      %v280 = vld [vmem:[#allocation2 + $0xa8] sm:$0x1]
      %v281 = vsel %vm237, 0, %v280
      %282 = vst [vmem:[#allocation2 + $0xa8] sm:$0x1] %v281
      %v283 = vld [vmem:[#allocation2 + $0xb4] sm:$0x1]
      %v284 = vsel %vm237, 0, %v283
      %285 = vst [vmem:[#allocation2 + $0xb4] sm:$0x1] %v284
      %v286 = vld [vmem:[#allocation2 + $0xc0] sm:$0x1]
      %v287 = vsel %vm237, 0, %v286
      %288 = vst [vmem:[#allocation2 + $0xc0] sm:$0x1] %v287
      %v289 = vld [vmem:[#allocation2 + $0xcc] sm:$0x1]
      %v290 = vsel %vm237, 0, %v289
      %291 = vst [vmem:[#allocation2 + $0xcc] sm:$0x1] %v290
      %vm292 = vsmask.f32 7938
      %vm293 = vmand %vm235, %vm292
      %v294 = vld [vmem:[#allocation2 + $0x8] sm:$0x1]
      %v295 = vsel %vm293, 0, %v294
      %296 = vst [vmem:[#allocation2 + $0x8] sm:$0x1] %v295
      %v297 = vld [vmem:[#allocation2 + $0x14] sm:$0x1]
      %v298 = vsel %vm293, 0, %v297
      %299 = vst [vmem:[#allocation2 + $0x14] sm:$0x1] %v298
      %v300 = vld [vmem:[#allocation2 + $0x20] sm:$0x1]
      %v301 = vsel %vm293, 0, %v300
      %302 = vst [vmem:[#allocation2 + $0x20] sm:$0x1] %v301
      %v303 = vld [vmem:[#allocation2 + $0x2c] sm:$0x1]
      %v304 = vsel %vm293, 0, %v303
      %305 = vst [vmem:[#allocation2 + $0x2c] sm:$0x1] %v304
      %v306 = vld [vmem:[#allocation2 + $0x38] sm:$0x1]
      %v307 = vsel %vm293, 0, %v306
      %308 = vst [vmem:[#allocation2 + $0x38] sm:$0x1] %v307
      %v309 = vld [vmem:[#allocation2 + $0x44] sm:$0x1]
      %v310 = vsel %vm293, 0, %v309
      %311 = vst [vmem:[#allocation2 + $0x44] sm:$0x1] %v310
      %v312 = vld [vmem:[#allocation2 + $0x50] sm:$0x1]
      %v313 = vsel %vm293, 0, %v312
      %314 = vst [vmem:[#allocation2 + $0x50] sm:$0x1] %v313
      %v315 = vld [vmem:[#allocation2 + $0x5c] sm:$0x1]
      %v316 = vsel %vm293, 0, %v315
      %317 = vst [vmem:[#allocation2 + $0x5c] sm:$0x1] %v316
      %v318 = vld [vmem:[#allocation2 + $0x68] sm:$0x1]
      %v319 = vsel %vm293, 0, %v318
      %320 = vst [vmem:[#allocation2 + $0x68] sm:$0x1] %v319
      %v321 = vld [vmem:[#allocation2 + $0x74] sm:$0x1]
      %v322 = vsel %vm293, 0, %v321
      %323 = vst [vmem:[#allocation2 + $0x74] sm:$0x1] %v322
      %v324 = vld [vmem:[#allocation2 + $0x80] sm:$0x1]
      %v325 = vsel %vm293, 0, %v324
      %326 = vst [vmem:[#allocation2 + $0x80] sm:$0x1] %v325
      %v327 = vld [vmem:[#allocation2 + $0x8c] sm:$0x1]
      %v328 = vsel %vm293, 0, %v327
      %329 = vst [vmem:[#allocation2 + $0x8c] sm:$0x1] %v328
      %v330 = vld [vmem:[#allocation2 + $0x98] sm:$0x1]
      %v331 = vsel %vm293, 0, %v330
      %332 = vst [vmem:[#allocation2 + $0x98] sm:$0x1] %v331
      %v333 = vld [vmem:[#allocation2 + $0xa4] sm:$0x1]
      %v334 = vsel %vm293, 0, %v333
      %335 = vst [vmem:[#allocation2 + $0xa4] sm:$0x1] %v334
      %v336 = vld [vmem:[#allocation2 + $0xb0] sm:$0x1]
      %v337 = vsel %vm293, 0, %v336
      %338 = vst [vmem:[#allocation2 + $0xb0] sm:$0x1] %v337
      %v339 = vld [vmem:[#allocation2 + $0xbc] sm:$0x1]
      %v340 = vsel %vm293, 0, %v339
      %341 = vst [vmem:[#allocation2 + $0xbc] sm:$0x1] %v340
      %v342 = vld [vmem:[#allocation2 + $0xc8] sm:$0x1]
      %v343 = vsel %vm293, 0, %v342
      %344 = vst [vmem:[#allocation2 + $0xc8] sm:$0x1] %v343
      %v345 = vld [vmem:[#allocation2 + $0xd4] sm:$0x1]
      %v346 = vsel %vm293, 0, %v345
      %347 = vst [vmem:[#allocation2 + $0xd4] sm:$0x1] %v346
      %v348 = vld [vmem:[%s219] sm:$0xff]
      %v349 = vld [vmem:[%s219 + $0x8] sm:$0xff]
      %v350 = vld [vmem:[%s219 + $0x10] sm:$0xff]
      %v351 = vld [vmem:[%s219 + $0x18] sm:$0xff]
      %v352 = vld [vmem:[%s219 + $0x20] sm:$0xff]
      %v353 = vld [vmem:[%s219 + $0x28] sm:$0xff]
      %v354 = vld [vmem:[%s219 + $0x30] sm:$0xff]
      %v355 = vld [vmem:[%s219 + $0x38] sm:$0xff]
      %v356 = vld [vmem:[%s219 + $0x40] sm:$0xff]
      %v357 = vld [vmem:[%s219 + $0x48] sm:$0xff]
      %v358 = vld [vmem:[%s219 + $0x50] sm:$0xff]
      %v359 = vld [vmem:[%s219 + $0x58] sm:$0xff]
      %v360 = vld [vmem:[%s219 + $0x60] sm:$0xff]
      %v361 = vld [vmem:[%s219 + $0x68] sm:$0xff]
      %v362 = vld [vmem:[%s219 + $0x70] sm:$0xff]
      %v363 = vld [vmem:[%s219 + $0x78] sm:$0xff]
      %v364 = vld [vmem:[%s219 + $0x80] sm:$0xff]
      %v365 = vld [vmem:[%s219 + $0x88] sm:$0xff]
      %v366 = vld [vmem:[%s219 + $0x90] sm:$0xff]
      %v367 = vld [vmem:[%s219 + $0x98] sm:$0xff]
      %v368 = vld [vmem:[%s219 + $0xa0] sm:$0xff]
      %v369 = vld [vmem:[%s219 + $0xa8] sm:$0xff]
      %v370 = vld [vmem:[%s219 + $0xb0] sm:$0xff]
      %v371 = vld [vmem:[%s219 + $0xb8] sm:$0xff]
      %v372 = vld [vmem:[%s219 + $0xc0] sm:$0xff]
      %v373 = vld [vmem:[%s219 + $0xc8] sm:$0xff]
      %v374 = vld [vmem:[%s219 + $0xd0] sm:$0xff]
      %v375 = vld [vmem:[%s219 + $0xd8] sm:$0xff]
      %v376 = vld [vmem:[%s219 + $0xe0] sm:$0xff]
      %v377 = vld [vmem:[%s219 + $0xe8] sm:$0xff]
      %v378 = vld [vmem:[%s219 + $0xf0] sm:$0xff]
      %v379 = vld [vmem:[%s219 + $0xf8] sm:$0xff]
      %v380 = vld [vmem:[%s1] sm:$0x1]
      %v382 = vperm.slane %v380, 0
      %v384 = vmul.f32 %v348, %v382
      %v385 = vmul.f32 %v349, %v382
      %v386 = vmul.f32 %v350, %v382
      %v387 = vmul.f32 %v351, %v382
      %v388 = vmul.f32 %v352, %v382
      %v389 = vmul.f32 %v353, %v382
      %v390 = vmul.f32 %v354, %v382
      %v391 = vmul.f32 %v355, %v382
      %v392 = vmul.f32 %v356, %v382
      %v393 = vmul.f32 %v357, %v382
      %v394 = vmul.f32 %v358, %v382
      %v395 = vmul.f32 %v359, %v382
      %v396 = vmul.f32 %v360, %v382
      %v397 = vmul.f32 %v361, %v382
      %v398 = vmul.f32 %v362, %v382
      %v399 = vmul.f32 %v363, %v382
      %v400 = vmul.f32 %v364, %v382
      %v401 = vmul.f32 %v365, %v382
      %v402 = vmul.f32 %v366, %v382
      %v403 = vmul.f32 %v367, %v382
      %v404 = vmul.f32 %v368, %v382
      %v405 = vmul.f32 %v369, %v382
      %v406 = vmul.f32 %v370, %v382
      %v407 = vmul.f32 %v371, %v382
      %v408 = vmul.f32 %v372, %v382
      %v409 = vmul.f32 %v373, %v382
      %v410 = vmul.f32 %v374, %v382
      %v411 = vmul.f32 %v375, %v382
      %v412 = vmul.f32 %v376, %v382
      %v413 = vmul.f32 %v377, %v382
      %v414 = vmul.f32 %v378, %v382
      %v415 = vmul.f32 %v379, %v382
      %v416 = vld [vmem:[%s2] sm:$0x1]
      %v418 = vperm.slane %v416, 0
      %v420 = vadd.f32 %v384, %v418
      %v421 = vadd.f32 %v385, %v418
      %v422 = vadd.f32 %v386, %v418
      %v423 = vadd.f32 %v387, %v418
      %v424 = vadd.f32 %v388, %v418
      %v425 = vadd.f32 %v389, %v418
      %v426 = vadd.f32 %v390, %v418
      %v427 = vadd.f32 %v391, %v418
      %v428 = vadd.f32 %v392, %v418
      %v429 = vadd.f32 %v393, %v418
      %v430 = vadd.f32 %v394, %v418
      %v431 = vadd.f32 %v395, %v418
      %v432 = vadd.f32 %v396, %v418
      %v433 = vadd.f32 %v397, %v418
      %v434 = vadd.f32 %v398, %v418
      %v435 = vadd.f32 %v399, %v418
      %v436 = vadd.f32 %v400, %v418
      %v437 = vadd.f32 %v401, %v418
      %v438 = vadd.f32 %v402, %v418
      %v439 = vadd.f32 %v403, %v418
      %v440 = vadd.f32 %v404, %v418
      %v441 = vadd.f32 %v405, %v418
      %v442 = vadd.f32 %v406, %v418
      %v443 = vadd.f32 %v407, %v418
      %v444 = vadd.f32 %v408, %v418
      %v445 = vadd.f32 %v409, %v418
      %v446 = vadd.f32 %v410, %v418
      %v447 = vadd.f32 %v411, %v418
      %v448 = vadd.f32 %v412, %v418
      %v449 = vadd.f32 %v413, %v418
      %v450 = vadd.f32 %v414, %v418
      %v451 = vadd.f32 %v415, %v418
      %v452 = vpack.c.bf16 %v420, %v420
      %v453 = vpack.c.bf16 %v421, %v421
      %v454 = vpack.c.bf16 %v422, %v422
      %v455 = vpack.c.bf16 %v423, %v423
      %v456 = vpack.c.bf16 %v424, %v424
      %v457 = vpack.c.bf16 %v425, %v425
      %v458 = vpack.c.bf16 %v426, %v426
      %v459 = vpack.c.bf16 %v427, %v427
      %v460 = vpack.c.bf16 %v428, %v428
      %v461 = vpack.c.bf16 %v429, %v429
      %v462 = vpack.c.bf16 %v430, %v430
      %v463 = vpack.c.bf16 %v431, %v431
      %v464 = vpack.c.bf16 %v432, %v432
      %v465 = vpack.c.bf16 %v433, %v433
      %v466 = vpack.c.bf16 %v434, %v434
      %v467 = vpack.c.bf16 %v435, %v435
      %v468 = vpack.c.bf16 %v436, %v436
      %v469 = vpack.c.bf16 %v437, %v437
      %v470 = vpack.c.bf16 %v438, %v438
      %v471 = vpack.c.bf16 %v439, %v439
      %v472 = vpack.c.bf16 %v440, %v440
      %v473 = vpack.c.bf16 %v441, %v441
      %v474 = vpack.c.bf16 %v442, %v442
      %v475 = vpack.c.bf16 %v443, %v443
      %v476 = vpack.c.bf16 %v444, %v444
      %v477 = vpack.c.bf16 %v445, %v445
      %v478 = vpack.c.bf16 %v446, %v446
      %v479 = vpack.c.bf16 %v447, %v447
      %v480 = vpack.c.bf16 %v448, %v448
      %v481 = vpack.c.bf16 %v449, %v449
      %v482 = vpack.c.bf16 %v450, %v450
      %v483 = vpack.c.bf16 %v451, %v451
      %vm484 = vsmask.f32 4368
      %vm485 = vmor %vm236, %vm484
      %v487 = vshrl.u32 %v452, 16
      %v489 = vrot.slane %v487, 7
      %v490 = vshll.u32 %v452, 16
      %v492 = vor.u32 %v489, %v490
      %v493 = vrot.slane %v489, 4
      %v495 = vshrl.u32 %v453, 16
      %v497 = vrot.slane %v495, 7
      %v498 = vshll.u32 %v453, 16
      %v500 = vor.u32 %v497, %v498
      %v501 = vsel %vm485, %v493, %v500
      %v502 = vrot.slane %v497, 4
      %v504 = vshrl.u32 %v454, 16
      %v506 = vrot.slane %v504, 7
      %v507 = vshll.u32 %v454, 16
      %v509 = vor.u32 %v506, %v507
      %v510 = vrot.slane %v506, 4
      %v512 = vshrl.u32 %v455, 16
      %v514 = vrot.slane %v512, 7
      %v515 = vshll.u32 %v455, 16
      %v517 = vor.u32 %v514, %v515
      %v518 = vsel %vm485, %v510, %v517
      %v519 = vrot.slane %v514, 4
      %v521 = vshrl.u32 %v456, 16
      %v523 = vrot.slane %v521, 7
      %v524 = vshll.u32 %v456, 16
      %v526 = vor.u32 %v523, %v524
      %v527 = vrot.slane %v523, 4
      %v529 = vshrl.u32 %v457, 16
      %v531 = vrot.slane %v529, 7
      %v532 = vshll.u32 %v457, 16
      %v534 = vor.u32 %v531, %v532
      %v535 = vsel %vm485, %v527, %v534
      %v536 = vrot.slane %v531, 4
      %v538 = vshrl.u32 %v458, 16
      %v540 = vrot.slane %v538, 7
      %v541 = vshll.u32 %v458, 16
      %v543 = vor.u32 %v540, %v541
      %v544 = vrot.slane %v540, 4
      %v546 = vshrl.u32 %v459, 16
      %v548 = vrot.slane %v546, 7
      %v549 = vshll.u32 %v459, 16
      %v551 = vor.u32 %v548, %v549
      %v552 = vsel %vm485, %v544, %v551
      %v553 = vrot.slane %v548, 4
      %v555 = vshrl.u32 %v460, 16
      %v557 = vrot.slane %v555, 7
      %v558 = vshll.u32 %v460, 16
      %v560 = vor.u32 %v557, %v558
      %v561 = vrot.slane %v557, 4
      %v563 = vshrl.u32 %v461, 16
      %v565 = vrot.slane %v563, 7
      %v566 = vshll.u32 %v461, 16
      %v568 = vor.u32 %v565, %v566
      %v569 = vsel %vm485, %v561, %v568
      %v570 = vrot.slane %v565, 4
      %v572 = vshrl.u32 %v462, 16
      %v574 = vrot.slane %v572, 7
      %v575 = vshll.u32 %v462, 16
      %v577 = vor.u32 %v574, %v575
      %v578 = vrot.slane %v574, 4
      %v580 = vshrl.u32 %v463, 16
      %v582 = vrot.slane %v580, 7
      %v583 = vshll.u32 %v463, 16
      %v585 = vor.u32 %v582, %v583
      %v586 = vsel %vm485, %v578, %v585
      %v587 = vrot.slane %v582, 4
      %v589 = vshrl.u32 %v464, 16
      %v591 = vrot.slane %v589, 7
      %v592 = vshll.u32 %v464, 16
      %v594 = vor.u32 %v591, %v592
      %v595 = vrot.slane %v591, 4
      %v597 = vshrl.u32 %v465, 16
      %v599 = vrot.slane %v597, 7
      %v600 = vshll.u32 %v465, 16
      %v602 = vor.u32 %v599, %v600
      %v603 = vsel %vm485, %v595, %v602
      %v604 = vrot.slane %v599, 4
      %v606 = vshrl.u32 %v466, 16
      %v608 = vrot.slane %v606, 7
      %v609 = vshll.u32 %v466, 16
      %v611 = vor.u32 %v608, %v609
      %v612 = vrot.slane %v608, 4
      %v614 = vshrl.u32 %v467, 16
      %v616 = vrot.slane %v614, 7
      %v617 = vshll.u32 %v467, 16
      %v619 = vor.u32 %v616, %v617
      %v620 = vsel %vm485, %v612, %v619
      %v621 = vrot.slane %v616, 4
      %v623 = vshrl.u32 %v468, 16
      %v625 = vrot.slane %v623, 7
      %v626 = vshll.u32 %v468, 16
      %v628 = vor.u32 %v625, %v626
      %v629 = vrot.slane %v625, 4
      %v631 = vshrl.u32 %v469, 16
      %v633 = vrot.slane %v631, 7
      %v634 = vshll.u32 %v469, 16
      %v636 = vor.u32 %v633, %v634
      %v637 = vsel %vm485, %v629, %v636
      %v638 = vrot.slane %v633, 4
      %v640 = vshrl.u32 %v470, 16
      %v642 = vrot.slane %v640, 7
      %v643 = vshll.u32 %v470, 16
      %v645 = vor.u32 %v642, %v643
      %v646 = vrot.slane %v642, 4
      %v648 = vshrl.u32 %v471, 16
      %v650 = vrot.slane %v648, 7
      %v651 = vshll.u32 %v471, 16
      %v653 = vor.u32 %v650, %v651
      %v654 = vsel %vm485, %v646, %v653
      %v655 = vrot.slane %v650, 4
      %v657 = vshrl.u32 %v472, 16
      %v659 = vrot.slane %v657, 7
      %v660 = vshll.u32 %v472, 16
      %v662 = vor.u32 %v659, %v660
      %v663 = vrot.slane %v659, 4
      %v665 = vshrl.u32 %v473, 16
      %v667 = vrot.slane %v665, 7
      %v668 = vshll.u32 %v473, 16
      %v670 = vor.u32 %v667, %v668
      %v671 = vsel %vm485, %v663, %v670
      %v672 = vrot.slane %v667, 4
      %v674 = vshrl.u32 %v474, 16
      %v676 = vrot.slane %v674, 7
      %v677 = vshll.u32 %v474, 16
      %v679 = vor.u32 %v676, %v677
      %v680 = vrot.slane %v676, 4
      %v682 = vshrl.u32 %v475, 16
      %v684 = vrot.slane %v682, 7
      %v685 = vshll.u32 %v475, 16
      %v687 = vor.u32 %v684, %v685
      %v688 = vsel %vm485, %v680, %v687
      %v689 = vrot.slane %v684, 4
      %v691 = vshrl.u32 %v476, 16
      %v693 = vrot.slane %v691, 7
      %v694 = vshll.u32 %v476, 16
      %v696 = vor.u32 %v693, %v694
      %v697 = vrot.slane %v693, 4
      %v699 = vshrl.u32 %v477, 16
      %v701 = vrot.slane %v699, 7
      %v702 = vshll.u32 %v477, 16
      %v704 = vor.u32 %v701, %v702
      %v705 = vsel %vm485, %v697, %v704
      %v706 = vrot.slane %v701, 4
      %v708 = vshrl.u32 %v478, 16
      %v710 = vrot.slane %v708, 7
      %v711 = vshll.u32 %v478, 16
      %v713 = vor.u32 %v710, %v711
      %v714 = vrot.slane %v710, 4
      %v716 = vshrl.u32 %v479, 16
      %v718 = vrot.slane %v716, 7
      %v719 = vshll.u32 %v479, 16
      %v721 = vor.u32 %v718, %v719
      %v722 = vsel %vm485, %v714, %v721
      %v723 = vrot.slane %v718, 4
      %v725 = vshrl.u32 %v480, 16
      %v727 = vrot.slane %v725, 7
      %v728 = vshll.u32 %v480, 16
      %v730 = vor.u32 %v727, %v728
      %v731 = vrot.slane %v727, 4
      %v733 = vshrl.u32 %v481, 16
      %v735 = vrot.slane %v733, 7
      %v736 = vshll.u32 %v481, 16
      %v738 = vor.u32 %v735, %v736
      %v739 = vsel %vm485, %v731, %v738
      %v740 = vrot.slane %v735, 4
      %v742 = vshrl.u32 %v482, 16
      %v744 = vrot.slane %v742, 7
      %v745 = vshll.u32 %v482, 16
      %v747 = vor.u32 %v744, %v745
      %v748 = vrot.slane %v744, 4
      %v750 = vshrl.u32 %v483, 16
      %v752 = vrot.slane %v750, 7
      %v753 = vshll.u32 %v483, 16
      %v755 = vor.u32 %v752, %v753
      %v756 = vsel %vm485, %v748, %v755
      %v757 = vrot.slane %v752, 4
      %s806 = scalar_lea.vmem [#allocation2], 12
      %vm807 = vcmask 437248
      %vm808 = vmand %vm807, %vm292
      %v809 = vld [vmem:[%s806] sm:$0xf]
      %v810 = vsel %vm808, %v492, %v809
      %811 = vst [vmem:[%s806] sm:$0xf] %v810
      %812 = vst.msk [vmem:[%s806 + $0x4] sm:$0xf] %vm226, %v501
      %v813 = vld [vmem:[%s806 + $0x8] sm:$0x1]
      %v814 = vsel %vm237, %v502, %v813
      %815 = vst [vmem:[%s806 + $0x8] sm:$0x1] %v814
      %v816 = vld [vmem:[%s806 + $0xc] sm:$0xf]
      %v817 = vsel %vm808, %v509, %v816
      %818 = vst [vmem:[%s806 + $0xc] sm:$0xf] %v817
      %819 = vst.msk [vmem:[%s806 + $0x10] sm:$0xf] %vm226, %v518
      %v820 = vld [vmem:[%s806 + $0x14] sm:$0x1]
      %v821 = vsel %vm237, %v519, %v820
      %822 = vst [vmem:[%s806 + $0x14] sm:$0x1] %v821
      %v823 = vld [vmem:[%s806 + $0x18] sm:$0xf]
      %v824 = vsel %vm808, %v526, %v823
      %825 = vst [vmem:[%s806 + $0x18] sm:$0xf] %v824
      %826 = vst.msk [vmem:[%s806 + $0x1c] sm:$0xf] %vm226, %v535
      %v827 = vld [vmem:[%s806 + $0x20] sm:$0x1]
      %v828 = vsel %vm237, %v536, %v827
      %829 = vst [vmem:[%s806 + $0x20] sm:$0x1] %v828
      %v830 = vld [vmem:[%s806 + $0x24] sm:$0xf]
      %v831 = vsel %vm808, %v543, %v830
      %832 = vst [vmem:[%s806 + $0x24] sm:$0xf] %v831
      %833 = vst.msk [vmem:[%s806 + $0x28] sm:$0xf] %vm226, %v552
      %v834 = vld [vmem:[%s806 + $0x2c] sm:$0x1]
      %v835 = vsel %vm237, %v553, %v834
      %836 = vst [vmem:[%s806 + $0x2c] sm:$0x1] %v835
      %v837 = vld [vmem:[%s806 + $0x30] sm:$0xf]
      %v838 = vsel %vm808, %v560, %v837
      %839 = vst [vmem:[%s806 + $0x30] sm:$0xf] %v838
      %840 = vst.msk [vmem:[%s806 + $0x34] sm:$0xf] %vm226, %v569
      %v841 = vld [vmem:[%s806 + $0x38] sm:$0x1]
      %v842 = vsel %vm237, %v570, %v841
      %843 = vst [vmem:[%s806 + $0x38] sm:$0x1] %v842
      %v844 = vld [vmem:[%s806 + $0x3c] sm:$0xf]
      %v845 = vsel %vm808, %v577, %v844
      %846 = vst [vmem:[%s806 + $0x3c] sm:$0xf] %v845
      %847 = vst.msk [vmem:[%s806 + $0x40] sm:$0xf] %vm226, %v586
      %v848 = vld [vmem:[%s806 + $0x44] sm:$0x1]
      %v849 = vsel %vm237, %v587, %v848
      %850 = vst [vmem:[%s806 + $0x44] sm:$0x1] %v849
      %v851 = vld [vmem:[%s806 + $0x48] sm:$0xf]
      %v852 = vsel %vm808, %v594, %v851
      %853 = vst [vmem:[%s806 + $0x48] sm:$0xf] %v852
      %854 = vst.msk [vmem:[%s806 + $0x4c] sm:$0xf] %vm226, %v603
      %v855 = vld [vmem:[%s806 + $0x50] sm:$0x1]
      %v856 = vsel %vm237, %v604, %v855
      %857 = vst [vmem:[%s806 + $0x50] sm:$0x1] %v856
      %v858 = vld [vmem:[%s806 + $0x54] sm:$0xf]
      %v859 = vsel %vm808, %v611, %v858
      %860 = vst [vmem:[%s806 + $0x54] sm:$0xf] %v859
      %861 = vst.msk [vmem:[%s806 + $0x58] sm:$0xf] %vm226, %v620
      %v862 = vld [vmem:[%s806 + $0x5c] sm:$0x1]
      %v863 = vsel %vm237, %v621, %v862
      %864 = vst [vmem:[%s806 + $0x5c] sm:$0x1] %v863
      %v865 = vld [vmem:[%s806 + $0x60] sm:$0xf]
      %v866 = vsel %vm808, %v628, %v865
      %867 = vst [vmem:[%s806 + $0x60] sm:$0xf] %v866
      %868 = vst.msk [vmem:[%s806 + $0x64] sm:$0xf] %vm226, %v637
      %v869 = vld [vmem:[%s806 + $0x68] sm:$0x1]
      %v870 = vsel %vm237, %v638, %v869
      %871 = vst [vmem:[%s806 + $0x68] sm:$0x1] %v870
      %v872 = vld [vmem:[%s806 + $0x6c] sm:$0xf]
      %v873 = vsel %vm808, %v645, %v872
      %874 = vst [vmem:[%s806 + $0x6c] sm:$0xf] %v873
      %875 = vst.msk [vmem:[%s806 + $0x70] sm:$0xf] %vm226, %v654
      %v876 = vld [vmem:[%s806 + $0x74] sm:$0x1]
      %v877 = vsel %vm237, %v655, %v876
      %878 = vst [vmem:[%s806 + $0x74] sm:$0x1] %v877
      %v879 = vld [vmem:[%s806 + $0x78] sm:$0xf]
      %v880 = vsel %vm808, %v662, %v879
      %881 = vst [vmem:[%s806 + $0x78] sm:$0xf] %v880
      %882 = vst.msk [vmem:[%s806 + $0x7c] sm:$0xf] %vm226, %v671
      %v883 = vld [vmem:[%s806 + $0x80] sm:$0x1]
      %v884 = vsel %vm237, %v672, %v883
      %885 = vst [vmem:[%s806 + $0x80] sm:$0x1] %v884
      %v886 = vld [vmem:[%s806 + $0x84] sm:$0xf]
      %v887 = vsel %vm808, %v679, %v886
      %888 = vst [vmem:[%s806 + $0x84] sm:$0xf] %v887
      %889 = vst.msk [vmem:[%s806 + $0x88] sm:$0xf] %vm226, %v688
      %v890 = vld [vmem:[%s806 + $0x8c] sm:$0x1]
      %v891 = vsel %vm237, %v689, %v890
      %892 = vst [vmem:[%s806 + $0x8c] sm:$0x1] %v891
      %v893 = vld [vmem:[%s806 + $0x90] sm:$0xf]
      %v894 = vsel %vm808, %v696, %v893
      %895 = vst [vmem:[%s806 + $0x90] sm:$0xf] %v894
      %896 = vst.msk [vmem:[%s806 + $0x94] sm:$0xf] %vm226, %v705
      %v897 = vld [vmem:[%s806 + $0x98] sm:$0x1]
      %v898 = vsel %vm237, %v706, %v897
      %899 = vst [vmem:[%s806 + $0x98] sm:$0x1] %v898
      %v900 = vld [vmem:[%s806 + $0x9c] sm:$0xf]
      %v901 = vsel %vm808, %v713, %v900
      %902 = vst [vmem:[%s806 + $0x9c] sm:$0xf] %v901
      %903 = vst.msk [vmem:[%s806 + $0xa0] sm:$0xf] %vm226, %v722
      %v904 = vld [vmem:[%s806 + $0xa4] sm:$0x1]
      %v905 = vsel %vm237, %v723, %v904
      %906 = vst [vmem:[%s806 + $0xa4] sm:$0x1] %v905
      %v907 = vld [vmem:[%s806 + $0xa8] sm:$0xf]
      %v908 = vsel %vm808, %v730, %v907
      %909 = vst [vmem:[%s806 + $0xa8] sm:$0xf] %v908
      %910 = vst.msk [vmem:[%s806 + $0xac] sm:$0xf] %vm226, %v739
      %v911 = vld [vmem:[%s806 + $0xb0] sm:$0x1]
      %v912 = vsel %vm237, %v740, %v911
      %913 = vst [vmem:[%s806 + $0xb0] sm:$0x1] %v912
      %v914 = vld [vmem:[%s806 + $0xb4] sm:$0xf]
      %v915 = vsel %vm808, %v747, %v914
      %916 = vst [vmem:[%s806 + $0xb4] sm:$0xf] %v915
      %917 = vst.msk [vmem:[%s806 + $0xb8] sm:$0xf] %vm226, %v756
      %v918 = vld [vmem:[%s806 + $0xbc] sm:$0x1]
      %v919 = vsel %vm237, %v757, %v918
      %920 = vst [vmem:[%s806 + $0xbc] sm:$0x1] %v919
      %v921 = vld [vmem:[#allocation2] sm:$0xf]
      %v922 = vld [vmem:[#allocation2 + $0x4] sm:$0xf]
      %v923 = vld [vmem:[#allocation2 + $0xc] sm:$0xf]
      %v924 = vld [vmem:[#allocation2 + $0x10] sm:$0xf]
      %v925 = vld [vmem:[#allocation2 + $0x18] sm:$0xf]
      %v926 = vld [vmem:[#allocation2 + $0x1c] sm:$0xf]
      %v927 = vld [vmem:[#allocation2 + $0x24] sm:$0xf]
      %v928 = vld [vmem:[#allocation2 + $0x28] sm:$0xf]
      %v929 = vld [vmem:[#allocation2 + $0x30] sm:$0xf]
      %v930 = vld [vmem:[#allocation2 + $0x34] sm:$0xf]
      %v931 = vld [vmem:[#allocation2 + $0x3c] sm:$0xf]
      %v932 = vld [vmem:[#allocation2 + $0x40] sm:$0xf]
      %v933 = vld [vmem:[#allocation2 + $0x48] sm:$0xf]
      %v934 = vld [vmem:[#allocation2 + $0x4c] sm:$0xf]
      %v935 = vld [vmem:[#allocation2 + $0x54] sm:$0xf]
      %v936 = vld [vmem:[#allocation2 + $0x58] sm:$0xf]
      %v937 = vld [vmem:[#allocation2 + $0x60] sm:$0xf]
      %v938 = vld [vmem:[#allocation2 + $0x64] sm:$0xf]
      %v939 = vld [vmem:[#allocation2 + $0x6c] sm:$0xf]
      %v940 = vld [vmem:[#allocation2 + $0x70] sm:$0xf]
      %v941 = vld [vmem:[#allocation2 + $0x78] sm:$0xf]
      %v942 = vld [vmem:[#allocation2 + $0x7c] sm:$0xf]
      %v943 = vld [vmem:[#allocation2 + $0x84] sm:$0xf]
      %v944 = vld [vmem:[#allocation2 + $0x88] sm:$0xf]
      %v945 = vld [vmem:[#allocation2 + $0x90] sm:$0xf]
      %v946 = vld [vmem:[#allocation2 + $0x94] sm:$0xf]
      %v947 = vld [vmem:[#allocation2 + $0x9c] sm:$0xf]
      %v948 = vld [vmem:[#allocation2 + $0xa0] sm:$0xf]
      %v949 = vld [vmem:[#allocation2 + $0xa8] sm:$0xf]
      %v950 = vld [vmem:[#allocation2 + $0xac] sm:$0xf]
      %v951 = vld [vmem:[#allocation2 + $0xb4] sm:$0xf]
      %v952 = vld [vmem:[#allocation2 + $0xb8] sm:$0xf]
      %v953 = vld [vmem:[%s3] sm:$0xf]
      %v954 = vld [vmem:[%s3 + $0x4] sm:$0xf]
      %v955 = vld [vmem:[%s3 + $0x8] sm:$0xf]
      %v956 = vld [vmem:[%s3 + $0xc] sm:$0xf]
      %v957 = vld [vmem:[%s3 + $0x10] sm:$0xf]
      %v958 = vld [vmem:[%s3 + $0x14] sm:$0xf]
      %v959 = vld [vmem:[%s3 + $0x18] sm:$0x7]
      %v960 = vld [vmem:[#allocation2 + $0x8] sm:$0x1]
      %v961 = vld [vmem:[#allocation2 + $0x14] sm:$0x1]
      %v962 = vld [vmem:[#allocation2 + $0x20] sm:$0x1]
      %v963 = vld [vmem:[#allocation2 + $0x2c] sm:$0x1]
      %v964 = vld [vmem:[#allocation2 + $0x38] sm:$0x1]
      %v965 = vld [vmem:[#allocation2 + $0x44] sm:$0x1]
      %v966 = vld [vmem:[#allocation2 + $0x50] sm:$0x1]
      %v967 = vld [vmem:[#allocation2 + $0x5c] sm:$0x1]
      %v968 = vld [vmem:[#allocation2 + $0x68] sm:$0x1]
      %v969 = vld [vmem:[#allocation2 + $0x74] sm:$0x1]
      %v970 = vld [vmem:[#allocation2 + $0x80] sm:$0x1]
      %v971 = vld [vmem:[#allocation2 + $0x8c] sm:$0x1]
      %v972 = vld [vmem:[#allocation2 + $0x98] sm:$0x1]
      %v973 = vld [vmem:[#allocation2 + $0xa4] sm:$0x1]
      %v974 = vld [vmem:[#allocation2 + $0xb0] sm:$0x1]
      %v975 = vld [vmem:[#allocation2 + $0xbc] sm:$0x1]
      %vm976 = vsmask.f32 3328
      %vm977 = vsmask.f32 7440
      %vm978 = vmor %vm976, %vm977
      %v980 = vshrl.u32 %v921, 16
      %v982 = vrot.slane %v980, 4
      %v983 = vshll.u32 %v921, 16
      %v985 = vrot.slane %v983, 5
      %v986 = vor.u32 %v982, %v985
      %v987 = vrot.slane %v986, 4
      %v989 = vshll.u32 %v922, 16
      %v991 = vrot.slane %v989, 5
      %v992 = vsel %vm978, %v987, %v991
      %v993 = vshrl.u32 %v922, 16
      %v995 = vrot.slane %v993, 4
      %v996 = vor.u32 %v995, %v991
      %v997 = vrot.slane %v996, 4
      %v999 = vshll.u32 %v960, 16
      %v1001 = vrot.slane %v999, 5
      %v1002 = vsel %vm978, %v997, %v1001
      %v1004 = vshrl.u32 %v923, 16
      %v1006 = vrot.slane %v1004, 4
      %v1007 = vshll.u32 %v923, 16
      %v1009 = vrot.slane %v1007, 5
      %v1010 = vor.u32 %v1006, %v1009
      %v1011 = vrot.slane %v1010, 4
      %v1013 = vshll.u32 %v924, 16
      %v1015 = vrot.slane %v1013, 5
      %v1016 = vsel %vm978, %v1011, %v1015
      %v1017 = vshrl.u32 %v924, 16
      %v1019 = vrot.slane %v1017, 4
      %v1020 = vor.u32 %v1019, %v1015
      %v1021 = vrot.slane %v1020, 4
      %v1023 = vshll.u32 %v961, 16
      %v1025 = vrot.slane %v1023, 5
      %v1026 = vsel %vm978, %v1021, %v1025
      %v1028 = vshrl.u32 %v925, 16
      %v1030 = vrot.slane %v1028, 4
      %v1031 = vshll.u32 %v925, 16
      %v1033 = vrot.slane %v1031, 5
      %v1034 = vor.u32 %v1030, %v1033
      %v1035 = vrot.slane %v1034, 4
      %v1037 = vshll.u32 %v926, 16
      %v1039 = vrot.slane %v1037, 5
      %v1040 = vsel %vm978, %v1035, %v1039
      %v1041 = vshrl.u32 %v926, 16
      %v1043 = vrot.slane %v1041, 4
      %v1044 = vor.u32 %v1043, %v1039
      %v1045 = vrot.slane %v1044, 4
      %v1047 = vshll.u32 %v962, 16
      %v1049 = vrot.slane %v1047, 5
      %v1050 = vsel %vm978, %v1045, %v1049
      %v1052 = vshrl.u32 %v927, 16
      %v1054 = vrot.slane %v1052, 4
      %v1055 = vshll.u32 %v927, 16
      %v1057 = vrot.slane %v1055, 5
      %v1058 = vor.u32 %v1054, %v1057
      %v1059 = vrot.slane %v1058, 4
      %v1061 = vshll.u32 %v928, 16
      %v1063 = vrot.slane %v1061, 5
      %v1064 = vsel %vm978, %v1059, %v1063
      %v1065 = vshrl.u32 %v928, 16
      %v1067 = vrot.slane %v1065, 4
      %v1068 = vor.u32 %v1067, %v1063
      %v1069 = vrot.slane %v1068, 4
      %v1071 = vshll.u32 %v963, 16
      %v1073 = vrot.slane %v1071, 5
      %v1074 = vsel %vm978, %v1069, %v1073
      %v1076 = vshrl.u32 %v929, 16
      %v1078 = vrot.slane %v1076, 4
      %v1079 = vshll.u32 %v929, 16
      %v1081 = vrot.slane %v1079, 5
      %v1082 = vor.u32 %v1078, %v1081
      %v1083 = vrot.slane %v1082, 4
      %v1085 = vshll.u32 %v930, 16
      %v1087 = vrot.slane %v1085, 5
      %v1088 = vsel %vm978, %v1083, %v1087
      %v1089 = vshrl.u32 %v930, 16
      %v1091 = vrot.slane %v1089, 4
      %v1092 = vor.u32 %v1091, %v1087
      %v1093 = vrot.slane %v1092, 4
      %v1095 = vshll.u32 %v964, 16
      %v1097 = vrot.slane %v1095, 5
      %v1098 = vsel %vm978, %v1093, %v1097
      %v1100 = vshrl.u32 %v931, 16
      %v1102 = vrot.slane %v1100, 4
      %v1103 = vshll.u32 %v931, 16
      %v1105 = vrot.slane %v1103, 5
      %v1106 = vor.u32 %v1102, %v1105
      %v1107 = vrot.slane %v1106, 4
      %v1109 = vshll.u32 %v932, 16
      %v1111 = vrot.slane %v1109, 5
      %v1112 = vsel %vm978, %v1107, %v1111
      %v1113 = vshrl.u32 %v932, 16
      %v1115 = vrot.slane %v1113, 4
      %v1116 = vor.u32 %v1115, %v1111
      %v1117 = vrot.slane %v1116, 4
      %v1119 = vshll.u32 %v965, 16
      %v1121 = vrot.slane %v1119, 5
      %v1122 = vsel %vm978, %v1117, %v1121
      %v1124 = vshrl.u32 %v933, 16
      %v1126 = vrot.slane %v1124, 4
      %v1127 = vshll.u32 %v933, 16
      %v1129 = vrot.slane %v1127, 5
      %v1130 = vor.u32 %v1126, %v1129
      %v1131 = vrot.slane %v1130, 4
      %v1133 = vshll.u32 %v934, 16
      %v1135 = vrot.slane %v1133, 5
      %v1136 = vsel %vm978, %v1131, %v1135
      %v1137 = vshrl.u32 %v934, 16
      %v1139 = vrot.slane %v1137, 4
      %v1140 = vor.u32 %v1139, %v1135
      %v1141 = vrot.slane %v1140, 4
      %v1143 = vshll.u32 %v966, 16
      %v1145 = vrot.slane %v1143, 5
      %v1146 = vsel %vm978, %v1141, %v1145
      %v1148 = vshrl.u32 %v935, 16
      %v1150 = vrot.slane %v1148, 4
      %v1151 = vshll.u32 %v935, 16
      %v1153 = vrot.slane %v1151, 5
      %v1154 = vor.u32 %v1150, %v1153
      %v1155 = vrot.slane %v1154, 4
      %v1157 = vshll.u32 %v936, 16
      %v1159 = vrot.slane %v1157, 5
      %v1160 = vsel %vm978, %v1155, %v1159
      %v1161 = vshrl.u32 %v936, 16
      %v1163 = vrot.slane %v1161, 4
      %v1164 = vor.u32 %v1163, %v1159
      %v1165 = vrot.slane %v1164, 4
      %v1167 = vshll.u32 %v967, 16
      %v1169 = vrot.slane %v1167, 5
      %v1170 = vsel %vm978, %v1165, %v1169
      %v1172 = vshrl.u32 %v937, 16
      %v1174 = vrot.slane %v1172, 4
      %v1175 = vshll.u32 %v937, 16
      %v1177 = vrot.slane %v1175, 5
      %v1178 = vor.u32 %v1174, %v1177
      %v1179 = vrot.slane %v1178, 4
      %v1181 = vshll.u32 %v938, 16
      %v1183 = vrot.slane %v1181, 5
      %v1184 = vsel %vm978, %v1179, %v1183
      %v1185 = vshrl.u32 %v938, 16
      %v1187 = vrot.slane %v1185, 4
      %v1188 = vor.u32 %v1187, %v1183
      %v1189 = vrot.slane %v1188, 4
      %v1191 = vshll.u32 %v968, 16
      %v1193 = vrot.slane %v1191, 5
      %v1194 = vsel %vm978, %v1189, %v1193
      %v1196 = vshrl.u32 %v939, 16
      %v1198 = vrot.slane %v1196, 4
      %v1199 = vshll.u32 %v939, 16
      %v1201 = vrot.slane %v1199, 5
      %v1202 = vor.u32 %v1198, %v1201
      %v1203 = vrot.slane %v1202, 4
      %v1205 = vshll.u32 %v940, 16
      %v1207 = vrot.slane %v1205, 5
      %v1208 = vsel %vm978, %v1203, %v1207
      %v1209 = vshrl.u32 %v940, 16
      %v1211 = vrot.slane %v1209, 4
      %v1212 = vor.u32 %v1211, %v1207
      %v1213 = vrot.slane %v1212, 4
      %v1215 = vshll.u32 %v969, 16
      %v1217 = vrot.slane %v1215, 5
      %v1218 = vsel %vm978, %v1213, %v1217
      %v1220 = vshrl.u32 %v941, 16
      %v1222 = vrot.slane %v1220, 4
      %v1223 = vshll.u32 %v941, 16
      %v1225 = vrot.slane %v1223, 5
      %v1226 = vor.u32 %v1222, %v1225
      %v1227 = vrot.slane %v1226, 4
      %v1229 = vshll.u32 %v942, 16
      %v1231 = vrot.slane %v1229, 5
      %v1232 = vsel %vm978, %v1227, %v1231
      %v1233 = vshrl.u32 %v942, 16
      %v1235 = vrot.slane %v1233, 4
      %v1236 = vor.u32 %v1235, %v1231
      %v1237 = vrot.slane %v1236, 4
      %v1239 = vshll.u32 %v970, 16
      %v1241 = vrot.slane %v1239, 5
      %v1242 = vsel %vm978, %v1237, %v1241
      %v1244 = vshrl.u32 %v943, 16
      %v1246 = vrot.slane %v1244, 4
      %v1247 = vshll.u32 %v943, 16
      %v1249 = vrot.slane %v1247, 5
      %v1250 = vor.u32 %v1246, %v1249
      %v1251 = vrot.slane %v1250, 4
      %v1253 = vshll.u32 %v944, 16
      %v1255 = vrot.slane %v1253, 5
      %v1256 = vsel %vm978, %v1251, %v1255
      %v1257 = vshrl.u32 %v944, 16
      %v1259 = vrot.slane %v1257, 4
      %v1260 = vor.u32 %v1259, %v1255
      %v1261 = vrot.slane %v1260, 4
      %v1263 = vshll.u32 %v971, 16
      %v1265 = vrot.slane %v1263, 5
      %v1266 = vsel %vm978, %v1261, %v1265
      %v1268 = vshrl.u32 %v945, 16
      %v1270 = vrot.slane %v1268, 4
      %v1271 = vshll.u32 %v945, 16
      %v1273 = vrot.slane %v1271, 5
      %v1274 = vor.u32 %v1270, %v1273
      %v1275 = vrot.slane %v1274, 4
      %v1277 = vshll.u32 %v946, 16
      %v1279 = vrot.slane %v1277, 5
      %v1280 = vsel %vm978, %v1275, %v1279
      %v1281 = vshrl.u32 %v946, 16
      %v1283 = vrot.slane %v1281, 4
      %v1284 = vor.u32 %v1283, %v1279
      %v1285 = vrot.slane %v1284, 4
      %v1287 = vshll.u32 %v972, 16
      %v1289 = vrot.slane %v1287, 5
      %v1290 = vsel %vm978, %v1285, %v1289
      %v1292 = vshrl.u32 %v947, 16
      %v1294 = vrot.slane %v1292, 4
      %v1295 = vshll.u32 %v947, 16
      %v1297 = vrot.slane %v1295, 5
      %v1298 = vor.u32 %v1294, %v1297
      %v1299 = vrot.slane %v1298, 4
      %v1301 = vshll.u32 %v948, 16
      %v1303 = vrot.slane %v1301, 5
      %v1304 = vsel %vm978, %v1299, %v1303
      %v1305 = vshrl.u32 %v948, 16
      %v1307 = vrot.slane %v1305, 4
      %v1308 = vor.u32 %v1307, %v1303
      %v1309 = vrot.slane %v1308, 4
      %v1311 = vshll.u32 %v973, 16
      %v1313 = vrot.slane %v1311, 5
      %v1314 = vsel %vm978, %v1309, %v1313
      %v1316 = vshrl.u32 %v949, 16
      %v1318 = vrot.slane %v1316, 4
      %v1319 = vshll.u32 %v949, 16
      %v1321 = vrot.slane %v1319, 5
      %v1322 = vor.u32 %v1318, %v1321
      %v1323 = vrot.slane %v1322, 4
      %v1325 = vshll.u32 %v950, 16
      %v1327 = vrot.slane %v1325, 5
      %v1328 = vsel %vm978, %v1323, %v1327
      %v1329 = vshrl.u32 %v950, 16
      %v1331 = vrot.slane %v1329, 4
      %v1332 = vor.u32 %v1331, %v1327
      %v1333 = vrot.slane %v1332, 4
      %v1335 = vshll.u32 %v974, 16
      %v1337 = vrot.slane %v1335, 5
      %v1338 = vsel %vm978, %v1333, %v1337
      %v1340 = vshrl.u32 %v951, 16
      %v1342 = vrot.slane %v1340, 4
      %v1343 = vshll.u32 %v951, 16
      %v1345 = vrot.slane %v1343, 5
      %v1346 = vor.u32 %v1342, %v1345
      %v1347 = vrot.slane %v1346, 4
      %v1349 = vshll.u32 %v952, 16
      %v1351 = vrot.slane %v1349, 5
      %v1352 = vsel %vm978, %v1347, %v1351
      %v1353 = vshrl.u32 %v952, 16
      %v1355 = vrot.slane %v1353, 4
      %v1356 = vor.u32 %v1355, %v1351
      %v1357 = vrot.slane %v1356, 4
      %v1359 = vshll.u32 %v975, 16
      %v1361 = vrot.slane %v1359, 5
      %v1362 = vsel %vm978, %v1357, %v1361
      %s1363 = scalar_lea.vmem %s3, 28
      %v1364 = vld [vmem:[%s1363] sm:$0xf]
      %v1365 = vld [vmem:[%s1363 + $0x4] sm:$0xf]
      %v1366 = vld [vmem:[%s1363 + $0x8] sm:$0xf]
      %v1367 = vld [vmem:[%s1363 + $0xc] sm:$0xf]
      %v1368 = vld [vmem:[%s1363 + $0x10] sm:$0xf]
      %v1369 = vld [vmem:[%s1363 + $0x14] sm:$0xf]
      %v1370 = vld [vmem:[%s1363 + $0x18] sm:$0x7]
      %v1371 = vunpack.c.l.b16 %v992
      %v1372 = vunpack.c.l.b16 %v1002
      %v1373 = vunpack.c.l.b16 %v1016
      %v1374 = vunpack.c.l.b16 %v1026
      %v1375 = vunpack.c.l.b16 %v1040
      %v1376 = vunpack.c.l.b16 %v1050
      %v1377 = vunpack.c.l.b16 %v1064
      %v1378 = vunpack.c.l.b16 %v1074
      %v1379 = vunpack.c.l.b16 %v1088
      %v1380 = vunpack.c.l.b16 %v1098
      %v1381 = vunpack.c.l.b16 %v1112
      %v1382 = vunpack.c.l.b16 %v1122
      %v1383 = vunpack.c.l.b16 %v1136
      %v1384 = vunpack.c.l.b16 %v1146
      %v1385 = vunpack.c.l.b16 %v1160
      %v1386 = vunpack.c.l.b16 %v1170
      %v1387 = vunpack.c.l.b16 %v1184
      %v1388 = vunpack.c.l.b16 %v1194
      %v1389 = vunpack.c.l.b16 %v1208
      %v1390 = vunpack.c.l.b16 %v1218
      %v1391 = vunpack.c.l.b16 %v1232
      %v1392 = vunpack.c.l.b16 %v1242
      %v1393 = vunpack.c.l.b16 %v1256
      %v1394 = vunpack.c.l.b16 %v1266
      %v1395 = vunpack.c.l.b16 %v1280
      %v1396 = vunpack.c.l.b16 %v1290
      %v1397 = vunpack.c.l.b16 %v1304
      %v1398 = vunpack.c.l.b16 %v1314
      %v1399 = vunpack.c.l.b16 %v1328
      %v1400 = vunpack.c.l.b16 %v1338
      %v1401 = vunpack.c.l.b16 %v1352
      %v1402 = vunpack.c.l.b16 %v1362
      %v1403 = vpack.c.b16 %v1372, %v1371
      %v1404 = vpack.c.b16 %v1374, %v1373
      %v1405 = vpack.c.b16 %v1376, %v1375
      %v1406 = vpack.c.b16 %v1378, %v1377
      %v1407 = vpack.c.b16 %v1380, %v1379
      %v1408 = vpack.c.b16 %v1382, %v1381
      %v1409 = vpack.c.b16 %v1384, %v1383
      %v1410 = vpack.c.b16 %v1386, %v1385
      %v1411 = vpack.c.b16 %v1388, %v1387
      %v1412 = vpack.c.b16 %v1390, %v1389
      %v1413 = vpack.c.b16 %v1392, %v1391
      %v1414 = vpack.c.b16 %v1394, %v1393
      %v1415 = vpack.c.b16 %v1396, %v1395
      %v1416 = vpack.c.b16 %v1398, %v1397
      %v1417 = vpack.c.b16 %v1400, %v1399
      %v1418 = vpack.c.b16 %v1402, %v1401
      %v1426 = vunpack.c.l.b16 %v1364
      %v1427 = vunpack.c.l.b16 %v1365
      %v1428 = vunpack.c.l.b16 %v1366
      %v1429 = vunpack.c.l.b16 %v1367
      %v1430 = vunpack.c.l.b16 %v1368
      %v1431 = vunpack.c.l.b16 %v1369
      %v1432 = vunpack.c.l.b16 %v1370
      %v1433 = vpack.c.b16 %v1427, %v1426
      %v1434 = vpack.c.b16 %v1429, %v1428
      %v1435 = vpack.c.b16 %v1431, %v1430
      %v1436 = vpack.c.b16 %v1432, %v1432
      %vm1440 = vcmask 441344
      %v1442 = vsel %vm1440, %v1403, 0
      %v1445 = vsel %vm1440, %v1404, 0
      %v1448 = vsel %vm1440, %v1405, 0
      %v1451 = vsel %vm1440, %v1406, 0
      %v1454 = vsel %vm1440, %v1407, 0
      %v1457 = vsel %vm1440, %v1408, 0
      %v1460 = vsel %vm1440, %v1409, 0
      %v1463 = vsel %vm1440, %v1410, 0
      %v1466 = vsel %vm1440, %v1411, 0
      %v1469 = vsel %vm1440, %v1412, 0
      %v1472 = vsel %vm1440, %v1413, 0
      %v1475 = vsel %vm1440, %v1414, 0
      %v1478 = vsel %vm1440, %v1415, 0
      %v1481 = vsel %vm1440, %v1416, 0
      %v1484 = vsel %vm1440, %v1417, 0
      %v1487 = vsel %vm1440, %v1418, 0
      %vm1489 = vcmask 1042432
      %v1491 = vsel %vm1489, %v1436, 0
      %1493 = vmatpush.bf16.msra.mxu0 0
      %1494 = vmatpush.bf16.msra.mxu0 0
      %1495 = vmatpush.bf16.msra.mxu0 0
      %1496 = vmatpush.bf16.msra.mxu0 0
      %1497 = vmatpush.bf16.msra.mxu0 %v1491
      %1498 = vmatpush.bf16.msra.mxu0 %v1435
      %1499 = vmatpush.bf16.msra.mxu0 %v1434
      %1500 = vmatpush.bf16.msra.mxu0 %v1433
      %1501 = vmatmul.bf16.gmra.mxu0 %v1442
      %v1502 = vpop.f32.mrf.mxu0
      %v1503 = vadd.f32 0.0, %v1502
      %v1504 = vpop.f32.mrf.mxu0
      %v1505 = vadd.f32 0.0, %v1504
      %1506 = vmatmul.bf16.gmra.mxu0 %v1445
      %v1507 = vpop.f32.mrf.mxu0
      %v1508 = vadd.f32 0.0, %v1507
      %v1509 = vpop.f32.mrf.mxu0
      %v1510 = vadd.f32 0.0, %v1509
      %1511 = vmatmul.bf16.gmra.mxu0 %v1448
      %v1512 = vpop.f32.mrf.mxu0
      %v1513 = vadd.f32 0.0, %v1512
      %v1514 = vpop.f32.mrf.mxu0
      %v1515 = vadd.f32 0.0, %v1514
      %1516 = vmatmul.bf16.gmra.mxu0 %v1451
      %v1517 = vpop.f32.mrf.mxu0
      %v1518 = vadd.f32 0.0, %v1517
      %v1519 = vpop.f32.mrf.mxu0
      %v1520 = vadd.f32 0.0, %v1519
      %1521 = vmatmul.bf16.gmra.mxu0 %v1454
      %v1522 = vpop.f32.mrf.mxu0
      %v1523 = vadd.f32 0.0, %v1522
      %v1524 = vpop.f32.mrf.mxu0
      %v1525 = vadd.f32 0.0, %v1524
      %1526 = vmatmul.bf16.gmra.mxu0 %v1457
      %v1527 = vpop.f32.mrf.mxu0
      %v1528 = vadd.f32 0.0, %v1527
      %v1529 = vpop.f32.mrf.mxu0
      %v1530 = vadd.f32 0.0, %v1529
      %1531 = vmatmul.bf16.gmra.mxu0 %v1460
      %v1532 = vpop.f32.mrf.mxu0
      %v1533 = vadd.f32 0.0, %v1532
      %v1534 = vpop.f32.mrf.mxu0
      %v1535 = vadd.f32 0.0, %v1534
      %1536 = vmatmul.bf16.gmra.mxu0 %v1463
      %v1537 = vpop.f32.mrf.mxu0
      %v1538 = vadd.f32 0.0, %v1537
      %v1539 = vpop.f32.mrf.mxu0
      %v1540 = vadd.f32 0.0, %v1539
      %1541 = vmatmul.bf16.gmra.mxu0 %v1466
      %v1542 = vpop.f32.mrf.mxu0
      %v1543 = vadd.f32 0.0, %v1542
      %v1544 = vpop.f32.mrf.mxu0
      %v1545 = vadd.f32 0.0, %v1544
      %1546 = vmatmul.bf16.gmra.mxu0 %v1469
      %v1547 = vpop.f32.mrf.mxu0
      %v1548 = vadd.f32 0.0, %v1547
      %v1549 = vpop.f32.mrf.mxu0
      %v1550 = vadd.f32 0.0, %v1549
      %1551 = vmatmul.bf16.gmra.mxu0 %v1472
      %v1552 = vpop.f32.mrf.mxu0
      %v1553 = vadd.f32 0.0, %v1552
      %v1554 = vpop.f32.mrf.mxu0
      %v1555 = vadd.f32 0.0, %v1554
      %1556 = vmatmul.bf16.gmra.mxu0 %v1475
      %v1557 = vpop.f32.mrf.mxu0
      %v1558 = vadd.f32 0.0, %v1557
      %v1559 = vpop.f32.mrf.mxu0
      %v1560 = vadd.f32 0.0, %v1559
      %1561 = vmatmul.bf16.gmra.mxu0 %v1478
      %v1562 = vpop.f32.mrf.mxu0
      %v1563 = vadd.f32 0.0, %v1562
      %v1564 = vpop.f32.mrf.mxu0
      %v1565 = vadd.f32 0.0, %v1564
      %1566 = vmatmul.bf16.gmra.mxu0 %v1481
      %v1567 = vpop.f32.mrf.mxu0
      %v1568 = vadd.f32 0.0, %v1567
      %v1569 = vpop.f32.mrf.mxu0
      %v1570 = vadd.f32 0.0, %v1569
      %1571 = vmatmul.bf16.gmra.mxu0 %v1484
      %v1572 = vpop.f32.mrf.mxu0
      %v1573 = vadd.f32 0.0, %v1572
      %v1574 = vpop.f32.mrf.mxu0
      %v1575 = vadd.f32 0.0, %v1574
      %1576 = vmatmul.bf16.gmra.mxu0 %v1487
      %v1577 = vpop.f32.mrf.mxu0
      %v1578 = vadd.f32 0.0, %v1577
      %v1579 = vpop.f32.mrf.mxu0
      %v1580 = vadd.f32 0.0, %v1579
      %1581 = vdwg.mxu0
      %v1614 = vunpack.c.l.b16 %v921
      %v1615 = vunpack.c.l.b16 %v922
      %v1616 = vunpack.c.l.b16 %v923
      %v1617 = vunpack.c.l.b16 %v924
      %v1618 = vunpack.c.l.b16 %v925
      %v1619 = vunpack.c.l.b16 %v926
      %v1620 = vunpack.c.l.b16 %v927
      %v1621 = vunpack.c.l.b16 %v928
      %v1622 = vunpack.c.l.b16 %v929
      %v1623 = vunpack.c.l.b16 %v930
      %v1624 = vunpack.c.l.b16 %v931
      %v1625 = vunpack.c.l.b16 %v932
      %v1626 = vunpack.c.l.b16 %v933
      %v1627 = vunpack.c.l.b16 %v934
      %v1628 = vunpack.c.l.b16 %v935
      %v1629 = vunpack.c.l.b16 %v936
      %v1630 = vunpack.c.l.b16 %v937
      %v1631 = vunpack.c.l.b16 %v938
      %v1632 = vunpack.c.l.b16 %v939
      %v1633 = vunpack.c.l.b16 %v940
      %v1634 = vunpack.c.l.b16 %v941
      %v1635 = vunpack.c.l.b16 %v942
      %v1636 = vunpack.c.l.b16 %v943
      %v1637 = vunpack.c.l.b16 %v944
      %v1638 = vunpack.c.l.b16 %v945
      %v1639 = vunpack.c.l.b16 %v946
      %v1640 = vunpack.c.l.b16 %v947
      %v1641 = vunpack.c.l.b16 %v948
      %v1642 = vunpack.c.l.b16 %v949
      %v1643 = vunpack.c.l.b16 %v950
      %v1644 = vunpack.c.l.b16 %v951
      %v1645 = vunpack.c.l.b16 %v952
      %v1646 = vpack.c.b16 %v1615, %v1614
      %v1647 = vpack.c.b16 %v1617, %v1616
      %v1648 = vpack.c.b16 %v1619, %v1618
      %v1649 = vpack.c.b16 %v1621, %v1620
      %v1650 = vpack.c.b16 %v1623, %v1622
      %v1651 = vpack.c.b16 %v1625, %v1624
      %v1652 = vpack.c.b16 %v1627, %v1626
      %v1653 = vpack.c.b16 %v1629, %v1628
      %v1654 = vpack.c.b16 %v1631, %v1630
      %v1655 = vpack.c.b16 %v1633, %v1632
      %v1656 = vpack.c.b16 %v1635, %v1634
      %v1657 = vpack.c.b16 %v1637, %v1636
      %v1658 = vpack.c.b16 %v1639, %v1638
      %v1659 = vpack.c.b16 %v1641, %v1640
      %v1660 = vpack.c.b16 %v1643, %v1642
      %v1661 = vpack.c.b16 %v1645, %v1644
      %v1669 = vunpack.c.l.b16 %v953
      %v1670 = vunpack.c.l.b16 %v954
      %v1671 = vunpack.c.l.b16 %v955
      %v1672 = vunpack.c.l.b16 %v956
      %v1673 = vunpack.c.l.b16 %v957
      %v1674 = vunpack.c.l.b16 %v958
      %v1675 = vunpack.c.l.b16 %v959
      %v1676 = vpack.c.b16 %v1670, %v1669
      %v1677 = vpack.c.b16 %v1672, %v1671
      %v1678 = vpack.c.b16 %v1674, %v1673
      %v1679 = vpack.c.b16 %v1675, %v1675
      %v1684 = vsel %vm1440, %v1646, 0
      %v1687 = vsel %vm1440, %v1647, 0
      %v1690 = vsel %vm1440, %v1648, 0
      %v1693 = vsel %vm1440, %v1649, 0
      %v1696 = vsel %vm1440, %v1650, 0
      %v1699 = vsel %vm1440, %v1651, 0
      %v1702 = vsel %vm1440, %v1652, 0
      %v1705 = vsel %vm1440, %v1653, 0
      %v1708 = vsel %vm1440, %v1654, 0
      %v1711 = vsel %vm1440, %v1655, 0
      %v1714 = vsel %vm1440, %v1656, 0
      %v1717 = vsel %vm1440, %v1657, 0
      %v1720 = vsel %vm1440, %v1658, 0
      %v1723 = vsel %vm1440, %v1659, 0
      %v1726 = vsel %vm1440, %v1660, 0
      %v1729 = vsel %vm1440, %v1661, 0
      %v1732 = vsel %vm1489, %v1679, 0
      %1734 = vmatpush.bf16.msra.mxu0 0
      %1735 = vmatpush.bf16.msra.mxu0 0
      %1736 = vmatpush.bf16.msra.mxu0 0
      %1737 = vmatpush.bf16.msra.mxu0 0
      %1738 = vmatpush.bf16.msra.mxu0 %v1732
      %1739 = vmatpush.bf16.msra.mxu0 %v1678
      %1740 = vmatpush.bf16.msra.mxu0 %v1677
      %1741 = vmatpush.bf16.msra.mxu0 %v1676
      %1742 = vmatmul.bf16.gmra.mxu0 %v1684
      %v1743 = vpop.f32.mrf.mxu0
      %v1744 = vadd.f32 %v1503, %v1743
      %v1745 = vpop.f32.mrf.mxu0
      %v1746 = vadd.f32 %v1505, %v1745
      %1747 = vmatmul.bf16.gmra.mxu0 %v1687
      %v1748 = vpop.f32.mrf.mxu0
      %v1749 = vadd.f32 %v1508, %v1748
      %v1750 = vpop.f32.mrf.mxu0
      %v1751 = vadd.f32 %v1510, %v1750
      %1752 = vmatmul.bf16.gmra.mxu0 %v1690
      %v1753 = vpop.f32.mrf.mxu0
      %v1754 = vadd.f32 %v1513, %v1753
      %v1755 = vpop.f32.mrf.mxu0
      %v1756 = vadd.f32 %v1515, %v1755
      %1757 = vmatmul.bf16.gmra.mxu0 %v1693
      %v1758 = vpop.f32.mrf.mxu0
      %v1759 = vadd.f32 %v1518, %v1758
      %v1760 = vpop.f32.mrf.mxu0
      %v1761 = vadd.f32 %v1520, %v1760
      %1762 = vmatmul.bf16.gmra.mxu0 %v1696
      %v1763 = vpop.f32.mrf.mxu0
      %v1764 = vadd.f32 %v1523, %v1763
      %v1765 = vpop.f32.mrf.mxu0
      %v1766 = vadd.f32 %v1525, %v1765
      %1767 = vmatmul.bf16.gmra.mxu0 %v1699
      %v1768 = vpop.f32.mrf.mxu0
      %v1769 = vadd.f32 %v1528, %v1768
      %v1770 = vpop.f32.mrf.mxu0
      %v1771 = vadd.f32 %v1530, %v1770
      %1772 = vmatmul.bf16.gmra.mxu0 %v1702
      %v1773 = vpop.f32.mrf.mxu0
      %v1774 = vadd.f32 %v1533, %v1773
      %v1775 = vpop.f32.mrf.mxu0
      %v1776 = vadd.f32 %v1535, %v1775
      %1777 = vmatmul.bf16.gmra.mxu0 %v1705
      %v1778 = vpop.f32.mrf.mxu0
      %v1779 = vadd.f32 %v1538, %v1778
      %v1780 = vpop.f32.mrf.mxu0
      %v1781 = vadd.f32 %v1540, %v1780
      %1782 = vmatmul.bf16.gmra.mxu0 %v1708
      %v1783 = vpop.f32.mrf.mxu0
      %v1784 = vadd.f32 %v1543, %v1783
      %v1785 = vpop.f32.mrf.mxu0
      %v1786 = vadd.f32 %v1545, %v1785
      %1787 = vmatmul.bf16.gmra.mxu0 %v1711
      %v1788 = vpop.f32.mrf.mxu0
      %v1789 = vadd.f32 %v1548, %v1788
      %v1790 = vpop.f32.mrf.mxu0
      %v1791 = vadd.f32 %v1550, %v1790
      %1792 = vmatmul.bf16.gmra.mxu0 %v1714
      %v1793 = vpop.f32.mrf.mxu0
      %v1794 = vadd.f32 %v1553, %v1793
      %v1795 = vpop.f32.mrf.mxu0
      %v1796 = vadd.f32 %v1555, %v1795
      %1797 = vmatmul.bf16.gmra.mxu0 %v1717
      %v1798 = vpop.f32.mrf.mxu0
      %v1799 = vadd.f32 %v1558, %v1798
      %v1800 = vpop.f32.mrf.mxu0
      %v1801 = vadd.f32 %v1560, %v1800
      %1802 = vmatmul.bf16.gmra.mxu0 %v1720
      %v1803 = vpop.f32.mrf.mxu0
      %v1804 = vadd.f32 %v1563, %v1803
      %v1805 = vpop.f32.mrf.mxu0
      %v1806 = vadd.f32 %v1565, %v1805
      %1807 = vmatmul.bf16.gmra.mxu0 %v1723
      %v1808 = vpop.f32.mrf.mxu0
      %v1809 = vadd.f32 %v1568, %v1808
      %v1810 = vpop.f32.mrf.mxu0
      %v1811 = vadd.f32 %v1570, %v1810
      %1812 = vmatmul.bf16.gmra.mxu0 %v1726
      %v1813 = vpop.f32.mrf.mxu0
      %v1814 = vadd.f32 %v1573, %v1813
      %v1815 = vpop.f32.mrf.mxu0
      %v1816 = vadd.f32 %v1575, %v1815
      %1817 = vmatmul.bf16.gmra.mxu0 %v1729
      %v1818 = vpop.f32.mrf.mxu0
      %v1819 = vadd.f32 %v1578, %v1818
      %v1820 = vpop.f32.mrf.mxu0
      %v1821 = vadd.f32 %v1580, %v1820
      %1822 = vdwg.mxu0
      %v1823 = vld [vmem:[#allocation2] sm:$0xe]
      %v1824 = vld [vmem:[#allocation2 + $0xc] sm:$0xe]
      %v1825 = vld [vmem:[#allocation2 + $0x18] sm:$0xe]
      %v1826 = vld [vmem:[#allocation2 + $0x24] sm:$0xe]
      %v1827 = vld [vmem:[#allocation2 + $0x30] sm:$0xe]
      %v1828 = vld [vmem:[#allocation2 + $0x3c] sm:$0xe]
      %v1829 = vld [vmem:[#allocation2 + $0x48] sm:$0xe]
      %v1830 = vld [vmem:[#allocation2 + $0x54] sm:$0xe]
      %v1831 = vld [vmem:[#allocation2 + $0x60] sm:$0xe]
      %v1832 = vld [vmem:[#allocation2 + $0x6c] sm:$0xe]
      %v1833 = vld [vmem:[#allocation2 + $0x78] sm:$0xe]
      %v1834 = vld [vmem:[#allocation2 + $0x84] sm:$0xe]
      %v1835 = vld [vmem:[#allocation2 + $0x90] sm:$0xe]
      %v1836 = vld [vmem:[#allocation2 + $0x9c] sm:$0xe]
      %v1837 = vld [vmem:[#allocation2 + $0xa8] sm:$0xe]
      %v1838 = vld [vmem:[#allocation2 + $0xb4] sm:$0xe]
      %vm1871 = vcmask 1042432
      %vm1872 = vcmask 1046532
      %vm1873 = vmor %vm1871, %vm1872
      %v1874 = vrot.slane %v1823, 5
      %v1875 = vrot.slane %v1874, 4
      %v1876 = vrot.slane %v922, 5
      %v1877 = vsel %vm1873, %v1875, %v1876
      %v1878 = vrot.slane %v1876, 4
      %v1879 = vrot.slane %v960, 5
      %v1880 = vsel %vm1873, %v1878, %v1879
      %v1881 = vrot.slane %v1824, 5
      %v1882 = vrot.slane %v1881, 4
      %v1883 = vrot.slane %v924, 5
      %v1884 = vsel %vm1873, %v1882, %v1883
      %v1885 = vrot.slane %v1883, 4
      %v1886 = vrot.slane %v961, 5
      %v1887 = vsel %vm1873, %v1885, %v1886
      %v1888 = vrot.slane %v1825, 5
      %v1889 = vrot.slane %v1888, 4
      %v1890 = vrot.slane %v926, 5
      %v1891 = vsel %vm1873, %v1889, %v1890
      %v1892 = vrot.slane %v1890, 4
      %v1893 = vrot.slane %v962, 5
      %v1894 = vsel %vm1873, %v1892, %v1893
      %v1895 = vrot.slane %v1826, 5
      %v1896 = vrot.slane %v1895, 4
      %v1897 = vrot.slane %v928, 5
      %v1898 = vsel %vm1873, %v1896, %v1897
      %v1899 = vrot.slane %v1897, 4
      %v1900 = vrot.slane %v963, 5
      %v1901 = vsel %vm1873, %v1899, %v1900
      %v1902 = vrot.slane %v1827, 5
      %v1903 = vrot.slane %v1902, 4
      %v1904 = vrot.slane %v930, 5
      %v1905 = vsel %vm1873, %v1903, %v1904
      %v1906 = vrot.slane %v1904, 4
      %v1907 = vrot.slane %v964, 5
      %v1908 = vsel %vm1873, %v1906, %v1907
      %v1909 = vrot.slane %v1828, 5
      %v1910 = vrot.slane %v1909, 4
      %v1911 = vrot.slane %v932, 5
      %v1912 = vsel %vm1873, %v1910, %v1911
      %v1913 = vrot.slane %v1911, 4
      %v1914 = vrot.slane %v965, 5
      %v1915 = vsel %vm1873, %v1913, %v1914
      %v1916 = vrot.slane %v1829, 5
      %v1917 = vrot.slane %v1916, 4
      %v1918 = vrot.slane %v934, 5
      %v1919 = vsel %vm1873, %v1917, %v1918
      %v1920 = vrot.slane %v1918, 4
      %v1921 = vrot.slane %v966, 5
      %v1922 = vsel %vm1873, %v1920, %v1921
      %v1923 = vrot.slane %v1830, 5
      %v1924 = vrot.slane %v1923, 4
      %v1925 = vrot.slane %v936, 5
      %v1926 = vsel %vm1873, %v1924, %v1925
      %v1927 = vrot.slane %v1925, 4
      %v1928 = vrot.slane %v967, 5
      %v1929 = vsel %vm1873, %v1927, %v1928
      %v1930 = vrot.slane %v1831, 5
      %v1931 = vrot.slane %v1930, 4
      %v1932 = vrot.slane %v938, 5
      %v1933 = vsel %vm1873, %v1931, %v1932
      %v1934 = vrot.slane %v1932, 4
      %v1935 = vrot.slane %v968, 5
      %v1936 = vsel %vm1873, %v1934, %v1935
      %v1937 = vrot.slane %v1832, 5
      %v1938 = vrot.slane %v1937, 4
      %v1939 = vrot.slane %v940, 5
      %v1940 = vsel %vm1873, %v1938, %v1939
      %v1941 = vrot.slane %v1939, 4
      %v1942 = vrot.slane %v969, 5
      %v1943 = vsel %vm1873, %v1941, %v1942
      %v1944 = vrot.slane %v1833, 5
      %v1945 = vrot.slane %v1944, 4
      %v1946 = vrot.slane %v942, 5
      %v1947 = vsel %vm1873, %v1945, %v1946
      %v1948 = vrot.slane %v1946, 4
      %v1949 = vrot.slane %v970, 5
      %v1950 = vsel %vm1873, %v1948, %v1949
      %v1951 = vrot.slane %v1834, 5
      %v1952 = vrot.slane %v1951, 4
      %v1953 = vrot.slane %v944, 5
      %v1954 = vsel %vm1873, %v1952, %v1953
      %v1955 = vrot.slane %v1953, 4
      %v1956 = vrot.slane %v971, 5
      %v1957 = vsel %vm1873, %v1955, %v1956
      %v1958 = vrot.slane %v1835, 5
      %v1959 = vrot.slane %v1958, 4
      %v1960 = vrot.slane %v946, 5
      %v1961 = vsel %vm1873, %v1959, %v1960
      %v1962 = vrot.slane %v1960, 4
      %v1963 = vrot.slane %v972, 5
      %v1964 = vsel %vm1873, %v1962, %v1963
      %v1965 = vrot.slane %v1836, 5
      %v1966 = vrot.slane %v1965, 4
      %v1967 = vrot.slane %v948, 5
      %v1968 = vsel %vm1873, %v1966, %v1967
      %v1969 = vrot.slane %v1967, 4
      %v1970 = vrot.slane %v973, 5
      %v1971 = vsel %vm1873, %v1969, %v1970
      %v1972 = vrot.slane %v1837, 5
      %v1973 = vrot.slane %v1972, 4
      %v1974 = vrot.slane %v950, 5
      %v1975 = vsel %vm1873, %v1973, %v1974
      %v1976 = vrot.slane %v1974, 4
      %v1977 = vrot.slane %v974, 5
      %v1978 = vsel %vm1873, %v1976, %v1977
      %v1979 = vrot.slane %v1838, 5
      %v1980 = vrot.slane %v1979, 4
      %v1981 = vrot.slane %v952, 5
      %v1982 = vsel %vm1873, %v1980, %v1981
      %v1983 = vrot.slane %v1981, 4
      %v1984 = vrot.slane %v975, 5
      %v1985 = vsel %vm1873, %v1983, %v1984
      %s1986 = scalar_lea.vmem %s3, 56
      %v1987 = vld [vmem:[%s1986] sm:$0xf]
      %v1988 = vld [vmem:[%s1986 + $0x4] sm:$0xf]
      %v1989 = vld [vmem:[%s1986 + $0x8] sm:$0xf]
      %v1990 = vld [vmem:[%s1986 + $0xc] sm:$0xf]
      %v1991 = vld [vmem:[%s1986 + $0x10] sm:$0xf]
      %v1992 = vld [vmem:[%s1986 + $0x14] sm:$0xf]
      %v1993 = vld [vmem:[%s1986 + $0x18] sm:$0x7]
      %v1994 = vunpack.c.l.b16 %v1877
      %v1995 = vunpack.c.l.b16 %v1880
      %v1996 = vunpack.c.l.b16 %v1884
      %v1997 = vunpack.c.l.b16 %v1887
      %v1998 = vunpack.c.l.b16 %v1891
      %v1999 = vunpack.c.l.b16 %v1894
      %v2000 = vunpack.c.l.b16 %v1898
      %v2001 = vunpack.c.l.b16 %v1901
      %v2002 = vunpack.c.l.b16 %v1905
      %v2003 = vunpack.c.l.b16 %v1908
      %v2004 = vunpack.c.l.b16 %v1912
      %v2005 = vunpack.c.l.b16 %v1915
      %v2006 = vunpack.c.l.b16 %v1919
      %v2007 = vunpack.c.l.b16 %v1922
      %v2008 = vunpack.c.l.b16 %v1926
      %v2009 = vunpack.c.l.b16 %v1929
      %v2010 = vunpack.c.l.b16 %v1933
      %v2011 = vunpack.c.l.b16 %v1936
      %v2012 = vunpack.c.l.b16 %v1940
      %v2013 = vunpack.c.l.b16 %v1943
      %v2014 = vunpack.c.l.b16 %v1947
      %v2015 = vunpack.c.l.b16 %v1950
      %v2016 = vunpack.c.l.b16 %v1954
      %v2017 = vunpack.c.l.b16 %v1957
      %v2018 = vunpack.c.l.b16 %v1961
      %v2019 = vunpack.c.l.b16 %v1964
      %v2020 = vunpack.c.l.b16 %v1968
      %v2021 = vunpack.c.l.b16 %v1971
      %v2022 = vunpack.c.l.b16 %v1975
      %v2023 = vunpack.c.l.b16 %v1978
      %v2024 = vunpack.c.l.b16 %v1982
      %v2025 = vunpack.c.l.b16 %v1985
      %v2026 = vpack.c.b16 %v1995, %v1994
      %v2027 = vpack.c.b16 %v1997, %v1996
      %v2028 = vpack.c.b16 %v1999, %v1998
      %v2029 = vpack.c.b16 %v2001, %v2000
      %v2030 = vpack.c.b16 %v2003, %v2002
      %v2031 = vpack.c.b16 %v2005, %v2004
      %v2032 = vpack.c.b16 %v2007, %v2006
      %v2033 = vpack.c.b16 %v2009, %v2008
      %v2034 = vpack.c.b16 %v2011, %v2010
      %v2035 = vpack.c.b16 %v2013, %v2012
      %v2036 = vpack.c.b16 %v2015, %v2014
      %v2037 = vpack.c.b16 %v2017, %v2016
      %v2038 = vpack.c.b16 %v2019, %v2018
      %v2039 = vpack.c.b16 %v2021, %v2020
      %v2040 = vpack.c.b16 %v2023, %v2022
      %v2041 = vpack.c.b16 %v2025, %v2024
      %v2049 = vunpack.c.l.b16 %v1987
      %v2050 = vunpack.c.l.b16 %v1988
      %v2051 = vunpack.c.l.b16 %v1989
      %v2052 = vunpack.c.l.b16 %v1990
      %v2053 = vunpack.c.l.b16 %v1991
      %v2054 = vunpack.c.l.b16 %v1992
      %v2055 = vunpack.c.l.b16 %v1993
      %v2056 = vpack.c.b16 %v2050, %v2049
      %v2057 = vpack.c.b16 %v2052, %v2051
      %v2058 = vpack.c.b16 %v2054, %v2053
      %v2059 = vpack.c.b16 %v2055, %v2055
      %v2064 = vsel %vm1440, %v2026, 0
      %v2067 = vsel %vm1440, %v2027, 0
      %v2070 = vsel %vm1440, %v2028, 0
      %v2073 = vsel %vm1440, %v2029, 0
      %v2076 = vsel %vm1440, %v2030, 0
      %v2079 = vsel %vm1440, %v2031, 0
      %v2082 = vsel %vm1440, %v2032, 0
      %v2085 = vsel %vm1440, %v2033, 0
      %v2088 = vsel %vm1440, %v2034, 0
      %v2091 = vsel %vm1440, %v2035, 0
      %v2094 = vsel %vm1440, %v2036, 0
      %v2097 = vsel %vm1440, %v2037, 0
      %v2100 = vsel %vm1440, %v2038, 0
      %v2103 = vsel %vm1440, %v2039, 0
      %v2106 = vsel %vm1440, %v2040, 0
      %v2109 = vsel %vm1440, %v2041, 0
      %v2112 = vsel %vm1489, %v2059, 0
      %2114 = vmatpush.bf16.msra.mxu0 0
      %2115 = vmatpush.bf16.msra.mxu0 0
      %2116 = vmatpush.bf16.msra.mxu0 0
      %2117 = vmatpush.bf16.msra.mxu0 0
      %2118 = vmatpush.bf16.msra.mxu0 %v2112
      %2119 = vmatpush.bf16.msra.mxu0 %v2058
      %2120 = vmatpush.bf16.msra.mxu0 %v2057
      %2121 = vmatpush.bf16.msra.mxu0 %v2056
      %2122 = vmatmul.bf16.gmra.mxu0 %v2064
      %v2123 = vpop.f32.mrf.mxu0
      %v2124 = vadd.f32 0.0, %v2123
      %v2125 = vpop.f32.mrf.mxu0
      %v2126 = vadd.f32 0.0, %v2125
      %2127 = vmatmul.bf16.gmra.mxu0 %v2067
      %v2128 = vpop.f32.mrf.mxu0
      %v2129 = vadd.f32 0.0, %v2128
      %v2130 = vpop.f32.mrf.mxu0
      %v2131 = vadd.f32 0.0, %v2130
      %2132 = vmatmul.bf16.gmra.mxu0 %v2070
      %v2133 = vpop.f32.mrf.mxu0
      %v2134 = vadd.f32 0.0, %v2133
      %v2135 = vpop.f32.mrf.mxu0
      %v2136 = vadd.f32 0.0, %v2135
      %2137 = vmatmul.bf16.gmra.mxu0 %v2073
      %v2138 = vpop.f32.mrf.mxu0
      %v2139 = vadd.f32 0.0, %v2138
      %v2140 = vpop.f32.mrf.mxu0
      %v2141 = vadd.f32 0.0, %v2140
      %2142 = vmatmul.bf16.gmra.mxu0 %v2076
      %v2143 = vpop.f32.mrf.mxu0
      %v2144 = vadd.f32 0.0, %v2143
      %v2145 = vpop.f32.mrf.mxu0
      %v2146 = vadd.f32 0.0, %v2145
      %2147 = vmatmul.bf16.gmra.mxu0 %v2079
      %v2148 = vpop.f32.mrf.mxu0
      %v2149 = vadd.f32 0.0, %v2148
      %v2150 = vpop.f32.mrf.mxu0
      %v2151 = vadd.f32 0.0, %v2150
      %2152 = vmatmul.bf16.gmra.mxu0 %v2082
      %v2153 = vpop.f32.mrf.mxu0
      %v2154 = vadd.f32 0.0, %v2153
      %v2155 = vpop.f32.mrf.mxu0
      %v2156 = vadd.f32 0.0, %v2155
      %2157 = vmatmul.bf16.gmra.mxu0 %v2085
      %v2158 = vpop.f32.mrf.mxu0
      %v2159 = vadd.f32 0.0, %v2158
      %v2160 = vpop.f32.mrf.mxu0
      %v2161 = vadd.f32 0.0, %v2160
      %2162 = vmatmul.bf16.gmra.mxu0 %v2088
      %v2163 = vpop.f32.mrf.mxu0
      %v2164 = vadd.f32 0.0, %v2163
      %v2165 = vpop.f32.mrf.mxu0
      %v2166 = vadd.f32 0.0, %v2165
      %2167 = vmatmul.bf16.gmra.mxu0 %v2091
      %v2168 = vpop.f32.mrf.mxu0
      %v2169 = vadd.f32 0.0, %v2168
      %v2170 = vpop.f32.mrf.mxu0
      %v2171 = vadd.f32 0.0, %v2170
      %2172 = vmatmul.bf16.gmra.mxu0 %v2094
      %v2173 = vpop.f32.mrf.mxu0
      %v2174 = vadd.f32 0.0, %v2173
      %v2175 = vpop.f32.mrf.mxu0
      %v2176 = vadd.f32 0.0, %v2175
      %2177 = vmatmul.bf16.gmra.mxu0 %v2097
      %v2178 = vpop.f32.mrf.mxu0
      %v2179 = vadd.f32 0.0, %v2178
      %v2180 = vpop.f32.mrf.mxu0
      %v2181 = vadd.f32 0.0, %v2180
      %2182 = vmatmul.bf16.gmra.mxu0 %v2100
      %v2183 = vpop.f32.mrf.mxu0
      %v2184 = vadd.f32 0.0, %v2183
      %v2185 = vpop.f32.mrf.mxu0
      %v2186 = vadd.f32 0.0, %v2185
      %2187 = vmatmul.bf16.gmra.mxu0 %v2103
      %v2188 = vpop.f32.mrf.mxu0
      %v2189 = vadd.f32 0.0, %v2188
      %v2190 = vpop.f32.mrf.mxu0
      %v2191 = vadd.f32 0.0, %v2190
      %2192 = vmatmul.bf16.gmra.mxu0 %v2106
      %v2193 = vpop.f32.mrf.mxu0
      %v2194 = vadd.f32 0.0, %v2193
      %v2195 = vpop.f32.mrf.mxu0
      %v2196 = vadd.f32 0.0, %v2195
      %2197 = vmatmul.bf16.gmra.mxu0 %v2109
      %v2198 = vpop.f32.mrf.mxu0
      %v2199 = vadd.f32 0.0, %v2198
      %v2200 = vpop.f32.mrf.mxu0
      %v2201 = vadd.f32 0.0, %v2200
      %2202 = vdwg.mxu0
      %v2203 = vadd.f32 %v1744, %v2124
      %v2204 = vadd.f32 %v1746, %v2126
      %v2205 = vadd.f32 %v1749, %v2129
      %v2206 = vadd.f32 %v1751, %v2131
      %v2207 = vadd.f32 %v1754, %v2134
      %v2208 = vadd.f32 %v1756, %v2136
      %v2209 = vadd.f32 %v1759, %v2139
      %v2210 = vadd.f32 %v1761, %v2141
      %v2211 = vadd.f32 %v1764, %v2144
      %v2212 = vadd.f32 %v1766, %v2146
      %v2213 = vadd.f32 %v1769, %v2149
      %v2214 = vadd.f32 %v1771, %v2151
      %v2215 = vadd.f32 %v1774, %v2154
      %v2216 = vadd.f32 %v1776, %v2156
      %v2217 = vadd.f32 %v1779, %v2159
      %v2218 = vadd.f32 %v1781, %v2161
      %v2219 = vadd.f32 %v1784, %v2164
      %v2220 = vadd.f32 %v1786, %v2166
      %v2221 = vadd.f32 %v1789, %v2169
      %v2222 = vadd.f32 %v1791, %v2171
      %v2223 = vadd.f32 %v1794, %v2174
      %v2224 = vadd.f32 %v1796, %v2176
      %v2225 = vadd.f32 %v1799, %v2179
      %v2226 = vadd.f32 %v1801, %v2181
      %v2227 = vadd.f32 %v1804, %v2184
      %v2228 = vadd.f32 %v1806, %v2186
      %v2229 = vadd.f32 %v1809, %v2189
      %v2230 = vadd.f32 %v1811, %v2191
      %v2231 = vadd.f32 %v1814, %v2194
      %v2232 = vadd.f32 %v1816, %v2196
      %v2233 = vadd.f32 %v1819, %v2199
      %v2234 = vadd.f32 %v1821, %v2201
      %v2235 = vld [vmem:[%s806] sm:$0xf]
      %v2236 = vld [vmem:[%s806 + $0x4] sm:$0xf]
      %v2237 = vld [vmem:[%s806 + $0xc] sm:$0xf]
      %v2238 = vld [vmem:[%s806 + $0x10] sm:$0xf]
      %v2239 = vld [vmem:[%s806 + $0x18] sm:$0xf]
      %v2240 = vld [vmem:[%s806 + $0x1c] sm:$0xf]
      %v2241 = vld [vmem:[%s806 + $0x24] sm:$0xf]
      %v2242 = vld [vmem:[%s806 + $0x28] sm:$0xf]
      %v2243 = vld [vmem:[%s806 + $0x30] sm:$0xf]
      %v2244 = vld [vmem:[%s806 + $0x34] sm:$0xf]
      %v2245 = vld [vmem:[%s806 + $0x3c] sm:$0xf]
      %v2246 = vld [vmem:[%s806 + $0x40] sm:$0xf]
      %v2247 = vld [vmem:[%s806 + $0x48] sm:$0xf]
      %v2248 = vld [vmem:[%s806 + $0x4c] sm:$0xf]
      %v2249 = vld [vmem:[%s806 + $0x54] sm:$0xf]
      %v2250 = vld [vmem:[%s806 + $0x58] sm:$0xf]
      %v2251 = vld [vmem:[%s806 + $0x60] sm:$0xf]
      %v2252 = vld [vmem:[%s806 + $0x64] sm:$0xf]
      %v2253 = vld [vmem:[%s806 + $0x6c] sm:$0xf]
      %v2254 = vld [vmem:[%s806 + $0x70] sm:$0xf]
      %v2255 = vld [vmem:[%s806 + $0x78] sm:$0xf]
      %v2256 = vld [vmem:[%s806 + $0x7c] sm:$0xf]
      %v2257 = vld [vmem:[%s806 + $0x84] sm:$0xf]
      %v2258 = vld [vmem:[%s806 + $0x88] sm:$0xf]
      %v2259 = vld [vmem:[%s806 + $0x90] sm:$0xf]
      %v2260 = vld [vmem:[%s806 + $0x94] sm:$0xf]
      %v2261 = vld [vmem:[%s806 + $0x9c] sm:$0xf]
      %v2262 = vld [vmem:[%s806 + $0xa0] sm:$0xf]
      %v2263 = vld [vmem:[%s806 + $0xa8] sm:$0xf]
      %v2264 = vld [vmem:[%s806 + $0xac] sm:$0xf]
      %v2265 = vld [vmem:[%s806 + $0xb4] sm:$0xf]
      %v2266 = vld [vmem:[%s806 + $0xb8] sm:$0xf]
      %s2267 = scalar_lea.vmem %s3, 84
      %v2268 = vld [vmem:[%s2267] sm:$0xf]
      %v2269 = vld [vmem:[%s2267 + $0x4] sm:$0xf]
      %v2270 = vld [vmem:[%s2267 + $0x8] sm:$0xf]
      %v2271 = vld [vmem:[%s2267 + $0xc] sm:$0xf]
      %v2272 = vld [vmem:[%s2267 + $0x10] sm:$0xf]
      %v2273 = vld [vmem:[%s2267 + $0x14] sm:$0xf]
      %v2274 = vld [vmem:[%s2267 + $0x18] sm:$0x7]
      %v2307 = vunpack.c.l.b16 %v2235
      %v2308 = vunpack.c.l.b16 %v2236
      %v2309 = vunpack.c.l.b16 %v2237
      %v2310 = vunpack.c.l.b16 %v2238
      %v2311 = vunpack.c.l.b16 %v2239
      %v2312 = vunpack.c.l.b16 %v2240
      %v2313 = vunpack.c.l.b16 %v2241
      %v2314 = vunpack.c.l.b16 %v2242
      %v2315 = vunpack.c.l.b16 %v2243
      %v2316 = vunpack.c.l.b16 %v2244
      %v2317 = vunpack.c.l.b16 %v2245
      %v2318 = vunpack.c.l.b16 %v2246
      %v2319 = vunpack.c.l.b16 %v2247
      %v2320 = vunpack.c.l.b16 %v2248
      %v2321 = vunpack.c.l.b16 %v2249
      %v2322 = vunpack.c.l.b16 %v2250
      %v2323 = vunpack.c.l.b16 %v2251
      %v2324 = vunpack.c.l.b16 %v2252
      %v2325 = vunpack.c.l.b16 %v2253
      %v2326 = vunpack.c.l.b16 %v2254
      %v2327 = vunpack.c.l.b16 %v2255
      %v2328 = vunpack.c.l.b16 %v2256
      %v2329 = vunpack.c.l.b16 %v2257
      %v2330 = vunpack.c.l.b16 %v2258
      %v2331 = vunpack.c.l.b16 %v2259
      %v2332 = vunpack.c.l.b16 %v2260
      %v2333 = vunpack.c.l.b16 %v2261
      %v2334 = vunpack.c.l.b16 %v2262
      %v2335 = vunpack.c.l.b16 %v2263
      %v2336 = vunpack.c.l.b16 %v2264
      %v2337 = vunpack.c.l.b16 %v2265
      %v2338 = vunpack.c.l.b16 %v2266
      %v2339 = vpack.c.b16 %v2308, %v2307
      %v2340 = vpack.c.b16 %v2310, %v2309
      %v2341 = vpack.c.b16 %v2312, %v2311
      %v2342 = vpack.c.b16 %v2314, %v2313
      %v2343 = vpack.c.b16 %v2316, %v2315
      %v2344 = vpack.c.b16 %v2318, %v2317
      %v2345 = vpack.c.b16 %v2320, %v2319
      %v2346 = vpack.c.b16 %v2322, %v2321
      %v2347 = vpack.c.b16 %v2324, %v2323
      %v2348 = vpack.c.b16 %v2326, %v2325
      %v2349 = vpack.c.b16 %v2328, %v2327
      %v2350 = vpack.c.b16 %v2330, %v2329
      %v2351 = vpack.c.b16 %v2332, %v2331
      %v2352 = vpack.c.b16 %v2334, %v2333
      %v2353 = vpack.c.b16 %v2336, %v2335
      %v2354 = vpack.c.b16 %v2338, %v2337
      %v2362 = vunpack.c.l.b16 %v2268
      %v2363 = vunpack.c.l.b16 %v2269
      %v2364 = vunpack.c.l.b16 %v2270
      %v2365 = vunpack.c.l.b16 %v2271
      %v2366 = vunpack.c.l.b16 %v2272
      %v2367 = vunpack.c.l.b16 %v2273
      %v2368 = vunpack.c.l.b16 %v2274
      %v2369 = vpack.c.b16 %v2363, %v2362
      %v2370 = vpack.c.b16 %v2365, %v2364
      %v2371 = vpack.c.b16 %v2367, %v2366
      %v2372 = vpack.c.b16 %v2368, %v2368
      %v2377 = vsel %vm1440, %v2339, 0
      %v2380 = vsel %vm1440, %v2340, 0
      %v2383 = vsel %vm1440, %v2341, 0
      %v2386 = vsel %vm1440, %v2342, 0
      %v2389 = vsel %vm1440, %v2343, 0
      %v2392 = vsel %vm1440, %v2344, 0
      %v2395 = vsel %vm1440, %v2345, 0
      %v2398 = vsel %vm1440, %v2346, 0
      %v2401 = vsel %vm1440, %v2347, 0
      %v2404 = vsel %vm1440, %v2348, 0
      %v2407 = vsel %vm1440, %v2349, 0
      %v2410 = vsel %vm1440, %v2350, 0
      %v2413 = vsel %vm1440, %v2351, 0
      %v2416 = vsel %vm1440, %v2352, 0
      %v2419 = vsel %vm1440, %v2353, 0
      %v2422 = vsel %vm1440, %v2354, 0
      %v2425 = vsel %vm1489, %v2372, 0
      %2427 = vmatpush.bf16.msra.mxu0 0
      %2428 = vmatpush.bf16.msra.mxu0 0
      %2429 = vmatpush.bf16.msra.mxu0 0
      %2430 = vmatpush.bf16.msra.mxu0 0
      %2431 = vmatpush.bf16.msra.mxu0 %v2425
      %2432 = vmatpush.bf16.msra.mxu0 %v2371
      %2433 = vmatpush.bf16.msra.mxu0 %v2370
      %2434 = vmatpush.bf16.msra.mxu0 %v2369
      %2435 = vmatmul.bf16.gmra.mxu0 %v2377
      %v2436 = vpop.f32.mrf.mxu0
      %v2437 = vadd.f32 0.0, %v2436
      %v2438 = vpop.f32.mrf.mxu0
      %v2439 = vadd.f32 0.0, %v2438
      %2440 = vmatmul.bf16.gmra.mxu0 %v2380
      %v2441 = vpop.f32.mrf.mxu0
      %v2442 = vadd.f32 0.0, %v2441
      %v2443 = vpop.f32.mrf.mxu0
      %v2444 = vadd.f32 0.0, %v2443
      %2445 = vmatmul.bf16.gmra.mxu0 %v2383
      %v2446 = vpop.f32.mrf.mxu0
      %v2447 = vadd.f32 0.0, %v2446
      %v2448 = vpop.f32.mrf.mxu0
      %v2449 = vadd.f32 0.0, %v2448
      %2450 = vmatmul.bf16.gmra.mxu0 %v2386
      %v2451 = vpop.f32.mrf.mxu0
      %v2452 = vadd.f32 0.0, %v2451
      %v2453 = vpop.f32.mrf.mxu0
      %v2454 = vadd.f32 0.0, %v2453
      %2455 = vmatmul.bf16.gmra.mxu0 %v2389
      %v2456 = vpop.f32.mrf.mxu0
      %v2457 = vadd.f32 0.0, %v2456
      %v2458 = vpop.f32.mrf.mxu0
      %v2459 = vadd.f32 0.0, %v2458
      %2460 = vmatmul.bf16.gmra.mxu0 %v2392
      %v2461 = vpop.f32.mrf.mxu0
      %v2462 = vadd.f32 0.0, %v2461
      %v2463 = vpop.f32.mrf.mxu0
      %v2464 = vadd.f32 0.0, %v2463
      %2465 = vmatmul.bf16.gmra.mxu0 %v2395
      %v2466 = vpop.f32.mrf.mxu0
      %v2467 = vadd.f32 0.0, %v2466
      %v2468 = vpop.f32.mrf.mxu0
      %v2469 = vadd.f32 0.0, %v2468
      %2470 = vmatmul.bf16.gmra.mxu0 %v2398
      %v2471 = vpop.f32.mrf.mxu0
      %v2472 = vadd.f32 0.0, %v2471
      %v2473 = vpop.f32.mrf.mxu0
      %v2474 = vadd.f32 0.0, %v2473
      %2475 = vmatmul.bf16.gmra.mxu0 %v2401
      %v2476 = vpop.f32.mrf.mxu0
      %v2477 = vadd.f32 0.0, %v2476
      %v2478 = vpop.f32.mrf.mxu0
      %v2479 = vadd.f32 0.0, %v2478
      %2480 = vmatmul.bf16.gmra.mxu0 %v2404
      %v2481 = vpop.f32.mrf.mxu0
      %v2482 = vadd.f32 0.0, %v2481
      %v2483 = vpop.f32.mrf.mxu0
      %v2484 = vadd.f32 0.0, %v2483
      %2485 = vmatmul.bf16.gmra.mxu0 %v2407
      %v2486 = vpop.f32.mrf.mxu0
      %v2487 = vadd.f32 0.0, %v2486
      %v2488 = vpop.f32.mrf.mxu0
      %v2489 = vadd.f32 0.0, %v2488
      %2490 = vmatmul.bf16.gmra.mxu0 %v2410
      %v2491 = vpop.f32.mrf.mxu0
      %v2492 = vadd.f32 0.0, %v2491
      %v2493 = vpop.f32.mrf.mxu0
      %v2494 = vadd.f32 0.0, %v2493
      %2495 = vmatmul.bf16.gmra.mxu0 %v2413
      %v2496 = vpop.f32.mrf.mxu0
      %v2497 = vadd.f32 0.0, %v2496
      %v2498 = vpop.f32.mrf.mxu0
      %v2499 = vadd.f32 0.0, %v2498
      %2500 = vmatmul.bf16.gmra.mxu0 %v2416
      %v2501 = vpop.f32.mrf.mxu0
      %v2502 = vadd.f32 0.0, %v2501
      %v2503 = vpop.f32.mrf.mxu0
      %v2504 = vadd.f32 0.0, %v2503
      %2505 = vmatmul.bf16.gmra.mxu0 %v2419
      %v2506 = vpop.f32.mrf.mxu0
      %v2507 = vadd.f32 0.0, %v2506
      %v2508 = vpop.f32.mrf.mxu0
      %v2509 = vadd.f32 0.0, %v2508
      %2510 = vmatmul.bf16.gmra.mxu0 %v2422
      %v2511 = vpop.f32.mrf.mxu0
      %v2512 = vadd.f32 0.0, %v2511
      %v2513 = vpop.f32.mrf.mxu0
      %v2514 = vadd.f32 0.0, %v2513
      %2515 = vdwg.mxu0
      %v2516 = vadd.f32 %v2203, %v2437
      %v2517 = vadd.f32 %v2204, %v2439
      %v2518 = vadd.f32 %v2205, %v2442
      %v2519 = vadd.f32 %v2206, %v2444
      %v2520 = vadd.f32 %v2207, %v2447
      %v2521 = vadd.f32 %v2208, %v2449
      %v2522 = vadd.f32 %v2209, %v2452
      %v2523 = vadd.f32 %v2210, %v2454
      %v2524 = vadd.f32 %v2211, %v2457
      %v2525 = vadd.f32 %v2212, %v2459
      %v2526 = vadd.f32 %v2213, %v2462
      %v2527 = vadd.f32 %v2214, %v2464
      %v2528 = vadd.f32 %v2215, %v2467
      %v2529 = vadd.f32 %v2216, %v2469
      %v2530 = vadd.f32 %v2217, %v2472
      %v2531 = vadd.f32 %v2218, %v2474
      %v2532 = vadd.f32 %v2219, %v2477
      %v2533 = vadd.f32 %v2220, %v2479
      %v2534 = vadd.f32 %v2221, %v2482
      %v2535 = vadd.f32 %v2222, %v2484
      %v2536 = vadd.f32 %v2223, %v2487
      %v2537 = vadd.f32 %v2224, %v2489
      %v2538 = vadd.f32 %v2225, %v2492
      %v2539 = vadd.f32 %v2226, %v2494
      %v2540 = vadd.f32 %v2227, %v2497
      %v2541 = vadd.f32 %v2228, %v2499
      %v2542 = vadd.f32 %v2229, %v2502
      %v2543 = vadd.f32 %v2230, %v2504
      %v2544 = vadd.f32 %v2231, %v2507
      %v2545 = vadd.f32 %v2232, %v2509
      %v2546 = vadd.f32 %v2233, %v2512
      %v2547 = vadd.f32 %v2234, %v2514
      %v2548 = vld [vmem:[%s806] sm:$0xf]
      %v2549 = vld [vmem:[%s806 + $0x4] sm:$0xf]
      %v2550 = vld [vmem:[%s806 + $0x8] sm:$0x1]
      %v2551 = vld [vmem:[%s806 + $0xc] sm:$0xf]
      %v2552 = vld [vmem:[%s806 + $0x10] sm:$0xf]
      %v2553 = vld [vmem:[%s806 + $0x14] sm:$0x1]
      %v2554 = vld [vmem:[%s806 + $0x18] sm:$0xf]
      %v2555 = vld [vmem:[%s806 + $0x1c] sm:$0xf]
      %v2556 = vld [vmem:[%s806 + $0x20] sm:$0x1]
      %v2557 = vld [vmem:[%s806 + $0x24] sm:$0xf]
      %v2558 = vld [vmem:[%s806 + $0x28] sm:$0xf]
      %v2559 = vld [vmem:[%s806 + $0x2c] sm:$0x1]
      %v2560 = vld [vmem:[%s806 + $0x30] sm:$0xf]
      %v2561 = vld [vmem:[%s806 + $0x34] sm:$0xf]
      %v2562 = vld [vmem:[%s806 + $0x38] sm:$0x1]
      %v2563 = vld [vmem:[%s806 + $0x3c] sm:$0xf]
      %v2564 = vld [vmem:[%s806 + $0x40] sm:$0xf]
      %v2565 = vld [vmem:[%s806 + $0x44] sm:$0x1]
      %v2566 = vld [vmem:[%s806 + $0x48] sm:$0xf]
      %v2567 = vld [vmem:[%s806 + $0x4c] sm:$0xf]
      %v2568 = vld [vmem:[%s806 + $0x50] sm:$0x1]
      %v2569 = vld [vmem:[%s806 + $0x54] sm:$0xf]
      %v2570 = vld [vmem:[%s806 + $0x58] sm:$0xf]
      %v2571 = vld [vmem:[%s806 + $0x5c] sm:$0x1]
      %v2572 = vld [vmem:[%s806 + $0x60] sm:$0xf]
      %v2573 = vld [vmem:[%s806 + $0x64] sm:$0xf]
      %v2574 = vld [vmem:[%s806 + $0x68] sm:$0x1]
      %v2575 = vld [vmem:[%s806 + $0x6c] sm:$0xf]
      %v2576 = vld [vmem:[%s806 + $0x70] sm:$0xf]
      %v2577 = vld [vmem:[%s806 + $0x74] sm:$0x1]
      %v2578 = vld [vmem:[%s806 + $0x78] sm:$0xf]
      %v2579 = vld [vmem:[%s806 + $0x7c] sm:$0xf]
      %v2580 = vld [vmem:[%s806 + $0x80] sm:$0x1]
      %v2581 = vld [vmem:[%s806 + $0x84] sm:$0xf]
      %v2582 = vld [vmem:[%s806 + $0x88] sm:$0xf]
      %v2583 = vld [vmem:[%s806 + $0x8c] sm:$0x1]
      %v2584 = vld [vmem:[%s806 + $0x90] sm:$0xf]
      %v2585 = vld [vmem:[%s806 + $0x94] sm:$0xf]
      %v2586 = vld [vmem:[%s806 + $0x98] sm:$0x1]
      %v2587 = vld [vmem:[%s806 + $0x9c] sm:$0xf]
      %v2588 = vld [vmem:[%s806 + $0xa0] sm:$0xf]
      %v2589 = vld [vmem:[%s806 + $0xa4] sm:$0x1]
      %v2590 = vld [vmem:[%s806 + $0xa8] sm:$0xf]
      %v2591 = vld [vmem:[%s806 + $0xac] sm:$0xf]
      %v2592 = vld [vmem:[%s806 + $0xb0] sm:$0x1]
      %v2593 = vld [vmem:[%s806 + $0xb4] sm:$0xf]
      %v2594 = vld [vmem:[%s806 + $0xb8] sm:$0xf]
      %v2595 = vld [vmem:[%s806 + $0xbc] sm:$0x1]
      %v2597 = vshrl.u32 %v2548, 16
      %v2599 = vrot.slane %v2597, 4
      %v2600 = vshll.u32 %v2548, 16
      %v2602 = vrot.slane %v2600, 5
      %v2603 = vor.u32 %v2599, %v2602
      %v2604 = vrot.slane %v2603, 4
      %v2606 = vshll.u32 %v2549, 16
      %v2608 = vrot.slane %v2606, 5
      %v2609 = vsel %vm978, %v2604, %v2608
      %v2610 = vshrl.u32 %v2549, 16
      %v2612 = vrot.slane %v2610, 4
      %v2613 = vor.u32 %v2612, %v2608
      %v2614 = vrot.slane %v2613, 4
      %v2616 = vshll.u32 %v2550, 16
      %v2618 = vrot.slane %v2616, 5
      %v2619 = vsel %vm978, %v2614, %v2618
      %v2621 = vshrl.u32 %v2551, 16
      %v2623 = vrot.slane %v2621, 4
      %v2624 = vshll.u32 %v2551, 16
      %v2626 = vrot.slane %v2624, 5
      %v2627 = vor.u32 %v2623, %v2626
      %v2628 = vrot.slane %v2627, 4
      %v2630 = vshll.u32 %v2552, 16
      %v2632 = vrot.slane %v2630, 5
      %v2633 = vsel %vm978, %v2628, %v2632
      %v2634 = vshrl.u32 %v2552, 16
      %v2636 = vrot.slane %v2634, 4
      %v2637 = vor.u32 %v2636, %v2632
      %v2638 = vrot.slane %v2637, 4
      %v2640 = vshll.u32 %v2553, 16
      %v2642 = vrot.slane %v2640, 5
      %v2643 = vsel %vm978, %v2638, %v2642
      %v2645 = vshrl.u32 %v2554, 16
      %v2647 = vrot.slane %v2645, 4
      %v2648 = vshll.u32 %v2554, 16
      %v2650 = vrot.slane %v2648, 5
      %v2651 = vor.u32 %v2647, %v2650
      %v2652 = vrot.slane %v2651, 4
      %v2654 = vshll.u32 %v2555, 16
      %v2656 = vrot.slane %v2654, 5
      %v2657 = vsel %vm978, %v2652, %v2656
      %v2658 = vshrl.u32 %v2555, 16
      %v2660 = vrot.slane %v2658, 4
      %v2661 = vor.u32 %v2660, %v2656
      %v2662 = vrot.slane %v2661, 4
      %v2664 = vshll.u32 %v2556, 16
      %v2666 = vrot.slane %v2664, 5
      %v2667 = vsel %vm978, %v2662, %v2666
      %v2669 = vshrl.u32 %v2557, 16
      %v2671 = vrot.slane %v2669, 4
      %v2672 = vshll.u32 %v2557, 16
      %v2674 = vrot.slane %v2672, 5
      %v2675 = vor.u32 %v2671, %v2674
      %v2676 = vrot.slane %v2675, 4
      %v2678 = vshll.u32 %v2558, 16
      %v2680 = vrot.slane %v2678, 5
      %v2681 = vsel %vm978, %v2676, %v2680
      %v2682 = vshrl.u32 %v2558, 16
      %v2684 = vrot.slane %v2682, 4
      %v2685 = vor.u32 %v2684, %v2680
      %v2686 = vrot.slane %v2685, 4
      %v2688 = vshll.u32 %v2559, 16
      %v2690 = vrot.slane %v2688, 5
      %v2691 = vsel %vm978, %v2686, %v2690
      %v2693 = vshrl.u32 %v2560, 16
      %v2695 = vrot.slane %v2693, 4
      %v2696 = vshll.u32 %v2560, 16
      %v2698 = vrot.slane %v2696, 5
      %v2699 = vor.u32 %v2695, %v2698
      %v2700 = vrot.slane %v2699, 4
      %v2702 = vshll.u32 %v2561, 16
      %v2704 = vrot.slane %v2702, 5
      %v2705 = vsel %vm978, %v2700, %v2704
      %v2706 = vshrl.u32 %v2561, 16
      %v2708 = vrot.slane %v2706, 4
      %v2709 = vor.u32 %v2708, %v2704
      %v2710 = vrot.slane %v2709, 4
      %v2712 = vshll.u32 %v2562, 16
      %v2714 = vrot.slane %v2712, 5
      %v2715 = vsel %vm978, %v2710, %v2714
      %v2717 = vshrl.u32 %v2563, 16
      %v2719 = vrot.slane %v2717, 4
      %v2720 = vshll.u32 %v2563, 16
      %v2722 = vrot.slane %v2720, 5
      %v2723 = vor.u32 %v2719, %v2722
      %v2724 = vrot.slane %v2723, 4
      %v2726 = vshll.u32 %v2564, 16
      %v2728 = vrot.slane %v2726, 5
      %v2729 = vsel %vm978, %v2724, %v2728
      %v2730 = vshrl.u32 %v2564, 16
      %v2732 = vrot.slane %v2730, 4
      %v2733 = vor.u32 %v2732, %v2728
      %v2734 = vrot.slane %v2733, 4
      %v2736 = vshll.u32 %v2565, 16
      %v2738 = vrot.slane %v2736, 5
      %v2739 = vsel %vm978, %v2734, %v2738
      %v2741 = vshrl.u32 %v2566, 16
      %v2743 = vrot.slane %v2741, 4
      %v2744 = vshll.u32 %v2566, 16
      %v2746 = vrot.slane %v2744, 5
      %v2747 = vor.u32 %v2743, %v2746
      %v2748 = vrot.slane %v2747, 4
      %v2750 = vshll.u32 %v2567, 16
      %v2752 = vrot.slane %v2750, 5
      %v2753 = vsel %vm978, %v2748, %v2752
      %v2754 = vshrl.u32 %v2567, 16
      %v2756 = vrot.slane %v2754, 4
      %v2757 = vor.u32 %v2756, %v2752
      %v2758 = vrot.slane %v2757, 4
      %v2760 = vshll.u32 %v2568, 16
      %v2762 = vrot.slane %v2760, 5
      %v2763 = vsel %vm978, %v2758, %v2762
      %v2765 = vshrl.u32 %v2569, 16
      %v2767 = vrot.slane %v2765, 4
      %v2768 = vshll.u32 %v2569, 16
      %v2770 = vrot.slane %v2768, 5
      %v2771 = vor.u32 %v2767, %v2770
      %v2772 = vrot.slane %v2771, 4
      %v2774 = vshll.u32 %v2570, 16
      %v2776 = vrot.slane %v2774, 5
      %v2777 = vsel %vm978, %v2772, %v2776
      %v2778 = vshrl.u32 %v2570, 16
      %v2780 = vrot.slane %v2778, 4
      %v2781 = vor.u32 %v2780, %v2776
      %v2782 = vrot.slane %v2781, 4
      %v2784 = vshll.u32 %v2571, 16
      %v2786 = vrot.slane %v2784, 5
      %v2787 = vsel %vm978, %v2782, %v2786
      %v2789 = vshrl.u32 %v2572, 16
      %v2791 = vrot.slane %v2789, 4
      %v2792 = vshll.u32 %v2572, 16
      %v2794 = vrot.slane %v2792, 5
      %v2795 = vor.u32 %v2791, %v2794
      %v2796 = vrot.slane %v2795, 4
      %v2798 = vshll.u32 %v2573, 16
      %v2800 = vrot.slane %v2798, 5
      %v2801 = vsel %vm978, %v2796, %v2800
      %v2802 = vshrl.u32 %v2573, 16
      %v2804 = vrot.slane %v2802, 4
      %v2805 = vor.u32 %v2804, %v2800
      %v2806 = vrot.slane %v2805, 4
      %v2808 = vshll.u32 %v2574, 16
      %v2810 = vrot.slane %v2808, 5
      %v2811 = vsel %vm978, %v2806, %v2810
      %v2813 = vshrl.u32 %v2575, 16
      %v2815 = vrot.slane %v2813, 4
      %v2816 = vshll.u32 %v2575, 16
      %v2818 = vrot.slane %v2816, 5
      %v2819 = vor.u32 %v2815, %v2818
      %v2820 = vrot.slane %v2819, 4
      %v2822 = vshll.u32 %v2576, 16
      %v2824 = vrot.slane %v2822, 5
      %v2825 = vsel %vm978, %v2820, %v2824
      %v2826 = vshrl.u32 %v2576, 16
      %v2828 = vrot.slane %v2826, 4
      %v2829 = vor.u32 %v2828, %v2824
      %v2830 = vrot.slane %v2829, 4
      %v2832 = vshll.u32 %v2577, 16
      %v2834 = vrot.slane %v2832, 5
      %v2835 = vsel %vm978, %v2830, %v2834
      %v2837 = vshrl.u32 %v2578, 16
      %v2839 = vrot.slane %v2837, 4
      %v2840 = vshll.u32 %v2578, 16
      %v2842 = vrot.slane %v2840, 5
      %v2843 = vor.u32 %v2839, %v2842
      %v2844 = vrot.slane %v2843, 4
      %v2846 = vshll.u32 %v2579, 16
      %v2848 = vrot.slane %v2846, 5
      %v2849 = vsel %vm978, %v2844, %v2848
      %v2850 = vshrl.u32 %v2579, 16
      %v2852 = vrot.slane %v2850, 4
      %v2853 = vor.u32 %v2852, %v2848
      %v2854 = vrot.slane %v2853, 4
      %v2856 = vshll.u32 %v2580, 16
      %v2858 = vrot.slane %v2856, 5
      %v2859 = vsel %vm978, %v2854, %v2858
      %v2861 = vshrl.u32 %v2581, 16
      %v2863 = vrot.slane %v2861, 4
      %v2864 = vshll.u32 %v2581, 16
      %v2866 = vrot.slane %v2864, 5
      %v2867 = vor.u32 %v2863, %v2866
      %v2868 = vrot.slane %v2867, 4
      %v2870 = vshll.u32 %v2582, 16
      %v2872 = vrot.slane %v2870, 5
      %v2873 = vsel %vm978, %v2868, %v2872
      %v2874 = vshrl.u32 %v2582, 16
      %v2876 = vrot.slane %v2874, 4
      %v2877 = vor.u32 %v2876, %v2872
      %v2878 = vrot.slane %v2877, 4
      %v2880 = vshll.u32 %v2583, 16
      %v2882 = vrot.slane %v2880, 5
      %v2883 = vsel %vm978, %v2878, %v2882
      %v2885 = vshrl.u32 %v2584, 16
      %v2887 = vrot.slane %v2885, 4
      %v2888 = vshll.u32 %v2584, 16
      %v2890 = vrot.slane %v2888, 5
      %v2891 = vor.u32 %v2887, %v2890
      %v2892 = vrot.slane %v2891, 4
      %v2894 = vshll.u32 %v2585, 16
      %v2896 = vrot.slane %v2894, 5
      %v2897 = vsel %vm978, %v2892, %v2896
      %v2898 = vshrl.u32 %v2585, 16
      %v2900 = vrot.slane %v2898, 4
      %v2901 = vor.u32 %v2900, %v2896
      %v2902 = vrot.slane %v2901, 4
      %v2904 = vshll.u32 %v2586, 16
      %v2906 = vrot.slane %v2904, 5
      %v2907 = vsel %vm978, %v2902, %v2906
      %v2909 = vshrl.u32 %v2587, 16
      %v2911 = vrot.slane %v2909, 4
      %v2912 = vshll.u32 %v2587, 16
      %v2914 = vrot.slane %v2912, 5
      %v2915 = vor.u32 %v2911, %v2914
      %v2916 = vrot.slane %v2915, 4
      %v2918 = vshll.u32 %v2588, 16
      %v2920 = vrot.slane %v2918, 5
      %v2921 = vsel %vm978, %v2916, %v2920
      %v2922 = vshrl.u32 %v2588, 16
      %v2924 = vrot.slane %v2922, 4
      %v2925 = vor.u32 %v2924, %v2920
      %v2926 = vrot.slane %v2925, 4
      %v2928 = vshll.u32 %v2589, 16
      %v2930 = vrot.slane %v2928, 5
      %v2931 = vsel %vm978, %v2926, %v2930
      %v2933 = vshrl.u32 %v2590, 16
      %v2935 = vrot.slane %v2933, 4
      %v2936 = vshll.u32 %v2590, 16
      %v2938 = vrot.slane %v2936, 5
      %v2939 = vor.u32 %v2935, %v2938
      %v2940 = vrot.slane %v2939, 4
      %v2942 = vshll.u32 %v2591, 16
      %v2944 = vrot.slane %v2942, 5
      %v2945 = vsel %vm978, %v2940, %v2944
      %v2946 = vshrl.u32 %v2591, 16
      %v2948 = vrot.slane %v2946, 4
      %v2949 = vor.u32 %v2948, %v2944
      %v2950 = vrot.slane %v2949, 4
      %v2952 = vshll.u32 %v2592, 16
      %v2954 = vrot.slane %v2952, 5
      %v2955 = vsel %vm978, %v2950, %v2954
      %v2957 = vshrl.u32 %v2593, 16
      %v2959 = vrot.slane %v2957, 4
      %v2960 = vshll.u32 %v2593, 16
      %v2962 = vrot.slane %v2960, 5
      %v2963 = vor.u32 %v2959, %v2962
      %v2964 = vrot.slane %v2963, 4
      %v2966 = vshll.u32 %v2594, 16
      %v2968 = vrot.slane %v2966, 5
      %v2969 = vsel %vm978, %v2964, %v2968
      %v2970 = vshrl.u32 %v2594, 16
      %v2972 = vrot.slane %v2970, 4
      %v2973 = vor.u32 %v2972, %v2968
      %v2974 = vrot.slane %v2973, 4
      %v2976 = vshll.u32 %v2595, 16
      %v2978 = vrot.slane %v2976, 5
      %v2979 = vsel %vm978, %v2974, %v2978
      %s2980 = scalar_lea.vmem %s3, 112
      %v2981 = vld [vmem:[%s2980] sm:$0xf]
      %v2982 = vld [vmem:[%s2980 + $0x4] sm:$0xf]
      %v2983 = vld [vmem:[%s2980 + $0x8] sm:$0xf]
      %v2984 = vld [vmem:[%s2980 + $0xc] sm:$0xf]
      %v2985 = vld [vmem:[%s2980 + $0x10] sm:$0xf]
      %v2986 = vld [vmem:[%s2980 + $0x14] sm:$0xf]
      %v2987 = vld [vmem:[%s2980 + $0x18] sm:$0x7]
      %v2988 = vunpack.c.l.b16 %v2609
      %v2989 = vunpack.c.l.b16 %v2619
      %v2990 = vunpack.c.l.b16 %v2633
      %v2991 = vunpack.c.l.b16 %v2643
      %v2992 = vunpack.c.l.b16 %v2657
      %v2993 = vunpack.c.l.b16 %v2667
      %v2994 = vunpack.c.l.b16 %v2681
      %v2995 = vunpack.c.l.b16 %v2691
      %v2996 = vunpack.c.l.b16 %v2705
      %v2997 = vunpack.c.l.b16 %v2715
      %v2998 = vunpack.c.l.b16 %v2729
      %v2999 = vunpack.c.l.b16 %v2739
      %v3000 = vunpack.c.l.b16 %v2753
      %v3001 = vunpack.c.l.b16 %v2763
      %v3002 = vunpack.c.l.b16 %v2777
      %v3003 = vunpack.c.l.b16 %v2787
      %v3004 = vunpack.c.l.b16 %v2801
      %v3005 = vunpack.c.l.b16 %v2811
      %v3006 = vunpack.c.l.b16 %v2825
      %v3007 = vunpack.c.l.b16 %v2835
      %v3008 = vunpack.c.l.b16 %v2849
      %v3009 = vunpack.c.l.b16 %v2859
      %v3010 = vunpack.c.l.b16 %v2873
      %v3011 = vunpack.c.l.b16 %v2883
      %v3012 = vunpack.c.l.b16 %v2897
      %v3013 = vunpack.c.l.b16 %v2907
      %v3014 = vunpack.c.l.b16 %v2921
      %v3015 = vunpack.c.l.b16 %v2931
      %v3016 = vunpack.c.l.b16 %v2945
      %v3017 = vunpack.c.l.b16 %v2955
      %v3018 = vunpack.c.l.b16 %v2969
      %v3019 = vunpack.c.l.b16 %v2979
      %v3020 = vpack.c.b16 %v2989, %v2988
      %v3021 = vpack.c.b16 %v2991, %v2990
      %v3022 = vpack.c.b16 %v2993, %v2992
      %v3023 = vpack.c.b16 %v2995, %v2994
      %v3024 = vpack.c.b16 %v2997, %v2996
      %v3025 = vpack.c.b16 %v2999, %v2998
      %v3026 = vpack.c.b16 %v3001, %v3000
      %v3027 = vpack.c.b16 %v3003, %v3002
      %v3028 = vpack.c.b16 %v3005, %v3004
      %v3029 = vpack.c.b16 %v3007, %v3006
      %v3030 = vpack.c.b16 %v3009, %v3008
      %v3031 = vpack.c.b16 %v3011, %v3010
      %v3032 = vpack.c.b16 %v3013, %v3012
      %v3033 = vpack.c.b16 %v3015, %v3014
      %v3034 = vpack.c.b16 %v3017, %v3016
      %v3035 = vpack.c.b16 %v3019, %v3018
      %v3043 = vunpack.c.l.b16 %v2981
      %v3044 = vunpack.c.l.b16 %v2982
      %v3045 = vunpack.c.l.b16 %v2983
      %v3046 = vunpack.c.l.b16 %v2984
      %v3047 = vunpack.c.l.b16 %v2985
      %v3048 = vunpack.c.l.b16 %v2986
      %v3049 = vunpack.c.l.b16 %v2987
      %v3050 = vpack.c.b16 %v3044, %v3043
      %v3051 = vpack.c.b16 %v3046, %v3045
      %v3052 = vpack.c.b16 %v3048, %v3047
      %v3053 = vpack.c.b16 %v3049, %v3049
      %v3058 = vsel %vm1440, %v3020, 0
      %v3061 = vsel %vm1440, %v3021, 0
      %v3064 = vsel %vm1440, %v3022, 0
      %v3067 = vsel %vm1440, %v3023, 0
      %v3070 = vsel %vm1440, %v3024, 0
      %v3073 = vsel %vm1440, %v3025, 0
      %v3076 = vsel %vm1440, %v3026, 0
      %v3079 = vsel %vm1440, %v3027, 0
      %v3082 = vsel %vm1440, %v3028, 0
      %v3085 = vsel %vm1440, %v3029, 0
      %v3088 = vsel %vm1440, %v3030, 0
      %v3091 = vsel %vm1440, %v3031, 0
      %v3094 = vsel %vm1440, %v3032, 0
      %v3097 = vsel %vm1440, %v3033, 0
      %v3100 = vsel %vm1440, %v3034, 0
      %v3103 = vsel %vm1440, %v3035, 0
      %v3106 = vsel %vm1489, %v3053, 0
      %3108 = vmatpush.bf16.msra.mxu0 0
      %3109 = vmatpush.bf16.msra.mxu0 0
      %3110 = vmatpush.bf16.msra.mxu0 0
      %3111 = vmatpush.bf16.msra.mxu0 0
      %3112 = vmatpush.bf16.msra.mxu0 %v3106
      %3113 = vmatpush.bf16.msra.mxu0 %v3052
      %3114 = vmatpush.bf16.msra.mxu0 %v3051
      %3115 = vmatpush.bf16.msra.mxu0 %v3050
      %3116 = vmatmul.bf16.gmra.mxu0 %v3058
      %v3117 = vpop.f32.mrf.mxu0
      %v3118 = vadd.f32 0.0, %v3117
      %v3119 = vpop.f32.mrf.mxu0
      %v3120 = vadd.f32 0.0, %v3119
      %3121 = vmatmul.bf16.gmra.mxu0 %v3061
      %v3122 = vpop.f32.mrf.mxu0
      %v3123 = vadd.f32 0.0, %v3122
      %v3124 = vpop.f32.mrf.mxu0
      %v3125 = vadd.f32 0.0, %v3124
      %3126 = vmatmul.bf16.gmra.mxu0 %v3064
      %v3127 = vpop.f32.mrf.mxu0
      %v3128 = vadd.f32 0.0, %v3127
      %v3129 = vpop.f32.mrf.mxu0
      %v3130 = vadd.f32 0.0, %v3129
      %3131 = vmatmul.bf16.gmra.mxu0 %v3067
      %v3132 = vpop.f32.mrf.mxu0
      %v3133 = vadd.f32 0.0, %v3132
      %v3134 = vpop.f32.mrf.mxu0
      %v3135 = vadd.f32 0.0, %v3134
      %3136 = vmatmul.bf16.gmra.mxu0 %v3070
      %v3137 = vpop.f32.mrf.mxu0
      %v3138 = vadd.f32 0.0, %v3137
      %v3139 = vpop.f32.mrf.mxu0
      %v3140 = vadd.f32 0.0, %v3139
      %3141 = vmatmul.bf16.gmra.mxu0 %v3073
      %v3142 = vpop.f32.mrf.mxu0
      %v3143 = vadd.f32 0.0, %v3142
      %v3144 = vpop.f32.mrf.mxu0
      %v3145 = vadd.f32 0.0, %v3144
      %3146 = vmatmul.bf16.gmra.mxu0 %v3076
      %v3147 = vpop.f32.mrf.mxu0
      %v3148 = vadd.f32 0.0, %v3147
      %v3149 = vpop.f32.mrf.mxu0
      %v3150 = vadd.f32 0.0, %v3149
      %3151 = vmatmul.bf16.gmra.mxu0 %v3079
      %v3152 = vpop.f32.mrf.mxu0
      %v3153 = vadd.f32 0.0, %v3152
      %v3154 = vpop.f32.mrf.mxu0
      %v3155 = vadd.f32 0.0, %v3154
      %3156 = vmatmul.bf16.gmra.mxu0 %v3082
      %v3157 = vpop.f32.mrf.mxu0
      %v3158 = vadd.f32 0.0, %v3157
      %v3159 = vpop.f32.mrf.mxu0
      %v3160 = vadd.f32 0.0, %v3159
      %3161 = vmatmul.bf16.gmra.mxu0 %v3085
      %v3162 = vpop.f32.mrf.mxu0
      %v3163 = vadd.f32 0.0, %v3162
      %v3164 = vpop.f32.mrf.mxu0
      %v3165 = vadd.f32 0.0, %v3164
      %3166 = vmatmul.bf16.gmra.mxu0 %v3088
      %v3167 = vpop.f32.mrf.mxu0
      %v3168 = vadd.f32 0.0, %v3167
      %v3169 = vpop.f32.mrf.mxu0
      %v3170 = vadd.f32 0.0, %v3169
      %3171 = vmatmul.bf16.gmra.mxu0 %v3091
      %v3172 = vpop.f32.mrf.mxu0
      %v3173 = vadd.f32 0.0, %v3172
      %v3174 = vpop.f32.mrf.mxu0
      %v3175 = vadd.f32 0.0, %v3174
      %3176 = vmatmul.bf16.gmra.mxu0 %v3094
      %v3177 = vpop.f32.mrf.mxu0
      %v3178 = vadd.f32 0.0, %v3177
      %v3179 = vpop.f32.mrf.mxu0
      %v3180 = vadd.f32 0.0, %v3179
      %3181 = vmatmul.bf16.gmra.mxu0 %v3097
      %v3182 = vpop.f32.mrf.mxu0
      %v3183 = vadd.f32 0.0, %v3182
      %v3184 = vpop.f32.mrf.mxu0
      %v3185 = vadd.f32 0.0, %v3184
      %3186 = vmatmul.bf16.gmra.mxu0 %v3100
      %v3187 = vpop.f32.mrf.mxu0
      %v3188 = vadd.f32 0.0, %v3187
      %v3189 = vpop.f32.mrf.mxu0
      %v3190 = vadd.f32 0.0, %v3189
      %3191 = vmatmul.bf16.gmra.mxu0 %v3103
      %v3192 = vpop.f32.mrf.mxu0
      %v3193 = vadd.f32 0.0, %v3192
      %v3194 = vpop.f32.mrf.mxu0
      %v3195 = vadd.f32 0.0, %v3194
      %3196 = vdwg.mxu0
      %v3197 = vadd.f32 %v2516, %v3118
      %v3198 = vadd.f32 %v2517, %v3120
      %v3199 = vadd.f32 %v2518, %v3123
      %v3200 = vadd.f32 %v2519, %v3125
      %v3201 = vadd.f32 %v2520, %v3128
      %v3202 = vadd.f32 %v2521, %v3130
      %v3203 = vadd.f32 %v2522, %v3133
      %v3204 = vadd.f32 %v2523, %v3135
      %v3205 = vadd.f32 %v2524, %v3138
      %v3206 = vadd.f32 %v2525, %v3140
      %v3207 = vadd.f32 %v2526, %v3143
      %v3208 = vadd.f32 %v2527, %v3145
      %v3209 = vadd.f32 %v2528, %v3148
      %v3210 = vadd.f32 %v2529, %v3150
      %v3211 = vadd.f32 %v2530, %v3153
      %v3212 = vadd.f32 %v2531, %v3155
      %v3213 = vadd.f32 %v2532, %v3158
      %v3214 = vadd.f32 %v2533, %v3160
      %v3215 = vadd.f32 %v2534, %v3163
      %v3216 = vadd.f32 %v2535, %v3165
      %v3217 = vadd.f32 %v2536, %v3168
      %v3218 = vadd.f32 %v2537, %v3170
      %v3219 = vadd.f32 %v2538, %v3173
      %v3220 = vadd.f32 %v2539, %v3175
      %v3221 = vadd.f32 %v2540, %v3178
      %v3222 = vadd.f32 %v2541, %v3180
      %v3223 = vadd.f32 %v2542, %v3183
      %v3224 = vadd.f32 %v2543, %v3185
      %v3225 = vadd.f32 %v2544, %v3188
      %v3226 = vadd.f32 %v2545, %v3190
      %v3227 = vadd.f32 %v2546, %v3193
      %v3228 = vadd.f32 %v2547, %v3195
      %v3229 = vld [vmem:[%s806] sm:$0xe]
      %v3230 = vld [vmem:[%s806 + $0xc] sm:$0xe]
      %v3231 = vld [vmem:[%s806 + $0x18] sm:$0xe]
      %v3232 = vld [vmem:[%s806 + $0x24] sm:$0xe]
      %v3233 = vld [vmem:[%s806 + $0x30] sm:$0xe]
      %v3234 = vld [vmem:[%s806 + $0x3c] sm:$0xe]
      %v3235 = vld [vmem:[%s806 + $0x48] sm:$0xe]
      %v3236 = vld [vmem:[%s806 + $0x54] sm:$0xe]
      %v3237 = vld [vmem:[%s806 + $0x60] sm:$0xe]
      %v3238 = vld [vmem:[%s806 + $0x6c] sm:$0xe]
      %v3239 = vld [vmem:[%s806 + $0x78] sm:$0xe]
      %v3240 = vld [vmem:[%s806 + $0x84] sm:$0xe]
      %v3241 = vld [vmem:[%s806 + $0x90] sm:$0xe]
      %v3242 = vld [vmem:[%s806 + $0x9c] sm:$0xe]
      %v3243 = vld [vmem:[%s806 + $0xa8] sm:$0xe]
      %v3244 = vld [vmem:[%s806 + $0xb4] sm:$0xe]
      %v3293 = vrot.slane %v3229, 5
      %v3294 = vrot.slane %v3293, 4
      %v3295 = vrot.slane %v2549, 5
      %v3296 = vsel %vm1873, %v3294, %v3295
      %v3297 = vrot.slane %v3295, 4
      %v3298 = vrot.slane %v2550, 5
      %v3299 = vsel %vm1873, %v3297, %v3298
      %v3300 = vrot.slane %v3230, 5
      %v3301 = vrot.slane %v3300, 4
      %v3302 = vrot.slane %v2552, 5
      %v3303 = vsel %vm1873, %v3301, %v3302
      %v3304 = vrot.slane %v3302, 4
      %v3305 = vrot.slane %v2553, 5
      %v3306 = vsel %vm1873, %v3304, %v3305
      %v3307 = vrot.slane %v3231, 5
      %v3308 = vrot.slane %v3307, 4
      %v3309 = vrot.slane %v2555, 5
      %v3310 = vsel %vm1873, %v3308, %v3309
      %v3311 = vrot.slane %v3309, 4
      %v3312 = vrot.slane %v2556, 5
      %v3313 = vsel %vm1873, %v3311, %v3312
      %v3314 = vrot.slane %v3232, 5
      %v3315 = vrot.slane %v3314, 4
      %v3316 = vrot.slane %v2558, 5
      %v3317 = vsel %vm1873, %v3315, %v3316
      %v3318 = vrot.slane %v3316, 4
      %v3319 = vrot.slane %v2559, 5
      %v3320 = vsel %vm1873, %v3318, %v3319
      %v3321 = vrot.slane %v3233, 5
      %v3322 = vrot.slane %v3321, 4
      %v3323 = vrot.slane %v2561, 5
      %v3324 = vsel %vm1873, %v3322, %v3323
      %v3325 = vrot.slane %v3323, 4
      %v3326 = vrot.slane %v2562, 5
      %v3327 = vsel %vm1873, %v3325, %v3326
      %v3328 = vrot.slane %v3234, 5
      %v3329 = vrot.slane %v3328, 4
      %v3330 = vrot.slane %v2564, 5
      %v3331 = vsel %vm1873, %v3329, %v3330
      %v3332 = vrot.slane %v3330, 4
      %v3333 = vrot.slane %v2565, 5
      %v3334 = vsel %vm1873, %v3332, %v3333
      %v3335 = vrot.slane %v3235, 5
      %v3336 = vrot.slane %v3335, 4
      %v3337 = vrot.slane %v2567, 5
      %v3338 = vsel %vm1873, %v3336, %v3337
      %v3339 = vrot.slane %v3337, 4
      %v3340 = vrot.slane %v2568, 5
      %v3341 = vsel %vm1873, %v3339, %v3340
      %v3342 = vrot.slane %v3236, 5
      %v3343 = vrot.slane %v3342, 4
      %v3344 = vrot.slane %v2570, 5
      %v3345 = vsel %vm1873, %v3343, %v3344
      %v3346 = vrot.slane %v3344, 4
      %v3347 = vrot.slane %v2571, 5
      %v3348 = vsel %vm1873, %v3346, %v3347
      %v3349 = vrot.slane %v3237, 5
      %v3350 = vrot.slane %v3349, 4
      %v3351 = vrot.slane %v2573, 5
      %v3352 = vsel %vm1873, %v3350, %v3351
      %v3353 = vrot.slane %v3351, 4
      %v3354 = vrot.slane %v2574, 5
      %v3355 = vsel %vm1873, %v3353, %v3354
      %v3356 = vrot.slane %v3238, 5
      %v3357 = vrot.slane %v3356, 4
      %v3358 = vrot.slane %v2576, 5
      %v3359 = vsel %vm1873, %v3357, %v3358
      %v3360 = vrot.slane %v3358, 4
      %v3361 = vrot.slane %v2577, 5
      %v3362 = vsel %vm1873, %v3360, %v3361
      %v3363 = vrot.slane %v3239, 5
      %v3364 = vrot.slane %v3363, 4
      %v3365 = vrot.slane %v2579, 5
      %v3366 = vsel %vm1873, %v3364, %v3365
      %v3367 = vrot.slane %v3365, 4
      %v3368 = vrot.slane %v2580, 5
      %v3369 = vsel %vm1873, %v3367, %v3368
      %v3370 = vrot.slane %v3240, 5
      %v3371 = vrot.slane %v3370, 4
      %v3372 = vrot.slane %v2582, 5
      %v3373 = vsel %vm1873, %v3371, %v3372
      %v3374 = vrot.slane %v3372, 4
      %v3375 = vrot.slane %v2583, 5
      %v3376 = vsel %vm1873, %v3374, %v3375
      %v3377 = vrot.slane %v3241, 5
      %v3378 = vrot.slane %v3377, 4
      %v3379 = vrot.slane %v2585, 5
      %v3380 = vsel %vm1873, %v3378, %v3379
      %v3381 = vrot.slane %v3379, 4
      %v3382 = vrot.slane %v2586, 5
      %v3383 = vsel %vm1873, %v3381, %v3382
      %v3384 = vrot.slane %v3242, 5
      %v3385 = vrot.slane %v3384, 4
      %v3386 = vrot.slane %v2588, 5
      %v3387 = vsel %vm1873, %v3385, %v3386
      %v3388 = vrot.slane %v3386, 4
      %v3389 = vrot.slane %v2589, 5
      %v3390 = vsel %vm1873, %v3388, %v3389
      %v3391 = vrot.slane %v3243, 5
      %v3392 = vrot.slane %v3391, 4
      %v3393 = vrot.slane %v2591, 5
      %v3394 = vsel %vm1873, %v3392, %v3393
      %v3395 = vrot.slane %v3393, 4
      %v3396 = vrot.slane %v2592, 5
      %v3397 = vsel %vm1873, %v3395, %v3396
      %v3398 = vrot.slane %v3244, 5
      %v3399 = vrot.slane %v3398, 4
      %v3400 = vrot.slane %v2594, 5
      %v3401 = vsel %vm1873, %v3399, %v3400
      %v3402 = vrot.slane %v3400, 4
      %v3403 = vrot.slane %v2595, 5
      %v3404 = vsel %vm1873, %v3402, %v3403
      %s3405 = scalar_lea.vmem %s3, 140
      %v3406 = vld [vmem:[%s3405] sm:$0xf]
      %v3407 = vld [vmem:[%s3405 + $0x4] sm:$0xf]
      %v3408 = vld [vmem:[%s3405 + $0x8] sm:$0xf]
      %v3409 = vld [vmem:[%s3405 + $0xc] sm:$0xf]
      %v3410 = vld [vmem:[%s3405 + $0x10] sm:$0xf]
      %v3411 = vld [vmem:[%s3405 + $0x14] sm:$0xf]
      %v3412 = vld [vmem:[%s3405 + $0x18] sm:$0x7]
      %v3413 = vunpack.c.l.b16 %v3296
      %v3414 = vunpack.c.l.b16 %v3299
      %v3415 = vunpack.c.l.b16 %v3303
      %v3416 = vunpack.c.l.b16 %v3306
      %v3417 = vunpack.c.l.b16 %v3310
      %v3418 = vunpack.c.l.b16 %v3313
      %v3419 = vunpack.c.l.b16 %v3317
      %v3420 = vunpack.c.l.b16 %v3320
      %v3421 = vunpack.c.l.b16 %v3324
      %v3422 = vunpack.c.l.b16 %v3327
      %v3423 = vunpack.c.l.b16 %v3331
      %v3424 = vunpack.c.l.b16 %v3334
      %v3425 = vunpack.c.l.b16 %v3338
      %v3426 = vunpack.c.l.b16 %v3341
      %v3427 = vunpack.c.l.b16 %v3345
      %v3428 = vunpack.c.l.b16 %v3348
      %v3429 = vunpack.c.l.b16 %v3352
      %v3430 = vunpack.c.l.b16 %v3355
      %v3431 = vunpack.c.l.b16 %v3359
      %v3432 = vunpack.c.l.b16 %v3362
      %v3433 = vunpack.c.l.b16 %v3366
      %v3434 = vunpack.c.l.b16 %v3369
      %v3435 = vunpack.c.l.b16 %v3373
      %v3436 = vunpack.c.l.b16 %v3376
      %v3437 = vunpack.c.l.b16 %v3380
      %v3438 = vunpack.c.l.b16 %v3383
      %v3439 = vunpack.c.l.b16 %v3387
      %v3440 = vunpack.c.l.b16 %v3390
      %v3441 = vunpack.c.l.b16 %v3394
      %v3442 = vunpack.c.l.b16 %v3397
      %v3443 = vunpack.c.l.b16 %v3401
      %v3444 = vunpack.c.l.b16 %v3404
      %v3445 = vpack.c.b16 %v3414, %v3413
      %v3446 = vpack.c.b16 %v3416, %v3415
      %v3447 = vpack.c.b16 %v3418, %v3417
      %v3448 = vpack.c.b16 %v3420, %v3419
      %v3449 = vpack.c.b16 %v3422, %v3421
      %v3450 = vpack.c.b16 %v3424, %v3423
      %v3451 = vpack.c.b16 %v3426, %v3425
      %v3452 = vpack.c.b16 %v3428, %v3427
      %v3453 = vpack.c.b16 %v3430, %v3429
      %v3454 = vpack.c.b16 %v3432, %v3431
      %v3455 = vpack.c.b16 %v3434, %v3433
      %v3456 = vpack.c.b16 %v3436, %v3435
      %v3457 = vpack.c.b16 %v3438, %v3437
      %v3458 = vpack.c.b16 %v3440, %v3439
      %v3459 = vpack.c.b16 %v3442, %v3441
      %v3460 = vpack.c.b16 %v3444, %v3443
      %v3468 = vunpack.c.l.b16 %v3406
      %v3469 = vunpack.c.l.b16 %v3407
      %v3470 = vunpack.c.l.b16 %v3408
      %v3471 = vunpack.c.l.b16 %v3409
      %v3472 = vunpack.c.l.b16 %v3410
      %v3473 = vunpack.c.l.b16 %v3411
      %v3474 = vunpack.c.l.b16 %v3412
      %v3475 = vpack.c.b16 %v3469, %v3468
      %v3476 = vpack.c.b16 %v3471, %v3470
      %v3477 = vpack.c.b16 %v3473, %v3472
      %v3478 = vpack.c.b16 %v3474, %v3474
      %v3483 = vsel %vm1440, %v3445, 0
      %v3486 = vsel %vm1440, %v3446, 0
      %v3489 = vsel %vm1440, %v3447, 0
      %v3492 = vsel %vm1440, %v3448, 0
      %v3495 = vsel %vm1440, %v3449, 0
      %v3498 = vsel %vm1440, %v3450, 0
      %v3501 = vsel %vm1440, %v3451, 0
      %v3504 = vsel %vm1440, %v3452, 0
      %v3507 = vsel %vm1440, %v3453, 0
      %v3510 = vsel %vm1440, %v3454, 0
      %v3513 = vsel %vm1440, %v3455, 0
      %v3516 = vsel %vm1440, %v3456, 0
      %v3519 = vsel %vm1440, %v3457, 0
      %v3522 = vsel %vm1440, %v3458, 0
      %v3525 = vsel %vm1440, %v3459, 0
      %v3528 = vsel %vm1440, %v3460, 0
      %v3531 = vsel %vm1489, %v3478, 0
      %3533 = vmatpush.bf16.msra.mxu0 0
      %3534 = vmatpush.bf16.msra.mxu0 0
      %3535 = vmatpush.bf16.msra.mxu0 0
      %3536 = vmatpush.bf16.msra.mxu0 0
      %3537 = vmatpush.bf16.msra.mxu0 %v3531
      %3538 = vmatpush.bf16.msra.mxu0 %v3477
      %3539 = vmatpush.bf16.msra.mxu0 %v3476
      %3540 = vmatpush.bf16.msra.mxu0 %v3475
      %3541 = vmatmul.bf16.gmra.mxu0 %v3483
      %v3542 = vpop.f32.mrf.mxu0
      %v3543 = vadd.f32 0.0, %v3542
      %v3544 = vpop.f32.mrf.mxu0
      %v3545 = vadd.f32 0.0, %v3544
      %3546 = vmatmul.bf16.gmra.mxu0 %v3486
      %v3547 = vpop.f32.mrf.mxu0
      %v3548 = vadd.f32 0.0, %v3547
      %v3549 = vpop.f32.mrf.mxu0
      %v3550 = vadd.f32 0.0, %v3549
      %3551 = vmatmul.bf16.gmra.mxu0 %v3489
      %v3552 = vpop.f32.mrf.mxu0
      %v3553 = vadd.f32 0.0, %v3552
      %v3554 = vpop.f32.mrf.mxu0
      %v3555 = vadd.f32 0.0, %v3554
      %3556 = vmatmul.bf16.gmra.mxu0 %v3492
      %v3557 = vpop.f32.mrf.mxu0
      %v3558 = vadd.f32 0.0, %v3557
      %v3559 = vpop.f32.mrf.mxu0
      %v3560 = vadd.f32 0.0, %v3559
      %3561 = vmatmul.bf16.gmra.mxu0 %v3495
      %v3562 = vpop.f32.mrf.mxu0
      %v3563 = vadd.f32 0.0, %v3562
      %v3564 = vpop.f32.mrf.mxu0
      %v3565 = vadd.f32 0.0, %v3564
      %3566 = vmatmul.bf16.gmra.mxu0 %v3498
      %v3567 = vpop.f32.mrf.mxu0
      %v3568 = vadd.f32 0.0, %v3567
      %v3569 = vpop.f32.mrf.mxu0
      %v3570 = vadd.f32 0.0, %v3569
      %3571 = vmatmul.bf16.gmra.mxu0 %v3501
      %v3572 = vpop.f32.mrf.mxu0
      %v3573 = vadd.f32 0.0, %v3572
      %v3574 = vpop.f32.mrf.mxu0
      %v3575 = vadd.f32 0.0, %v3574
      %3576 = vmatmul.bf16.gmra.mxu0 %v3504
      %v3577 = vpop.f32.mrf.mxu0
      %v3578 = vadd.f32 0.0, %v3577
      %v3579 = vpop.f32.mrf.mxu0
      %v3580 = vadd.f32 0.0, %v3579
      %3581 = vmatmul.bf16.gmra.mxu0 %v3507
      %v3582 = vpop.f32.mrf.mxu0
      %v3583 = vadd.f32 0.0, %v3582
      %v3584 = vpop.f32.mrf.mxu0
      %v3585 = vadd.f32 0.0, %v3584
      %3586 = vmatmul.bf16.gmra.mxu0 %v3510
      %v3587 = vpop.f32.mrf.mxu0
      %v3588 = vadd.f32 0.0, %v3587
      %v3589 = vpop.f32.mrf.mxu0
      %v3590 = vadd.f32 0.0, %v3589
      %3591 = vmatmul.bf16.gmra.mxu0 %v3513
      %v3592 = vpop.f32.mrf.mxu0
      %v3593 = vadd.f32 0.0, %v3592
      %v3594 = vpop.f32.mrf.mxu0
      %v3595 = vadd.f32 0.0, %v3594
      %3596 = vmatmul.bf16.gmra.mxu0 %v3516
      %v3597 = vpop.f32.mrf.mxu0
      %v3598 = vadd.f32 0.0, %v3597
      %v3599 = vpop.f32.mrf.mxu0
      %v3600 = vadd.f32 0.0, %v3599
      %3601 = vmatmul.bf16.gmra.mxu0 %v3519
      %v3602 = vpop.f32.mrf.mxu0
      %v3603 = vadd.f32 0.0, %v3602
      %v3604 = vpop.f32.mrf.mxu0
      %v3605 = vadd.f32 0.0, %v3604
      %3606 = vmatmul.bf16.gmra.mxu0 %v3522
      %v3607 = vpop.f32.mrf.mxu0
      %v3608 = vadd.f32 0.0, %v3607
      %v3609 = vpop.f32.mrf.mxu0
      %v3610 = vadd.f32 0.0, %v3609
      %3611 = vmatmul.bf16.gmra.mxu0 %v3525
      %v3612 = vpop.f32.mrf.mxu0
      %v3613 = vadd.f32 0.0, %v3612
      %v3614 = vpop.f32.mrf.mxu0
      %v3615 = vadd.f32 0.0, %v3614
      %3616 = vmatmul.bf16.gmra.mxu0 %v3528
      %v3617 = vpop.f32.mrf.mxu0
      %v3618 = vadd.f32 0.0, %v3617
      %v3619 = vpop.f32.mrf.mxu0
      %v3620 = vadd.f32 0.0, %v3619
      %3621 = vdwg.mxu0
      %v3622 = vadd.f32 %v3197, %v3543
      %v3623 = vadd.f32 %v3198, %v3545
      %v3624 = vadd.f32 %v3199, %v3548
      %v3625 = vadd.f32 %v3200, %v3550
      %v3626 = vadd.f32 %v3201, %v3553
      %v3627 = vadd.f32 %v3202, %v3555
      %v3628 = vadd.f32 %v3203, %v3558
      %v3629 = vadd.f32 %v3204, %v3560
      %v3630 = vadd.f32 %v3205, %v3563
      %v3631 = vadd.f32 %v3206, %v3565
      %v3632 = vadd.f32 %v3207, %v3568
      %v3633 = vadd.f32 %v3208, %v3570
      %v3634 = vadd.f32 %v3209, %v3573
      %v3635 = vadd.f32 %v3210, %v3575
      %v3636 = vadd.f32 %v3211, %v3578
      %v3637 = vadd.f32 %v3212, %v3580
      %v3638 = vadd.f32 %v3213, %v3583
      %v3639 = vadd.f32 %v3214, %v3585
      %v3640 = vadd.f32 %v3215, %v3588
      %v3641 = vadd.f32 %v3216, %v3590
      %v3642 = vadd.f32 %v3217, %v3593
      %v3643 = vadd.f32 %v3218, %v3595
      %v3644 = vadd.f32 %v3219, %v3598
      %v3645 = vadd.f32 %v3220, %v3600
      %v3646 = vadd.f32 %v3221, %v3603
      %v3647 = vadd.f32 %v3222, %v3605
      %v3648 = vadd.f32 %v3223, %v3608
      %v3649 = vadd.f32 %v3224, %v3610
      %v3650 = vadd.f32 %v3225, %v3613
      %v3651 = vadd.f32 %v3226, %v3615
      %v3652 = vadd.f32 %v3227, %v3618
      %v3653 = vadd.f32 %v3228, %v3620
      %s3654 = scalar_lea.vmem [#allocation2], 24
      %v3655 = vld [vmem:[%s3654] sm:$0xf]
      %v3656 = vld [vmem:[%s3654 + $0x4] sm:$0xf]
      %v3657 = vld [vmem:[%s3654 + $0xc] sm:$0xf]
      %v3658 = vld [vmem:[%s3654 + $0x10] sm:$0xf]
      %v3659 = vld [vmem:[%s3654 + $0x18] sm:$0xf]
      %v3660 = vld [vmem:[%s3654 + $0x1c] sm:$0xf]
      %v3661 = vld [vmem:[%s3654 + $0x24] sm:$0xf]
      %v3662 = vld [vmem:[%s3654 + $0x28] sm:$0xf]
      %v3663 = vld [vmem:[%s3654 + $0x30] sm:$0xf]
      %v3664 = vld [vmem:[%s3654 + $0x34] sm:$0xf]
      %v3665 = vld [vmem:[%s3654 + $0x3c] sm:$0xf]
      %v3666 = vld [vmem:[%s3654 + $0x40] sm:$0xf]
      %v3667 = vld [vmem:[%s3654 + $0x48] sm:$0xf]
      %v3668 = vld [vmem:[%s3654 + $0x4c] sm:$0xf]
      %v3669 = vld [vmem:[%s3654 + $0x54] sm:$0xf]
      %v3670 = vld [vmem:[%s3654 + $0x58] sm:$0xf]
      %v3671 = vld [vmem:[%s3654 + $0x60] sm:$0xf]
      %v3672 = vld [vmem:[%s3654 + $0x64] sm:$0xf]
      %v3673 = vld [vmem:[%s3654 + $0x6c] sm:$0xf]
      %v3674 = vld [vmem:[%s3654 + $0x70] sm:$0xf]
      %v3675 = vld [vmem:[%s3654 + $0x78] sm:$0xf]
      %v3676 = vld [vmem:[%s3654 + $0x7c] sm:$0xf]
      %v3677 = vld [vmem:[%s3654 + $0x84] sm:$0xf]
      %v3678 = vld [vmem:[%s3654 + $0x88] sm:$0xf]
      %v3679 = vld [vmem:[%s3654 + $0x90] sm:$0xf]
      %v3680 = vld [vmem:[%s3654 + $0x94] sm:$0xf]
      %v3681 = vld [vmem:[%s3654 + $0x9c] sm:$0xf]
      %v3682 = vld [vmem:[%s3654 + $0xa0] sm:$0xf]
      %v3683 = vld [vmem:[%s3654 + $0xa8] sm:$0xf]
      %v3684 = vld [vmem:[%s3654 + $0xac] sm:$0xf]
      %v3685 = vld [vmem:[%s3654 + $0xb4] sm:$0xf]
      %v3686 = vld [vmem:[%s3654 + $0xb8] sm:$0xf]
      %s3687 = scalar_lea.vmem %s3, 168
      %v3688 = vld [vmem:[%s3687] sm:$0xf]
      %v3689 = vld [vmem:[%s3687 + $0x4] sm:$0xf]
      %v3690 = vld [vmem:[%s3687 + $0x8] sm:$0xf]
      %v3691 = vld [vmem:[%s3687 + $0xc] sm:$0xf]
      %v3692 = vld [vmem:[%s3687 + $0x10] sm:$0xf]
      %v3693 = vld [vmem:[%s3687 + $0x14] sm:$0xf]
      %v3694 = vld [vmem:[%s3687 + $0x18] sm:$0x7]
      %v3727 = vunpack.c.l.b16 %v3655
      %v3728 = vunpack.c.l.b16 %v3656
      %v3729 = vunpack.c.l.b16 %v3657
      %v3730 = vunpack.c.l.b16 %v3658
      %v3731 = vunpack.c.l.b16 %v3659
      %v3732 = vunpack.c.l.b16 %v3660
      %v3733 = vunpack.c.l.b16 %v3661
      %v3734 = vunpack.c.l.b16 %v3662
      %v3735 = vunpack.c.l.b16 %v3663
      %v3736 = vunpack.c.l.b16 %v3664
      %v3737 = vunpack.c.l.b16 %v3665
      %v3738 = vunpack.c.l.b16 %v3666
      %v3739 = vunpack.c.l.b16 %v3667
      %v3740 = vunpack.c.l.b16 %v3668
      %v3741 = vunpack.c.l.b16 %v3669
      %v3742 = vunpack.c.l.b16 %v3670
      %v3743 = vunpack.c.l.b16 %v3671
      %v3744 = vunpack.c.l.b16 %v3672
      %v3745 = vunpack.c.l.b16 %v3673
      %v3746 = vunpack.c.l.b16 %v3674
      %v3747 = vunpack.c.l.b16 %v3675
      %v3748 = vunpack.c.l.b16 %v3676
      %v3749 = vunpack.c.l.b16 %v3677
      %v3750 = vunpack.c.l.b16 %v3678
      %v3751 = vunpack.c.l.b16 %v3679
      %v3752 = vunpack.c.l.b16 %v3680
      %v3753 = vunpack.c.l.b16 %v3681
      %v3754 = vunpack.c.l.b16 %v3682
      %v3755 = vunpack.c.l.b16 %v3683
      %v3756 = vunpack.c.l.b16 %v3684
      %v3757 = vunpack.c.l.b16 %v3685
      %v3758 = vunpack.c.l.b16 %v3686
      %v3759 = vpack.c.b16 %v3728, %v3727
      %v3760 = vpack.c.b16 %v3730, %v3729
      %v3761 = vpack.c.b16 %v3732, %v3731
      %v3762 = vpack.c.b16 %v3734, %v3733
      %v3763 = vpack.c.b16 %v3736, %v3735
      %v3764 = vpack.c.b16 %v3738, %v3737
      %v3765 = vpack.c.b16 %v3740, %v3739
      %v3766 = vpack.c.b16 %v3742, %v3741
      %v3767 = vpack.c.b16 %v3744, %v3743
      %v3768 = vpack.c.b16 %v3746, %v3745
      %v3769 = vpack.c.b16 %v3748, %v3747
      %v3770 = vpack.c.b16 %v3750, %v3749
      %v3771 = vpack.c.b16 %v3752, %v3751
      %v3772 = vpack.c.b16 %v3754, %v3753
      %v3773 = vpack.c.b16 %v3756, %v3755
      %v3774 = vpack.c.b16 %v3758, %v3757
      %v3782 = vunpack.c.l.b16 %v3688
      %v3783 = vunpack.c.l.b16 %v3689
      %v3784 = vunpack.c.l.b16 %v3690
      %v3785 = vunpack.c.l.b16 %v3691
      %v3786 = vunpack.c.l.b16 %v3692
      %v3787 = vunpack.c.l.b16 %v3693
      %v3788 = vunpack.c.l.b16 %v3694
      %v3789 = vpack.c.b16 %v3783, %v3782
      %v3790 = vpack.c.b16 %v3785, %v3784
      %v3791 = vpack.c.b16 %v3787, %v3786
      %v3792 = vpack.c.b16 %v3788, %v3788
      %v3797 = vsel %vm1440, %v3759, 0
      %v3800 = vsel %vm1440, %v3760, 0
      %v3803 = vsel %vm1440, %v3761, 0
      %v3806 = vsel %vm1440, %v3762, 0
      %v3809 = vsel %vm1440, %v3763, 0
      %v3812 = vsel %vm1440, %v3764, 0
      %v3815 = vsel %vm1440, %v3765, 0
      %v3818 = vsel %vm1440, %v3766, 0
      %v3821 = vsel %vm1440, %v3767, 0
      %v3824 = vsel %vm1440, %v3768, 0
      %v3827 = vsel %vm1440, %v3769, 0
      %v3830 = vsel %vm1440, %v3770, 0
      %v3833 = vsel %vm1440, %v3771, 0
      %v3836 = vsel %vm1440, %v3772, 0
      %v3839 = vsel %vm1440, %v3773, 0
      %v3842 = vsel %vm1440, %v3774, 0
      %v3845 = vsel %vm1489, %v3792, 0
      %3847 = vmatpush.bf16.msra.mxu0 0
      %3848 = vmatpush.bf16.msra.mxu0 0
      %3849 = vmatpush.bf16.msra.mxu0 0
      %3850 = vmatpush.bf16.msra.mxu0 0
      %3851 = vmatpush.bf16.msra.mxu0 %v3845
      %3852 = vmatpush.bf16.msra.mxu0 %v3791
      %3853 = vmatpush.bf16.msra.mxu0 %v3790
      %3854 = vmatpush.bf16.msra.mxu0 %v3789
      %3855 = vmatmul.bf16.gmra.mxu0 %v3797
      %v3856 = vpop.f32.mrf.mxu0
      %v3857 = vadd.f32 0.0, %v3856
      %v3858 = vpop.f32.mrf.mxu0
      %v3859 = vadd.f32 0.0, %v3858
      %3860 = vmatmul.bf16.gmra.mxu0 %v3800
      %v3861 = vpop.f32.mrf.mxu0
      %v3862 = vadd.f32 0.0, %v3861
      %v3863 = vpop.f32.mrf.mxu0
      %v3864 = vadd.f32 0.0, %v3863
      %3865 = vmatmul.bf16.gmra.mxu0 %v3803
      %v3866 = vpop.f32.mrf.mxu0
      %v3867 = vadd.f32 0.0, %v3866
      %v3868 = vpop.f32.mrf.mxu0
      %v3869 = vadd.f32 0.0, %v3868
      %3870 = vmatmul.bf16.gmra.mxu0 %v3806
      %v3871 = vpop.f32.mrf.mxu0
      %v3872 = vadd.f32 0.0, %v3871
      %v3873 = vpop.f32.mrf.mxu0
      %v3874 = vadd.f32 0.0, %v3873
      %3875 = vmatmul.bf16.gmra.mxu0 %v3809
      %v3876 = vpop.f32.mrf.mxu0
      %v3877 = vadd.f32 0.0, %v3876
      %v3878 = vpop.f32.mrf.mxu0
      %v3879 = vadd.f32 0.0, %v3878
      %3880 = vmatmul.bf16.gmra.mxu0 %v3812
      %v3881 = vpop.f32.mrf.mxu0
      %v3882 = vadd.f32 0.0, %v3881
      %v3883 = vpop.f32.mrf.mxu0
      %v3884 = vadd.f32 0.0, %v3883
      %3885 = vmatmul.bf16.gmra.mxu0 %v3815
      %v3886 = vpop.f32.mrf.mxu0
      %v3887 = vadd.f32 0.0, %v3886
      %v3888 = vpop.f32.mrf.mxu0
      %v3889 = vadd.f32 0.0, %v3888
      %3890 = vmatmul.bf16.gmra.mxu0 %v3818
      %v3891 = vpop.f32.mrf.mxu0
      %v3892 = vadd.f32 0.0, %v3891
      %v3893 = vpop.f32.mrf.mxu0
      %v3894 = vadd.f32 0.0, %v3893
      %3895 = vmatmul.bf16.gmra.mxu0 %v3821
      %v3896 = vpop.f32.mrf.mxu0
      %v3897 = vadd.f32 0.0, %v3896
      %v3898 = vpop.f32.mrf.mxu0
      %v3899 = vadd.f32 0.0, %v3898
      %3900 = vmatmul.bf16.gmra.mxu0 %v3824
      %v3901 = vpop.f32.mrf.mxu0
      %v3902 = vadd.f32 0.0, %v3901
      %v3903 = vpop.f32.mrf.mxu0
      %v3904 = vadd.f32 0.0, %v3903
      %3905 = vmatmul.bf16.gmra.mxu0 %v3827
      %v3906 = vpop.f32.mrf.mxu0
      %v3907 = vadd.f32 0.0, %v3906
      %v3908 = vpop.f32.mrf.mxu0
      %v3909 = vadd.f32 0.0, %v3908
      %3910 = vmatmul.bf16.gmra.mxu0 %v3830
      %v3911 = vpop.f32.mrf.mxu0
      %v3912 = vadd.f32 0.0, %v3911
      %v3913 = vpop.f32.mrf.mxu0
      %v3914 = vadd.f32 0.0, %v3913
      %3915 = vmatmul.bf16.gmra.mxu0 %v3833
      %v3916 = vpop.f32.mrf.mxu0
      %v3917 = vadd.f32 0.0, %v3916
      %v3918 = vpop.f32.mrf.mxu0
      %v3919 = vadd.f32 0.0, %v3918
      %3920 = vmatmul.bf16.gmra.mxu0 %v3836
      %v3921 = vpop.f32.mrf.mxu0
      %v3922 = vadd.f32 0.0, %v3921
      %v3923 = vpop.f32.mrf.mxu0
      %v3924 = vadd.f32 0.0, %v3923
      %3925 = vmatmul.bf16.gmra.mxu0 %v3839
      %v3926 = vpop.f32.mrf.mxu0
      %v3927 = vadd.f32 0.0, %v3926
      %v3928 = vpop.f32.mrf.mxu0
      %v3929 = vadd.f32 0.0, %v3928
      %3930 = vmatmul.bf16.gmra.mxu0 %v3842
      %v3931 = vpop.f32.mrf.mxu0
      %v3932 = vadd.f32 0.0, %v3931
      %v3933 = vpop.f32.mrf.mxu0
      %v3934 = vadd.f32 0.0, %v3933
      %3935 = vdwg.mxu0
      %v3936 = vadd.f32 %v3622, %v3857
      %v3937 = vadd.f32 %v3623, %v3859
      %v3938 = vadd.f32 %v3624, %v3862
      %v3939 = vadd.f32 %v3625, %v3864
      %v3940 = vadd.f32 %v3626, %v3867
      %v3941 = vadd.f32 %v3627, %v3869
      %v3942 = vadd.f32 %v3628, %v3872
      %v3943 = vadd.f32 %v3629, %v3874
      %v3944 = vadd.f32 %v3630, %v3877
      %v3945 = vadd.f32 %v3631, %v3879
      %v3946 = vadd.f32 %v3632, %v3882
      %v3947 = vadd.f32 %v3633, %v3884
      %v3948 = vadd.f32 %v3634, %v3887
      %v3949 = vadd.f32 %v3635, %v3889
      %v3950 = vadd.f32 %v3636, %v3892
      %v3951 = vadd.f32 %v3637, %v3894
      %v3952 = vadd.f32 %v3638, %v3897
      %v3953 = vadd.f32 %v3639, %v3899
      %v3954 = vadd.f32 %v3640, %v3902
      %v3955 = vadd.f32 %v3641, %v3904
      %v3956 = vadd.f32 %v3642, %v3907
      %v3957 = vadd.f32 %v3643, %v3909
      %v3958 = vadd.f32 %v3644, %v3912
      %v3959 = vadd.f32 %v3645, %v3914
      %v3960 = vadd.f32 %v3646, %v3917
      %v3961 = vadd.f32 %v3647, %v3919
      %v3962 = vadd.f32 %v3648, %v3922
      %v3963 = vadd.f32 %v3649, %v3924
      %v3964 = vadd.f32 %v3650, %v3927
      %v3965 = vadd.f32 %v3651, %v3929
      %v3966 = vadd.f32 %v3652, %v3932
      %v3967 = vadd.f32 %v3653, %v3934
      %v3968 = vld [vmem:[%s3654] sm:$0xf]
      %v3969 = vld [vmem:[%s3654 + $0x4] sm:$0xf]
      %v3970 = vld [vmem:[%s3654 + $0x8] sm:$0x1]
      %v3971 = vld [vmem:[%s3654 + $0xc] sm:$0xf]
      %v3972 = vld [vmem:[%s3654 + $0x10] sm:$0xf]
      %v3973 = vld [vmem:[%s3654 + $0x14] sm:$0x1]
      %v3974 = vld [vmem:[%s3654 + $0x18] sm:$0xf]
      %v3975 = vld [vmem:[%s3654 + $0x1c] sm:$0xf]
      %v3976 = vld [vmem:[%s3654 + $0x20] sm:$0x1]
      %v3977 = vld [vmem:[%s3654 + $0x24] sm:$0xf]
      %v3978 = vld [vmem:[%s3654 + $0x28] sm:$0xf]
      %v3979 = vld [vmem:[%s3654 + $0x2c] sm:$0x1]
      %v3980 = vld [vmem:[%s3654 + $0x30] sm:$0xf]
      %v3981 = vld [vmem:[%s3654 + $0x34] sm:$0xf]
      %v3982 = vld [vmem:[%s3654 + $0x38] sm:$0x1]
      %v3983 = vld [vmem:[%s3654 + $0x3c] sm:$0xf]
      %v3984 = vld [vmem:[%s3654 + $0x40] sm:$0xf]
      %v3985 = vld [vmem:[%s3654 + $0x44] sm:$0x1]
      %v3986 = vld [vmem:[%s3654 + $0x48] sm:$0xf]
      %v3987 = vld [vmem:[%s3654 + $0x4c] sm:$0xf]
      %v3988 = vld [vmem:[%s3654 + $0x50] sm:$0x1]
      %v3989 = vld [vmem:[%s3654 + $0x54] sm:$0xf]
      %v3990 = vld [vmem:[%s3654 + $0x58] sm:$0xf]
      %v3991 = vld [vmem:[%s3654 + $0x5c] sm:$0x1]
      %v3992 = vld [vmem:[%s3654 + $0x60] sm:$0xf]
      %v3993 = vld [vmem:[%s3654 + $0x64] sm:$0xf]
      %v3994 = vld [vmem:[%s3654 + $0x68] sm:$0x1]
      %v3995 = vld [vmem:[%s3654 + $0x6c] sm:$0xf]
      %v3996 = vld [vmem:[%s3654 + $0x70] sm:$0xf]
      %v3997 = vld [vmem:[%s3654 + $0x74] sm:$0x1]
      %v3998 = vld [vmem:[%s3654 + $0x78] sm:$0xf]
      %v3999 = vld [vmem:[%s3654 + $0x7c] sm:$0xf]
      %v4000 = vld [vmem:[%s3654 + $0x80] sm:$0x1]
      %v4001 = vld [vmem:[%s3654 + $0x84] sm:$0xf]
      %v4002 = vld [vmem:[%s3654 + $0x88] sm:$0xf]
      %v4003 = vld [vmem:[%s3654 + $0x8c] sm:$0x1]
      %v4004 = vld [vmem:[%s3654 + $0x90] sm:$0xf]
      %v4005 = vld [vmem:[%s3654 + $0x94] sm:$0xf]
      %v4006 = vld [vmem:[%s3654 + $0x98] sm:$0x1]
      %v4007 = vld [vmem:[%s3654 + $0x9c] sm:$0xf]
      %v4008 = vld [vmem:[%s3654 + $0xa0] sm:$0xf]
      %v4009 = vld [vmem:[%s3654 + $0xa4] sm:$0x1]
      %v4010 = vld [vmem:[%s3654 + $0xa8] sm:$0xf]
      %v4011 = vld [vmem:[%s3654 + $0xac] sm:$0xf]
      %v4012 = vld [vmem:[%s3654 + $0xb0] sm:$0x1]
      %v4013 = vld [vmem:[%s3654 + $0xb4] sm:$0xf]
      %v4014 = vld [vmem:[%s3654 + $0xb8] sm:$0xf]
      %v4015 = vld [vmem:[%s3654 + $0xbc] sm:$0x1]
      %v4017 = vshrl.u32 %v3968, 16
      %v4019 = vrot.slane %v4017, 4
      %v4020 = vshll.u32 %v3968, 16
      %v4022 = vrot.slane %v4020, 5
      %v4023 = vor.u32 %v4019, %v4022
      %v4024 = vrot.slane %v4023, 4
      %v4026 = vshll.u32 %v3969, 16
      %v4028 = vrot.slane %v4026, 5
      %v4029 = vsel %vm978, %v4024, %v4028
      %v4030 = vshrl.u32 %v3969, 16
      %v4032 = vrot.slane %v4030, 4
      %v4033 = vor.u32 %v4032, %v4028
      %v4034 = vrot.slane %v4033, 4
      %v4036 = vshll.u32 %v3970, 16
      %v4038 = vrot.slane %v4036, 5
      %v4039 = vsel %vm978, %v4034, %v4038
      %v4041 = vshrl.u32 %v3971, 16
      %v4043 = vrot.slane %v4041, 4
      %v4044 = vshll.u32 %v3971, 16
      %v4046 = vrot.slane %v4044, 5
      %v4047 = vor.u32 %v4043, %v4046
      %v4048 = vrot.slane %v4047, 4
      %v4050 = vshll.u32 %v3972, 16
      %v4052 = vrot.slane %v4050, 5
      %v4053 = vsel %vm978, %v4048, %v4052
      %v4054 = vshrl.u32 %v3972, 16
      %v4056 = vrot.slane %v4054, 4
      %v4057 = vor.u32 %v4056, %v4052
      %v4058 = vrot.slane %v4057, 4
      %v4060 = vshll.u32 %v3973, 16
      %v4062 = vrot.slane %v4060, 5
      %v4063 = vsel %vm978, %v4058, %v4062
      %v4065 = vshrl.u32 %v3974, 16
      %v4067 = vrot.slane %v4065, 4
      %v4068 = vshll.u32 %v3974, 16
      %v4070 = vrot.slane %v4068, 5
      %v4071 = vor.u32 %v4067, %v4070
      %v4072 = vrot.slane %v4071, 4
      %v4074 = vshll.u32 %v3975, 16
      %v4076 = vrot.slane %v4074, 5
      %v4077 = vsel %vm978, %v4072, %v4076
      %v4078 = vshrl.u32 %v3975, 16
      %v4080 = vrot.slane %v4078, 4
      %v4081 = vor.u32 %v4080, %v4076
      %v4082 = vrot.slane %v4081, 4
      %v4084 = vshll.u32 %v3976, 16
      %v4086 = vrot.slane %v4084, 5
      %v4087 = vsel %vm978, %v4082, %v4086
      %v4089 = vshrl.u32 %v3977, 16
      %v4091 = vrot.slane %v4089, 4
      %v4092 = vshll.u32 %v3977, 16
      %v4094 = vrot.slane %v4092, 5
      %v4095 = vor.u32 %v4091, %v4094
      %v4096 = vrot.slane %v4095, 4
      %v4098 = vshll.u32 %v3978, 16
      %v4100 = vrot.slane %v4098, 5
      %v4101 = vsel %vm978, %v4096, %v4100
      %v4102 = vshrl.u32 %v3978, 16
      %v4104 = vrot.slane %v4102, 4
      %v4105 = vor.u32 %v4104, %v4100
      %v4106 = vrot.slane %v4105, 4
      %v4108 = vshll.u32 %v3979, 16
      %v4110 = vrot.slane %v4108, 5
      %v4111 = vsel %vm978, %v4106, %v4110
      %v4113 = vshrl.u32 %v3980, 16
      %v4115 = vrot.slane %v4113, 4
      %v4116 = vshll.u32 %v3980, 16
      %v4118 = vrot.slane %v4116, 5
      %v4119 = vor.u32 %v4115, %v4118
      %v4120 = vrot.slane %v4119, 4
      %v4122 = vshll.u32 %v3981, 16
      %v4124 = vrot.slane %v4122, 5
      %v4125 = vsel %vm978, %v4120, %v4124
      %v4126 = vshrl.u32 %v3981, 16
      %v4128 = vrot.slane %v4126, 4
      %v4129 = vor.u32 %v4128, %v4124
      %v4130 = vrot.slane %v4129, 4
      %v4132 = vshll.u32 %v3982, 16
      %v4134 = vrot.slane %v4132, 5
      %v4135 = vsel %vm978, %v4130, %v4134
      %v4137 = vshrl.u32 %v3983, 16
      %v4139 = vrot.slane %v4137, 4
      %v4140 = vshll.u32 %v3983, 16
      %v4142 = vrot.slane %v4140, 5
      %v4143 = vor.u32 %v4139, %v4142
      %v4144 = vrot.slane %v4143, 4
      %v4146 = vshll.u32 %v3984, 16
      %v4148 = vrot.slane %v4146, 5
      %v4149 = vsel %vm978, %v4144, %v4148
      %v4150 = vshrl.u32 %v3984, 16
      %v4152 = vrot.slane %v4150, 4
      %v4153 = vor.u32 %v4152, %v4148
      %v4154 = vrot.slane %v4153, 4
      %v4156 = vshll.u32 %v3985, 16
      %v4158 = vrot.slane %v4156, 5
      %v4159 = vsel %vm978, %v4154, %v4158
      %v4161 = vshrl.u32 %v3986, 16
      %v4163 = vrot.slane %v4161, 4
      %v4164 = vshll.u32 %v3986, 16
      %v4166 = vrot.slane %v4164, 5
      %v4167 = vor.u32 %v4163, %v4166
      %v4168 = vrot.slane %v4167, 4
      %v4170 = vshll.u32 %v3987, 16
      %v4172 = vrot.slane %v4170, 5
      %v4173 = vsel %vm978, %v4168, %v4172
      %v4174 = vshrl.u32 %v3987, 16
      %v4176 = vrot.slane %v4174, 4
      %v4177 = vor.u32 %v4176, %v4172
      %v4178 = vrot.slane %v4177, 4
      %v4180 = vshll.u32 %v3988, 16
      %v4182 = vrot.slane %v4180, 5
      %v4183 = vsel %vm978, %v4178, %v4182
      %v4185 = vshrl.u32 %v3989, 16
      %v4187 = vrot.slane %v4185, 4
      %v4188 = vshll.u32 %v3989, 16
      %v4190 = vrot.slane %v4188, 5
      %v4191 = vor.u32 %v4187, %v4190
      %v4192 = vrot.slane %v4191, 4
      %v4194 = vshll.u32 %v3990, 16
      %v4196 = vrot.slane %v4194, 5
      %v4197 = vsel %vm978, %v4192, %v4196
      %v4198 = vshrl.u32 %v3990, 16
      %v4200 = vrot.slane %v4198, 4
      %v4201 = vor.u32 %v4200, %v4196
      %v4202 = vrot.slane %v4201, 4
      %v4204 = vshll.u32 %v3991, 16
      %v4206 = vrot.slane %v4204, 5
      %v4207 = vsel %vm978, %v4202, %v4206
      %v4209 = vshrl.u32 %v3992, 16
      %v4211 = vrot.slane %v4209, 4
      %v4212 = vshll.u32 %v3992, 16
      %v4214 = vrot.slane %v4212, 5
      %v4215 = vor.u32 %v4211, %v4214
      %v4216 = vrot.slane %v4215, 4
      %v4218 = vshll.u32 %v3993, 16
      %v4220 = vrot.slane %v4218, 5
      %v4221 = vsel %vm978, %v4216, %v4220
      %v4222 = vshrl.u32 %v3993, 16
      %v4224 = vrot.slane %v4222, 4
      %v4225 = vor.u32 %v4224, %v4220
      %v4226 = vrot.slane %v4225, 4
      %v4228 = vshll.u32 %v3994, 16
      %v4230 = vrot.slane %v4228, 5
      %v4231 = vsel %vm978, %v4226, %v4230
      %v4233 = vshrl.u32 %v3995, 16
      %v4235 = vrot.slane %v4233, 4
      %v4236 = vshll.u32 %v3995, 16
      %v4238 = vrot.slane %v4236, 5
      %v4239 = vor.u32 %v4235, %v4238
      %v4240 = vrot.slane %v4239, 4
      %v4242 = vshll.u32 %v3996, 16
      %v4244 = vrot.slane %v4242, 5
      %v4245 = vsel %vm978, %v4240, %v4244
      %v4246 = vshrl.u32 %v3996, 16
      %v4248 = vrot.slane %v4246, 4
      %v4249 = vor.u32 %v4248, %v4244
      %v4250 = vrot.slane %v4249, 4
      %v4252 = vshll.u32 %v3997, 16
      %v4254 = vrot.slane %v4252, 5
      %v4255 = vsel %vm978, %v4250, %v4254
      %v4257 = vshrl.u32 %v3998, 16
      %v4259 = vrot.slane %v4257, 4
      %v4260 = vshll.u32 %v3998, 16
      %v4262 = vrot.slane %v4260, 5
      %v4263 = vor.u32 %v4259, %v4262
      %v4264 = vrot.slane %v4263, 4
      %v4266 = vshll.u32 %v3999, 16
      %v4268 = vrot.slane %v4266, 5
      %v4269 = vsel %vm978, %v4264, %v4268
      %v4270 = vshrl.u32 %v3999, 16
      %v4272 = vrot.slane %v4270, 4
      %v4273 = vor.u32 %v4272, %v4268
      %v4274 = vrot.slane %v4273, 4
      %v4276 = vshll.u32 %v4000, 16
      %v4278 = vrot.slane %v4276, 5
      %v4279 = vsel %vm978, %v4274, %v4278
      %v4281 = vshrl.u32 %v4001, 16
      %v4283 = vrot.slane %v4281, 4
      %v4284 = vshll.u32 %v4001, 16
      %v4286 = vrot.slane %v4284, 5
      %v4287 = vor.u32 %v4283, %v4286
      %v4288 = vrot.slane %v4287, 4
      %v4290 = vshll.u32 %v4002, 16
      %v4292 = vrot.slane %v4290, 5
      %v4293 = vsel %vm978, %v4288, %v4292
      %v4294 = vshrl.u32 %v4002, 16
      %v4296 = vrot.slane %v4294, 4
      %v4297 = vor.u32 %v4296, %v4292
      %v4298 = vrot.slane %v4297, 4
      %v4300 = vshll.u32 %v4003, 16
      %v4302 = vrot.slane %v4300, 5
      %v4303 = vsel %vm978, %v4298, %v4302
      %v4305 = vshrl.u32 %v4004, 16
      %v4307 = vrot.slane %v4305, 4
      %v4308 = vshll.u32 %v4004, 16
      %v4310 = vrot.slane %v4308, 5
      %v4311 = vor.u32 %v4307, %v4310
      %v4312 = vrot.slane %v4311, 4
      %v4314 = vshll.u32 %v4005, 16
      %v4316 = vrot.slane %v4314, 5
      %v4317 = vsel %vm978, %v4312, %v4316
      %v4318 = vshrl.u32 %v4005, 16
      %v4320 = vrot.slane %v4318, 4
      %v4321 = vor.u32 %v4320, %v4316
      %v4322 = vrot.slane %v4321, 4
      %v4324 = vshll.u32 %v4006, 16
      %v4326 = vrot.slane %v4324, 5
      %v4327 = vsel %vm978, %v4322, %v4326
      %v4329 = vshrl.u32 %v4007, 16
      %v4331 = vrot.slane %v4329, 4
      %v4332 = vshll.u32 %v4007, 16
      %v4334 = vrot.slane %v4332, 5
      %v4335 = vor.u32 %v4331, %v4334
      %v4336 = vrot.slane %v4335, 4
      %v4338 = vshll.u32 %v4008, 16
      %v4340 = vrot.slane %v4338, 5
      %v4341 = vsel %vm978, %v4336, %v4340
      %v4342 = vshrl.u32 %v4008, 16
      %v4344 = vrot.slane %v4342, 4
      %v4345 = vor.u32 %v4344, %v4340
      %v4346 = vrot.slane %v4345, 4
      %v4348 = vshll.u32 %v4009, 16
      %v4350 = vrot.slane %v4348, 5
      %v4351 = vsel %vm978, %v4346, %v4350
      %v4353 = vshrl.u32 %v4010, 16
      %v4355 = vrot.slane %v4353, 4
      %v4356 = vshll.u32 %v4010, 16
      %v4358 = vrot.slane %v4356, 5
      %v4359 = vor.u32 %v4355, %v4358
      %v4360 = vrot.slane %v4359, 4
      %v4362 = vshll.u32 %v4011, 16
      %v4364 = vrot.slane %v4362, 5
      %v4365 = vsel %vm978, %v4360, %v4364
      %v4366 = vshrl.u32 %v4011, 16
      %v4368 = vrot.slane %v4366, 4
      %v4369 = vor.u32 %v4368, %v4364
      %v4370 = vrot.slane %v4369, 4
      %v4372 = vshll.u32 %v4012, 16
      %v4374 = vrot.slane %v4372, 5
      %v4375 = vsel %vm978, %v4370, %v4374
      %v4377 = vshrl.u32 %v4013, 16
      %v4379 = vrot.slane %v4377, 4
      %v4380 = vshll.u32 %v4013, 16
      %v4382 = vrot.slane %v4380, 5
      %v4383 = vor.u32 %v4379, %v4382
      %v4384 = vrot.slane %v4383, 4
      %v4386 = vshll.u32 %v4014, 16
      %v4388 = vrot.slane %v4386, 5
      %v4389 = vsel %vm978, %v4384, %v4388
      %v4390 = vshrl.u32 %v4014, 16
      %v4392 = vrot.slane %v4390, 4
      %v4393 = vor.u32 %v4392, %v4388
      %v4394 = vrot.slane %v4393, 4
      %v4396 = vshll.u32 %v4015, 16
      %v4398 = vrot.slane %v4396, 5
      %v4399 = vsel %vm978, %v4394, %v4398
      %s4400 = scalar_lea.vmem %s3, 196
      %v4401 = vld [vmem:[%s4400] sm:$0xf]
      %v4402 = vld [vmem:[%s4400 + $0x4] sm:$0xf]
      %v4403 = vld [vmem:[%s4400 + $0x8] sm:$0xf]
      %v4404 = vld [vmem:[%s4400 + $0xc] sm:$0xf]
      %v4405 = vld [vmem:[%s4400 + $0x10] sm:$0xf]
      %v4406 = vld [vmem:[%s4400 + $0x14] sm:$0xf]
      %v4407 = vld [vmem:[%s4400 + $0x18] sm:$0x7]
      %v4408 = vunpack.c.l.b16 %v4029
      %v4409 = vunpack.c.l.b16 %v4039
      %v4410 = vunpack.c.l.b16 %v4053
      %v4411 = vunpack.c.l.b16 %v4063
      %v4412 = vunpack.c.l.b16 %v4077
      %v4413 = vunpack.c.l.b16 %v4087
      %v4414 = vunpack.c.l.b16 %v4101
      %v4415 = vunpack.c.l.b16 %v4111
      %v4416 = vunpack.c.l.b16 %v4125
      %v4417 = vunpack.c.l.b16 %v4135
      %v4418 = vunpack.c.l.b16 %v4149
      %v4419 = vunpack.c.l.b16 %v4159
      %v4420 = vunpack.c.l.b16 %v4173
      %v4421 = vunpack.c.l.b16 %v4183
      %v4422 = vunpack.c.l.b16 %v4197
      %v4423 = vunpack.c.l.b16 %v4207
      %v4424 = vunpack.c.l.b16 %v4221
      %v4425 = vunpack.c.l.b16 %v4231
      %v4426 = vunpack.c.l.b16 %v4245
      %v4427 = vunpack.c.l.b16 %v4255
      %v4428 = vunpack.c.l.b16 %v4269
      %v4429 = vunpack.c.l.b16 %v4279
      %v4430 = vunpack.c.l.b16 %v4293
      %v4431 = vunpack.c.l.b16 %v4303
      %v4432 = vunpack.c.l.b16 %v4317
      %v4433 = vunpack.c.l.b16 %v4327
      %v4434 = vunpack.c.l.b16 %v4341
      %v4435 = vunpack.c.l.b16 %v4351
      %v4436 = vunpack.c.l.b16 %v4365
      %v4437 = vunpack.c.l.b16 %v4375
      %v4438 = vunpack.c.l.b16 %v4389
      %v4439 = vunpack.c.l.b16 %v4399
      %v4440 = vpack.c.b16 %v4409, %v4408
      %v4441 = vpack.c.b16 %v4411, %v4410
      %v4442 = vpack.c.b16 %v4413, %v4412
      %v4443 = vpack.c.b16 %v4415, %v4414
      %v4444 = vpack.c.b16 %v4417, %v4416
      %v4445 = vpack.c.b16 %v4419, %v4418
      %v4446 = vpack.c.b16 %v4421, %v4420
      %v4447 = vpack.c.b16 %v4423, %v4422
      %v4448 = vpack.c.b16 %v4425, %v4424
      %v4449 = vpack.c.b16 %v4427, %v4426
      %v4450 = vpack.c.b16 %v4429, %v4428
      %v4451 = vpack.c.b16 %v4431, %v4430
      %v4452 = vpack.c.b16 %v4433, %v4432
      %v4453 = vpack.c.b16 %v4435, %v4434
      %v4454 = vpack.c.b16 %v4437, %v4436
      %v4455 = vpack.c.b16 %v4439, %v4438
      %v4463 = vunpack.c.l.b16 %v4401
      %v4464 = vunpack.c.l.b16 %v4402
      %v4465 = vunpack.c.l.b16 %v4403
      %v4466 = vunpack.c.l.b16 %v4404
      %v4467 = vunpack.c.l.b16 %v4405
      %v4468 = vunpack.c.l.b16 %v4406
      %v4469 = vunpack.c.l.b16 %v4407
      %v4470 = vpack.c.b16 %v4464, %v4463
      %v4471 = vpack.c.b16 %v4466, %v4465
      %v4472 = vpack.c.b16 %v4468, %v4467
      %v4473 = vpack.c.b16 %v4469, %v4469
      %v4478 = vsel %vm1440, %v4440, 0
      %v4481 = vsel %vm1440, %v4441, 0
      %v4484 = vsel %vm1440, %v4442, 0
      %v4487 = vsel %vm1440, %v4443, 0
      %v4490 = vsel %vm1440, %v4444, 0
      %v4493 = vsel %vm1440, %v4445, 0
      %v4496 = vsel %vm1440, %v4446, 0
      %v4499 = vsel %vm1440, %v4447, 0
      %v4502 = vsel %vm1440, %v4448, 0
      %v4505 = vsel %vm1440, %v4449, 0
      %v4508 = vsel %vm1440, %v4450, 0
      %v4511 = vsel %vm1440, %v4451, 0
      %v4514 = vsel %vm1440, %v4452, 0
      %v4517 = vsel %vm1440, %v4453, 0
      %v4520 = vsel %vm1440, %v4454, 0
      %v4523 = vsel %vm1440, %v4455, 0
      %v4526 = vsel %vm1489, %v4473, 0
      %4528 = vmatpush.bf16.msra.mxu0 0
      %4529 = vmatpush.bf16.msra.mxu0 0
      %4530 = vmatpush.bf16.msra.mxu0 0
      %4531 = vmatpush.bf16.msra.mxu0 0
      %4532 = vmatpush.bf16.msra.mxu0 %v4526
      %4533 = vmatpush.bf16.msra.mxu0 %v4472
      %4534 = vmatpush.bf16.msra.mxu0 %v4471
      %4535 = vmatpush.bf16.msra.mxu0 %v4470
      %4536 = vmatmul.bf16.gmra.mxu0 %v4478
      %v4537 = vpop.f32.mrf.mxu0
      %v4538 = vadd.f32 0.0, %v4537
      %v4539 = vpop.f32.mrf.mxu0
      %v4540 = vadd.f32 0.0, %v4539
      %4541 = vmatmul.bf16.gmra.mxu0 %v4481
      %v4542 = vpop.f32.mrf.mxu0
      %v4543 = vadd.f32 0.0, %v4542
      %v4544 = vpop.f32.mrf.mxu0
      %v4545 = vadd.f32 0.0, %v4544
      %4546 = vmatmul.bf16.gmra.mxu0 %v4484
      %v4547 = vpop.f32.mrf.mxu0
      %v4548 = vadd.f32 0.0, %v4547
      %v4549 = vpop.f32.mrf.mxu0
      %v4550 = vadd.f32 0.0, %v4549
      %4551 = vmatmul.bf16.gmra.mxu0 %v4487
      %v4552 = vpop.f32.mrf.mxu0
      %v4553 = vadd.f32 0.0, %v4552
      %v4554 = vpop.f32.mrf.mxu0
      %v4555 = vadd.f32 0.0, %v4554
      %4556 = vmatmul.bf16.gmra.mxu0 %v4490
      %v4557 = vpop.f32.mrf.mxu0
      %v4558 = vadd.f32 0.0, %v4557
      %v4559 = vpop.f32.mrf.mxu0
      %v4560 = vadd.f32 0.0, %v4559
      %4561 = vmatmul.bf16.gmra.mxu0 %v4493
      %v4562 = vpop.f32.mrf.mxu0
      %v4563 = vadd.f32 0.0, %v4562
      %v4564 = vpop.f32.mrf.mxu0
      %v4565 = vadd.f32 0.0, %v4564
      %4566 = vmatmul.bf16.gmra.mxu0 %v4496
      %v4567 = vpop.f32.mrf.mxu0
      %v4568 = vadd.f32 0.0, %v4567
      %v4569 = vpop.f32.mrf.mxu0
      %v4570 = vadd.f32 0.0, %v4569
      %4571 = vmatmul.bf16.gmra.mxu0 %v4499
      %v4572 = vpop.f32.mrf.mxu0
      %v4573 = vadd.f32 0.0, %v4572
      %v4574 = vpop.f32.mrf.mxu0
      %v4575 = vadd.f32 0.0, %v4574
      %4576 = vmatmul.bf16.gmra.mxu0 %v4502
      %v4577 = vpop.f32.mrf.mxu0
      %v4578 = vadd.f32 0.0, %v4577
      %v4579 = vpop.f32.mrf.mxu0
      %v4580 = vadd.f32 0.0, %v4579
      %4581 = vmatmul.bf16.gmra.mxu0 %v4505
      %v4582 = vpop.f32.mrf.mxu0
      %v4583 = vadd.f32 0.0, %v4582
      %v4584 = vpop.f32.mrf.mxu0
      %v4585 = vadd.f32 0.0, %v4584
      %4586 = vmatmul.bf16.gmra.mxu0 %v4508
      %v4587 = vpop.f32.mrf.mxu0
      %v4588 = vadd.f32 0.0, %v4587
      %v4589 = vpop.f32.mrf.mxu0
      %v4590 = vadd.f32 0.0, %v4589
      %4591 = vmatmul.bf16.gmra.mxu0 %v4511
      %v4592 = vpop.f32.mrf.mxu0
      %v4593 = vadd.f32 0.0, %v4592
      %v4594 = vpop.f32.mrf.mxu0
      %v4595 = vadd.f32 0.0, %v4594
      %4596 = vmatmul.bf16.gmra.mxu0 %v4514
      %v4597 = vpop.f32.mrf.mxu0
      %v4598 = vadd.f32 0.0, %v4597
      %v4599 = vpop.f32.mrf.mxu0
      %v4600 = vadd.f32 0.0, %v4599
      %4601 = vmatmul.bf16.gmra.mxu0 %v4517
      %v4602 = vpop.f32.mrf.mxu0
      %v4603 = vadd.f32 0.0, %v4602
      %v4604 = vpop.f32.mrf.mxu0
      %v4605 = vadd.f32 0.0, %v4604
      %4606 = vmatmul.bf16.gmra.mxu0 %v4520
      %v4607 = vpop.f32.mrf.mxu0
      %v4608 = vadd.f32 0.0, %v4607
      %v4609 = vpop.f32.mrf.mxu0
      %v4610 = vadd.f32 0.0, %v4609
      %4611 = vmatmul.bf16.gmra.mxu0 %v4523
      %v4612 = vpop.f32.mrf.mxu0
      %v4613 = vadd.f32 0.0, %v4612
      %v4614 = vpop.f32.mrf.mxu0
      %v4615 = vadd.f32 0.0, %v4614
      %4616 = vdwg.mxu0
      %v4617 = vadd.f32 %v3936, %v4538
      %v4618 = vadd.f32 %v3937, %v4540
      %v4619 = vadd.f32 %v3938, %v4543
      %v4620 = vadd.f32 %v3939, %v4545
      %v4621 = vadd.f32 %v3940, %v4548
      %v4622 = vadd.f32 %v3941, %v4550
      %v4623 = vadd.f32 %v3942, %v4553
      %v4624 = vadd.f32 %v3943, %v4555
      %v4625 = vadd.f32 %v3944, %v4558
      %v4626 = vadd.f32 %v3945, %v4560
      %v4627 = vadd.f32 %v3946, %v4563
      %v4628 = vadd.f32 %v3947, %v4565
      %v4629 = vadd.f32 %v3948, %v4568
      %v4630 = vadd.f32 %v3949, %v4570
      %v4631 = vadd.f32 %v3950, %v4573
      %v4632 = vadd.f32 %v3951, %v4575
      %v4633 = vadd.f32 %v3952, %v4578
      %v4634 = vadd.f32 %v3953, %v4580
      %v4635 = vadd.f32 %v3954, %v4583
      %v4636 = vadd.f32 %v3955, %v4585
      %v4637 = vadd.f32 %v3956, %v4588
      %v4638 = vadd.f32 %v3957, %v4590
      %v4639 = vadd.f32 %v3958, %v4593
      %v4640 = vadd.f32 %v3959, %v4595
      %v4641 = vadd.f32 %v3960, %v4598
      %v4642 = vadd.f32 %v3961, %v4600
      %v4643 = vadd.f32 %v3962, %v4603
      %v4644 = vadd.f32 %v3963, %v4605
      %v4645 = vadd.f32 %v3964, %v4608
      %v4646 = vadd.f32 %v3965, %v4610
      %v4647 = vadd.f32 %v3966, %v4613
      %v4648 = vadd.f32 %v3967, %v4615
      %v4649 = vld [vmem:[%s3654] sm:$0xe]
      %v4650 = vld [vmem:[%s3654 + $0xc] sm:$0xe]
      %v4651 = vld [vmem:[%s3654 + $0x18] sm:$0xe]
      %v4652 = vld [vmem:[%s3654 + $0x24] sm:$0xe]
      %v4653 = vld [vmem:[%s3654 + $0x30] sm:$0xe]
      %v4654 = vld [vmem:[%s3654 + $0x3c] sm:$0xe]
      %v4655 = vld [vmem:[%s3654 + $0x48] sm:$0xe]
      %v4656 = vld [vmem:[%s3654 + $0x54] sm:$0xe]
      %v4657 = vld [vmem:[%s3654 + $0x60] sm:$0xe]
      %v4658 = vld [vmem:[%s3654 + $0x6c] sm:$0xe]
      %v4659 = vld [vmem:[%s3654 + $0x78] sm:$0xe]
      %v4660 = vld [vmem:[%s3654 + $0x84] sm:$0xe]
      %v4661 = vld [vmem:[%s3654 + $0x90] sm:$0xe]
      %v4662 = vld [vmem:[%s3654 + $0x9c] sm:$0xe]
      %v4663 = vld [vmem:[%s3654 + $0xa8] sm:$0xe]
      %v4664 = vld [vmem:[%s3654 + $0xb4] sm:$0xe]
      %v4713 = vrot.slane %v4649, 5
      %v4714 = vrot.slane %v4713, 4
      %v4715 = vrot.slane %v3969, 5
      %v4716 = vsel %vm1873, %v4714, %v4715
      %v4717 = vrot.slane %v4715, 4
      %v4718 = vrot.slane %v3970, 5
      %v4719 = vsel %vm1873, %v4717, %v4718
      %v4720 = vrot.slane %v4650, 5
      %v4721 = vrot.slane %v4720, 4
      %v4722 = vrot.slane %v3972, 5
      %v4723 = vsel %vm1873, %v4721, %v4722
      %v4724 = vrot.slane %v4722, 4
      %v4725 = vrot.slane %v3973, 5
      %v4726 = vsel %vm1873, %v4724, %v4725
      %v4727 = vrot.slane %v4651, 5
      %v4728 = vrot.slane %v4727, 4
      %v4729 = vrot.slane %v3975, 5
      %v4730 = vsel %vm1873, %v4728, %v4729
      %v4731 = vrot.slane %v4729, 4
      %v4732 = vrot.slane %v3976, 5
      %v4733 = vsel %vm1873, %v4731, %v4732
      %v4734 = vrot.slane %v4652, 5
      %v4735 = vrot.slane %v4734, 4
      %v4736 = vrot.slane %v3978, 5
      %v4737 = vsel %vm1873, %v4735, %v4736
      %v4738 = vrot.slane %v4736, 4
      %v4739 = vrot.slane %v3979, 5
      %v4740 = vsel %vm1873, %v4738, %v4739
      %v4741 = vrot.slane %v4653, 5
      %v4742 = vrot.slane %v4741, 4
      %v4743 = vrot.slane %v3981, 5
      %v4744 = vsel %vm1873, %v4742, %v4743
      %v4745 = vrot.slane %v4743, 4
      %v4746 = vrot.slane %v3982, 5
      %v4747 = vsel %vm1873, %v4745, %v4746
      %v4748 = vrot.slane %v4654, 5
      %v4749 = vrot.slane %v4748, 4
      %v4750 = vrot.slane %v3984, 5
      %v4751 = vsel %vm1873, %v4749, %v4750
      %v4752 = vrot.slane %v4750, 4
      %v4753 = vrot.slane %v3985, 5
      %v4754 = vsel %vm1873, %v4752, %v4753
      %v4755 = vrot.slane %v4655, 5
      %v4756 = vrot.slane %v4755, 4
      %v4757 = vrot.slane %v3987, 5
      %v4758 = vsel %vm1873, %v4756, %v4757
      %v4759 = vrot.slane %v4757, 4
      %v4760 = vrot.slane %v3988, 5
      %v4761 = vsel %vm1873, %v4759, %v4760
      %v4762 = vrot.slane %v4656, 5
      %v4763 = vrot.slane %v4762, 4
      %v4764 = vrot.slane %v3990, 5
      %v4765 = vsel %vm1873, %v4763, %v4764
      %v4766 = vrot.slane %v4764, 4
      %v4767 = vrot.slane %v3991, 5
      %v4768 = vsel %vm1873, %v4766, %v4767
      %v4769 = vrot.slane %v4657, 5
      %v4770 = vrot.slane %v4769, 4
      %v4771 = vrot.slane %v3993, 5
      %v4772 = vsel %vm1873, %v4770, %v4771
      %v4773 = vrot.slane %v4771, 4
      %v4774 = vrot.slane %v3994, 5
      %v4775 = vsel %vm1873, %v4773, %v4774
      %v4776 = vrot.slane %v4658, 5
      %v4777 = vrot.slane %v4776, 4
      %v4778 = vrot.slane %v3996, 5
      %v4779 = vsel %vm1873, %v4777, %v4778
      %v4780 = vrot.slane %v4778, 4
      %v4781 = vrot.slane %v3997, 5
      %v4782 = vsel %vm1873, %v4780, %v4781
      %v4783 = vrot.slane %v4659, 5
      %v4784 = vrot.slane %v4783, 4
      %v4785 = vrot.slane %v3999, 5
      %v4786 = vsel %vm1873, %v4784, %v4785
      %v4787 = vrot.slane %v4785, 4
      %v4788 = vrot.slane %v4000, 5
      %v4789 = vsel %vm1873, %v4787, %v4788
      %v4790 = vrot.slane %v4660, 5
      %v4791 = vrot.slane %v4790, 4
      %v4792 = vrot.slane %v4002, 5
      %v4793 = vsel %vm1873, %v4791, %v4792
      %v4794 = vrot.slane %v4792, 4
      %v4795 = vrot.slane %v4003, 5
      %v4796 = vsel %vm1873, %v4794, %v4795
      %v4797 = vrot.slane %v4661, 5
      %v4798 = vrot.slane %v4797, 4
      %v4799 = vrot.slane %v4005, 5
      %v4800 = vsel %vm1873, %v4798, %v4799
      %v4801 = vrot.slane %v4799, 4
      %v4802 = vrot.slane %v4006, 5
      %v4803 = vsel %vm1873, %v4801, %v4802
      %v4804 = vrot.slane %v4662, 5
      %v4805 = vrot.slane %v4804, 4
      %v4806 = vrot.slane %v4008, 5
      %v4807 = vsel %vm1873, %v4805, %v4806
      %v4808 = vrot.slane %v4806, 4
      %v4809 = vrot.slane %v4009, 5
      %v4810 = vsel %vm1873, %v4808, %v4809
      %v4811 = vrot.slane %v4663, 5
      %v4812 = vrot.slane %v4811, 4
      %v4813 = vrot.slane %v4011, 5
      %v4814 = vsel %vm1873, %v4812, %v4813
      %v4815 = vrot.slane %v4813, 4
      %v4816 = vrot.slane %v4012, 5
      %v4817 = vsel %vm1873, %v4815, %v4816
      %v4818 = vrot.slane %v4664, 5
      %v4819 = vrot.slane %v4818, 4
      %v4820 = vrot.slane %v4014, 5
      %v4821 = vsel %vm1873, %v4819, %v4820
      %v4822 = vrot.slane %v4820, 4
      %v4823 = vrot.slane %v4015, 5
      %v4824 = vsel %vm1873, %v4822, %v4823
      %s4825 = scalar_lea.vmem %s3, 224
      %v4826 = vld [vmem:[%s4825] sm:$0xf]
      %v4827 = vld [vmem:[%s4825 + $0x4] sm:$0xf]
      %v4828 = vld [vmem:[%s4825 + $0x8] sm:$0xf]
      %v4829 = vld [vmem:[%s4825 + $0xc] sm:$0xf]
      %v4830 = vld [vmem:[%s4825 + $0x10] sm:$0xf]
      %v4831 = vld [vmem:[%s4825 + $0x14] sm:$0xf]
      %v4832 = vld [vmem:[%s4825 + $0x18] sm:$0x7]
      %v4833 = vunpack.c.l.b16 %v4716
      %v4834 = vunpack.c.l.b16 %v4719
      %v4835 = vunpack.c.l.b16 %v4723
      %v4836 = vunpack.c.l.b16 %v4726
      %v4837 = vunpack.c.l.b16 %v4730
      %v4838 = vunpack.c.l.b16 %v4733
      %v4839 = vunpack.c.l.b16 %v4737
      %v4840 = vunpack.c.l.b16 %v4740
      %v4841 = vunpack.c.l.b16 %v4744
      %v4842 = vunpack.c.l.b16 %v4747
      %v4843 = vunpack.c.l.b16 %v4751
      %v4844 = vunpack.c.l.b16 %v4754
      %v4845 = vunpack.c.l.b16 %v4758
      %v4846 = vunpack.c.l.b16 %v4761
      %v4847 = vunpack.c.l.b16 %v4765
      %v4848 = vunpack.c.l.b16 %v4768
      %v4849 = vunpack.c.l.b16 %v4772
      %v4850 = vunpack.c.l.b16 %v4775
      %v4851 = vunpack.c.l.b16 %v4779
      %v4852 = vunpack.c.l.b16 %v4782
      %v4853 = vunpack.c.l.b16 %v4786
      %v4854 = vunpack.c.l.b16 %v4789
      %v4855 = vunpack.c.l.b16 %v4793
      %v4856 = vunpack.c.l.b16 %v4796
      %v4857 = vunpack.c.l.b16 %v4800
      %v4858 = vunpack.c.l.b16 %v4803
      %v4859 = vunpack.c.l.b16 %v4807
      %v4860 = vunpack.c.l.b16 %v4810
      %v4861 = vunpack.c.l.b16 %v4814
      %v4862 = vunpack.c.l.b16 %v4817
      %v4863 = vunpack.c.l.b16 %v4821
      %v4864 = vunpack.c.l.b16 %v4824
      %v4865 = vpack.c.b16 %v4834, %v4833
      %v4866 = vpack.c.b16 %v4836, %v4835
      %v4867 = vpack.c.b16 %v4838, %v4837
      %v4868 = vpack.c.b16 %v4840, %v4839
      %v4869 = vpack.c.b16 %v4842, %v4841
      %v4870 = vpack.c.b16 %v4844, %v4843
      %v4871 = vpack.c.b16 %v4846, %v4845
      %v4872 = vpack.c.b16 %v4848, %v4847
      %v4873 = vpack.c.b16 %v4850, %v4849
      %v4874 = vpack.c.b16 %v4852, %v4851
      %v4875 = vpack.c.b16 %v4854, %v4853
      %v4876 = vpack.c.b16 %v4856, %v4855
      %v4877 = vpack.c.b16 %v4858, %v4857
      %v4878 = vpack.c.b16 %v4860, %v4859
      %v4879 = vpack.c.b16 %v4862, %v4861
      %v4880 = vpack.c.b16 %v4864, %v4863
      %v4888 = vunpack.c.l.b16 %v4826
      %v4889 = vunpack.c.l.b16 %v4827
      %v4890 = vunpack.c.l.b16 %v4828
      %v4891 = vunpack.c.l.b16 %v4829
      %v4892 = vunpack.c.l.b16 %v4830
      %v4893 = vunpack.c.l.b16 %v4831
      %v4894 = vunpack.c.l.b16 %v4832
      %v4895 = vpack.c.b16 %v4889, %v4888
      %v4896 = vpack.c.b16 %v4891, %v4890
      %v4897 = vpack.c.b16 %v4893, %v4892
      %v4898 = vpack.c.b16 %v4894, %v4894
      %v4903 = vsel %vm1440, %v4865, 0
      %v4906 = vsel %vm1440, %v4866, 0
      %v4909 = vsel %vm1440, %v4867, 0
      %v4912 = vsel %vm1440, %v4868, 0
      %v4915 = vsel %vm1440, %v4869, 0
      %v4918 = vsel %vm1440, %v4870, 0
      %v4921 = vsel %vm1440, %v4871, 0
      %v4924 = vsel %vm1440, %v4872, 0
      %v4927 = vsel %vm1440, %v4873, 0
      %v4930 = vsel %vm1440, %v4874, 0
      %v4933 = vsel %vm1440, %v4875, 0
      %v4936 = vsel %vm1440, %v4876, 0
      %v4939 = vsel %vm1440, %v4877, 0
      %v4942 = vsel %vm1440, %v4878, 0
      %v4945 = vsel %vm1440, %v4879, 0
      %v4948 = vsel %vm1440, %v4880, 0
      %v4951 = vsel %vm1489, %v4898, 0
      %4953 = vmatpush.bf16.msra.mxu0 0
      %4954 = vmatpush.bf16.msra.mxu0 0
      %4955 = vmatpush.bf16.msra.mxu0 0
      %4956 = vmatpush.bf16.msra.mxu0 0
      %4957 = vmatpush.bf16.msra.mxu0 %v4951
      %4958 = vmatpush.bf16.msra.mxu0 %v4897
      %4959 = vmatpush.bf16.msra.mxu0 %v4896
      %4960 = vmatpush.bf16.msra.mxu0 %v4895
      %4961 = vmatmul.bf16.gmra.mxu0 %v4903
      %v4962 = vpop.f32.mrf.mxu0
      %v4963 = vadd.f32 0.0, %v4962
      %v4964 = vpop.f32.mrf.mxu0
      %v4965 = vadd.f32 0.0, %v4964
      %4966 = vmatmul.bf16.gmra.mxu0 %v4906
      %v4967 = vpop.f32.mrf.mxu0
      %v4968 = vadd.f32 0.0, %v4967
      %v4969 = vpop.f32.mrf.mxu0
      %v4970 = vadd.f32 0.0, %v4969
      %4971 = vmatmul.bf16.gmra.mxu0 %v4909
      %v4972 = vpop.f32.mrf.mxu0
      %v4973 = vadd.f32 0.0, %v4972
      %v4974 = vpop.f32.mrf.mxu0
      %v4975 = vadd.f32 0.0, %v4974
      %4976 = vmatmul.bf16.gmra.mxu0 %v4912
      %v4977 = vpop.f32.mrf.mxu0
      %v4978 = vadd.f32 0.0, %v4977
      %v4979 = vpop.f32.mrf.mxu0
      %v4980 = vadd.f32 0.0, %v4979
      %4981 = vmatmul.bf16.gmra.mxu0 %v4915
      %v4982 = vpop.f32.mrf.mxu0
      %v4983 = vadd.f32 0.0, %v4982
      %v4984 = vpop.f32.mrf.mxu0
      %v4985 = vadd.f32 0.0, %v4984
      %4986 = vmatmul.bf16.gmra.mxu0 %v4918
      %v4987 = vpop.f32.mrf.mxu0
      %v4988 = vadd.f32 0.0, %v4987
      %v4989 = vpop.f32.mrf.mxu0
      %v4990 = vadd.f32 0.0, %v4989
      %4991 = vmatmul.bf16.gmra.mxu0 %v4921
      %v4992 = vpop.f32.mrf.mxu0
      %v4993 = vadd.f32 0.0, %v4992
      %v4994 = vpop.f32.mrf.mxu0
      %v4995 = vadd.f32 0.0, %v4994
      %4996 = vmatmul.bf16.gmra.mxu0 %v4924
      %v4997 = vpop.f32.mrf.mxu0
      %v4998 = vadd.f32 0.0, %v4997
      %v4999 = vpop.f32.mrf.mxu0
      %v5000 = vadd.f32 0.0, %v4999
      %5001 = vmatmul.bf16.gmra.mxu0 %v4927
      %v5002 = vpop.f32.mrf.mxu0
      %v5003 = vadd.f32 0.0, %v5002
      %v5004 = vpop.f32.mrf.mxu0
      %v5005 = vadd.f32 0.0, %v5004
      %5006 = vmatmul.bf16.gmra.mxu0 %v4930
      %v5007 = vpop.f32.mrf.mxu0
      %v5008 = vadd.f32 0.0, %v5007
      %v5009 = vpop.f32.mrf.mxu0
      %v5010 = vadd.f32 0.0, %v5009
      %5011 = vmatmul.bf16.gmra.mxu0 %v4933
      %v5012 = vpop.f32.mrf.mxu0
      %v5013 = vadd.f32 0.0, %v5012
      %v5014 = vpop.f32.mrf.mxu0
      %v5015 = vadd.f32 0.0, %v5014
      %5016 = vmatmul.bf16.gmra.mxu0 %v4936
      %v5017 = vpop.f32.mrf.mxu0
      %v5018 = vadd.f32 0.0, %v5017
      %v5019 = vpop.f32.mrf.mxu0
      %v5020 = vadd.f32 0.0, %v5019
      %5021 = vmatmul.bf16.gmra.mxu0 %v4939
      %v5022 = vpop.f32.mrf.mxu0
      %v5023 = vadd.f32 0.0, %v5022
      %v5024 = vpop.f32.mrf.mxu0
      %v5025 = vadd.f32 0.0, %v5024
      %5026 = vmatmul.bf16.gmra.mxu0 %v4942
      %v5027 = vpop.f32.mrf.mxu0
      %v5028 = vadd.f32 0.0, %v5027
      %v5029 = vpop.f32.mrf.mxu0
      %v5030 = vadd.f32 0.0, %v5029
      %5031 = vmatmul.bf16.gmra.mxu0 %v4945
      %v5032 = vpop.f32.mrf.mxu0
      %v5033 = vadd.f32 0.0, %v5032
      %v5034 = vpop.f32.mrf.mxu0
      %v5035 = vadd.f32 0.0, %v5034
      %5036 = vmatmul.bf16.gmra.mxu0 %v4948
      %v5037 = vpop.f32.mrf.mxu0
      %v5038 = vadd.f32 0.0, %v5037
      %v5039 = vpop.f32.mrf.mxu0
      %v5040 = vadd.f32 0.0, %v5039
      %5041 = vdwg.mxu0
      %v5042 = vadd.f32 %v4617, %v4963
      %v5043 = vadd.f32 %v4618, %v4965
      %v5044 = vadd.f32 %v4619, %v4968
      %v5045 = vadd.f32 %v4620, %v4970
      %v5046 = vadd.f32 %v4621, %v4973
      %v5047 = vadd.f32 %v4622, %v4975
      %v5048 = vadd.f32 %v4623, %v4978
      %v5049 = vadd.f32 %v4624, %v4980
      %v5050 = vadd.f32 %v4625, %v4983
      %v5051 = vadd.f32 %v4626, %v4985
      %v5052 = vadd.f32 %v4627, %v4988
      %v5053 = vadd.f32 %v4628, %v4990
      %v5054 = vadd.f32 %v4629, %v4993
      %v5055 = vadd.f32 %v4630, %v4995
      %v5056 = vadd.f32 %v4631, %v4998
      %v5057 = vadd.f32 %v4632, %v5000
      %v5058 = vadd.f32 %v4633, %v5003
      %v5059 = vadd.f32 %v4634, %v5005
      %v5060 = vadd.f32 %v4635, %v5008
      %v5061 = vadd.f32 %v4636, %v5010
      %v5062 = vadd.f32 %v4637, %v5013
      %v5063 = vadd.f32 %v4638, %v5015
      %v5064 = vadd.f32 %v4639, %v5018
      %v5065 = vadd.f32 %v4640, %v5020
      %v5066 = vadd.f32 %v4641, %v5023
      %v5067 = vadd.f32 %v4642, %v5025
      %v5068 = vadd.f32 %v4643, %v5028
      %v5069 = vadd.f32 %v4644, %v5030
      %v5070 = vadd.f32 %v4645, %v5033
      %v5071 = vadd.f32 %v4646, %v5035
      %v5072 = vadd.f32 %v4647, %v5038
      %v5073 = vadd.f32 %v4648, %v5040
      %v5074 = vld [vmem:[%s4] sm:$0x1]
      %v5076 = vperm.slane %v5074, 0
      %v5078 = vadd.f32 %v5042, %v5076
      %v5079 = vadd.f32 %v5043, %v5076
      %v5080 = vadd.f32 %v5044, %v5076
      %v5081 = vadd.f32 %v5045, %v5076
      %v5082 = vadd.f32 %v5046, %v5076
      %v5083 = vadd.f32 %v5047, %v5076
      %v5084 = vadd.f32 %v5048, %v5076
      %v5085 = vadd.f32 %v5049, %v5076
      %v5086 = vadd.f32 %v5050, %v5076
      %v5087 = vadd.f32 %v5051, %v5076
      %v5088 = vadd.f32 %v5052, %v5076
      %v5089 = vadd.f32 %v5053, %v5076
      %v5090 = vadd.f32 %v5054, %v5076
      %v5091 = vadd.f32 %v5055, %v5076
      %v5092 = vadd.f32 %v5056, %v5076
      %v5093 = vadd.f32 %v5057, %v5076
      %v5094 = vadd.f32 %v5058, %v5076
      %v5095 = vadd.f32 %v5059, %v5076
      %v5096 = vadd.f32 %v5060, %v5076
      %v5097 = vadd.f32 %v5061, %v5076
      %v5098 = vadd.f32 %v5062, %v5076
      %v5099 = vadd.f32 %v5063, %v5076
      %v5100 = vadd.f32 %v5064, %v5076
      %v5101 = vadd.f32 %v5065, %v5076
      %v5102 = vadd.f32 %v5066, %v5076
      %v5103 = vadd.f32 %v5067, %v5076
      %v5104 = vadd.f32 %v5068, %v5076
      %v5105 = vadd.f32 %v5069, %v5076
      %v5106 = vadd.f32 %v5070, %v5076
      %v5107 = vadd.f32 %v5071, %v5076
      %v5108 = vadd.f32 %v5072, %v5076
      %v5109 = vadd.f32 %v5073, %v5076
      %v5110 = vmax.f32 %v5078, 0.0
      %v5111 = vmax.f32 %v5079, 0.0
      %v5112 = vmax.f32 %v5080, 0.0
      %v5113 = vmax.f32 %v5081, 0.0
      %v5114 = vmax.f32 %v5082, 0.0
      %v5115 = vmax.f32 %v5083, 0.0
      %v5116 = vmax.f32 %v5084, 0.0
      %v5117 = vmax.f32 %v5085, 0.0
      %v5118 = vmax.f32 %v5086, 0.0
      %v5119 = vmax.f32 %v5087, 0.0
      %v5120 = vmax.f32 %v5088, 0.0
      %v5121 = vmax.f32 %v5089, 0.0
      %v5122 = vmax.f32 %v5090, 0.0
      %v5123 = vmax.f32 %v5091, 0.0
      %v5124 = vmax.f32 %v5092, 0.0
      %v5125 = vmax.f32 %v5093, 0.0
      %v5126 = vmax.f32 %v5094, 0.0
      %v5127 = vmax.f32 %v5095, 0.0
      %v5128 = vmax.f32 %v5096, 0.0
      %v5129 = vmax.f32 %v5097, 0.0
      %v5130 = vmax.f32 %v5098, 0.0
      %v5131 = vmax.f32 %v5099, 0.0
      %v5132 = vmax.f32 %v5100, 0.0
      %v5133 = vmax.f32 %v5101, 0.0
      %v5134 = vmax.f32 %v5102, 0.0
      %v5135 = vmax.f32 %v5103, 0.0
      %v5136 = vmax.f32 %v5104, 0.0
      %v5137 = vmax.f32 %v5105, 0.0
      %v5138 = vmax.f32 %v5106, 0.0
      %v5139 = vmax.f32 %v5107, 0.0
      %v5140 = vmax.f32 %v5108, 0.0
      %v5141 = vmax.f32 %v5109, 0.0
      %vm5142 = vcmask 277504
      %5143 = vst.msk [vmem:[#allocation3] sm:$0xff] %vm5142, %v5110
      %5144 = vst.msk [vmem:[#allocation3 + $0x8] sm:$0xff] %vm5142, %v5111
      %5145 = vst.msk [vmem:[#allocation3 + $0x10] sm:$0xff] %vm5142, %v5112
      %5146 = vst.msk [vmem:[#allocation3 + $0x18] sm:$0xff] %vm5142, %v5113
      %5147 = vst.msk [vmem:[#allocation3 + $0x20] sm:$0xff] %vm5142, %v5114
      %5148 = vst.msk [vmem:[#allocation3 + $0x28] sm:$0xff] %vm5142, %v5115
      %5149 = vst.msk [vmem:[#allocation3 + $0x30] sm:$0xff] %vm5142, %v5116
      %5150 = vst.msk [vmem:[#allocation3 + $0x38] sm:$0xff] %vm5142, %v5117
      %5151 = vst.msk [vmem:[#allocation3 + $0x40] sm:$0xff] %vm5142, %v5118
      %5152 = vst.msk [vmem:[#allocation3 + $0x48] sm:$0xff] %vm5142, %v5119
      %5153 = vst.msk [vmem:[#allocation3 + $0x50] sm:$0xff] %vm5142, %v5120
      %5154 = vst.msk [vmem:[#allocation3 + $0x58] sm:$0xff] %vm5142, %v5121
      %5155 = vst.msk [vmem:[#allocation3 + $0x60] sm:$0xff] %vm5142, %v5122
      %5156 = vst.msk [vmem:[#allocation3 + $0x68] sm:$0xff] %vm5142, %v5123
      %5157 = vst.msk [vmem:[#allocation3 + $0x70] sm:$0xff] %vm5142, %v5124
      %5158 = vst.msk [vmem:[#allocation3 + $0x78] sm:$0xff] %vm5142, %v5125
      %5159 = vst.msk [vmem:[#allocation3 + $0x80] sm:$0xff] %vm5142, %v5126
      %5160 = vst.msk [vmem:[#allocation3 + $0x88] sm:$0xff] %vm5142, %v5127
      %5161 = vst.msk [vmem:[#allocation3 + $0x90] sm:$0xff] %vm5142, %v5128
      %5162 = vst.msk [vmem:[#allocation3 + $0x98] sm:$0xff] %vm5142, %v5129
      %5163 = vst.msk [vmem:[#allocation3 + $0xa0] sm:$0xff] %vm5142, %v5130
      %5164 = vst.msk [vmem:[#allocation3 + $0xa8] sm:$0xff] %vm5142, %v5131
      %5165 = vst.msk [vmem:[#allocation3 + $0xb0] sm:$0xff] %vm5142, %v5132
      %5166 = vst.msk [vmem:[#allocation3 + $0xb8] sm:$0xff] %vm5142, %v5133
      %5167 = vst.msk [vmem:[#allocation3 + $0xc0] sm:$0xff] %vm5142, %v5134
      %5168 = vst.msk [vmem:[#allocation3 + $0xc8] sm:$0xff] %vm5142, %v5135
      %5169 = vst.msk [vmem:[#allocation3 + $0xd0] sm:$0xff] %vm5142, %v5136
      %5170 = vst.msk [vmem:[#allocation3 + $0xd8] sm:$0xff] %vm5142, %v5137
      %5171 = vst.msk [vmem:[#allocation3 + $0xe0] sm:$0xff] %vm5142, %v5138
      %5172 = vst.msk [vmem:[#allocation3 + $0xe8] sm:$0xff] %vm5142, %v5139
      %5173 = vst.msk [vmem:[#allocation3 + $0xf0] sm:$0xff] %vm5142, %v5140
      %5174 = vst.msk [vmem:[#allocation3 + $0xf8] sm:$0xff] %vm5142, %v5141
      %v5175 = vld [vmem:[#allocation3] sm:$0xff]
      %v5176 = vld [vmem:[#allocation3 + $0x8] sm:$0xff]
      %v5177 = vld [vmem:[#allocation3 + $0x20] sm:$0xff]
      %v5178 = vld [vmem:[#allocation3 + $0x28] sm:$0xff]
      %v5179 = vld [vmem:[#allocation3 + $0x40] sm:$0xff]
      %v5180 = vld [vmem:[#allocation3 + $0x48] sm:$0xff]
      %v5181 = vld [vmem:[#allocation3 + $0x60] sm:$0xff]
      %v5182 = vld [vmem:[#allocation3 + $0x68] sm:$0xff]
      %v5183 = vld [vmem:[#allocation3 + $0x80] sm:$0xff]
      %v5184 = vld [vmem:[#allocation3 + $0x88] sm:$0xff]
      %v5185 = vld [vmem:[#allocation3 + $0xa0] sm:$0xff]
      %v5186 = vld [vmem:[#allocation3 + $0xa8] sm:$0xff]
      %v5187 = vld [vmem:[#allocation3 + $0xc0] sm:$0xff]
      %v5188 = vld [vmem:[#allocation3 + $0xc8] sm:$0xff]
      %v5189 = vld [vmem:[#allocation3 + $0xe0] sm:$0xff]
      %v5190 = vld [vmem:[#allocation3 + $0xe8] sm:$0xff]
      %s5191 = scalar_lea.vmem [#allocation3], 16
      %v5192 = vld [vmem:[%s5191] sm:$0xff]
      %v5193 = vld [vmem:[%s5191 + $0x8] sm:$0xff]
      %v5194 = vld [vmem:[%s5191 + $0x20] sm:$0xff]
      %v5195 = vld [vmem:[%s5191 + $0x28] sm:$0xff]
      %v5196 = vld [vmem:[%s5191 + $0x40] sm:$0xff]
      %v5197 = vld [vmem:[%s5191 + $0x48] sm:$0xff]
      %v5198 = vld [vmem:[%s5191 + $0x60] sm:$0xff]
      %v5199 = vld [vmem:[%s5191 + $0x68] sm:$0xff]
      %v5200 = vld [vmem:[%s5191 + $0x80] sm:$0xff]
      %v5201 = vld [vmem:[%s5191 + $0x88] sm:$0xff]
      %v5202 = vld [vmem:[%s5191 + $0xa0] sm:$0xff]
      %v5203 = vld [vmem:[%s5191 + $0xa8] sm:$0xff]
      %v5204 = vld [vmem:[%s5191 + $0xc0] sm:$0xff]
      %v5205 = vld [vmem:[%s5191 + $0xc8] sm:$0xff]
      %v5206 = vld [vmem:[%s5191 + $0xe0] sm:$0xff]
      %v5207 = vld [vmem:[%s5191 + $0xe8] sm:$0xff]
      %v5208 = vmax.f32 %v5175, %v5192
      %v5209 = vmax.f32 %v5176, %v5193
      %v5210 = vmax.f32 %v5177, %v5194
      %v5211 = vmax.f32 %v5178, %v5195
      %v5212 = vmax.f32 %v5179, %v5196
      %v5213 = vmax.f32 %v5180, %v5197
      %v5214 = vmax.f32 %v5181, %v5198
      %v5215 = vmax.f32 %v5182, %v5199
      %v5216 = vmax.f32 %v5183, %v5200
      %v5217 = vmax.f32 %v5184, %v5201
      %v5218 = vmax.f32 %v5185, %v5202
      %v5219 = vmax.f32 %v5186, %v5203
      %v5220 = vmax.f32 %v5187, %v5204
      %v5221 = vmax.f32 %v5188, %v5205
      %v5222 = vmax.f32 %v5189, %v5206
      %v5223 = vmax.f32 %v5190, %v5207
      %5224 = vst.msk [vmem:[#allocation4] sm:$0xff] %vm5142, %v5208
      %5225 = vst.msk [vmem:[#allocation4 + $0x8] sm:$0xff] %vm5142, %v5209
      %5226 = vst.msk [vmem:[#allocation4 + $0x10] sm:$0xff] %vm5142, %v5210
      %5227 = vst.msk [vmem:[#allocation4 + $0x18] sm:$0xff] %vm5142, %v5211
      %5228 = vst.msk [vmem:[#allocation4 + $0x20] sm:$0xff] %vm5142, %v5212
      %5229 = vst.msk [vmem:[#allocation4 + $0x28] sm:$0xff] %vm5142, %v5213
      %5230 = vst.msk [vmem:[#allocation4 + $0x30] sm:$0xff] %vm5142, %v5214
      %5231 = vst.msk [vmem:[#allocation4 + $0x38] sm:$0xff] %vm5142, %v5215
      %5232 = vst.msk [vmem:[#allocation4 + $0x40] sm:$0xff] %vm5142, %v5216
      %5233 = vst.msk [vmem:[#allocation4 + $0x48] sm:$0xff] %vm5142, %v5217
      %5234 = vst.msk [vmem:[#allocation4 + $0x50] sm:$0xff] %vm5142, %v5218
      %5235 = vst.msk [vmem:[#allocation4 + $0x58] sm:$0xff] %vm5142, %v5219
      %5236 = vst.msk [vmem:[#allocation4 + $0x60] sm:$0xff] %vm5142, %v5220
      %5237 = vst.msk [vmem:[#allocation4 + $0x68] sm:$0xff] %vm5142, %v5221
      %5238 = vst.msk [vmem:[#allocation4 + $0x70] sm:$0xff] %vm5142, %v5222
      %5239 = vst.msk [vmem:[#allocation4 + $0x78] sm:$0xff] %vm5142, %v5223
      %v5240 = vld [vmem:[#allocation4] ss:$2 sm:$0xff]
      %s5241 = scalar_lea.vmem [#allocation4], 16
      %v5242 = vld [vmem:[%s5241] ss:$2 sm:$0xff]
      %s5243 = scalar_lea.vmem [#allocation4], 32
      %v5244 = vld [vmem:[%s5243] ss:$2 sm:$0xff]
      %s5245 = scalar_lea.vmem [#allocation4], 48
      %v5246 = vld [vmem:[%s5245] ss:$2 sm:$0xff]
      %s5247 = scalar_lea.vmem [#allocation4], 64
      %v5248 = vld [vmem:[%s5247] ss:$2 sm:$0xff]
      %s5249 = scalar_lea.vmem [#allocation4], 80
      %v5250 = vld [vmem:[%s5249] ss:$2 sm:$0xff]
      %s5251 = scalar_lea.vmem [#allocation4], 96
      %v5252 = vld [vmem:[%s5251] ss:$2 sm:$0xff]
      %s5253 = scalar_lea.vmem [#allocation4], 112
      %v5254 = vld [vmem:[%s5253] ss:$2 sm:$0xff]
      %s5255 = scalar_lea.vmem [#allocation4], 1
      %v5256 = vld [vmem:[%s5255] ss:$2 sm:$0xff]
      %s5257 = scalar_lea.vmem [#allocation4], 17
      %v5258 = vld [vmem:[%s5257] ss:$2 sm:$0xff]
      %s5259 = scalar_lea.vmem [#allocation4], 33
      %v5260 = vld [vmem:[%s5259] ss:$2 sm:$0xff]
      %s5261 = scalar_lea.vmem [#allocation4], 49
      %v5262 = vld [vmem:[%s5261] ss:$2 sm:$0xff]
      %s5263 = scalar_lea.vmem [#allocation4], 65
      %v5264 = vld [vmem:[%s5263] ss:$2 sm:$0xff]
      %s5265 = scalar_lea.vmem [#allocation4], 81
      %v5266 = vld [vmem:[%s5265] ss:$2 sm:$0xff]
      %s5267 = scalar_lea.vmem [#allocation4], 97
      %v5268 = vld [vmem:[%s5267] ss:$2 sm:$0xff]
      %s5269 = scalar_lea.vmem [#allocation4], 113
      %v5270 = vld [vmem:[%s5269] ss:$2 sm:$0xff]
      %v5271 = vmax.f32 %v5240, %v5256
      %v5272 = vmax.f32 %v5242, %v5258
      %v5273 = vmax.f32 %v5244, %v5260
      %v5274 = vmax.f32 %v5246, %v5262
      %v5275 = vmax.f32 %v5248, %v5264
      %v5276 = vmax.f32 %v5250, %v5266
      %v5277 = vmax.f32 %v5252, %v5268
      %v5278 = vmax.f32 %v5254, %v5270
      %5279 = vst.msk [vmem:[%s224] sm:$0xff] %vm5142, %v5271
      %5280 = vst.msk [vmem:[%s224 + $0x8] sm:$0xff] %vm5142, %v5272
      %5281 = vst.msk [vmem:[%s224 + $0x10] sm:$0xff] %vm5142, %v5273
      %5282 = vst.msk [vmem:[%s224 + $0x18] sm:$0xff] %vm5142, %v5274
      %5283 = vst.msk [vmem:[%s224 + $0x20] sm:$0xff] %vm5142, %v5275
      %5284 = vst.msk [vmem:[%s224 + $0x28] sm:$0xff] %vm5142, %v5276
      %5285 = vst.msk [vmem:[%s224 + $0x30] sm:$0xff] %vm5142, %v5277
      %5286 = vst.msk [vmem:[%s224 + $0x38] sm:$0xff] %vm5142, %v5278
      %p5287 = scmp.lt.s32.totalorder %s16, 1
      %s5288 = scalar_select %p5287, %s16, 1
      %s5289 = smul.addr %s5288, 8
      %s5290 = smul.addr %s5289, 8
      %s5291 = scalar_lea.vmem %s5, %s5290
      // Predicated region
      $region41: #{test_net_forward.5} parent=39 // pred_check
        %p5292 = pneg %p144
      $region42: #{test_net_forward.5} parent=39 // pred_check_branch
        %5294 = sbr.rel (%p5292) target = $region44
      $region43: #{test_net_forward.5} parent=39 // pred_region
        _
      $region44: #{test_net_forward.5} parent=39 // pred_fallthru
        _
    $region40: #{test_net_forward.5} parent=5 // pred_fallthru
      _
    %p5295 = scmp.le.s32.totalorder 2, %s11
    // Predicated region
    $region45: #{test_net_forward.5} parent=5 // pred_check
      %p5296 = pneg %p5295
    $region46: #{test_net_forward.5} parent=5 // pred_check_branch
      %5298 = sbr.rel (%p5296) target = $region48
    $region47: #{test_net_forward.5} parent=5 // pred_region
      %s5299 = ssub.s32 %s11, 2
      // Predicated region
      $region49: #{test_net_forward.5} parent=47 // pred_check
        %p5300 = pneg %p150
      $region50: #{test_net_forward.5} parent=47 // pred_check_branch
        %5302 = sbr.rel (%p5300) target = $region52
      $region51: #{test_net_forward.5} parent=47 // pred_region
        %p5303 = scmp.lt.s32.totalorder %s17, 1
        %s5304 = scalar_select %p5303, %s17, 1
        %s5305 = smul.addr %s5304, 8
        %s5306 = smul.addr %s5305, 8
        %s5307 = scalar_lea.vmem %s5, %s5306
      $region52: #{test_net_forward.5} parent=47 // pred_fallthru
        _
    $region48: #{test_net_forward.5} parent=5 // pred_fallthru
      _
  $region6: #{test_net_forward.5} parent=0 // loop_footer
    %s15 = sadd.s32 1, %s11
  $region7: #{test_net_forward.5} parent=0 // loop_footer_branch
    %10 = sbr.rel target = $region3
  $region8: #{test_net_forward.5} parent=0 // loop_exit
    _

</llo_original>
